<compile_context>
chip_gen: v7x
topology: tpu7x:2x2x1
jax: 0.10.0
libtpu: 0.0.40
codegen_flags: <defaults>
</compile_context>

<pallas_src>
import jax
import jax.numpy as jnp
import numpy as np
from jax import lax
from jax.experimental import pallas as pl
from jax.experimental.pallas import tpu as pltpu


# Padded layout constants (lane = 128, sublane = 8).
LANE = 128
SUBLANE = 8


# ---------------------------------------------------------------------------
# Fused Pallas kernel: all timesteps + all layers + classifier head
# ---------------------------------------------------------------------------
def _fused_lstm_kernel(x_ref, w_ref, b_ref, lw_ref, lb_ref, out_ref,
                       h_scr, c_scr):
    """x_ref:  (T, Bp, Ip)        padded time-major embeddings
       w_ref:  (L, Ip+Hp, 4*Hp)   per-layer concat([W_ih; W_hh]) weights
       b_ref:  (L, 1, 4*Hp)       per-layer combined gate bias
       lw_ref: (Hp, OUTp)         classifier weight (only column 0 is real)
       lb_ref: (1, OUTp)          classifier bias
       out_ref:(Bp, OUTp)         sigmoid(logit) broadcast-padded output
       h_scr, c_scr: (L, Bp, Hp)  recurrent state, VMEM resident
    """
    T = x_ref.shape[0]
    L = w_ref.shape[0]
    Hp = h_scr.shape[-1]

    h_scr[...] = jnp.zeros_like(h_scr)
    c_scr[...] = jnp.zeros_like(c_scr)

    def step(t, carry):
        x = x_ref[t]                                    # (Bp, Ip)
        for l in range(L):                              # static, small L
            h = h_scr[l]                                # (Bp, Hp)
            c = c_scr[l]                                # (Bp, Hp)
            xh = jnp.concatenate([x, h], axis=-1)       # (Bp, Ip+Hp)
            gates = (
                jnp.dot(xh, w_ref[l], preferred_element_type=jnp.float32)
                + b_ref[l]
            )                                           # (Bp, 4*Hp)
            # Lane-aligned 128-wide gate slabs (PyTorch order i, f, g, o).
            i_g = jax.nn.sigmoid(gates[:, 0 * Hp:1 * Hp])
            f_g = jax.nn.sigmoid(gates[:, 1 * Hp:2 * Hp])
            g_g = jnp.tanh(gates[:, 2 * Hp:3 * Hp])
            o_g = jax.nn.sigmoid(gates[:, 3 * Hp:4 * Hp])

            c_new = f_g * c + i_g * g_g
            h_new = o_g * jnp.tanh(c_new)
            c_scr[l] = c_new
            h_scr[l] = h_new
            x = h_new                                   # feed next layer
        return carry

    lax.fori_loop(0, T, step, 0, unroll=True)

    # Classifier head on the last timestep of the top layer (output[:, -1]).
    h_last = h_scr[L - 1]                               # (Bp, Hp)
    out_ref[...] = jax.nn.sigmoid(
        jnp.dot(h_last, lw_ref[...], preferred_element_type=jnp.float32)
        + lb_ref[...]
    )


# ---------------------------------------------------------------------------
# Parameter re-layout (padding + gate-block padding + W_ih/W_hh concat)
# ---------------------------------------------------------------------------
def _build_kernel_params(params):
    H = params["lstm_layers"][0]["w_hh_t"].shape[0]
    Hp = LANE
    Ip = LANE
    OUTp = LANE

    def relayout_gates(w, rows_to):
        # (rows, 4H) -> pad each gate block to Hp and rows to rows_to.
        rows = w.shape[0]
        w = w.reshape(rows, 4, H)
        w = jnp.pad(w, ((0, rows_to - rows), (0, 0), (0, Hp - H)))
        return w.reshape(rows_to, 4 * Hp)

    w_stack, b_stack = [], []
    for layer in params["lstm_layers"]:
        w_ih_p = relayout_gates(layer["w_ih_t"], Ip)        # (Ip, 4Hp)
        w_hh_p = relayout_gates(layer["w_hh_t"], Hp)        # (Hp, 4Hp)
        w_stack.append(jnp.concatenate([w_ih_p, w_hh_p], axis=0))
        b = layer["bias"].reshape(1, 4, H)
        b = jnp.pad(b, ((0, 0), (0, 0), (0, Hp - H))).reshape(1, 4 * Hp)
        b_stack.append(b)

    w_all = jnp.stack(w_stack, axis=0)                      # (L, Ip+Hp, 4Hp)
    b_all = jnp.stack(b_stack, axis=0)                      # (L, 1, 4Hp)
    lin_w = jnp.pad(params["lin_w_t"], ((0, Hp - H), (0, OUTp - 1)))
    lin_b = jnp.pad(params["lin_b"], ((0, 0), (0, OUTp - 1)))
    return w_all, b_all, lin_w, lin_b


# ---------------------------------------------------------------------------
# Model wrapper (embedding gather + padding glue in plain JAX)
# ---------------------------------------------------------------------------
def lstm4classify_forward(inputs, params):
    """inputs: (B, T) int32 token ids -> (B,) sigmoid probabilities."""
    B, T = inputs.shape
    D = params["embedding"].shape[1]
    Bp = max(SUBLANE, ((B + SUBLANE - 1) // SUBLANE) * SUBLANE)
    Ip = Hp = OUTp = LANE

    emb = jnp.take(params["embedding"], inputs, axis=0)          # (B, T, D)
    # dropout(rate) is identity at inference time
    x_seq = jnp.transpose(emb, (1, 0, 2)).astype(jnp.float32)    # (T, B, D)
    x_pad = jnp.pad(x_seq, ((0, 0), (0, Bp - B), (0, Ip - D)))   # (T, Bp, Ip)

    w_all, b_all, lin_w, lin_b = _build_kernel_params(params)
    L = w_all.shape[0]

    out_p = pl.pallas_call(
        _fused_lstm_kernel,
        out_shape=jax.ShapeDtypeStruct((Bp, OUTp), jnp.float32),
        grid_spec=pltpu.PrefetchScalarGridSpec(
            num_scalar_prefetch=0,
            grid=(1,),
            in_specs=[
                pl.BlockSpec((T, Bp, Ip), lambda i: (0, 0, 0)),
                pl.BlockSpec((L, Ip + Hp, 4 * Hp), lambda i: (0, 0, 0)),
                pl.BlockSpec((L, 1, 4 * Hp), lambda i: (0, 0, 0)),
                pl.BlockSpec((Hp, OUTp), lambda i: (0, 0)),
                pl.BlockSpec((1, OUTp), lambda i: (0, 0)),
            ],
            out_specs=pl.BlockSpec((Bp, OUTp), lambda i: (0, 0)),
            scratch_shapes=[
                pltpu.VMEM((L, Bp, Hp), jnp.float32),   # h state per layer
                pltpu.VMEM((L, Bp, Hp), jnp.float32),   # c state per layer
            ],
        ),
        compiler_params=pltpu.CompilerParams(
            dimension_semantics=("arbitrary",)),
    )(x_pad, w_all, b_all, lin_w, lin_b)

    # Real logits live in rows 0:B, lane 0; rest is padding.
    return out_p[:B, 0]


# ---------------------------------------------------------------------------
# Pure-JAX reference (for correctness check)
# ---------------------------------------------------------------------------
def lstm4classify_reference(inputs, params):
    emb = jnp.take(params["embedding"], inputs, axis=0)      # (B, T, D)
    x_seq = jnp.transpose(emb, (1, 0, 2)).astype(jnp.float32)
    T, B, _ = x_seq.shape
    for layer in params["lstm_layers"]:
        H = layer["w_hh_t"].shape[0]
        h = jnp.zeros((B, H), jnp.float32)
        c = jnp.zeros((B, H), jnp.float32)
        outs = []
        for t in range(T):
            gates = x_seq[t] @ layer["w_ih_t"] + h @ layer["w_hh_t"] + layer["bias"]
            i_g = jax.nn.sigmoid(gates[:, 0 * H:1 * H])
            f_g = jax.nn.sigmoid(gates[:, 1 * H:2 * H])
            g_g = jnp.tanh(gates[:, 2 * H:3 * H])
            o_g = jax.nn.sigmoid(gates[:, 3 * H:4 * H])
            c = f_g * c + i_g * g_g
            h = o_g * jnp.tanh(c)
            outs.append(h)
        x_seq = jnp.stack(outs, axis=0)
    h_last = x_seq[-1]
    return jax.nn.sigmoid(h_last @ params["lin_w_t"] + params["lin_b"])[:, 0]


# ---------------------------------------------------------------------------
# Deterministic parameter init (shapes follow the PyTorch module)
# ---------------------------------------------------------------------------
def init_params(key, vocab_size, n_dim, hidden_size, num_layers):
    keys = jax.random.split(key, 2 + 4 * num_layers + 2)
    k = iter(keys)
    params = {}
    # nn.Embedding(vocab_size, n_dim)
    params["embedding"] = jax.random.normal(next(k), (vocab_size, n_dim),
                                            jnp.float32) * 0.1
    layers = []
    in_dim = n_dim
    for _ in range(num_layers):
        w_ih = jax.random.uniform(next(k), (4 * hidden_size, in_dim),
                                  jnp.float32, -0.1, 0.1)
        w_hh = jax.random.uniform(next(k), (4 * hidden_size, hidden_size),
                                  jnp.float32, -0.1, 0.1)
        b_ih = jax.random.uniform(next(k), (4 * hidden_size,),
                                  jnp.float32, -0.1, 0.1)
        b_hh = jax.random.uniform(next(k), (4 * hidden_size,),
                                  jnp.float32, -0.1, 0.1)
        layers.append({
            "w_ih_t": w_ih.T,                        # (in_dim, 4H)
            "w_hh_t": w_hh.T,                        # (H, 4H)
            "bias": (b_ih + b_hh)[None, :],          # (1, 4H)
        })
        in_dim = hidden_size
    params["lstm_layers"] = layers
    # nn.Linear(hidden_size, 1)
    lin_w = jax.random.uniform(next(k), (1, hidden_size), jnp.float32,
                               -0.1, 0.1)
    lin_b = jax.random.uniform(next(k), (1,), jnp.float32, -0.1, 0.1)
    params["lin_w_t"] = lin_w.T                      # (H, 1)
    params["lin_b"] = lin_b[None, :]                 # (1, 1)
    return params


if __name__ == "__main__":
    VOCAB, N_DIM, HIDDEN, NUM_LAYERS = 32, 16, 32, 2
    B, T = 2, 8

    key = jax.random.PRNGKey(0)
    key_params, key_inputs = jax.random.split(key)
    params = init_params(key_params, VOCAB, N_DIM, HIDDEN, NUM_LAYERS)
    inputs = jax.random.randint(key_inputs, (B, T), 0, VOCAB, dtype=jnp.int32)

    out = lstm4classify_forward(inputs, params)
    out = jax.block_until_ready(out)

    ref = jax.block_until_ready(lstm4classify_reference(inputs, params))
    np.testing.assert_allclose(np.asarray(out), np.asarray(ref),
                               rtol=1e-3, atol=1e-3)
    assert out.shape == (B,)
    print("KERNEL_OK")
</pallas_src>

<mosaic_0001>
module attributes {stable_mosaic.version = 11 : i64} {
  func.func @_fused_lstm_kernel(%arg0: i32, %arg1: memref<8x8x128xf32, #tpu.memory_space<vmem>>, %arg2: memref<2x256x512xf32, #tpu.memory_space<vmem>>, %arg3: memref<2x1x512xf32, #tpu.memory_space<vmem>>, %arg4: memref<128x128xf32, #tpu.memory_space<vmem>>, %arg5: memref<1x128xf32, #tpu.memory_space<vmem>>, %arg6: memref<8x128xf32, #tpu.memory_space<vmem>>, %arg7: memref<2x8x128xf32, #tpu.memory_space<vmem>>, %arg8: memref<2x8x128xf32, #tpu.memory_space<vmem>>) attributes {dimension_semantics = [#tpu.dimension_semantics<arbitrary>], iteration_bounds = array<i64: 1>, scalar_prefetch = 0 : i64, scratch_operands = 2 : i64, tpu.core_type = #tpu.core_type<tc>, window_params = [{pipeline_mode = #tpu.pipeline_mode<synchronous>, transform_indices = @transform_0, window_bounds = array<i64: 8, 8, 128>}, {pipeline_mode = #tpu.pipeline_mode<synchronous>, transform_indices = @transform_1, window_bounds = array<i64: 2, 256, 512>}, {pipeline_mode = #tpu.pipeline_mode<synchronous>, transform_indices = @transform_2, window_bounds = array<i64: 2, 1, 512>}, {pipeline_mode = #tpu.pipeline_mode<synchronous>, transform_indices = @transform_3, window_bounds = array<i64: 128, 128>}, {pipeline_mode = #tpu.pipeline_mode<synchronous>, transform_indices = @transform_4, window_bounds = array<i64: 1, 128>}, {pipeline_mode = #tpu.pipeline_mode<synchronous>, transform_indices = @transform_5, window_bounds = array<i64: 8, 128>}]} {
    %cst = arith.constant 0.000000e+00 : f32
    %0 = vector.broadcast %cst : f32 to vector<2x8x128xf32>
    %c0 = arith.constant 0 : index
    %c0_0 = arith.constant 0 : index
    %c0_1 = arith.constant 0 : index
    %1 = vector.load %arg7[%c0, %c0_0, %c0_1] : memref<2x8x128xf32, #tpu.memory_space<vmem>>, vector<2x8x128xf32>
    tpu.vector_store %arg7[%c0, %c0_0, %c0_1], %0 {strides = array<i32>} : memref<2x8x128xf32, #tpu.memory_space<vmem>>, vector<2x8x128xf32>,
    %cst_2 = arith.constant 0.000000e+00 : f32
    %2 = vector.broadcast %cst_2 : f32 to vector<2x8x128xf32>
    %c0_3 = arith.constant 0 : index
    %c0_4 = arith.constant 0 : index
    %c0_5 = arith.constant 0 : index
    %3 = vector.load %arg8[%c0_3, %c0_4, %c0_5] : memref<2x8x128xf32, #tpu.memory_space<vmem>>, vector<2x8x128xf32>
    tpu.vector_store %arg8[%c0_3, %c0_4, %c0_5], %2 {strides = array<i32>} : memref<2x8x128xf32, #tpu.memory_space<vmem>>, vector<2x8x128xf32>,
    %c0_i32 = arith.constant 0 : i32
    %4 = arith.index_cast %c0_i32 : i32 to index
    %c0_6 = arith.constant 0 : index
    %c0_7 = arith.constant 0 : index
    %5 = vector.load %arg1[%4, %c0_6, %c0_7] : memref<8x8x128xf32, #tpu.memory_space<vmem>>, vector<1x8x128xf32>
    %6 = vector.shape_cast %5 : vector<1x8x128xf32> to vector<8x128xf32>
    %c0_8 = arith.constant 0 : index
    %c0_9 = arith.constant 0 : index
    %c0_10 = arith.constant 0 : index
    %7 = vector.load %arg7[%c0_8, %c0_9, %c0_10] : memref<2x8x128xf32, #tpu.memory_space<vmem>>, vector<1x8x128xf32>
    %8 = vector.shape_cast %7 : vector<1x8x128xf32> to vector<8x128xf32>
    %c0_11 = arith.constant 0 : index
    %c0_12 = arith.constant 0 : index
    %c0_13 = arith.constant 0 : index
    %9 = vector.load %arg8[%c0_11, %c0_12, %c0_13] : memref<2x8x128xf32, #tpu.memory_space<vmem>>, vector<1x8x128xf32>
    %10 = vector.shape_cast %9 : vector<1x8x128xf32> to vector<8x128xf32>
    %11 = tpu.concatenate %6, %8 in 1 : vector<8x128xf32>, vector<8x128xf32> -> vector<8x256xf32>
    %c0_14 = arith.constant 0 : index
    %c0_15 = arith.constant 0 : index
    %c0_16 = arith.constant 0 : index
    %12 = vector.load %arg2[%c0_14, %c0_15, %c0_16] : memref<2x256x512xf32, #tpu.memory_space<vmem>>, vector<1x256x512xf32>
    %13 = vector.shape_cast %12 : vector<1x256x512xf32> to vector<256x512xf32>
    %cst_17 = arith.constant dense<0.000000e+00> : vector<8x512xf32>
    %14 = tpu.matmul %11, %13, %cst_17 {dimension_numbers = #tpu.dot_dimension_numbers<[1], [0], [0], [1], [0, 0, 1, 1], [], []>} : vector<8x256xf32>, vector<256x512xf32>, vector<8x512xf32> -> vector<8x512xf32>
    %c0_18 = arith.constant 0 : index
    %c0_19 = arith.constant 0 : index
    %c0_20 = arith.constant 0 : index
    %15 = vector.load %arg3[%c0_18, %c0_19, %c0_20] : memref<2x1x512xf32, #tpu.memory_space<vmem>>, vector<1x1x512xf32>
    %16 = vector.shape_cast %15 : vector<1x1x512xf32> to vector<1x512xf32>
    %17 = vector.broadcast %16 : vector<1x512xf32> to vector<8x512xf32>
    %18 = arith.addf %14, %17 : vector<8x512xf32>
    %19 = vector.extract_strided_slice %18 {offsets = [0, 0], sizes = [8, 128], strides = [1, 1]} : vector<8x512xf32> to vector<8x128xf32>
    %20 = arith.negf %19 : vector<8x128xf32>
    %21 = math.exp %20 : vector<8x128xf32>
    %cst_21 = arith.constant 1.000000e+00 : f32
    %22 = vector.broadcast %cst_21 : f32 to vector<8x128xf32>
    %23 = arith.addf %22, %21 : vector<8x128xf32>
    %24 = arith.divf %22, %23 : vector<8x128xf32>
    %25 = vector.extract_strided_slice %18 {offsets = [0, 128], sizes = [8, 128], strides = [1, 1]} : vector<8x512xf32> to vector<8x128xf32>
    %26 = arith.negf %25 : vector<8x128xf32>
    %27 = math.exp %26 : vector<8x128xf32>
    %cst_22 = arith.constant 1.000000e+00 : f32
    %28 = vector.broadcast %cst_22 : f32 to vector<8x128xf32>
    %29 = arith.addf %28, %27 : vector<8x128xf32>
    %30 = arith.divf %28, %29 : vector<8x128xf32>
    %31 = vector.extract_strided_slice %18 {offsets = [0, 256], sizes = [8, 128], strides = [1, 1]} : vector<8x512xf32> to vector<8x128xf32>
    %32 = math.tanh %31 : vector<8x128xf32>
    %33 = vector.extract_strided_slice %18 {offsets = [0, 384], sizes = [8, 128], strides = [1, 1]} : vector<8x512xf32> to vector<8x128xf32>
    %34 = arith.negf %33 : vector<8x128xf32>
    %35 = math.exp %34 : vector<8x128xf32>
    %cst_23 = arith.constant 1.000000e+00 : f32
    %36 = vector.broadcast %cst_23 : f32 to vector<8x128xf32>
    %37 = arith.addf %36, %35 : vector<8x128xf32>
    %38 = arith.divf %36, %37 : vector<8x128xf32>
    %39 = arith.mulf %30, %10 : vector<8x128xf32>
    %40 = arith.mulf %24, %32 : vector<8x128xf32>
    %41 = arith.addf %39, %40 : vector<8x128xf32>
    %42 = math.tanh %41 : vector<8x128xf32>
    %43 = arith.mulf %38, %42 : vector<8x128xf32>
    %c0_24 = arith.constant 0 : index
    %c0_25 = arith.constant 0 : index
    %c0_26 = arith.constant 0 : index
    %44 = vector.load %arg8[%c0_24, %c0_25, %c0_26] : memref<2x8x128xf32, #tpu.memory_space<vmem>>, vector<1x8x128xf32>
    %45 = vector.shape_cast %44 : vector<1x8x128xf32> to vector<8x128xf32>
    %46 = vector.shape_cast %41 : vector<8x128xf32> to vector<1x8x128xf32>
    tpu.vector_store %arg8[%c0_24, %c0_25, %c0_26], %46 {strides = array<i32>} : memref<2x8x128xf32, #tpu.memory_space<vmem>>, vector<1x8x128xf32>,
    %c0_27 = arith.constant 0 : index
    %c0_28 = arith.constant 0 : index
    %c0_29 = arith.constant 0 : index
    %47 = vector.load %arg7[%c0_27, %c0_28, %c0_29] : memref<2x8x128xf32, #tpu.memory_space<vmem>>, vector<1x8x128xf32>
    %48 = vector.shape_cast %47 : vector<1x8x128xf32> to vector<8x128xf32>
    %49 = vector.shape_cast %43 : vector<8x128xf32> to vector<1x8x128xf32>
    tpu.vector_store %arg7[%c0_27, %c0_28, %c0_29], %49 {strides = array<i32>} : memref<2x8x128xf32, #tpu.memory_space<vmem>>, vector<1x8x128xf32>,
    %c1 = arith.constant 1 : index
    %c0_30 = arith.constant 0 : index
    %c0_31 = arith.constant 0 : index
    %50 = vector.load %arg7[%c1, %c0_30, %c0_31] : memref<2x8x128xf32, #tpu.memory_space<vmem>>, vector<1x8x128xf32>
    %51 = vector.shape_cast %50 : vector<1x8x128xf32> to vector<8x128xf32>
    %c1_32 = arith.constant 1 : index
    %c0_33 = arith.constant 0 : index
    %c0_34 = arith.constant 0 : index
    %52 = vector.load %arg8[%c1_32, %c0_33, %c0_34] : memref<2x8x128xf32, #tpu.memory_space<vmem>>, vector<1x8x128xf32>
    %53 = vector.shape_cast %52 : vector<1x8x128xf32> to vector<8x128xf32>
    %54 = tpu.concatenate %43, %51 in 1 : vector<8x128xf32>, vector<8x128xf32> -> vector<8x256xf32>
    %c1_35 = arith.constant 1 : index
    %c0_36 = arith.constant 0 : index
    %c0_37 = arith.constant 0 : index
    %55 = vector.load %arg2[%c1_35, %c0_36, %c0_37] : memref<2x256x512xf32, #tpu.memory_space<vmem>>, vector<1x256x512xf32>
    %56 = vector.shape_cast %55 : vector<1x256x512xf32> to vector<256x512xf32>
    %cst_38 = arith.constant dense<0.000000e+00> : vector<8x512xf32>
    %57 = tpu.matmul %54, %56, %cst_38 {dimension_numbers = #tpu.dot_dimension_numbers<[1], [0], [0], [1], [0, 0, 1, 1], [], []>} : vector<8x256xf32>, vector<256x512xf32>, vector<8x512xf32> -> vector<8x512xf32>
    %c1_39 = arith.constant 1 : index
    %c0_40 = arith.constant 0 : index
    %c0_41 = arith.constant 0 : index
    %58 = vector.load %arg3[%c1_39, %c0_40, %c0_41] : memref<2x1x512xf32, #tpu.memory_space<vmem>>, vector<1x1x512xf32>
    %59 = vector.shape_cast %58 : vector<1x1x512xf32> to vector<1x512xf32>
    %60 = vector.broadcast %59 : vector<1x512xf32> to vector<8x512xf32>
    %61 = arith.addf %57, %60 : vector<8x512xf32>
    %62 = vector.extract_strided_slice %61 {offsets = [0, 0], sizes = [8, 128], strides = [1, 1]} : vector<8x512xf32> to vector<8x128xf32>
    %63 = arith.negf %62 : vector<8x128xf32>
    %64 = math.exp %63 : vector<8x128xf32>
    %cst_42 = arith.constant 1.000000e+00 : f32
    %65 = vector.broadcast %cst_42 : f32 to vector<8x128xf32>
    %66 = arith.addf %65, %64 : vector<8x128xf32>
    %67 = arith.divf %65, %66 : vector<8x128xf32>
    %68 = vector.extract_strided_slice %61 {offsets = [0, 128], sizes = [8, 128], strides = [1, 1]} : vector<8x512xf32> to vector<8x128xf32>
    %69 = arith.negf %68 : vector<8x128xf32>
    %70 = math.exp %69 : vector<8x128xf32>
    %cst_43 = arith.constant 1.000000e+00 : f32
    %71 = vector.broadcast %cst_43 : f32 to vector<8x128xf32>
    %72 = arith.addf %71, %70 : vector<8x128xf32>
    %73 = arith.divf %71, %72 : vector<8x128xf32>
    %74 = vector.extract_strided_slice %61 {offsets = [0, 256], sizes = [8, 128], strides = [1, 1]} : vector<8x512xf32> to vector<8x128xf32>
    %75 = math.tanh %74 : vector<8x128xf32>
    %76 = vector.extract_strided_slice %61 {offsets = [0, 384], sizes = [8, 128], strides = [1, 1]} : vector<8x512xf32> to vector<8x128xf32>
    %77 = arith.negf %76 : vector<8x128xf32>
    %78 = math.exp %77 : vector<8x128xf32>
    %cst_44 = arith.constant 1.000000e+00 : f32
    %79 = vector.broadcast %cst_44 : f32 to vector<8x128xf32>
    %80 = arith.addf %79, %78 : vector<8x128xf32>
    %81 = arith.divf %79, %80 : vector<8x128xf32>
    %82 = arith.mulf %73, %53 : vector<8x128xf32>
    %83 = arith.mulf %67, %75 : vector<8x128xf32>
    %84 = arith.addf %82, %83 : vector<8x128xf32>
    %85 = math.tanh %84 : vector<8x128xf32>
    %86 = arith.mulf %81, %85 : vector<8x128xf32>
    %c1_45 = arith.constant 1 : index
    %c0_46 = arith.constant 0 : index
    %c0_47 = arith.constant 0 : index
    %87 = vector.load %arg8[%c1_45, %c0_46, %c0_47] : memref<2x8x128xf32, #tpu.memory_space<vmem>>, vector<1x8x128xf32>
    %88 = vector.shape_cast %87 : vector<1x8x128xf32> to vector<8x128xf32>
    %89 = vector.shape_cast %84 : vector<8x128xf32> to vector<1x8x128xf32>
    tpu.vector_store %arg8[%c1_45, %c0_46, %c0_47], %89 {strides = array<i32>} : memref<2x8x128xf32, #tpu.memory_space<vmem>>, vector<1x8x128xf32>,
    %c1_48 = arith.constant 1 : index
    %c0_49 = arith.constant 0 : index
    %c0_50 = arith.constant 0 : index
    %90 = vector.load %arg7[%c1_48, %c0_49, %c0_50] : memref<2x8x128xf32, #tpu.memory_space<vmem>>, vector<1x8x128xf32>
    %91 = vector.shape_cast %90 : vector<1x8x128xf32> to vector<8x128xf32>
    %92 = vector.shape_cast %86 : vector<8x128xf32> to vector<1x8x128xf32>
    tpu.vector_store %arg7[%c1_48, %c0_49, %c0_50], %92 {strides = array<i32>} : memref<2x8x128xf32, #tpu.memory_space<vmem>>, vector<1x8x128xf32>,
    %c1_i32 = arith.constant 1 : i32
    %93 = arith.index_cast %c1_i32 : i32 to index
    %c0_51 = arith.constant 0 : index
    %c0_52 = arith.constant 0 : index
    %94 = vector.load %arg1[%93, %c0_51, %c0_52] : memref<8x8x128xf32, #tpu.memory_space<vmem>>, vector<1x8x128xf32>
    %95 = vector.shape_cast %94 : vector<1x8x128xf32> to vector<8x128xf32>
    %c0_53 = arith.constant 0 : index
    %c0_54 = arith.constant 0 : index
    %c0_55 = arith.constant 0 : index
    %96 = vector.load %arg7[%c0_53, %c0_54, %c0_55] : memref<2x8x128xf32, #tpu.memory_space<vmem>>, vector<1x8x128xf32>
    %97 = vector.shape_cast %96 : vector<1x8x128xf32> to vector<8x128xf32>
    %c0_56 = arith.constant 0 : index
    %c0_57 = arith.constant 0 : index
    %c0_58 = arith.constant 0 : index
    %98 = vector.load %arg8[%c0_56, %c0_57, %c0_58] : memref<2x8x128xf32, #tpu.memory_space<vmem>>, vector<1x8x128xf32>
    %99 = vector.shape_cast %98 : vector<1x8x128xf32> to vector<8x128xf32>
    %100 = tpu.concatenate %95, %97 in 1 : vector<8x128xf32>, vector<8x128xf32> -> vector<8x256xf32>
    %c0_59 = arith.constant 0 : index
    %c0_60 = arith.constant 0 : index
    %c0_61 = arith.constant 0 : index
    %101 = vector.load %arg2[%c0_59, %c0_60, %c0_61] : memref<2x256x512xf32, #tpu.memory_space<vmem>>, vector<1x256x512xf32>
    %102 = vector.shape_cast %101 : vector<1x256x512xf32> to vector<256x512xf32>
    %cst_62 = arith.constant dense<0.000000e+00> : vector<8x512xf32>
    %103 = tpu.matmul %100, %102, %cst_62 {dimension_numbers = #tpu.dot_dimension_numbers<[1], [0], [0], [1], [0, 0, 1, 1], [], []>} : vector<8x256xf32>, vector<256x512xf32>, vector<8x512xf32> -> vector<8x512xf32>
    %c0_63 = arith.constant 0 : index
    %c0_64 = arith.constant 0 : index
    %c0_65 = arith.constant 0 : index
    %104 = vector.load %arg3[%c0_63, %c0_64, %c0_65] : memref<2x1x512xf32, #tpu.memory_space<vmem>>, vector<1x1x512xf32>
    %105 = vector.shape_cast %104 : vector<1x1x512xf32> to vector<1x512xf32>
    %106 = vector.broadcast %105 : vector<1x512xf32> to vector<8x512xf32>
    %107 = arith.addf %103, %106 : vector<8x512xf32>
    %108 = vector.extract_strided_slice %107 {offsets = [0, 0], sizes = [8, 128], strides = [1, 1]} : vector<8x512xf32> to vector<8x128xf32>
    %109 = arith.negf %108 : vector<8x128xf32>
    %110 = math.exp %109 : vector<8x128xf32>
    %cst_66 = arith.constant 1.000000e+00 : f32
    %111 = vector.broadcast %cst_66 : f32 to vector<8x128xf32>
    %112 = arith.addf %111, %110 : vector<8x128xf32>
    %113 = arith.divf %111, %112 : vector<8x128xf32>
    %114 = vector.extract_strided_slice %107 {offsets = [0, 128], sizes = [8, 128], strides = [1, 1]} : vector<8x512xf32> to vector<8x128xf32>
    %115 = arith.negf %114 : vector<8x128xf32>
    %116 = math.exp %115 : vector<8x128xf32>
    %cst_67 = arith.constant 1.000000e+00 : f32
    %117 = vector.broadcast %cst_67 : f32 to vector<8x128xf32>
    %118 = arith.addf %117, %116 : vector<8x128xf32>
    %119 = arith.divf %117, %118 : vector<8x128xf32>
    %120 = vector.extract_strided_slice %107 {offsets = [0, 256], sizes = [8, 128], strides = [1, 1]} : vector<8x512xf32> to vector<8x128xf32>
    %121 = math.tanh %120 : vector<8x128xf32>
    %122 = vector.extract_strided_slice %107 {offsets = [0, 384], sizes = [8, 128], strides = [1, 1]} : vector<8x512xf32> to vector<8x128xf32>
    %123 = arith.negf %122 : vector<8x128xf32>
    %124 = math.exp %123 : vector<8x128xf32>
    %cst_68 = arith.constant 1.000000e+00 : f32
    %125 = vector.broadcast %cst_68 : f32 to vector<8x128xf32>
    %126 = arith.addf %125, %124 : vector<8x128xf32>
    %127 = arith.divf %125, %126 : vector<8x128xf32>
    %128 = arith.mulf %119, %99 : vector<8x128xf32>
    %129 = arith.mulf %113, %121 : vector<8x128xf32>
    %130 = arith.addf %128, %129 : vector<8x128xf32>
    %131 = math.tanh %130 : vector<8x128xf32>
    %132 = arith.mulf %127, %131 : vector<8x128xf32>
    %c0_69 = arith.constant 0 : index
    %c0_70 = arith.constant 0 : index
    %c0_71 = arith.constant 0 : index
    %133 = vector.load %arg8[%c0_69, %c0_70, %c0_71] : memref<2x8x128xf32, #tpu.memory_space<vmem>>, vector<1x8x128xf32>
    %134 = vector.shape_cast %133 : vector<1x8x128xf32> to vector<8x128xf32>
    %135 = vector.shape_cast %130 : vector<8x128xf32> to vector<1x8x128xf32>
    tpu.vector_store %arg8[%c0_69, %c0_70, %c0_71], %135 {strides = array<i32>} : memref<2x8x128xf32, #tpu.memory_space<vmem>>, vector<1x8x128xf32>,
    %c0_72 = arith.constant 0 : index
    %c0_73 = arith.constant 0 : index
    %c0_74 = arith.constant 0 : index
    %136 = vector.load %arg7[%c0_72, %c0_73, %c0_74] : memref<2x8x128xf32, #tpu.memory_space<vmem>>, vector<1x8x128xf32>
    %137 = vector.shape_cast %136 : vector<1x8x128xf32> to vector<8x128xf32>
    %138 = vector.shape_cast %132 : vector<8x128xf32> to vector<1x8x128xf32>
    tpu.vector_store %arg7[%c0_72, %c0_73, %c0_74], %138 {strides = array<i32>} : memref<2x8x128xf32, #tpu.memory_space<vmem>>, vector<1x8x128xf32>,
    %c1_75 = arith.constant 1 : index
    %c0_76 = arith.constant 0 : index
    %c0_77 = arith.constant 0 : index
    %139 = vector.load %arg7[%c1_75, %c0_76, %c0_77] : memref<2x8x128xf32, #tpu.memory_space<vmem>>, vector<1x8x128xf32>
    %140 = vector.shape_cast %139 : vector<1x8x128xf32> to vector<8x128xf32>
    %c1_78 = arith.constant 1 : index
    %c0_79 = arith.constant 0 : index
    %c0_80 = arith.constant 0 : index
    %141 = vector.load %arg8[%c1_78, %c0_79, %c0_80] : memref<2x8x128xf32, #tpu.memory_space<vmem>>, vector<1x8x128xf32>
    %142 = vector.shape_cast %141 : vector<1x8x128xf32> to vector<8x128xf32>
    %143 = tpu.concatenate %132, %140 in 1 : vector<8x128xf32>, vector<8x128xf32> -> vector<8x256xf32>
    %c1_81 = arith.constant 1 : index
    %c0_82 = arith.constant 0 : index
    %c0_83 = arith.constant 0 : index
    %144 = vector.load %arg2[%c1_81, %c0_82, %c0_83] : memref<2x256x512xf32, #tpu.memory_space<vmem>>, vector<1x256x512xf32>
    %145 = vector.shape_cast %144 : vector<1x256x512xf32> to vector<256x512xf32>
    %cst_84 = arith.constant dense<0.000000e+00> : vector<8x512xf32>
    %146 = tpu.matmul %143, %145, %cst_84 {dimension_numbers = #tpu.dot_dimension_numbers<[1], [0], [0], [1], [0, 0, 1, 1], [], []>} : vector<8x256xf32>, vector<256x512xf32>, vector<8x512xf32> -> vector<8x512xf32>
    %c1_85 = arith.constant 1 : index
    %c0_86 = arith.constant 0 : index
    %c0_87 = arith.constant 0 : index
    %147 = vector.load %arg3[%c1_85, %c0_86, %c0_87] : memref<2x1x512xf32, #tpu.memory_space<vmem>>, vector<1x1x512xf32>
    %148 = vector.shape_cast %147 : vector<1x1x512xf32> to vector<1x512xf32>
    %149 = vector.broadcast %148 : vector<1x512xf32> to vector<8x512xf32>
    %150 = arith.addf %146, %149 : vector<8x512xf32>
    %151 = vector.extract_strided_slice %150 {offsets = [0, 0], sizes = [8, 128], strides = [1, 1]} : vector<8x512xf32> to vector<8x128xf32>
    %152 = arith.negf %151 : vector<8x128xf32>
    %153 = math.exp %152 : vector<8x128xf32>
    %cst_88 = arith.constant 1.000000e+00 : f32
    %154 = vector.broadcast %cst_88 : f32 to vector<8x128xf32>
    %155 = arith.addf %154, %153 : vector<8x128xf32>
    %156 = arith.divf %154, %155 : vector<8x128xf32>
    %157 = vector.extract_strided_slice %150 {offsets = [0, 128], sizes = [8, 128], strides = [1, 1]} : vector<8x512xf32> to vector<8x128xf32>
    %158 = arith.negf %157 : vector<8x128xf32>
    %159 = math.exp %158 : vector<8x128xf32>
    %cst_89 = arith.constant 1.000000e+00 : f32
    %160 = vector.broadcast %cst_89 : f32 to vector<8x128xf32>
    %161 = arith.addf %160, %159 : vector<8x128xf32>
    %162 = arith.divf %160, %161 : vector<8x128xf32>
    %163 = vector.extract_strided_slice %150 {offsets = [0, 256], sizes = [8, 128], strides = [1, 1]} : vector<8x512xf32> to vector<8x128xf32>
    %164 = math.tanh %163 : vector<8x128xf32>
    %165 = vector.extract_strided_slice %150 {offsets = [0, 384], sizes = [8, 128], strides = [1, 1]} : vector<8x512xf32> to vector<8x128xf32>
    %166 = arith.negf %165 : vector<8x128xf32>
    %167 = math.exp %166 : vector<8x128xf32>
    %cst_90 = arith.constant 1.000000e+00 : f32
    %168 = vector.broadcast %cst_90 : f32 to vector<8x128xf32>
    %169 = arith.addf %168, %167 : vector<8x128xf32>
    %170 = arith.divf %168, %169 : vector<8x128xf32>
    %171 = arith.mulf %162, %142 : vector<8x128xf32>
    %172 = arith.mulf %156, %164 : vector<8x128xf32>
    %173 = arith.addf %171, %172 : vector<8x128xf32>
    %174 = math.tanh %173 : vector<8x128xf32>
    %175 = arith.mulf %170, %174 : vector<8x128xf32>
    %c1_91 = arith.constant 1 : index
    %c0_92 = arith.constant 0 : index
    %c0_93 = arith.constant 0 : index
    %176 = vector.load %arg8[%c1_91, %c0_92, %c0_93] : memref<2x8x128xf32, #tpu.memory_space<vmem>>, vector<1x8x128xf32>
    %177 = vector.shape_cast %176 : vector<1x8x128xf32> to vector<8x128xf32>
    %178 = vector.shape_cast %173 : vector<8x128xf32> to vector<1x8x128xf32>
    tpu.vector_store %arg8[%c1_91, %c0_92, %c0_93], %178 {strides = array<i32>} : memref<2x8x128xf32, #tpu.memory_space<vmem>>, vector<1x8x128xf32>,
    %c1_94 = arith.constant 1 : index
    %c0_95 = arith.constant 0 : index
    %c0_96 = arith.constant 0 : index
    %179 = vector.load %arg7[%c1_94, %c0_95, %c0_96] : memref<2x8x128xf32, #tpu.memory_space<vmem>>, vector<1x8x128xf32>
    %180 = vector.shape_cast %179 : vector<1x8x128xf32> to vector<8x128xf32>
    %181 = vector.shape_cast %175 : vector<8x128xf32> to vector<1x8x128xf32>
    tpu.vector_store %arg7[%c1_94, %c0_95, %c0_96], %181 {strides = array<i32>} : memref<2x8x128xf32, #tpu.memory_space<vmem>>, vector<1x8x128xf32>,
    %c2_i32 = arith.constant 2 : i32
    %182 = arith.index_cast %c2_i32 : i32 to index
    %c0_97 = arith.constant 0 : index
    %c0_98 = arith.constant 0 : index
    %183 = vector.load %arg1[%182, %c0_97, %c0_98] : memref<8x8x128xf32, #tpu.memory_space<vmem>>, vector<1x8x128xf32>
    %184 = vector.shape_cast %183 : vector<1x8x128xf32> to vector<8x128xf32>
    %c0_99 = arith.constant 0 : index
    %c0_100 = arith.constant 0 : index
    %c0_101 = arith.constant 0 : index
    %185 = vector.load %arg7[%c0_99, %c0_100, %c0_101] : memref<2x8x128xf32, #tpu.memory_space<vmem>>, vector<1x8x128xf32>
    %186 = vector.shape_cast %185 : vector<1x8x128xf32> to vector<8x128xf32>
    %c0_102 = arith.constant 0 : index
    %c0_103 = arith.constant 0 : index
    %c0_104 = arith.constant 0 : index
    %187 = vector.load %arg8[%c0_102, %c0_103, %c0_104] : memref<2x8x128xf32, #tpu.memory_space<vmem>>, vector<1x8x128xf32>
    %188 = vector.shape_cast %187 : vector<1x8x128xf32> to vector<8x128xf32>
    %189 = tpu.concatenate %184, %186 in 1 : vector<8x128xf32>, vector<8x128xf32> -> vector<8x256xf32>
    %c0_105 = arith.constant 0 : index
    %c0_106 = arith.constant 0 : index
    %c0_107 = arith.constant 0 : index
    %190 = vector.load %arg2[%c0_105, %c0_106, %c0_107] : memref<2x256x512xf32, #tpu.memory_space<vmem>>, vector<1x256x512xf32>
    %191 = vector.shape_cast %190 : vector<1x256x512xf32> to vector<256x512xf32>
    %cst_108 = arith.constant dense<0.000000e+00> : vector<8x512xf32>
    %192 = tpu.matmul %189, %191, %cst_108 {dimension_numbers = #tpu.dot_dimension_numbers<[1], [0], [0], [1], [0, 0, 1, 1], [], []>} : vector<8x256xf32>, vector<256x512xf32>, vector<8x512xf32> -> vector<8x512xf32>
    %c0_109 = arith.constant 0 : index
    %c0_110 = arith.constant 0 : index
    %c0_111 = arith.constant 0 : index
    %193 = vector.load %arg3[%c0_109, %c0_110, %c0_111] : memref<2x1x512xf32, #tpu.memory_space<vmem>>, vector<1x1x512xf32>
    %194 = vector.shape_cast %193 : vector<1x1x512xf32> to vector<1x512xf32>
    %195 = vector.broadcast %194 : vector<1x512xf32> to vector<8x512xf32>
    %196 = arith.addf %192, %195 : vector<8x512xf32>
    %197 = vector.extract_strided_slice %196 {offsets = [0, 0], sizes = [8, 128], strides = [1, 1]} : vector<8x512xf32> to vector<8x128xf32>
    %198 = arith.negf %197 : vector<8x128xf32>
    %199 = math.exp %198 : vector<8x128xf32>
    %cst_112 = arith.constant 1.000000e+00 : f32
    %200 = vector.broadcast %cst_112 : f32 to vector<8x128xf32>
    %201 = arith.addf %200, %199 : vector<8x128xf32>
    %202 = arith.divf %200, %201 : vector<8x128xf32>
    %203 = vector.extract_strided_slice %196 {offsets = [0, 128], sizes = [8, 128], strides = [1, 1]} : vector<8x512xf32> to vector<8x128xf32>
    %204 = arith.negf %203 : vector<8x128xf32>
    %205 = math.exp %204 : vector<8x128xf32>
    %cst_113 = arith.constant 1.000000e+00 : f32
    %206 = vector.broadcast %cst_113 : f32 to vector<8x128xf32>
    %207 = arith.addf %206, %205 : vector<8x128xf32>
    %208 = arith.divf %206, %207 : vector<8x128xf32>
    %209 = vector.extract_strided_slice %196 {offsets = [0, 256], sizes = [8, 128], strides = [1, 1]} : vector<8x512xf32> to vector<8x128xf32>
    %210 = math.tanh %209 : vector<8x128xf32>
    %211 = vector.extract_strided_slice %196 {offsets = [0, 384], sizes = [8, 128], strides = [1, 1]} : vector<8x512xf32> to vector<8x128xf32>
    %212 = arith.negf %211 : vector<8x128xf32>
    %213 = math.exp %212 : vector<8x128xf32>
    %cst_114 = arith.constant 1.000000e+00 : f32
    %214 = vector.broadcast %cst_114 : f32 to vector<8x128xf32>
    %215 = arith.addf %214, %213 : vector<8x128xf32>
    %216 = arith.divf %214, %215 : vector<8x128xf32>
    %217 = arith.mulf %208, %188 : vector<8x128xf32>
    %218 = arith.mulf %202, %210 : vector<8x128xf32>
    %219 = arith.addf %217, %218 : vector<8x128xf32>
    %220 = math.tanh %219 : vector<8x128xf32>
    %221 = arith.mulf %216, %220 : vector<8x128xf32>
    %c0_115 = arith.constant 0 : index
    %c0_116 = arith.constant 0 : index
    %c0_117 = arith.constant 0 : index
    %222 = vector.load %arg8[%c0_115, %c0_116, %c0_117] : memref<2x8x128xf32, #tpu.memory_space<vmem>>, vector<1x8x128xf32>
    %223 = vector.shape_cast %222 : vector<1x8x128xf32> to vector<8x128xf32>
    %224 = vector.shape_cast %219 : vector<8x128xf32> to vector<1x8x128xf32>
    tpu.vector_store %arg8[%c0_115, %c0_116, %c0_117], %224 {strides = array<i32>} : memref<2x8x128xf32, #tpu.memory_space<vmem>>, vector<1x8x128xf32>,
    %c0_118 = arith.constant 0 : index
    %c0_119 = arith.constant 0 : index
    %c0_120 = arith.constant 0 : index
    %225 = vector.load %arg7[%c0_118, %c0_119, %c0_120] : memref<2x8x128xf32, #tpu.memory_space<vmem>>, vector<1x8x128xf32>
    %226 = vector.shape_cast %225 : vector<1x8x128xf32> to vector<8x128xf32>
    %227 = vector.shape_cast %221 : vector<8x128xf32> to vector<1x8x128xf32>
    tpu.vector_store %arg7[%c0_118, %c0_119, %c0_120], %227 {strides = array<i32>} : memref<2x8x128xf32, #tpu.memory_space<vmem>>, vector<1x8x128xf32>,
    %c1_121 = arith.constant 1 : index
    %c0_122 = arith.constant 0 : index
    %c0_123 = arith.constant 0 : index
    %228 = vector.load %arg7[%c1_121, %c0_122, %c0_123] : memref<2x8x128xf32, #tpu.memory_space<vmem>>, vector<1x8x128xf32>
    %229 = vector.shape_cast %228 : vector<1x8x128xf32> to vector<8x128xf32>
    %c1_124 = arith.constant 1 : index
    %c0_125 = arith.constant 0 : index
    %c0_126 = arith.constant 0 : index
    %230 = vector.load %arg8[%c1_124, %c0_125, %c0_126] : memref<2x8x128xf32, #tpu.memory_space<vmem>>, vector<1x8x128xf32>
    %231 = vector.shape_cast %230 : vector<1x8x128xf32> to vector<8x128xf32>
    %232 = tpu.concatenate %221, %229 in 1 : vector<8x128xf32>, vector<8x128xf32> -> vector<8x256xf32>
    %c1_127 = arith.constant 1 : index
    %c0_128 = arith.constant 0 : index
    %c0_129 = arith.constant 0 : index
    %233 = vector.load %arg2[%c1_127, %c0_128, %c0_129] : memref<2x256x512xf32, #tpu.memory_space<vmem>>, vector<1x256x512xf32>
    %234 = vector.shape_cast %233 : vector<1x256x512xf32> to vector<256x512xf32>
    %cst_130 = arith.constant dense<0.000000e+00> : vector<8x512xf32>
    %235 = tpu.matmul %232, %234, %cst_130 {dimension_numbers = #tpu.dot_dimension_numbers<[1], [0], [0], [1], [0, 0, 1, 1], [], []>} : vector<8x256xf32>, vector<256x512xf32>, vector<8x512xf32> -> vector<8x512xf32>
    %c1_131 = arith.constant 1 : index
    %c0_132 = arith.constant 0 : index
    %c0_133 = arith.constant 0 : index
    %236 = vector.load %arg3[%c1_131, %c0_132, %c0_133] : memref<2x1x512xf32, #tpu.memory_space<vmem>>, vector<1x1x512xf32>
    %237 = vector.shape_cast %236 : vector<1x1x512xf32> to vector<1x512xf32>
    %238 = vector.broadcast %237 : vector<1x512xf32> to vector<8x512xf32>
    %239 = arith.addf %235, %238 : vector<8x512xf32>
    %240 = vector.extract_strided_slice %239 {offsets = [0, 0], sizes = [8, 128], strides = [1, 1]} : vector<8x512xf32> to vector<8x128xf32>
    %241 = arith.negf %240 : vector<8x128xf32>
    %242 = math.exp %241 : vector<8x128xf32>
    %cst_134 = arith.constant 1.000000e+00 : f32
    %243 = vector.broadcast %cst_134 : f32 to vector<8x128xf32>
    %244 = arith.addf %243, %242 : vector<8x128xf32>
    %245 = arith.divf %243, %244 : vector<8x128xf32>
    %246 = vector.extract_strided_slice %239 {offsets = [0, 128], sizes = [8, 128], strides = [1, 1]} : vector<8x512xf32> to vector<8x128xf32>
    %247 = arith.negf %246 : vector<8x128xf32>
    %248 = math.exp %247 : vector<8x128xf32>
    %cst_135 = arith.constant 1.000000e+00 : f32
    %249 = vector.broadcast %cst_135 : f32 to vector<8x128xf32>
    %250 = arith.addf %249, %248 : vector<8x128xf32>
    %251 = arith.divf %249, %250 : vector<8x128xf32>
    %252 = vector.extract_strided_slice %239 {offsets = [0, 256], sizes = [8, 128], strides = [1, 1]} : vector<8x512xf32> to vector<8x128xf32>
    %253 = math.tanh %252 : vector<8x128xf32>
    %254 = vector.extract_strided_slice %239 {offsets = [0, 384], sizes = [8, 128], strides = [1, 1]} : vector<8x512xf32> to vector<8x128xf32>
    %255 = arith.negf %254 : vector<8x128xf32>
    %256 = math.exp %255 : vector<8x128xf32>
    %cst_136 = arith.constant 1.000000e+00 : f32
    %257 = vector.broadcast %cst_136 : f32 to vector<8x128xf32>
    %258 = arith.addf %257, %256 : vector<8x128xf32>
    %259 = arith.divf %257, %258 : vector<8x128xf32>
    %260 = arith.mulf %251, %231 : vector<8x128xf32>
    %261 = arith.mulf %245, %253 : vector<8x128xf32>
    %262 = arith.addf %260, %261 : vector<8x128xf32>
    %263 = math.tanh %262 : vector<8x128xf32>
    %264 = arith.mulf %259, %263 : vector<8x128xf32>
    %c1_137 = arith.constant 1 : index
    %c0_138 = arith.constant 0 : index
    %c0_139 = arith.constant 0 : index
    %265 = vector.load %arg8[%c1_137, %c0_138, %c0_139] : memref<2x8x128xf32, #tpu.memory_space<vmem>>, vector<1x8x128xf32>
    %266 = vector.shape_cast %265 : vector<1x8x128xf32> to vector<8x128xf32>
    %267 = vector.shape_cast %262 : vector<8x128xf32> to vector<1x8x128xf32>
    tpu.vector_store %arg8[%c1_137, %c0_138, %c0_139], %267 {strides = array<i32>} : memref<2x8x128xf32, #tpu.memory_space<vmem>>, vector<1x8x128xf32>,
    %c1_140 = arith.constant 1 : index
    %c0_141 = arith.constant 0 : index
    %c0_142 = arith.constant 0 : index
    %268 = vector.load %arg7[%c1_140, %c0_141, %c0_142] : memref<2x8x128xf32, #tpu.memory_space<vmem>>, vector<1x8x128xf32>
    %269 = vector.shape_cast %268 : vector<1x8x128xf32> to vector<8x128xf32>
    %270 = vector.shape_cast %264 : vector<8x128xf32> to vector<1x8x128xf32>
    tpu.vector_store %arg7[%c1_140, %c0_141, %c0_142], %270 {strides = array<i32>} : memref<2x8x128xf32, #tpu.memory_space<vmem>>, vector<1x8x128xf32>,
    %c3_i32 = arith.constant 3 : i32
    %271 = arith.index_cast %c3_i32 : i32 to index
    %c0_143 = arith.constant 0 : index
    %c0_144 = arith.constant 0 : index
    %272 = vector.load %arg1[%271, %c0_143, %c0_144] : memref<8x8x128xf32, #tpu.memory_space<vmem>>, vector<1x8x128xf32>
    %273 = vector.shape_cast %272 : vector<1x8x128xf32> to vector<8x128xf32>
    %c0_145 = arith.constant 0 : index
    %c0_146 = arith.constant 0 : index
    %c0_147 = arith.constant 0 : index
    %274 = vector.load %arg7[%c0_145, %c0_146, %c0_147] : memref<2x8x128xf32, #tpu.memory_space<vmem>>, vector<1x8x128xf32>
    %275 = vector.shape_cast %274 : vector<1x8x128xf32> to vector<8x128xf32>
    %c0_148 = arith.constant 0 : index
    %c0_149 = arith.constant 0 : index
    %c0_150 = arith.constant 0 : index
    %276 = vector.load %arg8[%c0_148, %c0_149, %c0_150] : memref<2x8x128xf32, #tpu.memory_space<vmem>>, vector<1x8x128xf32>
    %277 = vector.shape_cast %276 : vector<1x8x128xf32> to vector<8x128xf32>
    %278 = tpu.concatenate %273, %275 in 1 : vector<8x128xf32>, vector<8x128xf32> -> vector<8x256xf32>
    %c0_151 = arith.constant 0 : index
    %c0_152 = arith.constant 0 : index
    %c0_153 = arith.constant 0 : index
    %279 = vector.load %arg2[%c0_151, %c0_152, %c0_153] : memref<2x256x512xf32, #tpu.memory_space<vmem>>, vector<1x256x512xf32>
    %280 = vector.shape_cast %279 : vector<1x256x512xf32> to vector<256x512xf32>
    %cst_154 = arith.constant dense<0.000000e+00> : vector<8x512xf32>
    %281 = tpu.matmul %278, %280, %cst_154 {dimension_numbers = #tpu.dot_dimension_numbers<[1], [0], [0], [1], [0, 0, 1, 1], [], []>} : vector<8x256xf32>, vector<256x512xf32>, vector<8x512xf32> -> vector<8x512xf32>
    %c0_155 = arith.constant 0 : index
    %c0_156 = arith.constant 0 : index
    %c0_157 = arith.constant 0 : index
    %282 = vector.load %arg3[%c0_155, %c0_156, %c0_157] : memref<2x1x512xf32, #tpu.memory_space<vmem>>, vector<1x1x512xf32>
    %283 = vector.shape_cast %282 : vector<1x1x512xf32> to vector<1x512xf32>
    %284 = vector.broadcast %283 : vector<1x512xf32> to vector<8x512xf32>
    %285 = arith.addf %281, %284 : vector<8x512xf32>
    %286 = vector.extract_strided_slice %285 {offsets = [0, 0], sizes = [8, 128], strides = [1, 1]} : vector<8x512xf32> to vector<8x128xf32>
    %287 = arith.negf %286 : vector<8x128xf32>
    %288 = math.exp %287 : vector<8x128xf32>
    %cst_158 = arith.constant 1.000000e+00 : f32
    %289 = vector.broadcast %cst_158 : f32 to vector<8x128xf32>
    %290 = arith.addf %289, %288 : vector<8x128xf32>
    %291 = arith.divf %289, %290 : vector<8x128xf32>
    %292 = vector.extract_strided_slice %285 {offsets = [0, 128], sizes = [8, 128], strides = [1, 1]} : vector<8x512xf32> to vector<8x128xf32>
    %293 = arith.negf %292 : vector<8x128xf32>
    %294 = math.exp %293 : vector<8x128xf32>
    %cst_159 = arith.constant 1.000000e+00 : f32
    %295 = vector.broadcast %cst_159 : f32 to vector<8x128xf32>
    %296 = arith.addf %295, %294 : vector<8x128xf32>
    %297 = arith.divf %295, %296 : vector<8x128xf32>
    %298 = vector.extract_strided_slice %285 {offsets = [0, 256], sizes = [8, 128], strides = [1, 1]} : vector<8x512xf32> to vector<8x128xf32>
    %299 = math.tanh %298 : vector<8x128xf32>
    %300 = vector.extract_strided_slice %285 {offsets = [0, 384], sizes = [8, 128], strides = [1, 1]} : vector<8x512xf32> to vector<8x128xf32>
    %301 = arith.negf %300 : vector<8x128xf32>
    %302 = math.exp %301 : vector<8x128xf32>
    %cst_160 = arith.constant 1.000000e+00 : f32
    %303 = vector.broadcast %cst_160 : f32 to vector<8x128xf32>
    %304 = arith.addf %303, %302 : vector<8x128xf32>
    %305 = arith.divf %303, %304 : vector<8x128xf32>
    %306 = arith.mulf %297, %277 : vector<8x128xf32>
    %307 = arith.mulf %291, %299 : vector<8x128xf32>
    %308 = arith.addf %306, %307 : vector<8x128xf32>
    %309 = math.tanh %308 : vector<8x128xf32>
    %310 = arith.mulf %305, %309 : vector<8x128xf32>
    %c0_161 = arith.constant 0 : index
    %c0_162 = arith.constant 0 : index
    %c0_163 = arith.constant 0 : index
    %311 = vector.load %arg8[%c0_161, %c0_162, %c0_163] : memref<2x8x128xf32, #tpu.memory_space<vmem>>, vector<1x8x128xf32>
    %312 = vector.shape_cast %311 : vector<1x8x128xf32> to vector<8x128xf32>
    %313 = vector.shape_cast %308 : vector<8x128xf32> to vector<1x8x128xf32>
    tpu.vector_store %arg8[%c0_161, %c0_162, %c0_163], %313 {strides = array<i32>} : memref<2x8x128xf32, #tpu.memory_space<vmem>>, vector<1x8x128xf32>,
    %c0_164 = arith.constant 0 : index
    %c0_165 = arith.constant 0 : index
    %c0_166 = arith.constant 0 : index
    %314 = vector.load %arg7[%c0_164, %c0_165, %c0_166] : memref<2x8x128xf32, #tpu.memory_space<vmem>>, vector<1x8x128xf32>
    %315 = vector.shape_cast %314 : vector<1x8x128xf32> to vector<8x128xf32>
    %316 = vector.shape_cast %310 : vector<8x128xf32> to vector<1x8x128xf32>
    tpu.vector_store %arg7[%c0_164, %c0_165, %c0_166], %316 {strides = array<i32>} : memref<2x8x128xf32, #tpu.memory_space<vmem>>, vector<1x8x128xf32>,
    %c1_167 = arith.constant 1 : index
    %c0_168 = arith.constant 0 : index
    %c0_169 = arith.constant 0 : index
    %317 = vector.load %arg7[%c1_167, %c0_168, %c0_169] : memref<2x8x128xf32, #tpu.memory_space<vmem>>, vector<1x8x128xf32>
    %318 = vector.shape_cast %317 : vector<1x8x128xf32> to vector<8x128xf32>
    %c1_170 = arith.constant 1 : index
    %c0_171 = arith.constant 0 : index
    %c0_172 = arith.constant 0 : index
    %319 = vector.load %arg8[%c1_170, %c0_171, %c0_172] : memref<2x8x128xf32, #tpu.memory_space<vmem>>, vector<1x8x128xf32>
    %320 = vector.shape_cast %319 : vector<1x8x128xf32> to vector<8x128xf32>
    %321 = tpu.concatenate %310, %318 in 1 : vector<8x128xf32>, vector<8x128xf32> -> vector<8x256xf32>
    %c1_173 = arith.constant 1 : index
    %c0_174 = arith.constant 0 : index
    %c0_175 = arith.constant 0 : index
    %322 = vector.load %arg2[%c1_173, %c0_174, %c0_175] : memref<2x256x512xf32, #tpu.memory_space<vmem>>, vector<1x256x512xf32>
    %323 = vector.shape_cast %322 : vector<1x256x512xf32> to vector<256x512xf32>
    %cst_176 = arith.constant dense<0.000000e+00> : vector<8x512xf32>
    %324 = tpu.matmul %321, %323, %cst_176 {dimension_numbers = #tpu.dot_dimension_numbers<[1], [0], [0], [1], [0, 0, 1, 1], [], []>} : vector<8x256xf32>, vector<256x512xf32>, vector<8x512xf32> -> vector<8x512xf32>
    %c1_177 = arith.constant 1 : index
    %c0_178 = arith.constant 0 : index
    %c0_179 = arith.constant 0 : index
    %325 = vector.load %arg3[%c1_177, %c0_178, %c0_179] : memref<2x1x512xf32, #tpu.memory_space<vmem>>, vector<1x1x512xf32>
    %326 = vector.shape_cast %325 : vector<1x1x512xf32> to vector<1x512xf32>
    %327 = vector.broadcast %326 : vector<1x512xf32> to vector<8x512xf32>
    %328 = arith.addf %324, %327 : vector<8x512xf32>
    %329 = vector.extract_strided_slice %328 {offsets = [0, 0], sizes = [8, 128], strides = [1, 1]} : vector<8x512xf32> to vector<8x128xf32>
    %330 = arith.negf %329 : vector<8x128xf32>
    %331 = math.exp %330 : vector<8x128xf32>
    %cst_180 = arith.constant 1.000000e+00 : f32
    %332 = vector.broadcast %cst_180 : f32 to vector<8x128xf32>
    %333 = arith.addf %332, %331 : vector<8x128xf32>
    %334 = arith.divf %332, %333 : vector<8x128xf32>
    %335 = vector.extract_strided_slice %328 {offsets = [0, 128], sizes = [8, 128], strides = [1, 1]} : vector<8x512xf32> to vector<8x128xf32>
    %336 = arith.negf %335 : vector<8x128xf32>
    %337 = math.exp %336 : vector<8x128xf32>
    %cst_181 = arith.constant 1.000000e+00 : f32
    %338 = vector.broadcast %cst_181 : f32 to vector<8x128xf32>
    %339 = arith.addf %338, %337 : vector<8x128xf32>
    %340 = arith.divf %338, %339 : vector<8x128xf32>
    %341 = vector.extract_strided_slice %328 {offsets = [0, 256], sizes = [8, 128], strides = [1, 1]} : vector<8x512xf32> to vector<8x128xf32>
    %342 = math.tanh %341 : vector<8x128xf32>
    %343 = vector.extract_strided_slice %328 {offsets = [0, 384], sizes = [8, 128], strides = [1, 1]} : vector<8x512xf32> to vector<8x128xf32>
    %344 = arith.negf %343 : vector<8x128xf32>
    %345 = math.exp %344 : vector<8x128xf32>
    %cst_182 = arith.constant 1.000000e+00 : f32
    %346 = vector.broadcast %cst_182 : f32 to vector<8x128xf32>
    %347 = arith.addf %346, %345 : vector<8x128xf32>
    %348 = arith.divf %346, %347 : vector<8x128xf32>
    %349 = arith.mulf %340, %320 : vector<8x128xf32>
    %350 = arith.mulf %334, %342 : vector<8x128xf32>
    %351 = arith.addf %349, %350 : vector<8x128xf32>
    %352 = math.tanh %351 : vector<8x128xf32>
    %353 = arith.mulf %348, %352 : vector<8x128xf32>
    %c1_183 = arith.constant 1 : index
    %c0_184 = arith.constant 0 : index
    %c0_185 = arith.constant 0 : index
    %354 = vector.load %arg8[%c1_183, %c0_184, %c0_185] : memref<2x8x128xf32, #tpu.memory_space<vmem>>, vector<1x8x128xf32>
    %355 = vector.shape_cast %354 : vector<1x8x128xf32> to vector<8x128xf32>
    %356 = vector.shape_cast %351 : vector<8x128xf32> to vector<1x8x128xf32>
    tpu.vector_store %arg8[%c1_183, %c0_184, %c0_185], %356 {strides = array<i32>} : memref<2x8x128xf32, #tpu.memory_space<vmem>>, vector<1x8x128xf32>,
    %c1_186 = arith.constant 1 : index
    %c0_187 = arith.constant 0 : index
    %c0_188 = arith.constant 0 : index
    %357 = vector.load %arg7[%c1_186, %c0_187, %c0_188] : memref<2x8x128xf32, #tpu.memory_space<vmem>>, vector<1x8x128xf32>
    %358 = vector.shape_cast %357 : vector<1x8x128xf32> to vector<8x128xf32>
    %359 = vector.shape_cast %353 : vector<8x128xf32> to vector<1x8x128xf32>
    tpu.vector_store %arg7[%c1_186, %c0_187, %c0_188], %359 {strides = array<i32>} : memref<2x8x128xf32, #tpu.memory_space<vmem>>, vector<1x8x128xf32>,
    %c4_i32 = arith.constant 4 : i32
    %360 = arith.index_cast %c4_i32 : i32 to index
    %c0_189 = arith.constant 0 : index
    %c0_190 = arith.constant 0 : index
    %361 = vector.load %arg1[%360, %c0_189, %c0_190] : memref<8x8x128xf32, #tpu.memory_space<vmem>>, vector<1x8x128xf32>
    %362 = vector.shape_cast %361 : vector<1x8x128xf32> to vector<8x128xf32>
    %c0_191 = arith.constant 0 : index
    %c0_192 = arith.constant 0 : index
    %c0_193 = arith.constant 0 : index
    %363 = vector.load %arg7[%c0_191, %c0_192, %c0_193] : memref<2x8x128xf32, #tpu.memory_space<vmem>>, vector<1x8x128xf32>
    %364 = vector.shape_cast %363 : vector<1x8x128xf32> to vector<8x128xf32>
    %c0_194 = arith.constant 0 : index
    %c0_195 = arith.constant 0 : index
    %c0_196 = arith.constant 0 : index
    %365 = vector.load %arg8[%c0_194, %c0_195, %c0_196] : memref<2x8x128xf32, #tpu.memory_space<vmem>>, vector<1x8x128xf32>
    %366 = vector.shape_cast %365 : vector<1x8x128xf32> to vector<8x128xf32>
    %367 = tpu.concatenate %362, %364 in 1 : vector<8x128xf32>, vector<8x128xf32> -> vector<8x256xf32>
    %c0_197 = arith.constant 0 : index
    %c0_198 = arith.constant 0 : index
    %c0_199 = arith.constant 0 : index
    %368 = vector.load %arg2[%c0_197, %c0_198, %c0_199] : memref<2x256x512xf32, #tpu.memory_space<vmem>>, vector<1x256x512xf32>
    %369 = vector.shape_cast %368 : vector<1x256x512xf32> to vector<256x512xf32>
    %cst_200 = arith.constant dense<0.000000e+00> : vector<8x512xf32>
    %370 = tpu.matmul %367, %369, %cst_200 {dimension_numbers = #tpu.dot_dimension_numbers<[1], [0], [0], [1], [0, 0, 1, 1], [], []>} : vector<8x256xf32>, vector<256x512xf32>, vector<8x512xf32> -> vector<8x512xf32>
    %c0_201 = arith.constant 0 : index
    %c0_202 = arith.constant 0 : index
    %c0_203 = arith.constant 0 : index
    %371 = vector.load %arg3[%c0_201, %c0_202, %c0_203] : memref<2x1x512xf32, #tpu.memory_space<vmem>>, vector<1x1x512xf32>
    %372 = vector.shape_cast %371 : vector<1x1x512xf32> to vector<1x512xf32>
    %373 = vector.broadcast %372 : vector<1x512xf32> to vector<8x512xf32>
    %374 = arith.addf %370, %373 : vector<8x512xf32>
    %375 = vector.extract_strided_slice %374 {offsets = [0, 0], sizes = [8, 128], strides = [1, 1]} : vector<8x512xf32> to vector<8x128xf32>
    %376 = arith.negf %375 : vector<8x128xf32>
    %377 = math.exp %376 : vector<8x128xf32>
    %cst_204 = arith.constant 1.000000e+00 : f32
    %378 = vector.broadcast %cst_204 : f32 to vector<8x128xf32>
    %379 = arith.addf %378, %377 : vector<8x128xf32>
    %380 = arith.divf %378, %379 : vector<8x128xf32>
    %381 = vector.extract_strided_slice %374 {offsets = [0, 128], sizes = [8, 128], strides = [1, 1]} : vector<8x512xf32> to vector<8x128xf32>
    %382 = arith.negf %381 : vector<8x128xf32>
    %383 = math.exp %382 : vector<8x128xf32>
    %cst_205 = arith.constant 1.000000e+00 : f32
    %384 = vector.broadcast %cst_205 : f32 to vector<8x128xf32>
    %385 = arith.addf %384, %383 : vector<8x128xf32>
    %386 = arith.divf %384, %385 : vector<8x128xf32>
    %387 = vector.extract_strided_slice %374 {offsets = [0, 256], sizes = [8, 128], strides = [1, 1]} : vector<8x512xf32> to vector<8x128xf32>
    %388 = math.tanh %387 : vector<8x128xf32>
    %389 = vector.extract_strided_slice %374 {offsets = [0, 384], sizes = [8, 128], strides = [1, 1]} : vector<8x512xf32> to vector<8x128xf32>
    %390 = arith.negf %389 : vector<8x128xf32>
    %391 = math.exp %390 : vector<8x128xf32>
    %cst_206 = arith.constant 1.000000e+00 : f32
    %392 = vector.broadcast %cst_206 : f32 to vector<8x128xf32>
    %393 = arith.addf %392, %391 : vector<8x128xf32>
    %394 = arith.divf %392, %393 : vector<8x128xf32>
    %395 = arith.mulf %386, %366 : vector<8x128xf32>
    %396 = arith.mulf %380, %388 : vector<8x128xf32>
    %397 = arith.addf %395, %396 : vector<8x128xf32>
    %398 = math.tanh %397 : vector<8x128xf32>
    %399 = arith.mulf %394, %398 : vector<8x128xf32>
    %c0_207 = arith.constant 0 : index
    %c0_208 = arith.constant 0 : index
    %c0_209 = arith.constant 0 : index
    %400 = vector.load %arg8[%c0_207, %c0_208, %c0_209] : memref<2x8x128xf32, #tpu.memory_space<vmem>>, vector<1x8x128xf32>
    %401 = vector.shape_cast %400 : vector<1x8x128xf32> to vector<8x128xf32>
    %402 = vector.shape_cast %397 : vector<8x128xf32> to vector<1x8x128xf32>
    tpu.vector_store %arg8[%c0_207, %c0_208, %c0_209], %402 {strides = array<i32>} : memref<2x8x128xf32, #tpu.memory_space<vmem>>, vector<1x8x128xf32>,
    %c0_210 = arith.constant 0 : index
    %c0_211 = arith.constant 0 : index
    %c0_212 = arith.constant 0 : index
    %403 = vector.load %arg7[%c0_210, %c0_211, %c0_212] : memref<2x8x128xf32, #tpu.memory_space<vmem>>, vector<1x8x128xf32>
    %404 = vector.shape_cast %403 : vector<1x8x128xf32> to vector<8x128xf32>
    %405 = vector.shape_cast %399 : vector<8x128xf32> to vector<1x8x128xf32>
    tpu.vector_store %arg7[%c0_210, %c0_211, %c0_212], %405 {strides = array<i32>} : memref<2x8x128xf32, #tpu.memory_space<vmem>>, vector<1x8x128xf32>,
    %c1_213 = arith.constant 1 : index
    %c0_214 = arith.constant 0 : index
    %c0_215 = arith.constant 0 : index
    %406 = vector.load %arg7[%c1_213, %c0_214, %c0_215] : memref<2x8x128xf32, #tpu.memory_space<vmem>>, vector<1x8x128xf32>
    %407 = vector.shape_cast %406 : vector<1x8x128xf32> to vector<8x128xf32>
    %c1_216 = arith.constant 1 : index
    %c0_217 = arith.constant 0 : index
    %c0_218 = arith.constant 0 : index
    %408 = vector.load %arg8[%c1_216, %c0_217, %c0_218] : memref<2x8x128xf32, #tpu.memory_space<vmem>>, vector<1x8x128xf32>
    %409 = vector.shape_cast %408 : vector<1x8x128xf32> to vector<8x128xf32>
    %410 = tpu.concatenate %399, %407 in 1 : vector<8x128xf32>, vector<8x128xf32> -> vector<8x256xf32>
    %c1_219 = arith.constant 1 : index
    %c0_220 = arith.constant 0 : index
    %c0_221 = arith.constant 0 : index
    %411 = vector.load %arg2[%c1_219, %c0_220, %c0_221] : memref<2x256x512xf32, #tpu.memory_space<vmem>>, vector<1x256x512xf32>
    %412 = vector.shape_cast %411 : vector<1x256x512xf32> to vector<256x512xf32>
    %cst_222 = arith.constant dense<0.000000e+00> : vector<8x512xf32>
    %413 = tpu.matmul %410, %412, %cst_222 {dimension_numbers = #tpu.dot_dimension_numbers<[1], [0], [0], [1], [0, 0, 1, 1], [], []>} : vector<8x256xf32>, vector<256x512xf32>, vector<8x512xf32> -> vector<8x512xf32>
    %c1_223 = arith.constant 1 : index
    %c0_224 = arith.constant 0 : index
    %c0_225 = arith.constant 0 : index
    %414 = vector.load %arg3[%c1_223, %c0_224, %c0_225] : memref<2x1x512xf32, #tpu.memory_space<vmem>>, vector<1x1x512xf32>
    %415 = vector.shape_cast %414 : vector<1x1x512xf32> to vector<1x512xf32>
    %416 = vector.broadcast %415 : vector<1x512xf32> to vector<8x512xf32>
    %417 = arith.addf %413, %416 : vector<8x512xf32>
    %418 = vector.extract_strided_slice %417 {offsets = [0, 0], sizes = [8, 128], strides = [1, 1]} : vector<8x512xf32> to vector<8x128xf32>
    %419 = arith.negf %418 : vector<8x128xf32>
    %420 = math.exp %419 : vector<8x128xf32>
    %cst_226 = arith.constant 1.000000e+00 : f32
    %421 = vector.broadcast %cst_226 : f32 to vector<8x128xf32>
    %422 = arith.addf %421, %420 : vector<8x128xf32>
    %423 = arith.divf %421, %422 : vector<8x128xf32>
    %424 = vector.extract_strided_slice %417 {offsets = [0, 128], sizes = [8, 128], strides = [1, 1]} : vector<8x512xf32> to vector<8x128xf32>
    %425 = arith.negf %424 : vector<8x128xf32>
    %426 = math.exp %425 : vector<8x128xf32>
    %cst_227 = arith.constant 1.000000e+00 : f32
    %427 = vector.broadcast %cst_227 : f32 to vector<8x128xf32>
    %428 = arith.addf %427, %426 : vector<8x128xf32>
    %429 = arith.divf %427, %428 : vector<8x128xf32>
    %430 = vector.extract_strided_slice %417 {offsets = [0, 256], sizes = [8, 128], strides = [1, 1]} : vector<8x512xf32> to vector<8x128xf32>
    %431 = math.tanh %430 : vector<8x128xf32>
    %432 = vector.extract_strided_slice %417 {offsets = [0, 384], sizes = [8, 128], strides = [1, 1]} : vector<8x512xf32> to vector<8x128xf32>
    %433 = arith.negf %432 : vector<8x128xf32>
    %434 = math.exp %433 : vector<8x128xf32>
    %cst_228 = arith.constant 1.000000e+00 : f32
    %435 = vector.broadcast %cst_228 : f32 to vector<8x128xf32>
    %436 = arith.addf %435, %434 : vector<8x128xf32>
    %437 = arith.divf %435, %436 : vector<8x128xf32>
    %438 = arith.mulf %429, %409 : vector<8x128xf32>
    %439 = arith.mulf %423, %431 : vector<8x128xf32>
    %440 = arith.addf %438, %439 : vector<8x128xf32>
    %441 = math.tanh %440 : vector<8x128xf32>
    %442 = arith.mulf %437, %441 : vector<8x128xf32>
    %c1_229 = arith.constant 1 : index
    %c0_230 = arith.constant 0 : index
    %c0_231 = arith.constant 0 : index
    %443 = vector.load %arg8[%c1_229, %c0_230, %c0_231] : memref<2x8x128xf32, #tpu.memory_space<vmem>>, vector<1x8x128xf32>
    %444 = vector.shape_cast %443 : vector<1x8x128xf32> to vector<8x128xf32>
    %445 = vector.shape_cast %440 : vector<8x128xf32> to vector<1x8x128xf32>
    tpu.vector_store %arg8[%c1_229, %c0_230, %c0_231], %445 {strides = array<i32>} : memref<2x8x128xf32, #tpu.memory_space<vmem>>, vector<1x8x128xf32>,
    %c1_232 = arith.constant 1 : index
    %c0_233 = arith.constant 0 : index
    %c0_234 = arith.constant 0 : index
    %446 = vector.load %arg7[%c1_232, %c0_233, %c0_234] : memref<2x8x128xf32, #tpu.memory_space<vmem>>, vector<1x8x128xf32>
    %447 = vector.shape_cast %446 : vector<1x8x128xf32> to vector<8x128xf32>
    %448 = vector.shape_cast %442 : vector<8x128xf32> to vector<1x8x128xf32>
    tpu.vector_store %arg7[%c1_232, %c0_233, %c0_234], %448 {strides = array<i32>} : memref<2x8x128xf32, #tpu.memory_space<vmem>>, vector<1x8x128xf32>,
    %c5_i32 = arith.constant 5 : i32
    %449 = arith.index_cast %c5_i32 : i32 to index
    %c0_235 = arith.constant 0 : index
    %c0_236 = arith.constant 0 : index
    %450 = vector.load %arg1[%449, %c0_235, %c0_236] : memref<8x8x128xf32, #tpu.memory_space<vmem>>, vector<1x8x128xf32>
    %451 = vector.shape_cast %450 : vector<1x8x128xf32> to vector<8x128xf32>
    %c0_237 = arith.constant 0 : index
    %c0_238 = arith.constant 0 : index
    %c0_239 = arith.constant 0 : index
    %452 = vector.load %arg7[%c0_237, %c0_238, %c0_239] : memref<2x8x128xf32, #tpu.memory_space<vmem>>, vector<1x8x128xf32>
    %453 = vector.shape_cast %452 : vector<1x8x128xf32> to vector<8x128xf32>
    %c0_240 = arith.constant 0 : index
    %c0_241 = arith.constant 0 : index
    %c0_242 = arith.constant 0 : index
    %454 = vector.load %arg8[%c0_240, %c0_241, %c0_242] : memref<2x8x128xf32, #tpu.memory_space<vmem>>, vector<1x8x128xf32>
    %455 = vector.shape_cast %454 : vector<1x8x128xf32> to vector<8x128xf32>
    %456 = tpu.concatenate %451, %453 in 1 : vector<8x128xf32>, vector<8x128xf32> -> vector<8x256xf32>
    %c0_243 = arith.constant 0 : index
    %c0_244 = arith.constant 0 : index
    %c0_245 = arith.constant 0 : index
    %457 = vector.load %arg2[%c0_243, %c0_244, %c0_245] : memref<2x256x512xf32, #tpu.memory_space<vmem>>, vector<1x256x512xf32>
    %458 = vector.shape_cast %457 : vector<1x256x512xf32> to vector<256x512xf32>
    %cst_246 = arith.constant dense<0.000000e+00> : vector<8x512xf32>
    %459 = tpu.matmul %456, %458, %cst_246 {dimension_numbers = #tpu.dot_dimension_numbers<[1], [0], [0], [1], [0, 0, 1, 1], [], []>} : vector<8x256xf32>, vector<256x512xf32>, vector<8x512xf32> -> vector<8x512xf32>
    %c0_247 = arith.constant 0 : index
    %c0_248 = arith.constant 0 : index
    %c0_249 = arith.constant 0 : index
    %460 = vector.load %arg3[%c0_247, %c0_248, %c0_249] : memref<2x1x512xf32, #tpu.memory_space<vmem>>, vector<1x1x512xf32>
    %461 = vector.shape_cast %460 : vector<1x1x512xf32> to vector<1x512xf32>
    %462 = vector.broadcast %461 : vector<1x512xf32> to vector<8x512xf32>
    %463 = arith.addf %459, %462 : vector<8x512xf32>
    %464 = vector.extract_strided_slice %463 {offsets = [0, 0], sizes = [8, 128], strides = [1, 1]} : vector<8x512xf32> to vector<8x128xf32>
    %465 = arith.negf %464 : vector<8x128xf32>
    %466 = math.exp %465 : vector<8x128xf32>
    %cst_250 = arith.constant 1.000000e+00 : f32
    %467 = vector.broadcast %cst_250 : f32 to vector<8x128xf32>
    %468 = arith.addf %467, %466 : vector<8x128xf32>
    %469 = arith.divf %467, %468 : vector<8x128xf32>
    %470 = vector.extract_strided_slice %463 {offsets = [0, 128], sizes = [8, 128], strides = [1, 1]} : vector<8x512xf32> to vector<8x128xf32>
    %471 = arith.negf %470 : vector<8x128xf32>
    %472 = math.exp %471 : vector<8x128xf32>
    %cst_251 = arith.constant 1.000000e+00 : f32
    %473 = vector.broadcast %cst_251 : f32 to vector<8x128xf32>
    %474 = arith.addf %473, %472 : vector<8x128xf32>
    %475 = arith.divf %473, %474 : vector<8x128xf32>
    %476 = vector.extract_strided_slice %463 {offsets = [0, 256], sizes = [8, 128], strides = [1, 1]} : vector<8x512xf32> to vector<8x128xf32>
    %477 = math.tanh %476 : vector<8x128xf32>
    %478 = vector.extract_strided_slice %463 {offsets = [0, 384], sizes = [8, 128], strides = [1, 1]} : vector<8x512xf32> to vector<8x128xf32>
    %479 = arith.negf %478 : vector<8x128xf32>
    %480 = math.exp %479 : vector<8x128xf32>
    %cst_252 = arith.constant 1.000000e+00 : f32
    %481 = vector.broadcast %cst_252 : f32 to vector<8x128xf32>
    %482 = arith.addf %481, %480 : vector<8x128xf32>
    %483 = arith.divf %481, %482 : vector<8x128xf32>
    %484 = arith.mulf %475, %455 : vector<8x128xf32>
    %485 = arith.mulf %469, %477 : vector<8x128xf32>
    %486 = arith.addf %484, %485 : vector<8x128xf32>
    %487 = math.tanh %486 : vector<8x128xf32>
    %488 = arith.mulf %483, %487 : vector<8x128xf32>
    %c0_253 = arith.constant 0 : index
    %c0_254 = arith.constant 0 : index
    %c0_255 = arith.constant 0 : index
    %489 = vector.load %arg8[%c0_253, %c0_254, %c0_255] : memref<2x8x128xf32, #tpu.memory_space<vmem>>, vector<1x8x128xf32>
    %490 = vector.shape_cast %489 : vector<1x8x128xf32> to vector<8x128xf32>
    %491 = vector.shape_cast %486 : vector<8x128xf32> to vector<1x8x128xf32>
    tpu.vector_store %arg8[%c0_253, %c0_254, %c0_255], %491 {strides = array<i32>} : memref<2x8x128xf32, #tpu.memory_space<vmem>>, vector<1x8x128xf32>,
    %c0_256 = arith.constant 0 : index
    %c0_257 = arith.constant 0 : index
    %c0_258 = arith.constant 0 : index
    %492 = vector.load %arg7[%c0_256, %c0_257, %c0_258] : memref<2x8x128xf32, #tpu.memory_space<vmem>>, vector<1x8x128xf32>
    %493 = vector.shape_cast %492 : vector<1x8x128xf32> to vector<8x128xf32>
    %494 = vector.shape_cast %488 : vector<8x128xf32> to vector<1x8x128xf32>
    tpu.vector_store %arg7[%c0_256, %c0_257, %c0_258], %494 {strides = array<i32>} : memref<2x8x128xf32, #tpu.memory_space<vmem>>, vector<1x8x128xf32>,
    %c1_259 = arith.constant 1 : index
    %c0_260 = arith.constant 0 : index
    %c0_261 = arith.constant 0 : index
    %495 = vector.load %arg7[%c1_259, %c0_260, %c0_261] : memref<2x8x128xf32, #tpu.memory_space<vmem>>, vector<1x8x128xf32>
    %496 = vector.shape_cast %495 : vector<1x8x128xf32> to vector<8x128xf32>
    %c1_262 = arith.constant 1 : index
    %c0_263 = arith.constant 0 : index
    %c0_264 = arith.constant 0 : index
    %497 = vector.load %arg8[%c1_262, %c0_263, %c0_264] : memref<2x8x128xf32, #tpu.memory_space<vmem>>, vector<1x8x128xf32>
    %498 = vector.shape_cast %497 : vector<1x8x128xf32> to vector<8x128xf32>
    %499 = tpu.concatenate %488, %496 in 1 : vector<8x128xf32>, vector<8x128xf32> -> vector<8x256xf32>
    %c1_265 = arith.constant 1 : index
    %c0_266 = arith.constant 0 : index
    %c0_267 = arith.constant 0 : index
    %500 = vector.load %arg2[%c1_265, %c0_266, %c0_267] : memref<2x256x512xf32, #tpu.memory_space<vmem>>, vector<1x256x512xf32>
    %501 = vector.shape_cast %500 : vector<1x256x512xf32> to vector<256x512xf32>
    %cst_268 = arith.constant dense<0.000000e+00> : vector<8x512xf32>
    %502 = tpu.matmul %499, %501, %cst_268 {dimension_numbers = #tpu.dot_dimension_numbers<[1], [0], [0], [1], [0, 0, 1, 1], [], []>} : vector<8x256xf32>, vector<256x512xf32>, vector<8x512xf32> -> vector<8x512xf32>
    %c1_269 = arith.constant 1 : index
    %c0_270 = arith.constant 0 : index
    %c0_271 = arith.constant 0 : index
    %503 = vector.load %arg3[%c1_269, %c0_270, %c0_271] : memref<2x1x512xf32, #tpu.memory_space<vmem>>, vector<1x1x512xf32>
    %504 = vector.shape_cast %503 : vector<1x1x512xf32> to vector<1x512xf32>
    %505 = vector.broadcast %504 : vector<1x512xf32> to vector<8x512xf32>
    %506 = arith.addf %502, %505 : vector<8x512xf32>
    %507 = vector.extract_strided_slice %506 {offsets = [0, 0], sizes = [8, 128], strides = [1, 1]} : vector<8x512xf32> to vector<8x128xf32>
    %508 = arith.negf %507 : vector<8x128xf32>
    %509 = math.exp %508 : vector<8x128xf32>
    %cst_272 = arith.constant 1.000000e+00 : f32
    %510 = vector.broadcast %cst_272 : f32 to vector<8x128xf32>
    %511 = arith.addf %510, %509 : vector<8x128xf32>
    %512 = arith.divf %510, %511 : vector<8x128xf32>
    %513 = vector.extract_strided_slice %506 {offsets = [0, 128], sizes = [8, 128], strides = [1, 1]} : vector<8x512xf32> to vector<8x128xf32>
    %514 = arith.negf %513 : vector<8x128xf32>
    %515 = math.exp %514 : vector<8x128xf32>
    %cst_273 = arith.constant 1.000000e+00 : f32
    %516 = vector.broadcast %cst_273 : f32 to vector<8x128xf32>
    %517 = arith.addf %516, %515 : vector<8x128xf32>
    %518 = arith.divf %516, %517 : vector<8x128xf32>
    %519 = vector.extract_strided_slice %506 {offsets = [0, 256], sizes = [8, 128], strides = [1, 1]} : vector<8x512xf32> to vector<8x128xf32>
    %520 = math.tanh %519 : vector<8x128xf32>
    %521 = vector.extract_strided_slice %506 {offsets = [0, 384], sizes = [8, 128], strides = [1, 1]} : vector<8x512xf32> to vector<8x128xf32>
    %522 = arith.negf %521 : vector<8x128xf32>
    %523 = math.exp %522 : vector<8x128xf32>
    %cst_274 = arith.constant 1.000000e+00 : f32
    %524 = vector.broadcast %cst_274 : f32 to vector<8x128xf32>
    %525 = arith.addf %524, %523 : vector<8x128xf32>
    %526 = arith.divf %524, %525 : vector<8x128xf32>
    %527 = arith.mulf %518, %498 : vector<8x128xf32>
    %528 = arith.mulf %512, %520 : vector<8x128xf32>
    %529 = arith.addf %527, %528 : vector<8x128xf32>
    %530 = math.tanh %529 : vector<8x128xf32>
    %531 = arith.mulf %526, %530 : vector<8x128xf32>
    %c1_275 = arith.constant 1 : index
    %c0_276 = arith.constant 0 : index
    %c0_277 = arith.constant 0 : index
    %532 = vector.load %arg8[%c1_275, %c0_276, %c0_277] : memref<2x8x128xf32, #tpu.memory_space<vmem>>, vector<1x8x128xf32>
    %533 = vector.shape_cast %532 : vector<1x8x128xf32> to vector<8x128xf32>
    %534 = vector.shape_cast %529 : vector<8x128xf32> to vector<1x8x128xf32>
    tpu.vector_store %arg8[%c1_275, %c0_276, %c0_277], %534 {strides = array<i32>} : memref<2x8x128xf32, #tpu.memory_space<vmem>>, vector<1x8x128xf32>,
    %c1_278 = arith.constant 1 : index
    %c0_279 = arith.constant 0 : index
    %c0_280 = arith.constant 0 : index
    %535 = vector.load %arg7[%c1_278, %c0_279, %c0_280] : memref<2x8x128xf32, #tpu.memory_space<vmem>>, vector<1x8x128xf32>
    %536 = vector.shape_cast %535 : vector<1x8x128xf32> to vector<8x128xf32>
    %537 = vector.shape_cast %531 : vector<8x128xf32> to vector<1x8x128xf32>
    tpu.vector_store %arg7[%c1_278, %c0_279, %c0_280], %537 {strides = array<i32>} : memref<2x8x128xf32, #tpu.memory_space<vmem>>, vector<1x8x128xf32>,
    %c6_i32 = arith.constant 6 : i32
    %538 = arith.index_cast %c6_i32 : i32 to index
    %c0_281 = arith.constant 0 : index
    %c0_282 = arith.constant 0 : index
    %539 = vector.load %arg1[%538, %c0_281, %c0_282] : memref<8x8x128xf32, #tpu.memory_space<vmem>>, vector<1x8x128xf32>
    %540 = vector.shape_cast %539 : vector<1x8x128xf32> to vector<8x128xf32>
    %c0_283 = arith.constant 0 : index
    %c0_284 = arith.constant 0 : index
    %c0_285 = arith.constant 0 : index
    %541 = vector.load %arg7[%c0_283, %c0_284, %c0_285] : memref<2x8x128xf32, #tpu.memory_space<vmem>>, vector<1x8x128xf32>
    %542 = vector.shape_cast %541 : vector<1x8x128xf32> to vector<8x128xf32>
    %c0_286 = arith.constant 0 : index
    %c0_287 = arith.constant 0 : index
    %c0_288 = arith.constant 0 : index
    %543 = vector.load %arg8[%c0_286, %c0_287, %c0_288] : memref<2x8x128xf32, #tpu.memory_space<vmem>>, vector<1x8x128xf32>
    %544 = vector.shape_cast %543 : vector<1x8x128xf32> to vector<8x128xf32>
    %545 = tpu.concatenate %540, %542 in 1 : vector<8x128xf32>, vector<8x128xf32> -> vector<8x256xf32>
    %c0_289 = arith.constant 0 : index
    %c0_290 = arith.constant 0 : index
    %c0_291 = arith.constant 0 : index
    %546 = vector.load %arg2[%c0_289, %c0_290, %c0_291] : memref<2x256x512xf32, #tpu.memory_space<vmem>>, vector<1x256x512xf32>
    %547 = vector.shape_cast %546 : vector<1x256x512xf32> to vector<256x512xf32>
    %cst_292 = arith.constant dense<0.000000e+00> : vector<8x512xf32>
    %548 = tpu.matmul %545, %547, %cst_292 {dimension_numbers = #tpu.dot_dimension_numbers<[1], [0], [0], [1], [0, 0, 1, 1], [], []>} : vector<8x256xf32>, vector<256x512xf32>, vector<8x512xf32> -> vector<8x512xf32>
    %c0_293 = arith.constant 0 : index
    %c0_294 = arith.constant 0 : index
    %c0_295 = arith.constant 0 : index
    %549 = vector.load %arg3[%c0_293, %c0_294, %c0_295] : memref<2x1x512xf32, #tpu.memory_space<vmem>>, vector<1x1x512xf32>
    %550 = vector.shape_cast %549 : vector<1x1x512xf32> to vector<1x512xf32>
    %551 = vector.broadcast %550 : vector<1x512xf32> to vector<8x512xf32>
    %552 = arith.addf %548, %551 : vector<8x512xf32>
    %553 = vector.extract_strided_slice %552 {offsets = [0, 0], sizes = [8, 128], strides = [1, 1]} : vector<8x512xf32> to vector<8x128xf32>
    %554 = arith.negf %553 : vector<8x128xf32>
    %555 = math.exp %554 : vector<8x128xf32>
    %cst_296 = arith.constant 1.000000e+00 : f32
    %556 = vector.broadcast %cst_296 : f32 to vector<8x128xf32>
    %557 = arith.addf %556, %555 : vector<8x128xf32>
    %558 = arith.divf %556, %557 : vector<8x128xf32>
    %559 = vector.extract_strided_slice %552 {offsets = [0, 128], sizes = [8, 128], strides = [1, 1]} : vector<8x512xf32> to vector<8x128xf32>
    %560 = arith.negf %559 : vector<8x128xf32>
    %561 = math.exp %560 : vector<8x128xf32>
    %cst_297 = arith.constant 1.000000e+00 : f32
    %562 = vector.broadcast %cst_297 : f32 to vector<8x128xf32>
    %563 = arith.addf %562, %561 : vector<8x128xf32>
    %564 = arith.divf %562, %563 : vector<8x128xf32>
    %565 = vector.extract_strided_slice %552 {offsets = [0, 256], sizes = [8, 128], strides = [1, 1]} : vector<8x512xf32> to vector<8x128xf32>
    %566 = math.tanh %565 : vector<8x128xf32>
    %567 = vector.extract_strided_slice %552 {offsets = [0, 384], sizes = [8, 128], strides = [1, 1]} : vector<8x512xf32> to vector<8x128xf32>
    %568 = arith.negf %567 : vector<8x128xf32>
    %569 = math.exp %568 : vector<8x128xf32>
    %cst_298 = arith.constant 1.000000e+00 : f32
    %570 = vector.broadcast %cst_298 : f32 to vector<8x128xf32>
    %571 = arith.addf %570, %569 : vector<8x128xf32>
    %572 = arith.divf %570, %571 : vector<8x128xf32>
    %573 = arith.mulf %564, %544 : vector<8x128xf32>
    %574 = arith.mulf %558, %566 : vector<8x128xf32>
    %575 = arith.addf %573, %574 : vector<8x128xf32>
    %576 = math.tanh %575 : vector<8x128xf32>
    %577 = arith.mulf %572, %576 : vector<8x128xf32>
    %c0_299 = arith.constant 0 : index
    %c0_300 = arith.constant 0 : index
    %c0_301 = arith.constant 0 : index
    %578 = vector.load %arg8[%c0_299, %c0_300, %c0_301] : memref<2x8x128xf32, #tpu.memory_space<vmem>>, vector<1x8x128xf32>
    %579 = vector.shape_cast %578 : vector<1x8x128xf32> to vector<8x128xf32>
    %580 = vector.shape_cast %575 : vector<8x128xf32> to vector<1x8x128xf32>
    tpu.vector_store %arg8[%c0_299, %c0_300, %c0_301], %580 {strides = array<i32>} : memref<2x8x128xf32, #tpu.memory_space<vmem>>, vector<1x8x128xf32>,
    %c0_302 = arith.constant 0 : index
    %c0_303 = arith.constant 0 : index
    %c0_304 = arith.constant 0 : index
    %581 = vector.load %arg7[%c0_302, %c0_303, %c0_304] : memref<2x8x128xf32, #tpu.memory_space<vmem>>, vector<1x8x128xf32>
    %582 = vector.shape_cast %581 : vector<1x8x128xf32> to vector<8x128xf32>
    %583 = vector.shape_cast %577 : vector<8x128xf32> to vector<1x8x128xf32>
    tpu.vector_store %arg7[%c0_302, %c0_303, %c0_304], %583 {strides = array<i32>} : memref<2x8x128xf32, #tpu.memory_space<vmem>>, vector<1x8x128xf32>,
    %c1_305 = arith.constant 1 : index
    %c0_306 = arith.constant 0 : index
    %c0_307 = arith.constant 0 : index
    %584 = vector.load %arg7[%c1_305, %c0_306, %c0_307] : memref<2x8x128xf32, #tpu.memory_space<vmem>>, vector<1x8x128xf32>
    %585 = vector.shape_cast %584 : vector<1x8x128xf32> to vector<8x128xf32>
    %c1_308 = arith.constant 1 : index
    %c0_309 = arith.constant 0 : index
    %c0_310 = arith.constant 0 : index
    %586 = vector.load %arg8[%c1_308, %c0_309, %c0_310] : memref<2x8x128xf32, #tpu.memory_space<vmem>>, vector<1x8x128xf32>
    %587 = vector.shape_cast %586 : vector<1x8x128xf32> to vector<8x128xf32>
    %588 = tpu.concatenate %577, %585 in 1 : vector<8x128xf32>, vector<8x128xf32> -> vector<8x256xf32>
    %c1_311 = arith.constant 1 : index
    %c0_312 = arith.constant 0 : index
    %c0_313 = arith.constant 0 : index
    %589 = vector.load %arg2[%c1_311, %c0_312, %c0_313] : memref<2x256x512xf32, #tpu.memory_space<vmem>>, vector<1x256x512xf32>
    %590 = vector.shape_cast %589 : vector<1x256x512xf32> to vector<256x512xf32>
    %cst_314 = arith.constant dense<0.000000e+00> : vector<8x512xf32>
    %591 = tpu.matmul %588, %590, %cst_314 {dimension_numbers = #tpu.dot_dimension_numbers<[1], [0], [0], [1], [0, 0, 1, 1], [], []>} : vector<8x256xf32>, vector<256x512xf32>, vector<8x512xf32> -> vector<8x512xf32>
    %c1_315 = arith.constant 1 : index
    %c0_316 = arith.constant 0 : index
    %c0_317 = arith.constant 0 : index
    %592 = vector.load %arg3[%c1_315, %c0_316, %c0_317] : memref<2x1x512xf32, #tpu.memory_space<vmem>>, vector<1x1x512xf32>
    %593 = vector.shape_cast %592 : vector<1x1x512xf32> to vector<1x512xf32>
    %594 = vector.broadcast %593 : vector<1x512xf32> to vector<8x512xf32>
    %595 = arith.addf %591, %594 : vector<8x512xf32>
    %596 = vector.extract_strided_slice %595 {offsets = [0, 0], sizes = [8, 128], strides = [1, 1]} : vector<8x512xf32> to vector<8x128xf32>
    %597 = arith.negf %596 : vector<8x128xf32>
    %598 = math.exp %597 : vector<8x128xf32>
    %cst_318 = arith.constant 1.000000e+00 : f32
    %599 = vector.broadcast %cst_318 : f32 to vector<8x128xf32>
    %600 = arith.addf %599, %598 : vector<8x128xf32>
    %601 = arith.divf %599, %600 : vector<8x128xf32>
    %602 = vector.extract_strided_slice %595 {offsets = [0, 128], sizes = [8, 128], strides = [1, 1]} : vector<8x512xf32> to vector<8x128xf32>
    %603 = arith.negf %602 : vector<8x128xf32>
    %604 = math.exp %603 : vector<8x128xf32>
    %cst_319 = arith.constant 1.000000e+00 : f32
    %605 = vector.broadcast %cst_319 : f32 to vector<8x128xf32>
    %606 = arith.addf %605, %604 : vector<8x128xf32>
    %607 = arith.divf %605, %606 : vector<8x128xf32>
    %608 = vector.extract_strided_slice %595 {offsets = [0, 256], sizes = [8, 128], strides = [1, 1]} : vector<8x512xf32> to vector<8x128xf32>
    %609 = math.tanh %608 : vector<8x128xf32>
    %610 = vector.extract_strided_slice %595 {offsets = [0, 384], sizes = [8, 128], strides = [1, 1]} : vector<8x512xf32> to vector<8x128xf32>
    %611 = arith.negf %610 : vector<8x128xf32>
    %612 = math.exp %611 : vector<8x128xf32>
    %cst_320 = arith.constant 1.000000e+00 : f32
    %613 = vector.broadcast %cst_320 : f32 to vector<8x128xf32>
    %614 = arith.addf %613, %612 : vector<8x128xf32>
    %615 = arith.divf %613, %614 : vector<8x128xf32>
    %616 = arith.mulf %607, %587 : vector<8x128xf32>
    %617 = arith.mulf %601, %609 : vector<8x128xf32>
    %618 = arith.addf %616, %617 : vector<8x128xf32>
    %619 = math.tanh %618 : vector<8x128xf32>
    %620 = arith.mulf %615, %619 : vector<8x128xf32>
    %c1_321 = arith.constant 1 : index
    %c0_322 = arith.constant 0 : index
    %c0_323 = arith.constant 0 : index
    %621 = vector.load %arg8[%c1_321, %c0_322, %c0_323] : memref<2x8x128xf32, #tpu.memory_space<vmem>>, vector<1x8x128xf32>
    %622 = vector.shape_cast %621 : vector<1x8x128xf32> to vector<8x128xf32>
    %623 = vector.shape_cast %618 : vector<8x128xf32> to vector<1x8x128xf32>
    tpu.vector_store %arg8[%c1_321, %c0_322, %c0_323], %623 {strides = array<i32>} : memref<2x8x128xf32, #tpu.memory_space<vmem>>, vector<1x8x128xf32>,
    %c1_324 = arith.constant 1 : index
    %c0_325 = arith.constant 0 : index
    %c0_326 = arith.constant 0 : index
    %624 = vector.load %arg7[%c1_324, %c0_325, %c0_326] : memref<2x8x128xf32, #tpu.memory_space<vmem>>, vector<1x8x128xf32>
    %625 = vector.shape_cast %624 : vector<1x8x128xf32> to vector<8x128xf32>
    %626 = vector.shape_cast %620 : vector<8x128xf32> to vector<1x8x128xf32>
    tpu.vector_store %arg7[%c1_324, %c0_325, %c0_326], %626 {strides = array<i32>} : memref<2x8x128xf32, #tpu.memory_space<vmem>>, vector<1x8x128xf32>,
    %c7_i32 = arith.constant 7 : i32
    %627 = arith.index_cast %c7_i32 : i32 to index
    %c0_327 = arith.constant 0 : index
    %c0_328 = arith.constant 0 : index
    %628 = vector.load %arg1[%627, %c0_327, %c0_328] : memref<8x8x128xf32, #tpu.memory_space<vmem>>, vector<1x8x128xf32>
    %629 = vector.shape_cast %628 : vector<1x8x128xf32> to vector<8x128xf32>
    %c0_329 = arith.constant 0 : index
    %c0_330 = arith.constant 0 : index
    %c0_331 = arith.constant 0 : index
    %630 = vector.load %arg7[%c0_329, %c0_330, %c0_331] : memref<2x8x128xf32, #tpu.memory_space<vmem>>, vector<1x8x128xf32>
    %631 = vector.shape_cast %630 : vector<1x8x128xf32> to vector<8x128xf32>
    %c0_332 = arith.constant 0 : index
    %c0_333 = arith.constant 0 : index
    %c0_334 = arith.constant 0 : index
    %632 = vector.load %arg8[%c0_332, %c0_333, %c0_334] : memref<2x8x128xf32, #tpu.memory_space<vmem>>, vector<1x8x128xf32>
    %633 = vector.shape_cast %632 : vector<1x8x128xf32> to vector<8x128xf32>
    %634 = tpu.concatenate %629, %631 in 1 : vector<8x128xf32>, vector<8x128xf32> -> vector<8x256xf32>
    %c0_335 = arith.constant 0 : index
    %c0_336 = arith.constant 0 : index
    %c0_337 = arith.constant 0 : index
    %635 = vector.load %arg2[%c0_335, %c0_336, %c0_337] : memref<2x256x512xf32, #tpu.memory_space<vmem>>, vector<1x256x512xf32>
    %636 = vector.shape_cast %635 : vector<1x256x512xf32> to vector<256x512xf32>
    %cst_338 = arith.constant dense<0.000000e+00> : vector<8x512xf32>
    %637 = tpu.matmul %634, %636, %cst_338 {dimension_numbers = #tpu.dot_dimension_numbers<[1], [0], [0], [1], [0, 0, 1, 1], [], []>} : vector<8x256xf32>, vector<256x512xf32>, vector<8x512xf32> -> vector<8x512xf32>
    %c0_339 = arith.constant 0 : index
    %c0_340 = arith.constant 0 : index
    %c0_341 = arith.constant 0 : index
    %638 = vector.load %arg3[%c0_339, %c0_340, %c0_341] : memref<2x1x512xf32, #tpu.memory_space<vmem>>, vector<1x1x512xf32>
    %639 = vector.shape_cast %638 : vector<1x1x512xf32> to vector<1x512xf32>
    %640 = vector.broadcast %639 : vector<1x512xf32> to vector<8x512xf32>
    %641 = arith.addf %637, %640 : vector<8x512xf32>
    %642 = vector.extract_strided_slice %641 {offsets = [0, 0], sizes = [8, 128], strides = [1, 1]} : vector<8x512xf32> to vector<8x128xf32>
    %643 = arith.negf %642 : vector<8x128xf32>
    %644 = math.exp %643 : vector<8x128xf32>
    %cst_342 = arith.constant 1.000000e+00 : f32
    %645 = vector.broadcast %cst_342 : f32 to vector<8x128xf32>
    %646 = arith.addf %645, %644 : vector<8x128xf32>
    %647 = arith.divf %645, %646 : vector<8x128xf32>
    %648 = vector.extract_strided_slice %641 {offsets = [0, 128], sizes = [8, 128], strides = [1, 1]} : vector<8x512xf32> to vector<8x128xf32>
    %649 = arith.negf %648 : vector<8x128xf32>
    %650 = math.exp %649 : vector<8x128xf32>
    %cst_343 = arith.constant 1.000000e+00 : f32
    %651 = vector.broadcast %cst_343 : f32 to vector<8x128xf32>
    %652 = arith.addf %651, %650 : vector<8x128xf32>
    %653 = arith.divf %651, %652 : vector<8x128xf32>
    %654 = vector.extract_strided_slice %641 {offsets = [0, 256], sizes = [8, 128], strides = [1, 1]} : vector<8x512xf32> to vector<8x128xf32>
    %655 = math.tanh %654 : vector<8x128xf32>
    %656 = vector.extract_strided_slice %641 {offsets = [0, 384], sizes = [8, 128], strides = [1, 1]} : vector<8x512xf32> to vector<8x128xf32>
    %657 = arith.negf %656 : vector<8x128xf32>
    %658 = math.exp %657 : vector<8x128xf32>
    %cst_344 = arith.constant 1.000000e+00 : f32
    %659 = vector.broadcast %cst_344 : f32 to vector<8x128xf32>
    %660 = arith.addf %659, %658 : vector<8x128xf32>
    %661 = arith.divf %659, %660 : vector<8x128xf32>
    %662 = arith.mulf %653, %633 : vector<8x128xf32>
    %663 = arith.mulf %647, %655 : vector<8x128xf32>
    %664 = arith.addf %662, %663 : vector<8x128xf32>
    %665 = math.tanh %664 : vector<8x128xf32>
    %666 = arith.mulf %661, %665 : vector<8x128xf32>
    %c0_345 = arith.constant 0 : index
    %c0_346 = arith.constant 0 : index
    %c0_347 = arith.constant 0 : index
    %667 = vector.load %arg8[%c0_345, %c0_346, %c0_347] : memref<2x8x128xf32, #tpu.memory_space<vmem>>, vector<1x8x128xf32>
    %668 = vector.shape_cast %667 : vector<1x8x128xf32> to vector<8x128xf32>
    %669 = vector.shape_cast %664 : vector<8x128xf32> to vector<1x8x128xf32>
    tpu.vector_store %arg8[%c0_345, %c0_346, %c0_347], %669 {strides = array<i32>} : memref<2x8x128xf32, #tpu.memory_space<vmem>>, vector<1x8x128xf32>,
    %c0_348 = arith.constant 0 : index
    %c0_349 = arith.constant 0 : index
    %c0_350 = arith.constant 0 : index
    %670 = vector.load %arg7[%c0_348, %c0_349, %c0_350] : memref<2x8x128xf32, #tpu.memory_space<vmem>>, vector<1x8x128xf32>
    %671 = vector.shape_cast %670 : vector<1x8x128xf32> to vector<8x128xf32>
    %672 = vector.shape_cast %666 : vector<8x128xf32> to vector<1x8x128xf32>
    tpu.vector_store %arg7[%c0_348, %c0_349, %c0_350], %672 {strides = array<i32>} : memref<2x8x128xf32, #tpu.memory_space<vmem>>, vector<1x8x128xf32>,
    %c1_351 = arith.constant 1 : index
    %c0_352 = arith.constant 0 : index
    %c0_353 = arith.constant 0 : index
    %673 = vector.load %arg7[%c1_351, %c0_352, %c0_353] : memref<2x8x128xf32, #tpu.memory_space<vmem>>, vector<1x8x128xf32>
    %674 = vector.shape_cast %673 : vector<1x8x128xf32> to vector<8x128xf32>
    %c1_354 = arith.constant 1 : index
    %c0_355 = arith.constant 0 : index
    %c0_356 = arith.constant 0 : index
    %675 = vector.load %arg8[%c1_354, %c0_355, %c0_356] : memref<2x8x128xf32, #tpu.memory_space<vmem>>, vector<1x8x128xf32>
    %676 = vector.shape_cast %675 : vector<1x8x128xf32> to vector<8x128xf32>
    %677 = tpu.concatenate %666, %674 in 1 : vector<8x128xf32>, vector<8x128xf32> -> vector<8x256xf32>
    %c1_357 = arith.constant 1 : index
    %c0_358 = arith.constant 0 : index
    %c0_359 = arith.constant 0 : index
    %678 = vector.load %arg2[%c1_357, %c0_358, %c0_359] : memref<2x256x512xf32, #tpu.memory_space<vmem>>, vector<1x256x512xf32>
    %679 = vector.shape_cast %678 : vector<1x256x512xf32> to vector<256x512xf32>
    %cst_360 = arith.constant dense<0.000000e+00> : vector<8x512xf32>
    %680 = tpu.matmul %677, %679, %cst_360 {dimension_numbers = #tpu.dot_dimension_numbers<[1], [0], [0], [1], [0, 0, 1, 1], [], []>} : vector<8x256xf32>, vector<256x512xf32>, vector<8x512xf32> -> vector<8x512xf32>
    %c1_361 = arith.constant 1 : index
    %c0_362 = arith.constant 0 : index
    %c0_363 = arith.constant 0 : index
    %681 = vector.load %arg3[%c1_361, %c0_362, %c0_363] : memref<2x1x512xf32, #tpu.memory_space<vmem>>, vector<1x1x512xf32>
    %682 = vector.shape_cast %681 : vector<1x1x512xf32> to vector<1x512xf32>
    %683 = vector.broadcast %682 : vector<1x512xf32> to vector<8x512xf32>
    %684 = arith.addf %680, %683 : vector<8x512xf32>
    %685 = vector.extract_strided_slice %684 {offsets = [0, 0], sizes = [8, 128], strides = [1, 1]} : vector<8x512xf32> to vector<8x128xf32>
    %686 = arith.negf %685 : vector<8x128xf32>
    %687 = math.exp %686 : vector<8x128xf32>
    %cst_364 = arith.constant 1.000000e+00 : f32
    %688 = vector.broadcast %cst_364 : f32 to vector<8x128xf32>
    %689 = arith.addf %688, %687 : vector<8x128xf32>
    %690 = arith.divf %688, %689 : vector<8x128xf32>
    %691 = vector.extract_strided_slice %684 {offsets = [0, 128], sizes = [8, 128], strides = [1, 1]} : vector<8x512xf32> to vector<8x128xf32>
    %692 = arith.negf %691 : vector<8x128xf32>
    %693 = math.exp %692 : vector<8x128xf32>
    %cst_365 = arith.constant 1.000000e+00 : f32
    %694 = vector.broadcast %cst_365 : f32 to vector<8x128xf32>
    %695 = arith.addf %694, %693 : vector<8x128xf32>
    %696 = arith.divf %694, %695 : vector<8x128xf32>
    %697 = vector.extract_strided_slice %684 {offsets = [0, 256], sizes = [8, 128], strides = [1, 1]} : vector<8x512xf32> to vector<8x128xf32>
    %698 = math.tanh %697 : vector<8x128xf32>
    %699 = vector.extract_strided_slice %684 {offsets = [0, 384], sizes = [8, 128], strides = [1, 1]} : vector<8x512xf32> to vector<8x128xf32>
    %700 = arith.negf %699 : vector<8x128xf32>
    %701 = math.exp %700 : vector<8x128xf32>
    %cst_366 = arith.constant 1.000000e+00 : f32
    %702 = vector.broadcast %cst_366 : f32 to vector<8x128xf32>
    %703 = arith.addf %702, %701 : vector<8x128xf32>
    %704 = arith.divf %702, %703 : vector<8x128xf32>
    %705 = arith.mulf %696, %676 : vector<8x128xf32>
    %706 = arith.mulf %690, %698 : vector<8x128xf32>
    %707 = arith.addf %705, %706 : vector<8x128xf32>
    %708 = math.tanh %707 : vector<8x128xf32>
    %709 = arith.mulf %704, %708 : vector<8x128xf32>
    %c1_367 = arith.constant 1 : index
    %c0_368 = arith.constant 0 : index
    %c0_369 = arith.constant 0 : index
    %710 = vector.load %arg8[%c1_367, %c0_368, %c0_369] : memref<2x8x128xf32, #tpu.memory_space<vmem>>, vector<1x8x128xf32>
    %711 = vector.shape_cast %710 : vector<1x8x128xf32> to vector<8x128xf32>
    %712 = vector.shape_cast %707 : vector<8x128xf32> to vector<1x8x128xf32>
    tpu.vector_store %arg8[%c1_367, %c0_368, %c0_369], %712 {strides = array<i32>} : memref<2x8x128xf32, #tpu.memory_space<vmem>>, vector<1x8x128xf32>,
    %c1_370 = arith.constant 1 : index
    %c0_371 = arith.constant 0 : index
    %c0_372 = arith.constant 0 : index
    %713 = vector.load %arg7[%c1_370, %c0_371, %c0_372] : memref<2x8x128xf32, #tpu.memory_space<vmem>>, vector<1x8x128xf32>
    %714 = vector.shape_cast %713 : vector<1x8x128xf32> to vector<8x128xf32>
    %715 = vector.shape_cast %709 : vector<8x128xf32> to vector<1x8x128xf32>
    tpu.vector_store %arg7[%c1_370, %c0_371, %c0_372], %715 {strides = array<i32>} : memref<2x8x128xf32, #tpu.memory_space<vmem>>, vector<1x8x128xf32>,
    %c8_i32 = arith.constant 8 : i32
    %c1_373 = arith.constant 1 : index
    %c0_374 = arith.constant 0 : index
    %c0_375 = arith.constant 0 : index
    %716 = vector.load %arg7[%c1_373, %c0_374, %c0_375] : memref<2x8x128xf32, #tpu.memory_space<vmem>>, vector<1x8x128xf32>
    %717 = vector.shape_cast %716 : vector<1x8x128xf32> to vector<8x128xf32>
    %c0_376 = arith.constant 0 : index
    %c0_377 = arith.constant 0 : index
    %718 = vector.load %arg4[%c0_376, %c0_377] : memref<128x128xf32, #tpu.memory_space<vmem>>, vector<128x128xf32>
    %cst_378 = arith.constant dense<0.000000e+00> : vector<8x128xf32>
    %719 = tpu.matmul %717, %718, %cst_378 {dimension_numbers = #tpu.dot_dimension_numbers<[1], [0], [0], [1], [0, 0, 1, 1], [], []>} : vector<8x128xf32>, vector<128x128xf32>, vector<8x128xf32> -> vector<8x128xf32>
    %c0_379 = arith.constant 0 : index
    %c0_380 = arith.constant 0 : index
    %720 = vector.load %arg5[%c0_379, %c0_380] : memref<1x128xf32, #tpu.memory_space<vmem>>, vector<1x128xf32>
    %721 = vector.broadcast %720 : vector<1x128xf32> to vector<8x128xf32>
    %722 = arith.addf %719, %721 : vector<8x128xf32>
    %723 = arith.negf %722 : vector<8x128xf32>
    %724 = math.exp %723 : vector<8x128xf32>
    %cst_381 = arith.constant 1.000000e+00 : f32
    %725 = vector.broadcast %cst_381 : f32 to vector<8x128xf32>
    %726 = arith.addf %725, %724 : vector<8x128xf32>
    %727 = arith.divf %725, %726 : vector<8x128xf32>
    %c0_382 = arith.constant 0 : index
    %c0_383 = arith.constant 0 : index
    %728 = vector.load %arg6[%c0_382, %c0_383] : memref<8x128xf32, #tpu.memory_space<vmem>>, vector<8x128xf32>
    tpu.vector_store %arg6[%c0_382, %c0_383], %727 {strides = array<i32>} : memref<8x128xf32, #tpu.memory_space<vmem>>, vector<8x128xf32>,
    return
  }
  func.func @transform_0(%arg0: i32) -> (i32, i32, i32) {
    %c0_i32 = arith.constant 0 : i32
    %c0_i32_0 = arith.constant 0 : i32
    %c0_i32_1 = arith.constant 0 : i32
    %c0_i32_2 = arith.constant 0 : i32
    return %c0_i32, %c0_i32_0, %c0_i32_1 : i32, i32, i32
  }
  func.func @transform_1(%arg0: i32) -> (i32, i32, i32) {
    %c0_i32 = arith.constant 0 : i32
    %c0_i32_0 = arith.constant 0 : i32
    %c0_i32_1 = arith.constant 0 : i32
    %c0_i32_2 = arith.constant 0 : i32
    return %c0_i32, %c0_i32_0, %c0_i32_1 : i32, i32, i32
  }
  func.func @transform_2(%arg0: i32) -> (i32, i32, i32) {
    %c0_i32 = arith.constant 0 : i32
    %c0_i32_0 = arith.constant 0 : i32
    %c0_i32_1 = arith.constant 0 : i32
    %c0_i32_2 = arith.constant 0 : i32
    return %c0_i32, %c0_i32_0, %c0_i32_1 : i32, i32, i32
  }
  func.func @transform_3(%arg0: i32) -> (i32, i32) {
    %c0_i32 = arith.constant 0 : i32
    %c0_i32_0 = arith.constant 0 : i32
    %c0_i32_1 = arith.constant 0 : i32
    return %c0_i32, %c0_i32_0 : i32, i32
  }
  func.func @transform_4(%arg0: i32) -> (i32, i32) {
    %c0_i32 = arith.constant 0 : i32
    %c0_i32_0 = arith.constant 0 : i32
    %c0_i32_1 = arith.constant 0 : i32
    return %c0_i32, %c0_i32_0 : i32, i32
  }
  func.func @transform_5(%arg0: i32) -> (i32, i32) {
    %c0_i32 = arith.constant 0 : i32
    %c0_i32_0 = arith.constant 0 : i32
    %c0_i32_1 = arith.constant 0 : i32
    return %c0_i32, %c0_i32_0 : i32, i32
  }
}

</mosaic_0001>

<llo_original>
// kernel: tpu_custom_call.1
$region0: #{tpu_custom_call.1}
  #allocation0 [shape = 'u32[]', space=smem, size = 0x4, offset = 0x4, fixed_abs, tag = 'smem constant byte address 0x4 - core index']
  #allocation1 [shape = 'u32[144,128]{1,0:T(1,128)}', space=vmem, size = 0x12000, scoped, tag = 'internal scratch']
  #allocation2 [shape = 'f32[2,8,128]{2,1,0:T(8,128)}', space=vmem, size = 0x2000, scoped, tag = 'scratch operand']
  #allocation3 [shape = 'f32[2,8,128]{2,1,0:T(8,128)}', space=vmem, size = 0x2000, scoped, tag = 'scratch operand']
  %s0 = inlined_call_operand.hbm [shape: f32[8,8,128], index: 0, kind: input, shape index: {}]
  %s1 = inlined_call_operand.hbm [shape: f32[2,256,512], index: 1, kind: input, shape index: {}]
  %s2 = inlined_call_operand.hbm [shape: f32[2,1,512], index: 2, kind: input, shape index: {}]
  %s3 = inlined_call_operand.hbm [shape: f32[128,128], index: 3, kind: input, shape index: {}]
  %s4 = inlined_call_operand.vmem [shape: f32[1,128], index: 4, kind: input, shape index: {}]
  %s5 = inlined_call_operand.hbm [shape: f32[8,128], index: 5, kind: output, shape index: {}]
  %s6 = sld [smem:[#allocation0]]
  $region46: #{tpu_custom_call.1} parent=0
    _
  %s8 = ssub.s32 1, %s6
  %s9 = scalar_select 0, %s8, %s6
  $region1: #{tpu_custom_call.1} parent=0
    #allocation4 [shape = 'u8[32768]{0}', space=vmem, size = 0x8000, scoped, tag = 'input window, operand 0, single buffered']
    #allocation5 [shape = 's32[1]{0}', space=sflag, size = 0x4, scoped, tag = 'scoped memory for tpu_custom_call.1']
    #allocation6 [shape = 's32[1]{0}', space=sflag, size = 0x4, scoped, tag = 'scoped memory for tpu_custom_call.1']
    #allocation7 [shape = 'u8[1048576]{0}', space=vmem, size = 0x100000, scoped, tag = 'input window, operand 1, single buffered']
    #allocation8 [shape = 's32[1]{0}', space=sflag, size = 0x4, scoped, tag = 'scoped memory for tpu_custom_call.1']
    #allocation9 [shape = 'u8[4096]{0}', space=vmem, size = 0x1000, scoped, tag = 'input window, operand 2, single buffered']
    #allocation10 [shape = 'u8[65536]{0}', space=vmem, size = 0x10000, scoped, tag = 'input window, operand 3, single buffered']
    #allocation11 [shape = 's32[1]{0}', space=sflag, size = 0x4, scoped, tag = 'scoped memory for tpu_custom_call.1']
    #allocation12 [shape = 'u8[4096]{0}', space=vmem, size = 0x1000, scoped, tag = 'output window, operand 0, single buffered']
    %10 = vsyncpa [#allocation5], 0
    %11 = vsyncpa [#allocation8], 0
    %12 = vsyncpa [#allocation11], 0
    %13 = vsyncpa [#allocation6], 0
    // Predicated region
    $region2: #{tpu_custom_call.1} parent=1 // pred_check
      _
    $region3: #{tpu_custom_call.1} parent=1 // pred_check_branch
      %15 = sbr.rel (0) target = $region5
    $region4: #{tpu_custom_call.1} parent=1 // pred_region
      %s17 = ssub.s32 1024, 1024
      %18 = vsyncadd [#allocation5], %s17
      %s19 = sshll.u32 [#allocation4], 4
      %s20 = int_to_ptr.vmem [resolvable:$true] %s19
      %25 = dma.hbm_to_vmem [thread:$0]  %s0, 1024, %s20, [#allocation5], 128, 128, 8
    $region5: #{tpu_custom_call.1} parent=1 // pred_fallthru
      _
    // Predicated region
    $region6: #{tpu_custom_call.1} parent=1 // pred_check
      _
    $region7: #{tpu_custom_call.1} parent=1 // pred_check_branch
      %27 = sbr.rel (0) target = $region9
    $region8: #{tpu_custom_call.1} parent=1 // pred_region
      %s29 = ssub.s32 32768, 32768
      %30 = vsyncadd [#allocation8], %s29
      %s31 = sshll.u32 [#allocation7], 4
      %s32 = int_to_ptr.vmem [resolvable:$true] %s31
      %37 = dma.hbm_to_vmem [thread:$0]  %s1, 32768, %s32, [#allocation8], 512, 512, 32
    $region9: #{tpu_custom_call.1} parent=1 // pred_fallthru
      _
    // Predicated region
    $region10: #{tpu_custom_call.1} parent=1 // pred_check
      _
    $region11: #{tpu_custom_call.1} parent=1 // pred_check_branch
      %39 = sbr.rel (0) target = $region13
    $region12: #{tpu_custom_call.1} parent=1 // pred_region
      %s41 = ssub.s32 128, 128
      %42 = vsyncadd [#allocation8], %s41
      %s43 = sshll.u32 [#allocation9], 4
      %s44 = int_to_ptr.vmem [resolvable:$true] %s43
      %49 = dma.hbm_to_vmem [thread:$0]  %s2, 128, %s44, [#allocation8], 64, 64, 4
    $region13: #{tpu_custom_call.1} parent=1 // pred_fallthru
      _
    // Predicated region
    $region14: #{tpu_custom_call.1} parent=1 // pred_check
      _
    $region15: #{tpu_custom_call.1} parent=1 // pred_check_branch
      %51 = sbr.rel (0) target = $region17
    $region16: #{tpu_custom_call.1} parent=1 // pred_region
      %s53 = ssub.s32 2048, 2048
      %54 = vsyncadd [#allocation11], %s53
      %s55 = sshll.u32 [#allocation10], 4
      %s56 = int_to_ptr.vmem [resolvable:$true] %s55
      %61 = dma.hbm_to_vmem [thread:$0]  %s3, 2048, %s56, [#allocation11], 128, 128, 8
    $region17: #{tpu_custom_call.1} parent=1 // pred_fallthru
      _
    // Predicated region
    $region18: #{tpu_custom_call.1} parent=1 // pred_check
      _
    $region19: #{tpu_custom_call.1} parent=1 // pred_check_branch
      %63 = sbr.rel (0) target = $region21
    $region20: #{tpu_custom_call.1} parent=1 // pred_region
      _
    $region21: #{tpu_custom_call.1} parent=1 // pred_fallthru
      _
    // Predicated region
    $region22: #{tpu_custom_call.1} parent=1 // pred_check
      _
    $region23: #{tpu_custom_call.1} parent=1 // pred_check_branch
      %65 = sbr.rel (0) target = $region25
    $region24: #{tpu_custom_call.1} parent=1 // pred_region
      %66 = dma.done [#allocation5], 1024
    $region25: #{tpu_custom_call.1} parent=1 // pred_fallthru
      _
    // Predicated region
    $region26: #{tpu_custom_call.1} parent=1 // pred_check
      _
    $region27: #{tpu_custom_call.1} parent=1 // pred_check_branch
      %68 = sbr.rel (0) target = $region29
    $region28: #{tpu_custom_call.1} parent=1 // pred_region
      %69 = dma.done [#allocation8], 32768
    $region29: #{tpu_custom_call.1} parent=1 // pred_fallthru
      _
    // Predicated region
    $region30: #{tpu_custom_call.1} parent=1 // pred_check
      _
    $region31: #{tpu_custom_call.1} parent=1 // pred_check_branch
      %71 = sbr.rel (0) target = $region33
    $region32: #{tpu_custom_call.1} parent=1 // pred_region
      %72 = dma.done [#allocation8], 128
    $region33: #{tpu_custom_call.1} parent=1 // pred_fallthru
      _
    // Predicated region
    $region34: #{tpu_custom_call.1} parent=1 // pred_check
      _
    $region35: #{tpu_custom_call.1} parent=1 // pred_check_branch
      %74 = sbr.rel (0) target = $region37
    $region36: #{tpu_custom_call.1} parent=1 // pred_region
      %75 = dma.done [#allocation11], 2048
    $region37: #{tpu_custom_call.1} parent=1 // pred_fallthru
      _
    %76 = vst [vmem:[#allocation2] sm:$0xff] 0.0
    %77 = vst [vmem:[#allocation2 + $0x8] sm:$0xff] 0.0
    %78 = vst [vmem:[#allocation3] sm:$0xff] 0.0
    %79 = vst [vmem:[#allocation3 + $0x8] sm:$0xff] 0.0
    %v80 = vld [vmem:[#allocation4] sm:$0xff]
    %v81 = vld [vmem:[#allocation2] sm:$0xff]
    %v82 = vld [vmem:[#allocation3] sm:$0xff]
    %v83 = vld [vmem:[#allocation7] sm:$0xff]
    %v84 = vld [vmem:[#allocation7 + $0x8] sm:$0xff]
    %v85 = vld [vmem:[#allocation7 + $0x10] sm:$0xff]
    %v86 = vld [vmem:[#allocation7 + $0x18] sm:$0xff]
    %v87 = vld [vmem:[#allocation7 + $0x20] sm:$0xff]
    %v88 = vld [vmem:[#allocation7 + $0x28] sm:$0xff]
    %v89 = vld [vmem:[#allocation7 + $0x30] sm:$0xff]
    %v90 = vld [vmem:[#allocation7 + $0x38] sm:$0xff]
    %v91 = vld [vmem:[#allocation7 + $0x40] sm:$0xff]
    %v92 = vld [vmem:[#allocation7 + $0x48] sm:$0xff]
    %v93 = vld [vmem:[#allocation7 + $0x50] sm:$0xff]
    %v94 = vld [vmem:[#allocation7 + $0x58] sm:$0xff]
    %v95 = vld [vmem:[#allocation7 + $0x60] sm:$0xff]
    %v96 = vld [vmem:[#allocation7 + $0x68] sm:$0xff]
    %v97 = vld [vmem:[#allocation7 + $0x70] sm:$0xff]
    %v98 = vld [vmem:[#allocation7 + $0x78] sm:$0xff]
    %v99 = vld [vmem:[#allocation7 + $0x80] sm:$0xff]
    %v100 = vld [vmem:[#allocation7 + $0x88] sm:$0xff]
    %v101 = vld [vmem:[#allocation7 + $0x90] sm:$0xff]
    %v102 = vld [vmem:[#allocation7 + $0x98] sm:$0xff]
    %v103 = vld [vmem:[#allocation7 + $0xa0] sm:$0xff]
    %v104 = vld [vmem:[#allocation7 + $0xa8] sm:$0xff]
    %v105 = vld [vmem:[#allocation7 + $0xb0] sm:$0xff]
    %v106 = vld [vmem:[#allocation7 + $0xb8] sm:$0xff]
    %v107 = vld [vmem:[#allocation7 + $0xc0] sm:$0xff]
    %v108 = vld [vmem:[#allocation7 + $0xc8] sm:$0xff]
    %v109 = vld [vmem:[#allocation7 + $0xd0] sm:$0xff]
    %v110 = vld [vmem:[#allocation7 + $0xd8] sm:$0xff]
    %v111 = vld [vmem:[#allocation7 + $0xe0] sm:$0xff]
    %v112 = vld [vmem:[#allocation7 + $0xe8] sm:$0xff]
    %v113 = vld [vmem:[#allocation7 + $0xf0] sm:$0xff]
    %v114 = vld [vmem:[#allocation7 + $0xf8] sm:$0xff]
    %v115 = vld [vmem:[#allocation7 + $0x100] sm:$0xff]
    %v116 = vld [vmem:[#allocation7 + $0x108] sm:$0xff]
    %v117 = vld [vmem:[#allocation7 + $0x110] sm:$0xff]
    %v118 = vld [vmem:[#allocation7 + $0x118] sm:$0xff]
    %v119 = vld [vmem:[#allocation7 + $0x120] sm:$0xff]
    %v120 = vld [vmem:[#allocation7 + $0x128] sm:$0xff]
    %v121 = vld [vmem:[#allocation7 + $0x130] sm:$0xff]
    %v122 = vld [vmem:[#allocation7 + $0x138] sm:$0xff]
    %v123 = vld [vmem:[#allocation7 + $0x140] sm:$0xff]
    %v124 = vld [vmem:[#allocation7 + $0x148] sm:$0xff]
    %v125 = vld [vmem:[#allocation7 + $0x150] sm:$0xff]
    %v126 = vld [vmem:[#allocation7 + $0x158] sm:$0xff]
    %v127 = vld [vmem:[#allocation7 + $0x160] sm:$0xff]
    %v128 = vld [vmem:[#allocation7 + $0x168] sm:$0xff]
    %v129 = vld [vmem:[#allocation7 + $0x170] sm:$0xff]
    %v130 = vld [vmem:[#allocation7 + $0x178] sm:$0xff]
    %v131 = vld [vmem:[#allocation7 + $0x180] sm:$0xff]
    %v132 = vld [vmem:[#allocation7 + $0x188] sm:$0xff]
    %v133 = vld [vmem:[#allocation7 + $0x190] sm:$0xff]
    %v134 = vld [vmem:[#allocation7 + $0x198] sm:$0xff]
    %v135 = vld [vmem:[#allocation7 + $0x1a0] sm:$0xff]
    %v136 = vld [vmem:[#allocation7 + $0x1a8] sm:$0xff]
    %v137 = vld [vmem:[#allocation7 + $0x1b0] sm:$0xff]
    %v138 = vld [vmem:[#allocation7 + $0x1b8] sm:$0xff]
    %v139 = vld [vmem:[#allocation7 + $0x1c0] sm:$0xff]
    %v140 = vld [vmem:[#allocation7 + $0x1c8] sm:$0xff]
    %v141 = vld [vmem:[#allocation7 + $0x1d0] sm:$0xff]
    %v142 = vld [vmem:[#allocation7 + $0x1d8] sm:$0xff]
    %v143 = vld [vmem:[#allocation7 + $0x1e0] sm:$0xff]
    %v144 = vld [vmem:[#allocation7 + $0x1e8] sm:$0xff]
    %v145 = vld [vmem:[#allocation7 + $0x1f0] sm:$0xff]
    %v146 = vld [vmem:[#allocation7 + $0x1f8] sm:$0xff]
    %v147 = vld [vmem:[#allocation7 + $0x200] sm:$0xff]
    %v148 = vld [vmem:[#allocation7 + $0x208] sm:$0xff]
    %v149 = vld [vmem:[#allocation7 + $0x210] sm:$0xff]
    %v150 = vld [vmem:[#allocation7 + $0x218] sm:$0xff]
    %v151 = vld [vmem:[#allocation7 + $0x220] sm:$0xff]
    %v152 = vld [vmem:[#allocation7 + $0x228] sm:$0xff]
    %v153 = vld [vmem:[#allocation7 + $0x230] sm:$0xff]
    %v154 = vld [vmem:[#allocation7 + $0x238] sm:$0xff]
    %v155 = vld [vmem:[#allocation7 + $0x240] sm:$0xff]
    %v156 = vld [vmem:[#allocation7 + $0x248] sm:$0xff]
    %v157 = vld [vmem:[#allocation7 + $0x250] sm:$0xff]
    %v158 = vld [vmem:[#allocation7 + $0x258] sm:$0xff]
    %v159 = vld [vmem:[#allocation7 + $0x260] sm:$0xff]
    %v160 = vld [vmem:[#allocation7 + $0x268] sm:$0xff]
    %v161 = vld [vmem:[#allocation7 + $0x270] sm:$0xff]
    %v162 = vld [vmem:[#allocation7 + $0x278] sm:$0xff]
    %v163 = vld [vmem:[#allocation7 + $0x280] sm:$0xff]
    %v164 = vld [vmem:[#allocation7 + $0x288] sm:$0xff]
    %v165 = vld [vmem:[#allocation7 + $0x290] sm:$0xff]
    %v166 = vld [vmem:[#allocation7 + $0x298] sm:$0xff]
    %v167 = vld [vmem:[#allocation7 + $0x2a0] sm:$0xff]
    %v168 = vld [vmem:[#allocation7 + $0x2a8] sm:$0xff]
    %v169 = vld [vmem:[#allocation7 + $0x2b0] sm:$0xff]
    %v170 = vld [vmem:[#allocation7 + $0x2b8] sm:$0xff]
    %v171 = vld [vmem:[#allocation7 + $0x2c0] sm:$0xff]
    %v172 = vld [vmem:[#allocation7 + $0x2c8] sm:$0xff]
    %v173 = vld [vmem:[#allocation7 + $0x2d0] sm:$0xff]
    %v174 = vld [vmem:[#allocation7 + $0x2d8] sm:$0xff]
    %v175 = vld [vmem:[#allocation7 + $0x2e0] sm:$0xff]
    %v176 = vld [vmem:[#allocation7 + $0x2e8] sm:$0xff]
    %v177 = vld [vmem:[#allocation7 + $0x2f0] sm:$0xff]
    %v178 = vld [vmem:[#allocation7 + $0x2f8] sm:$0xff]
    %v179 = vld [vmem:[#allocation7 + $0x300] sm:$0xff]
    %v180 = vld [vmem:[#allocation7 + $0x308] sm:$0xff]
    %v181 = vld [vmem:[#allocation7 + $0x310] sm:$0xff]
    %v182 = vld [vmem:[#allocation7 + $0x318] sm:$0xff]
    %v183 = vld [vmem:[#allocation7 + $0x320] sm:$0xff]
    %v184 = vld [vmem:[#allocation7 + $0x328] sm:$0xff]
    %v185 = vld [vmem:[#allocation7 + $0x330] sm:$0xff]
    %v186 = vld [vmem:[#allocation7 + $0x338] sm:$0xff]
    %v187 = vld [vmem:[#allocation7 + $0x340] sm:$0xff]
    %v188 = vld [vmem:[#allocation7 + $0x348] sm:$0xff]
    %v189 = vld [vmem:[#allocation7 + $0x350] sm:$0xff]
    %v190 = vld [vmem:[#allocation7 + $0x358] sm:$0xff]
    %v191 = vld [vmem:[#allocation7 + $0x360] sm:$0xff]
    %v192 = vld [vmem:[#allocation7 + $0x368] sm:$0xff]
    %v193 = vld [vmem:[#allocation7 + $0x370] sm:$0xff]
    %v194 = vld [vmem:[#allocation7 + $0x378] sm:$0xff]
    %v195 = vld [vmem:[#allocation7 + $0x380] sm:$0xff]
    %v196 = vld [vmem:[#allocation7 + $0x388] sm:$0xff]
    %v197 = vld [vmem:[#allocation7 + $0x390] sm:$0xff]
    %v198 = vld [vmem:[#allocation7 + $0x398] sm:$0xff]
    %v199 = vld [vmem:[#allocation7 + $0x3a0] sm:$0xff]
    %v200 = vld [vmem:[#allocation7 + $0x3a8] sm:$0xff]
    %v201 = vld [vmem:[#allocation7 + $0x3b0] sm:$0xff]
    %v202 = vld [vmem:[#allocation7 + $0x3b8] sm:$0xff]
    %v203 = vld [vmem:[#allocation7 + $0x3c0] sm:$0xff]
    %v204 = vld [vmem:[#allocation7 + $0x3c8] sm:$0xff]
    %v205 = vld [vmem:[#allocation7 + $0x3d0] sm:$0xff]
    %v206 = vld [vmem:[#allocation7 + $0x3d8] sm:$0xff]
    %v207 = vld [vmem:[#allocation7 + $0x3e0] sm:$0xff]
    %v208 = vld [vmem:[#allocation7 + $0x3e8] sm:$0xff]
    %v209 = vld [vmem:[#allocation7 + $0x3f0] sm:$0xff]
    %v210 = vld [vmem:[#allocation7 + $0x3f8] sm:$0xff]
    %v211 = vld [vmem:[#allocation9] sm:$0xf]
    %v213 = vlaneseq
    %v214 = vshrl.u32 %v213, 7
    %v215 = vsub.s32 0, %v214
    %v216 = vrot.slane %v211, %v215
    %v217 = vlaneseq
    %v218 = vshrl.u32 %v217, 7
    %v219 = vsub.s32 1, %v218
    %v220 = vrot.slane %v211, %v219
    %v221 = vlaneseq
    %v222 = vshrl.u32 %v221, 7
    %v223 = vsub.s32 2, %v222
    %v224 = vrot.slane %v211, %v223
    %v225 = vlaneseq
    %v226 = vshrl.u32 %v225, 7
    %v227 = vsub.s32 3, %v226
    %v228 = vrot.slane %v211, %v227
    %233 = vmatprep.subr.mxu0 %v84
    %234 = vmatpush1.msra.mxu0 %v83
    %235 = vmatprep.subr.mxu0 %v88
    %236 = vmatpush1.msra.mxu0 %v87
    %237 = vmatprep.subr.mxu0 %v92
    %238 = vmatpush1.msra.mxu0 %v91
    %239 = vmatprep.subr.mxu0 %v96
    %240 = vmatpush1.msra.mxu0 %v95
    %241 = vmatprep.subr.mxu0 %v100
    %242 = vmatpush1.msra.mxu0 %v99
    %243 = vmatprep.subr.mxu0 %v104
    %244 = vmatpush1.msra.mxu0 %v103
    %245 = vmatprep.subr.mxu0 %v108
    %246 = vmatpush1.msra.mxu0 %v107
    %247 = vmatprep.subr.mxu0 %v112
    %248 = vmatpush1.msra.mxu0 %v111
    %249 = vmatprep.subr.mxu0 %v116
    %250 = vmatpush1.msra.mxu0 %v115
    %251 = vmatprep.subr.mxu0 %v120
    %252 = vmatpush1.msra.mxu0 %v119
    %253 = vmatprep.subr.mxu0 %v124
    %254 = vmatpush1.msra.mxu0 %v123
    %255 = vmatprep.subr.mxu0 %v128
    %256 = vmatpush1.msra.mxu0 %v127
    %257 = vmatprep.subr.mxu0 %v132
    %258 = vmatpush1.msra.mxu0 %v131
    %259 = vmatprep.subr.mxu0 %v136
    %260 = vmatpush1.msra.mxu0 %v135
    %261 = vmatprep.subr.mxu0 %v140
    %262 = vmatpush1.msra.mxu0 %v139
    %263 = vmatprep.subr.mxu0 %v144
    %264 = vmatpush1.msra.mxu0 %v143
    %265 = vmatprep.subr.mxu0 %v148
    %266 = vmatpush1.msra.mxu0 %v147
    %267 = vmatprep.subr.mxu0 %v152
    %268 = vmatpush1.msra.mxu0 %v151
    %269 = vmatprep.subr.mxu0 %v156
    %270 = vmatpush1.msra.mxu0 %v155
    %271 = vmatprep.subr.mxu0 %v160
    %272 = vmatpush1.msra.mxu0 %v159
    %273 = vmatprep.subr.mxu0 %v164
    %274 = vmatpush1.msra.mxu0 %v163
    %275 = vmatprep.subr.mxu0 %v168
    %276 = vmatpush1.msra.mxu0 %v167
    %277 = vmatprep.subr.mxu0 %v172
    %278 = vmatpush1.msra.mxu0 %v171
    %279 = vmatprep.subr.mxu0 %v176
    %280 = vmatpush1.msra.mxu0 %v175
    %281 = vmatprep.subr.mxu0 %v180
    %282 = vmatpush1.msra.mxu0 %v179
    %283 = vmatprep.subr.mxu0 %v184
    %284 = vmatpush1.msra.mxu0 %v183
    %285 = vmatprep.subr.mxu0 %v188
    %286 = vmatpush1.msra.mxu0 %v187
    %287 = vmatprep.subr.mxu0 %v192
    %288 = vmatpush1.msra.mxu0 %v191
    %289 = vmatprep.subr.mxu0 %v196
    %290 = vmatpush1.msra.mxu0 %v195
    %291 = vmatprep.subr.mxu0 %v200
    %292 = vmatpush1.msra.mxu0 %v199
    %293 = vmatprep.subr.mxu0 %v204
    %294 = vmatpush1.msra.mxu0 %v203
    %295 = vmatprep.subr.mxu0 %v208
    %296 = vmatpush1.msra.mxu0 %v207
    %297 = vmatprep.mubr.f32.mxu0 %v81
    %298 = vmatmul.mubr.f32.gmra.mrb[0].mxu0 %v80
    %v299 = vpop.f32.mrb[0].mxu0
    %v300 = vadd.f32 %v216, %v299
    %v301 = vpop.f32.mrb[0].mxu0
    %v302 = vadd.f32 %v220, %v301
    %303 = vdwg.mxu0
    %304 = vmatprep.subr.mxu0 %v86
    %305 = vmatpush1.msra.mxu0 %v85
    %306 = vmatprep.subr.mxu0 %v90
    %307 = vmatpush1.msra.mxu0 %v89
    %308 = vmatprep.subr.mxu0 %v94
    %309 = vmatpush1.msra.mxu0 %v93
    %310 = vmatprep.subr.mxu0 %v98
    %311 = vmatpush1.msra.mxu0 %v97
    %312 = vmatprep.subr.mxu0 %v102
    %313 = vmatpush1.msra.mxu0 %v101
    %314 = vmatprep.subr.mxu0 %v106
    %315 = vmatpush1.msra.mxu0 %v105
    %316 = vmatprep.subr.mxu0 %v110
    %317 = vmatpush1.msra.mxu0 %v109
    %318 = vmatprep.subr.mxu0 %v114
    %319 = vmatpush1.msra.mxu0 %v113
    %320 = vmatprep.subr.mxu0 %v118
    %321 = vmatpush1.msra.mxu0 %v117
    %322 = vmatprep.subr.mxu0 %v122
    %323 = vmatpush1.msra.mxu0 %v121
    %324 = vmatprep.subr.mxu0 %v126
    %325 = vmatpush1.msra.mxu0 %v125
    %326 = vmatprep.subr.mxu0 %v130
    %327 = vmatpush1.msra.mxu0 %v129
    %328 = vmatprep.subr.mxu0 %v134
    %329 = vmatpush1.msra.mxu0 %v133
    %330 = vmatprep.subr.mxu0 %v138
    %331 = vmatpush1.msra.mxu0 %v137
    %332 = vmatprep.subr.mxu0 %v142
    %333 = vmatpush1.msra.mxu0 %v141
    %334 = vmatprep.subr.mxu0 %v146
    %335 = vmatpush1.msra.mxu0 %v145
    %336 = vmatprep.subr.mxu0 %v150
    %337 = vmatpush1.msra.mxu0 %v149
    %338 = vmatprep.subr.mxu0 %v154
    %339 = vmatpush1.msra.mxu0 %v153
    %340 = vmatprep.subr.mxu0 %v158
    %341 = vmatpush1.msra.mxu0 %v157
    %342 = vmatprep.subr.mxu0 %v162
    %343 = vmatpush1.msra.mxu0 %v161
    %344 = vmatprep.subr.mxu0 %v166
    %345 = vmatpush1.msra.mxu0 %v165
    %346 = vmatprep.subr.mxu0 %v170
    %347 = vmatpush1.msra.mxu0 %v169
    %348 = vmatprep.subr.mxu0 %v174
    %349 = vmatpush1.msra.mxu0 %v173
    %350 = vmatprep.subr.mxu0 %v178
    %351 = vmatpush1.msra.mxu0 %v177
    %352 = vmatprep.subr.mxu0 %v182
    %353 = vmatpush1.msra.mxu0 %v181
    %354 = vmatprep.subr.mxu0 %v186
    %355 = vmatpush1.msra.mxu0 %v185
    %356 = vmatprep.subr.mxu0 %v190
    %357 = vmatpush1.msra.mxu0 %v189
    %358 = vmatprep.subr.mxu0 %v194
    %359 = vmatpush1.msra.mxu0 %v193
    %360 = vmatprep.subr.mxu0 %v198
    %361 = vmatpush1.msra.mxu0 %v197
    %362 = vmatprep.subr.mxu0 %v202
    %363 = vmatpush1.msra.mxu0 %v201
    %364 = vmatprep.subr.mxu0 %v206
    %365 = vmatpush1.msra.mxu0 %v205
    %366 = vmatprep.subr.mxu0 %v210
    %367 = vmatpush1.msra.mxu0 %v209
    %368 = vmatprep.mubr.f32.mxu0 %v81
    %369 = vmatmul.mubr.f32.gmra.mrb[0].mxu0 %v80
    %v370 = vpop.f32.mrb[0].mxu0
    %v371 = vadd.f32 %v224, %v370
    %v372 = vpop.f32.mrb[0].mxu0
    %v373 = vadd.f32 %v228, %v372
    %374 = vdwg.mxu0
    %v375 = vxor.u32 %v300, 2147483648
    %v376 = vmul.f32 %v375, 1.442695
    %v377 = vpow.pop %v376
    %v378 = vadd.f32 %v377, 1.0
    %v379 = vrcp.pop %v378
    %v380 = vmul.f32 1.0, %v379
    %v381 = vxor.u32 %v302, 2147483648
    %v382 = vmul.f32 %v381, 1.442695
    %v383 = vpow.pop %v382
    %v384 = vadd.f32 %v383, 1.0
    %v385 = vrcp.pop %v384
    %v386 = vmul.f32 1.0, %v385
    %v387 = vtanh.pop %v371
    %v388 = vxor.u32 %v373, 2147483648
    %v389 = vmul.f32 %v388, 1.442695
    %v390 = vpow.pop %v389
    %v391 = vadd.f32 %v390, 1.0
    %v392 = vrcp.pop %v391
    %v393 = vmul.f32 1.0, %v392
    %v394 = vmul.f32 %v386, %v82
    %v395 = vmul.f32 %v380, %v387
    %v396 = vadd.f32 %v394, %v395
    %v397 = vtanh.pop %v396
    %v398 = vmul.f32 %v393, %v397
    %399 = vst [vmem:[#allocation3] sm:$0xff] %v396
    %400 = vst [vmem:[#allocation2] sm:$0xff] %v398
    %s401 = scalar_lea.vmem [#allocation2], 8
    %v402 = vld [vmem:[%s401] sm:$0xff]
    %s403 = scalar_lea.vmem [#allocation3], 8
    %v404 = vld [vmem:[%s403] sm:$0xff]
    %s405 = scalar_lea.vmem [#allocation7], 1024
    %v406 = vld [vmem:[%s405] sm:$0xff]
    %v407 = vld [vmem:[%s405 + $0x8] sm:$0xff]
    %v408 = vld [vmem:[%s405 + $0x10] sm:$0xff]
    %v409 = vld [vmem:[%s405 + $0x18] sm:$0xff]
    %v410 = vld [vmem:[%s405 + $0x20] sm:$0xff]
    %v411 = vld [vmem:[%s405 + $0x28] sm:$0xff]
    %v412 = vld [vmem:[%s405 + $0x30] sm:$0xff]
    %v413 = vld [vmem:[%s405 + $0x38] sm:$0xff]
    %v414 = vld [vmem:[%s405 + $0x40] sm:$0xff]
    %v415 = vld [vmem:[%s405 + $0x48] sm:$0xff]
    %v416 = vld [vmem:[%s405 + $0x50] sm:$0xff]
    %v417 = vld [vmem:[%s405 + $0x58] sm:$0xff]
    %v418 = vld [vmem:[%s405 + $0x60] sm:$0xff]
    %v419 = vld [vmem:[%s405 + $0x68] sm:$0xff]
    %v420 = vld [vmem:[%s405 + $0x70] sm:$0xff]
    %v421 = vld [vmem:[%s405 + $0x78] sm:$0xff]
    %v422 = vld [vmem:[%s405 + $0x80] sm:$0xff]
    %v423 = vld [vmem:[%s405 + $0x88] sm:$0xff]
    %v424 = vld [vmem:[%s405 + $0x90] sm:$0xff]
    %v425 = vld [vmem:[%s405 + $0x98] sm:$0xff]
    %v426 = vld [vmem:[%s405 + $0xa0] sm:$0xff]
    %v427 = vld [vmem:[%s405 + $0xa8] sm:$0xff]
    %v428 = vld [vmem:[%s405 + $0xb0] sm:$0xff]
    %v429 = vld [vmem:[%s405 + $0xb8] sm:$0xff]
    %v430 = vld [vmem:[%s405 + $0xc0] sm:$0xff]
    %v431 = vld [vmem:[%s405 + $0xc8] sm:$0xff]
    %v432 = vld [vmem:[%s405 + $0xd0] sm:$0xff]
    %v433 = vld [vmem:[%s405 + $0xd8] sm:$0xff]
    %v434 = vld [vmem:[%s405 + $0xe0] sm:$0xff]
    %v435 = vld [vmem:[%s405 + $0xe8] sm:$0xff]
    %v436 = vld [vmem:[%s405 + $0xf0] sm:$0xff]
    %v437 = vld [vmem:[%s405 + $0xf8] sm:$0xff]
    %v438 = vld [vmem:[%s405 + $0x100] sm:$0xff]
    %v439 = vld [vmem:[%s405 + $0x108] sm:$0xff]
    %v440 = vld [vmem:[%s405 + $0x110] sm:$0xff]
    %v441 = vld [vmem:[%s405 + $0x118] sm:$0xff]
    %v442 = vld [vmem:[%s405 + $0x120] sm:$0xff]
    %v443 = vld [vmem:[%s405 + $0x128] sm:$0xff]
    %v444 = vld [vmem:[%s405 + $0x130] sm:$0xff]
    %v445 = vld [vmem:[%s405 + $0x138] sm:$0xff]
    %v446 = vld [vmem:[%s405 + $0x140] sm:$0xff]
    %v447 = vld [vmem:[%s405 + $0x148] sm:$0xff]
    %v448 = vld [vmem:[%s405 + $0x150] sm:$0xff]
    %v449 = vld [vmem:[%s405 + $0x158] sm:$0xff]
    %v450 = vld [vmem:[%s405 + $0x160] sm:$0xff]
    %v451 = vld [vmem:[%s405 + $0x168] sm:$0xff]
    %v452 = vld [vmem:[%s405 + $0x170] sm:$0xff]
    %v453 = vld [vmem:[%s405 + $0x178] sm:$0xff]
    %v454 = vld [vmem:[%s405 + $0x180] sm:$0xff]
    %v455 = vld [vmem:[%s405 + $0x188] sm:$0xff]
    %v456 = vld [vmem:[%s405 + $0x190] sm:$0xff]
    %v457 = vld [vmem:[%s405 + $0x198] sm:$0xff]
    %v458 = vld [vmem:[%s405 + $0x1a0] sm:$0xff]
    %v459 = vld [vmem:[%s405 + $0x1a8] sm:$0xff]
    %v460 = vld [vmem:[%s405 + $0x1b0] sm:$0xff]
    %v461 = vld [vmem:[%s405 + $0x1b8] sm:$0xff]
    %v462 = vld [vmem:[%s405 + $0x1c0] sm:$0xff]
    %v463 = vld [vmem:[%s405 + $0x1c8] sm:$0xff]
    %v464 = vld [vmem:[%s405 + $0x1d0] sm:$0xff]
    %v465 = vld [vmem:[%s405 + $0x1d8] sm:$0xff]
    %v466 = vld [vmem:[%s405 + $0x1e0] sm:$0xff]
    %v467 = vld [vmem:[%s405 + $0x1e8] sm:$0xff]
    %v468 = vld [vmem:[%s405 + $0x1f0] sm:$0xff]
    %v469 = vld [vmem:[%s405 + $0x1f8] sm:$0xff]
    %v470 = vld [vmem:[%s405 + $0x200] sm:$0xff]
    %v471 = vld [vmem:[%s405 + $0x208] sm:$0xff]
    %v472 = vld [vmem:[%s405 + $0x210] sm:$0xff]
    %v473 = vld [vmem:[%s405 + $0x218] sm:$0xff]
    %v474 = vld [vmem:[%s405 + $0x220] sm:$0xff]
    %v475 = vld [vmem:[%s405 + $0x228] sm:$0xff]
    %v476 = vld [vmem:[%s405 + $0x230] sm:$0xff]
    %v477 = vld [vmem:[%s405 + $0x238] sm:$0xff]
    %v478 = vld [vmem:[%s405 + $0x240] sm:$0xff]
    %v479 = vld [vmem:[%s405 + $0x248] sm:$0xff]
    %v480 = vld [vmem:[%s405 + $0x250] sm:$0xff]
    %v481 = vld [vmem:[%s405 + $0x258] sm:$0xff]
    %v482 = vld [vmem:[%s405 + $0x260] sm:$0xff]
    %v483 = vld [vmem:[%s405 + $0x268] sm:$0xff]
    %v484 = vld [vmem:[%s405 + $0x270] sm:$0xff]
    %v485 = vld [vmem:[%s405 + $0x278] sm:$0xff]
    %v486 = vld [vmem:[%s405 + $0x280] sm:$0xff]
    %v487 = vld [vmem:[%s405 + $0x288] sm:$0xff]
    %v488 = vld [vmem:[%s405 + $0x290] sm:$0xff]
    %v489 = vld [vmem:[%s405 + $0x298] sm:$0xff]
    %v490 = vld [vmem:[%s405 + $0x2a0] sm:$0xff]
    %v491 = vld [vmem:[%s405 + $0x2a8] sm:$0xff]
    %v492 = vld [vmem:[%s405 + $0x2b0] sm:$0xff]
    %v493 = vld [vmem:[%s405 + $0x2b8] sm:$0xff]
    %v494 = vld [vmem:[%s405 + $0x2c0] sm:$0xff]
    %v495 = vld [vmem:[%s405 + $0x2c8] sm:$0xff]
    %v496 = vld [vmem:[%s405 + $0x2d0] sm:$0xff]
    %v497 = vld [vmem:[%s405 + $0x2d8] sm:$0xff]
    %v498 = vld [vmem:[%s405 + $0x2e0] sm:$0xff]
    %v499 = vld [vmem:[%s405 + $0x2e8] sm:$0xff]
    %v500 = vld [vmem:[%s405 + $0x2f0] sm:$0xff]
    %v501 = vld [vmem:[%s405 + $0x2f8] sm:$0xff]
    %v502 = vld [vmem:[%s405 + $0x300] sm:$0xff]
    %v503 = vld [vmem:[%s405 + $0x308] sm:$0xff]
    %v504 = vld [vmem:[%s405 + $0x310] sm:$0xff]
    %v505 = vld [vmem:[%s405 + $0x318] sm:$0xff]
    %v506 = vld [vmem:[%s405 + $0x320] sm:$0xff]
    %v507 = vld [vmem:[%s405 + $0x328] sm:$0xff]
    %v508 = vld [vmem:[%s405 + $0x330] sm:$0xff]
    %v509 = vld [vmem:[%s405 + $0x338] sm:$0xff]
    %v510 = vld [vmem:[%s405 + $0x340] sm:$0xff]
    %v511 = vld [vmem:[%s405 + $0x348] sm:$0xff]
    %v512 = vld [vmem:[%s405 + $0x350] sm:$0xff]
    %v513 = vld [vmem:[%s405 + $0x358] sm:$0xff]
    %v514 = vld [vmem:[%s405 + $0x360] sm:$0xff]
    %v515 = vld [vmem:[%s405 + $0x368] sm:$0xff]
    %v516 = vld [vmem:[%s405 + $0x370] sm:$0xff]
    %v517 = vld [vmem:[%s405 + $0x378] sm:$0xff]
    %v518 = vld [vmem:[%s405 + $0x380] sm:$0xff]
    %v519 = vld [vmem:[%s405 + $0x388] sm:$0xff]
    %v520 = vld [vmem:[%s405 + $0x390] sm:$0xff]
    %v521 = vld [vmem:[%s405 + $0x398] sm:$0xff]
    %v522 = vld [vmem:[%s405 + $0x3a0] sm:$0xff]
    %v523 = vld [vmem:[%s405 + $0x3a8] sm:$0xff]
    %v524 = vld [vmem:[%s405 + $0x3b0] sm:$0xff]
    %v525 = vld [vmem:[%s405 + $0x3b8] sm:$0xff]
    %v526 = vld [vmem:[%s405 + $0x3c0] sm:$0xff]
    %v527 = vld [vmem:[%s405 + $0x3c8] sm:$0xff]
    %v528 = vld [vmem:[%s405 + $0x3d0] sm:$0xff]
    %v529 = vld [vmem:[%s405 + $0x3d8] sm:$0xff]
    %v530 = vld [vmem:[%s405 + $0x3e0] sm:$0xff]
    %v531 = vld [vmem:[%s405 + $0x3e8] sm:$0xff]
    %v532 = vld [vmem:[%s405 + $0x3f0] sm:$0xff]
    %v533 = vld [vmem:[%s405 + $0x3f8] sm:$0xff]
    %s534 = scalar_lea.vmem [#allocation9], 4
    %v535 = vld [vmem:[%s534] sm:$0xf]
    %v537 = vlaneseq
    %v538 = vshrl.u32 %v537, 7
    %v539 = vsub.s32 0, %v538
    %v540 = vrot.slane %v535, %v539
    %v541 = vlaneseq
    %v542 = vshrl.u32 %v541, 7
    %v543 = vsub.s32 1, %v542
    %v544 = vrot.slane %v535, %v543
    %v545 = vlaneseq
    %v546 = vshrl.u32 %v545, 7
    %v547 = vsub.s32 2, %v546
    %v548 = vrot.slane %v535, %v547
    %v549 = vlaneseq
    %v550 = vshrl.u32 %v549, 7
    %v551 = vsub.s32 3, %v550
    %v552 = vrot.slane %v535, %v551
    %557 = vmatprep.subr.mxu0 %v407
    %558 = vmatpush1.msra.mxu0 %v406
    %559 = vmatprep.subr.mxu0 %v411
    %560 = vmatpush1.msra.mxu0 %v410
    %561 = vmatprep.subr.mxu0 %v415
    %562 = vmatpush1.msra.mxu0 %v414
    %563 = vmatprep.subr.mxu0 %v419
    %564 = vmatpush1.msra.mxu0 %v418
    %565 = vmatprep.subr.mxu0 %v423
    %566 = vmatpush1.msra.mxu0 %v422
    %567 = vmatprep.subr.mxu0 %v427
    %568 = vmatpush1.msra.mxu0 %v426
    %569 = vmatprep.subr.mxu0 %v431
    %570 = vmatpush1.msra.mxu0 %v430
    %571 = vmatprep.subr.mxu0 %v435
    %572 = vmatpush1.msra.mxu0 %v434
    %573 = vmatprep.subr.mxu0 %v439
    %574 = vmatpush1.msra.mxu0 %v438
    %575 = vmatprep.subr.mxu0 %v443
    %576 = vmatpush1.msra.mxu0 %v442
    %577 = vmatprep.subr.mxu0 %v447
    %578 = vmatpush1.msra.mxu0 %v446
    %579 = vmatprep.subr.mxu0 %v451
    %580 = vmatpush1.msra.mxu0 %v450
    %581 = vmatprep.subr.mxu0 %v455
    %582 = vmatpush1.msra.mxu0 %v454
    %583 = vmatprep.subr.mxu0 %v459
    %584 = vmatpush1.msra.mxu0 %v458
    %585 = vmatprep.subr.mxu0 %v463
    %586 = vmatpush1.msra.mxu0 %v462
    %587 = vmatprep.subr.mxu0 %v467
    %588 = vmatpush1.msra.mxu0 %v466
    %589 = vmatprep.subr.mxu0 %v471
    %590 = vmatpush1.msra.mxu0 %v470
    %591 = vmatprep.subr.mxu0 %v475
    %592 = vmatpush1.msra.mxu0 %v474
    %593 = vmatprep.subr.mxu0 %v479
    %594 = vmatpush1.msra.mxu0 %v478
    %595 = vmatprep.subr.mxu0 %v483
    %596 = vmatpush1.msra.mxu0 %v482
    %597 = vmatprep.subr.mxu0 %v487
    %598 = vmatpush1.msra.mxu0 %v486
    %599 = vmatprep.subr.mxu0 %v491
    %600 = vmatpush1.msra.mxu0 %v490
    %601 = vmatprep.subr.mxu0 %v495
    %602 = vmatpush1.msra.mxu0 %v494
    %603 = vmatprep.subr.mxu0 %v499
    %604 = vmatpush1.msra.mxu0 %v498
    %605 = vmatprep.subr.mxu0 %v503
    %606 = vmatpush1.msra.mxu0 %v502
    %607 = vmatprep.subr.mxu0 %v507
    %608 = vmatpush1.msra.mxu0 %v506
    %609 = vmatprep.subr.mxu0 %v511
    %610 = vmatpush1.msra.mxu0 %v510
    %611 = vmatprep.subr.mxu0 %v515
    %612 = vmatpush1.msra.mxu0 %v514
    %613 = vmatprep.subr.mxu0 %v519
    %614 = vmatpush1.msra.mxu0 %v518
    %615 = vmatprep.subr.mxu0 %v523
    %616 = vmatpush1.msra.mxu0 %v522
    %617 = vmatprep.subr.mxu0 %v527
    %618 = vmatpush1.msra.mxu0 %v526
    %619 = vmatprep.subr.mxu0 %v531
    %620 = vmatpush1.msra.mxu0 %v530
    %621 = vmatprep.mubr.f32.mxu0 %v402
    %622 = vmatmul.mubr.f32.gmra.mrb[0].mxu0 %v398
    %v623 = vpop.f32.mrb[0].mxu0
    %v624 = vadd.f32 %v540, %v623
    %v625 = vpop.f32.mrb[0].mxu0
    %v626 = vadd.f32 %v544, %v625
    %627 = vdwg.mxu0
    %628 = vmatprep.subr.mxu0 %v409
    %629 = vmatpush1.msra.mxu0 %v408
    %630 = vmatprep.subr.mxu0 %v413
    %631 = vmatpush1.msra.mxu0 %v412
    %632 = vmatprep.subr.mxu0 %v417
    %633 = vmatpush1.msra.mxu0 %v416
    %634 = vmatprep.subr.mxu0 %v421
    %635 = vmatpush1.msra.mxu0 %v420
    %636 = vmatprep.subr.mxu0 %v425
    %637 = vmatpush1.msra.mxu0 %v424
    %638 = vmatprep.subr.mxu0 %v429
    %639 = vmatpush1.msra.mxu0 %v428
    %640 = vmatprep.subr.mxu0 %v433
    %641 = vmatpush1.msra.mxu0 %v432
    %642 = vmatprep.subr.mxu0 %v437
    %643 = vmatpush1.msra.mxu0 %v436
    %644 = vmatprep.subr.mxu0 %v441
    %645 = vmatpush1.msra.mxu0 %v440
    %646 = vmatprep.subr.mxu0 %v445
    %647 = vmatpush1.msra.mxu0 %v444
    %648 = vmatprep.subr.mxu0 %v449
    %649 = vmatpush1.msra.mxu0 %v448
    %650 = vmatprep.subr.mxu0 %v453
    %651 = vmatpush1.msra.mxu0 %v452
    %652 = vmatprep.subr.mxu0 %v457
    %653 = vmatpush1.msra.mxu0 %v456
    %654 = vmatprep.subr.mxu0 %v461
    %655 = vmatpush1.msra.mxu0 %v460
    %656 = vmatprep.subr.mxu0 %v465
    %657 = vmatpush1.msra.mxu0 %v464
    %658 = vmatprep.subr.mxu0 %v469
    %659 = vmatpush1.msra.mxu0 %v468
    %660 = vmatprep.subr.mxu0 %v473
    %661 = vmatpush1.msra.mxu0 %v472
    %662 = vmatprep.subr.mxu0 %v477
    %663 = vmatpush1.msra.mxu0 %v476
    %664 = vmatprep.subr.mxu0 %v481
    %665 = vmatpush1.msra.mxu0 %v480
    %666 = vmatprep.subr.mxu0 %v485
    %667 = vmatpush1.msra.mxu0 %v484
    %668 = vmatprep.subr.mxu0 %v489
    %669 = vmatpush1.msra.mxu0 %v488
    %670 = vmatprep.subr.mxu0 %v493
    %671 = vmatpush1.msra.mxu0 %v492
    %672 = vmatprep.subr.mxu0 %v497
    %673 = vmatpush1.msra.mxu0 %v496
    %674 = vmatprep.subr.mxu0 %v501
    %675 = vmatpush1.msra.mxu0 %v500
    %676 = vmatprep.subr.mxu0 %v505
    %677 = vmatpush1.msra.mxu0 %v504
    %678 = vmatprep.subr.mxu0 %v509
    %679 = vmatpush1.msra.mxu0 %v508
    %680 = vmatprep.subr.mxu0 %v513
    %681 = vmatpush1.msra.mxu0 %v512
    %682 = vmatprep.subr.mxu0 %v517
    %683 = vmatpush1.msra.mxu0 %v516
    %684 = vmatprep.subr.mxu0 %v521
    %685 = vmatpush1.msra.mxu0 %v520
    %686 = vmatprep.subr.mxu0 %v525
    %687 = vmatpush1.msra.mxu0 %v524
    %688 = vmatprep.subr.mxu0 %v529
    %689 = vmatpush1.msra.mxu0 %v528
    %690 = vmatprep.subr.mxu0 %v533
    %691 = vmatpush1.msra.mxu0 %v532
    %692 = vmatprep.mubr.f32.mxu0 %v402
    %693 = vmatmul.mubr.f32.gmra.mrb[0].mxu0 %v398
    %v694 = vpop.f32.mrb[0].mxu0
    %v695 = vadd.f32 %v548, %v694
    %v696 = vpop.f32.mrb[0].mxu0
    %v697 = vadd.f32 %v552, %v696
    %698 = vdwg.mxu0
    %v699 = vxor.u32 %v624, 2147483648
    %v700 = vmul.f32 %v699, 1.442695
    %v701 = vpow.pop %v700
    %v702 = vadd.f32 %v701, 1.0
    %v703 = vrcp.pop %v702
    %v704 = vmul.f32 1.0, %v703
    %v705 = vxor.u32 %v626, 2147483648
    %v706 = vmul.f32 %v705, 1.442695
    %v707 = vpow.pop %v706
    %v708 = vadd.f32 %v707, 1.0
    %v709 = vrcp.pop %v708
    %v710 = vmul.f32 1.0, %v709
    %v711 = vtanh.pop %v695
    %v712 = vxor.u32 %v697, 2147483648
    %v713 = vmul.f32 %v712, 1.442695
    %v714 = vpow.pop %v713
    %v715 = vadd.f32 %v714, 1.0
    %v716 = vrcp.pop %v715
    %v717 = vmul.f32 1.0, %v716
    %v718 = vmul.f32 %v710, %v404
    %v719 = vmul.f32 %v704, %v711
    %v720 = vadd.f32 %v718, %v719
    %v721 = vtanh.pop %v720
    %v722 = vmul.f32 %v717, %v721
    %723 = vst [vmem:[%s403] sm:$0xff] %v720
    %724 = vst [vmem:[%s401] sm:$0xff] %v722
    %s725 = scalar_lea.vmem [#allocation4], 8
    %v726 = vld [vmem:[%s725] sm:$0xff]
    %v727 = vld [vmem:[#allocation2] sm:$0xff]
    %v728 = vld [vmem:[#allocation3] sm:$0xff]
    %v729 = vld [vmem:[#allocation7] sm:$0xff]
    %v730 = vld [vmem:[#allocation7 + $0x8] sm:$0xff]
    %v731 = vld [vmem:[#allocation7 + $0x10] sm:$0xff]
    %v732 = vld [vmem:[#allocation7 + $0x18] sm:$0xff]
    %v733 = vld [vmem:[#allocation7 + $0x20] sm:$0xff]
    %v734 = vld [vmem:[#allocation7 + $0x28] sm:$0xff]
    %v735 = vld [vmem:[#allocation7 + $0x30] sm:$0xff]
    %v736 = vld [vmem:[#allocation7 + $0x38] sm:$0xff]
    %v737 = vld [vmem:[#allocation7 + $0x40] sm:$0xff]
    %v738 = vld [vmem:[#allocation7 + $0x48] sm:$0xff]
    %v739 = vld [vmem:[#allocation7 + $0x50] sm:$0xff]
    %v740 = vld [vmem:[#allocation7 + $0x58] sm:$0xff]
    %v741 = vld [vmem:[#allocation7 + $0x60] sm:$0xff]
    %v742 = vld [vmem:[#allocation7 + $0x68] sm:$0xff]
    %v743 = vld [vmem:[#allocation7 + $0x70] sm:$0xff]
    %v744 = vld [vmem:[#allocation7 + $0x78] sm:$0xff]
    %v745 = vld [vmem:[#allocation7 + $0x80] sm:$0xff]
    %v746 = vld [vmem:[#allocation7 + $0x88] sm:$0xff]
    %v747 = vld [vmem:[#allocation7 + $0x90] sm:$0xff]
    %v748 = vld [vmem:[#allocation7 + $0x98] sm:$0xff]
    %v749 = vld [vmem:[#allocation7 + $0xa0] sm:$0xff]
    %v750 = vld [vmem:[#allocation7 + $0xa8] sm:$0xff]
    %v751 = vld [vmem:[#allocation7 + $0xb0] sm:$0xff]
    %v752 = vld [vmem:[#allocation7 + $0xb8] sm:$0xff]
    %v753 = vld [vmem:[#allocation7 + $0xc0] sm:$0xff]
    %v754 = vld [vmem:[#allocation7 + $0xc8] sm:$0xff]
    %v755 = vld [vmem:[#allocation7 + $0xd0] sm:$0xff]
    %v756 = vld [vmem:[#allocation7 + $0xd8] sm:$0xff]
    %v757 = vld [vmem:[#allocation7 + $0xe0] sm:$0xff]
    %v758 = vld [vmem:[#allocation7 + $0xe8] sm:$0xff]
    %v759 = vld [vmem:[#allocation7 + $0xf0] sm:$0xff]
    %v760 = vld [vmem:[#allocation7 + $0xf8] sm:$0xff]
    %v761 = vld [vmem:[#allocation7 + $0x100] sm:$0xff]
    %v762 = vld [vmem:[#allocation7 + $0x108] sm:$0xff]
    %v763 = vld [vmem:[#allocation7 + $0x110] sm:$0xff]
    %v764 = vld [vmem:[#allocation7 + $0x118] sm:$0xff]
    %v765 = vld [vmem:[#allocation7 + $0x120] sm:$0xff]
    %v766 = vld [vmem:[#allocation7 + $0x128] sm:$0xff]
    %v767 = vld [vmem:[#allocation7 + $0x130] sm:$0xff]
    %v768 = vld [vmem:[#allocation7 + $0x138] sm:$0xff]
    %v769 = vld [vmem:[#allocation7 + $0x140] sm:$0xff]
    %v770 = vld [vmem:[#allocation7 + $0x148] sm:$0xff]
    %v771 = vld [vmem:[#allocation7 + $0x150] sm:$0xff]
    %v772 = vld [vmem:[#allocation7 + $0x158] sm:$0xff]
    %v773 = vld [vmem:[#allocation7 + $0x160] sm:$0xff]
    %v774 = vld [vmem:[#allocation7 + $0x168] sm:$0xff]
    %v775 = vld [vmem:[#allocation7 + $0x170] sm:$0xff]
    %v776 = vld [vmem:[#allocation7 + $0x178] sm:$0xff]
    %v777 = vld [vmem:[#allocation7 + $0x180] sm:$0xff]
    %v778 = vld [vmem:[#allocation7 + $0x188] sm:$0xff]
    %v779 = vld [vmem:[#allocation7 + $0x190] sm:$0xff]
    %v780 = vld [vmem:[#allocation7 + $0x198] sm:$0xff]
    %v781 = vld [vmem:[#allocation7 + $0x1a0] sm:$0xff]
    %v782 = vld [vmem:[#allocation7 + $0x1a8] sm:$0xff]
    %v783 = vld [vmem:[#allocation7 + $0x1b0] sm:$0xff]
    %v784 = vld [vmem:[#allocation7 + $0x1b8] sm:$0xff]
    %v785 = vld [vmem:[#allocation7 + $0x1c0] sm:$0xff]
    %v786 = vld [vmem:[#allocation7 + $0x1c8] sm:$0xff]
    %v787 = vld [vmem:[#allocation7 + $0x1d0] sm:$0xff]
    %v788 = vld [vmem:[#allocation7 + $0x1d8] sm:$0xff]
    %v789 = vld [vmem:[#allocation7 + $0x1e0] sm:$0xff]
    %v790 = vld [vmem:[#allocation7 + $0x1e8] sm:$0xff]
    %v791 = vld [vmem:[#allocation7 + $0x1f0] sm:$0xff]
    %v792 = vld [vmem:[#allocation7 + $0x1f8] sm:$0xff]
    %v793 = vld [vmem:[#allocation7 + $0x200] sm:$0xff]
    %v794 = vld [vmem:[#allocation7 + $0x208] sm:$0xff]
    %v795 = vld [vmem:[#allocation7 + $0x210] sm:$0xff]
    %v796 = vld [vmem:[#allocation7 + $0x218] sm:$0xff]
    %v797 = vld [vmem:[#allocation7 + $0x220] sm:$0xff]
    %v798 = vld [vmem:[#allocation7 + $0x228] sm:$0xff]
    %v799 = vld [vmem:[#allocation7 + $0x230] sm:$0xff]
    %v800 = vld [vmem:[#allocation7 + $0x238] sm:$0xff]
    %v801 = vld [vmem:[#allocation7 + $0x240] sm:$0xff]
    %v802 = vld [vmem:[#allocation7 + $0x248] sm:$0xff]
    %v803 = vld [vmem:[#allocation7 + $0x250] sm:$0xff]
    %v804 = vld [vmem:[#allocation7 + $0x258] sm:$0xff]
    %v805 = vld [vmem:[#allocation7 + $0x260] sm:$0xff]
    %v806 = vld [vmem:[#allocation7 + $0x268] sm:$0xff]
    %v807 = vld [vmem:[#allocation7 + $0x270] sm:$0xff]
    %v808 = vld [vmem:[#allocation7 + $0x278] sm:$0xff]
    %v809 = vld [vmem:[#allocation7 + $0x280] sm:$0xff]
    %v810 = vld [vmem:[#allocation7 + $0x288] sm:$0xff]
    %v811 = vld [vmem:[#allocation7 + $0x290] sm:$0xff]
    %v812 = vld [vmem:[#allocation7 + $0x298] sm:$0xff]
    %v813 = vld [vmem:[#allocation7 + $0x2a0] sm:$0xff]
    %v814 = vld [vmem:[#allocation7 + $0x2a8] sm:$0xff]
    %v815 = vld [vmem:[#allocation7 + $0x2b0] sm:$0xff]
    %v816 = vld [vmem:[#allocation7 + $0x2b8] sm:$0xff]
    %v817 = vld [vmem:[#allocation7 + $0x2c0] sm:$0xff]
    %v818 = vld [vmem:[#allocation7 + $0x2c8] sm:$0xff]
    %v819 = vld [vmem:[#allocation7 + $0x2d0] sm:$0xff]
    %v820 = vld [vmem:[#allocation7 + $0x2d8] sm:$0xff]
    %v821 = vld [vmem:[#allocation7 + $0x2e0] sm:$0xff]
    %v822 = vld [vmem:[#allocation7 + $0x2e8] sm:$0xff]
    %v823 = vld [vmem:[#allocation7 + $0x2f0] sm:$0xff]
    %v824 = vld [vmem:[#allocation7 + $0x2f8] sm:$0xff]
    %v825 = vld [vmem:[#allocation7 + $0x300] sm:$0xff]
    %v826 = vld [vmem:[#allocation7 + $0x308] sm:$0xff]
    %v827 = vld [vmem:[#allocation7 + $0x310] sm:$0xff]
    %v828 = vld [vmem:[#allocation7 + $0x318] sm:$0xff]
    %v829 = vld [vmem:[#allocation7 + $0x320] sm:$0xff]
    %v830 = vld [vmem:[#allocation7 + $0x328] sm:$0xff]
    %v831 = vld [vmem:[#allocation7 + $0x330] sm:$0xff]
    %v832 = vld [vmem:[#allocation7 + $0x338] sm:$0xff]
    %v833 = vld [vmem:[#allocation7 + $0x340] sm:$0xff]
    %v834 = vld [vmem:[#allocation7 + $0x348] sm:$0xff]
    %v835 = vld [vmem:[#allocation7 + $0x350] sm:$0xff]
    %v836 = vld [vmem:[#allocation7 + $0x358] sm:$0xff]
    %v837 = vld [vmem:[#allocation7 + $0x360] sm:$0xff]
    %v838 = vld [vmem:[#allocation7 + $0x368] sm:$0xff]
    %v839 = vld [vmem:[#allocation7 + $0x370] sm:$0xff]
    %v840 = vld [vmem:[#allocation7 + $0x378] sm:$0xff]
    %v841 = vld [vmem:[#allocation7 + $0x380] sm:$0xff]
    %v842 = vld [vmem:[#allocation7 + $0x388] sm:$0xff]
    %v843 = vld [vmem:[#allocation7 + $0x390] sm:$0xff]
    %v844 = vld [vmem:[#allocation7 + $0x398] sm:$0xff]
    %v845 = vld [vmem:[#allocation7 + $0x3a0] sm:$0xff]
    %v846 = vld [vmem:[#allocation7 + $0x3a8] sm:$0xff]
    %v847 = vld [vmem:[#allocation7 + $0x3b0] sm:$0xff]
    %v848 = vld [vmem:[#allocation7 + $0x3b8] sm:$0xff]
    %v849 = vld [vmem:[#allocation7 + $0x3c0] sm:$0xff]
    %v850 = vld [vmem:[#allocation7 + $0x3c8] sm:$0xff]
    %v851 = vld [vmem:[#allocation7 + $0x3d0] sm:$0xff]
    %v852 = vld [vmem:[#allocation7 + $0x3d8] sm:$0xff]
    %v853 = vld [vmem:[#allocation7 + $0x3e0] sm:$0xff]
    %v854 = vld [vmem:[#allocation7 + $0x3e8] sm:$0xff]
    %v855 = vld [vmem:[#allocation7 + $0x3f0] sm:$0xff]
    %v856 = vld [vmem:[#allocation7 + $0x3f8] sm:$0xff]
    %v857 = vld [vmem:[#allocation9] sm:$0xf]
    %v859 = vlaneseq
    %v860 = vshrl.u32 %v859, 7
    %v861 = vsub.s32 0, %v860
    %v862 = vrot.slane %v857, %v861
    %v863 = vlaneseq
    %v864 = vshrl.u32 %v863, 7
    %v865 = vsub.s32 1, %v864
    %v866 = vrot.slane %v857, %v865
    %v867 = vlaneseq
    %v868 = vshrl.u32 %v867, 7
    %v869 = vsub.s32 2, %v868
    %v870 = vrot.slane %v857, %v869
    %v871 = vlaneseq
    %v872 = vshrl.u32 %v871, 7
    %v873 = vsub.s32 3, %v872
    %v874 = vrot.slane %v857, %v873
    %879 = vmatprep.subr.mxu0 %v730
    %880 = vmatpush1.msra.mxu0 %v729
    %881 = vmatprep.subr.mxu0 %v734
    %882 = vmatpush1.msra.mxu0 %v733
    %883 = vmatprep.subr.mxu0 %v738
    %884 = vmatpush1.msra.mxu0 %v737
    %885 = vmatprep.subr.mxu0 %v742
    %886 = vmatpush1.msra.mxu0 %v741
    %887 = vmatprep.subr.mxu0 %v746
    %888 = vmatpush1.msra.mxu0 %v745
    %889 = vmatprep.subr.mxu0 %v750
    %890 = vmatpush1.msra.mxu0 %v749
    %891 = vmatprep.subr.mxu0 %v754
    %892 = vmatpush1.msra.mxu0 %v753
    %893 = vmatprep.subr.mxu0 %v758
    %894 = vmatpush1.msra.mxu0 %v757
    %895 = vmatprep.subr.mxu0 %v762
    %896 = vmatpush1.msra.mxu0 %v761
    %897 = vmatprep.subr.mxu0 %v766
    %898 = vmatpush1.msra.mxu0 %v765
    %899 = vmatprep.subr.mxu0 %v770
    %900 = vmatpush1.msra.mxu0 %v769
    %901 = vmatprep.subr.mxu0 %v774
    %902 = vmatpush1.msra.mxu0 %v773
    %903 = vmatprep.subr.mxu0 %v778
    %904 = vmatpush1.msra.mxu0 %v777
    %905 = vmatprep.subr.mxu0 %v782
    %906 = vmatpush1.msra.mxu0 %v781
    %907 = vmatprep.subr.mxu0 %v786
    %908 = vmatpush1.msra.mxu0 %v785
    %909 = vmatprep.subr.mxu0 %v790
    %910 = vmatpush1.msra.mxu0 %v789
    %911 = vmatprep.subr.mxu0 %v794
    %912 = vmatpush1.msra.mxu0 %v793
    %913 = vmatprep.subr.mxu0 %v798
    %914 = vmatpush1.msra.mxu0 %v797
    %915 = vmatprep.subr.mxu0 %v802
    %916 = vmatpush1.msra.mxu0 %v801
    %917 = vmatprep.subr.mxu0 %v806
    %918 = vmatpush1.msra.mxu0 %v805
    %919 = vmatprep.subr.mxu0 %v810
    %920 = vmatpush1.msra.mxu0 %v809
    %921 = vmatprep.subr.mxu0 %v814
    %922 = vmatpush1.msra.mxu0 %v813
    %923 = vmatprep.subr.mxu0 %v818
    %924 = vmatpush1.msra.mxu0 %v817
    %925 = vmatprep.subr.mxu0 %v822
    %926 = vmatpush1.msra.mxu0 %v821
    %927 = vmatprep.subr.mxu0 %v826
    %928 = vmatpush1.msra.mxu0 %v825
    %929 = vmatprep.subr.mxu0 %v830
    %930 = vmatpush1.msra.mxu0 %v829
    %931 = vmatprep.subr.mxu0 %v834
    %932 = vmatpush1.msra.mxu0 %v833
    %933 = vmatprep.subr.mxu0 %v838
    %934 = vmatpush1.msra.mxu0 %v837
    %935 = vmatprep.subr.mxu0 %v842
    %936 = vmatpush1.msra.mxu0 %v841
    %937 = vmatprep.subr.mxu0 %v846
    %938 = vmatpush1.msra.mxu0 %v845
    %939 = vmatprep.subr.mxu0 %v850
    %940 = vmatpush1.msra.mxu0 %v849
    %941 = vmatprep.subr.mxu0 %v854
    %942 = vmatpush1.msra.mxu0 %v853
    %943 = vmatprep.mubr.f32.mxu0 %v727
    %944 = vmatmul.mubr.f32.gmra.mrb[0].mxu0 %v726
    %v945 = vpop.f32.mrb[0].mxu0
    %v946 = vadd.f32 %v862, %v945
    %v947 = vpop.f32.mrb[0].mxu0
    %v948 = vadd.f32 %v866, %v947
    %949 = vdwg.mxu0
    %950 = vmatprep.subr.mxu0 %v732
    %951 = vmatpush1.msra.mxu0 %v731
    %952 = vmatprep.subr.mxu0 %v736
    %953 = vmatpush1.msra.mxu0 %v735
    %954 = vmatprep.subr.mxu0 %v740
    %955 = vmatpush1.msra.mxu0 %v739
    %956 = vmatprep.subr.mxu0 %v744
    %957 = vmatpush1.msra.mxu0 %v743
    %958 = vmatprep.subr.mxu0 %v748
    %959 = vmatpush1.msra.mxu0 %v747
    %960 = vmatprep.subr.mxu0 %v752
    %961 = vmatpush1.msra.mxu0 %v751
    %962 = vmatprep.subr.mxu0 %v756
    %963 = vmatpush1.msra.mxu0 %v755
    %964 = vmatprep.subr.mxu0 %v760
    %965 = vmatpush1.msra.mxu0 %v759
    %966 = vmatprep.subr.mxu0 %v764
    %967 = vmatpush1.msra.mxu0 %v763
    %968 = vmatprep.subr.mxu0 %v768
    %969 = vmatpush1.msra.mxu0 %v767
    %970 = vmatprep.subr.mxu0 %v772
    %971 = vmatpush1.msra.mxu0 %v771
    %972 = vmatprep.subr.mxu0 %v776
    %973 = vmatpush1.msra.mxu0 %v775
    %974 = vmatprep.subr.mxu0 %v780
    %975 = vmatpush1.msra.mxu0 %v779
    %976 = vmatprep.subr.mxu0 %v784
    %977 = vmatpush1.msra.mxu0 %v783
    %978 = vmatprep.subr.mxu0 %v788
    %979 = vmatpush1.msra.mxu0 %v787
    %980 = vmatprep.subr.mxu0 %v792
    %981 = vmatpush1.msra.mxu0 %v791
    %982 = vmatprep.subr.mxu0 %v796
    %983 = vmatpush1.msra.mxu0 %v795
    %984 = vmatprep.subr.mxu0 %v800
    %985 = vmatpush1.msra.mxu0 %v799
    %986 = vmatprep.subr.mxu0 %v804
    %987 = vmatpush1.msra.mxu0 %v803
    %988 = vmatprep.subr.mxu0 %v808
    %989 = vmatpush1.msra.mxu0 %v807
    %990 = vmatprep.subr.mxu0 %v812
    %991 = vmatpush1.msra.mxu0 %v811
    %992 = vmatprep.subr.mxu0 %v816
    %993 = vmatpush1.msra.mxu0 %v815
    %994 = vmatprep.subr.mxu0 %v820
    %995 = vmatpush1.msra.mxu0 %v819
    %996 = vmatprep.subr.mxu0 %v824
    %997 = vmatpush1.msra.mxu0 %v823
    %998 = vmatprep.subr.mxu0 %v828
    %999 = vmatpush1.msra.mxu0 %v827
    %1000 = vmatprep.subr.mxu0 %v832
    %1001 = vmatpush1.msra.mxu0 %v831
    %1002 = vmatprep.subr.mxu0 %v836
    %1003 = vmatpush1.msra.mxu0 %v835
    %1004 = vmatprep.subr.mxu0 %v840
    %1005 = vmatpush1.msra.mxu0 %v839
    %1006 = vmatprep.subr.mxu0 %v844
    %1007 = vmatpush1.msra.mxu0 %v843
    %1008 = vmatprep.subr.mxu0 %v848
    %1009 = vmatpush1.msra.mxu0 %v847
    %1010 = vmatprep.subr.mxu0 %v852
    %1011 = vmatpush1.msra.mxu0 %v851
    %1012 = vmatprep.subr.mxu0 %v856
    %1013 = vmatpush1.msra.mxu0 %v855
    %1014 = vmatprep.mubr.f32.mxu0 %v727
    %1015 = vmatmul.mubr.f32.gmra.mrb[0].mxu0 %v726
    %v1016 = vpop.f32.mrb[0].mxu0
    %v1017 = vadd.f32 %v870, %v1016
    %v1018 = vpop.f32.mrb[0].mxu0
    %v1019 = vadd.f32 %v874, %v1018
    %1020 = vdwg.mxu0
    %v1021 = vxor.u32 %v946, 2147483648
    %v1022 = vmul.f32 %v1021, 1.442695
    %v1023 = vpow.pop %v1022
    %v1024 = vadd.f32 %v1023, 1.0
    %v1025 = vrcp.pop %v1024
    %v1026 = vmul.f32 1.0, %v1025
    %v1027 = vxor.u32 %v948, 2147483648
    %v1028 = vmul.f32 %v1027, 1.442695
    %v1029 = vpow.pop %v1028
    %v1030 = vadd.f32 %v1029, 1.0
    %v1031 = vrcp.pop %v1030
    %v1032 = vmul.f32 1.0, %v1031
    %v1033 = vtanh.pop %v1017
    %v1034 = vxor.u32 %v1019, 2147483648
    %v1035 = vmul.f32 %v1034, 1.442695
    %v1036 = vpow.pop %v1035
    %v1037 = vadd.f32 %v1036, 1.0
    %v1038 = vrcp.pop %v1037
    %v1039 = vmul.f32 1.0, %v1038
    %v1040 = vmul.f32 %v1032, %v728
    %v1041 = vmul.f32 %v1026, %v1033
    %v1042 = vadd.f32 %v1040, %v1041
    %v1043 = vtanh.pop %v1042
    %v1044 = vmul.f32 %v1039, %v1043
    %1045 = vst [vmem:[#allocation3] sm:$0xff] %v1042
    %1046 = vst [vmem:[#allocation2] sm:$0xff] %v1044
    %v1047 = vld [vmem:[%s401] sm:$0xff]
    %v1048 = vld [vmem:[%s403] sm:$0xff]
    %v1049 = vld [vmem:[%s405] sm:$0xff]
    %v1050 = vld [vmem:[%s405 + $0x8] sm:$0xff]
    %v1051 = vld [vmem:[%s405 + $0x10] sm:$0xff]
    %v1052 = vld [vmem:[%s405 + $0x18] sm:$0xff]
    %v1053 = vld [vmem:[%s405 + $0x20] sm:$0xff]
    %v1054 = vld [vmem:[%s405 + $0x28] sm:$0xff]
    %v1055 = vld [vmem:[%s405 + $0x30] sm:$0xff]
    %v1056 = vld [vmem:[%s405 + $0x38] sm:$0xff]
    %v1057 = vld [vmem:[%s405 + $0x40] sm:$0xff]
    %v1058 = vld [vmem:[%s405 + $0x48] sm:$0xff]
    %v1059 = vld [vmem:[%s405 + $0x50] sm:$0xff]
    %v1060 = vld [vmem:[%s405 + $0x58] sm:$0xff]
    %v1061 = vld [vmem:[%s405 + $0x60] sm:$0xff]
    %v1062 = vld [vmem:[%s405 + $0x68] sm:$0xff]
    %v1063 = vld [vmem:[%s405 + $0x70] sm:$0xff]
    %v1064 = vld [vmem:[%s405 + $0x78] sm:$0xff]
    %v1065 = vld [vmem:[%s405 + $0x80] sm:$0xff]
    %v1066 = vld [vmem:[%s405 + $0x88] sm:$0xff]
    %v1067 = vld [vmem:[%s405 + $0x90] sm:$0xff]
    %v1068 = vld [vmem:[%s405 + $0x98] sm:$0xff]
    %v1069 = vld [vmem:[%s405 + $0xa0] sm:$0xff]
    %v1070 = vld [vmem:[%s405 + $0xa8] sm:$0xff]
    %v1071 = vld [vmem:[%s405 + $0xb0] sm:$0xff]
    %v1072 = vld [vmem:[%s405 + $0xb8] sm:$0xff]
    %v1073 = vld [vmem:[%s405 + $0xc0] sm:$0xff]
    %v1074 = vld [vmem:[%s405 + $0xc8] sm:$0xff]
    %v1075 = vld [vmem:[%s405 + $0xd0] sm:$0xff]
    %v1076 = vld [vmem:[%s405 + $0xd8] sm:$0xff]
    %v1077 = vld [vmem:[%s405 + $0xe0] sm:$0xff]
    %v1078 = vld [vmem:[%s405 + $0xe8] sm:$0xff]
    %v1079 = vld [vmem:[%s405 + $0xf0] sm:$0xff]
    %v1080 = vld [vmem:[%s405 + $0xf8] sm:$0xff]
    %v1081 = vld [vmem:[%s405 + $0x100] sm:$0xff]
    %v1082 = vld [vmem:[%s405 + $0x108] sm:$0xff]
    %v1083 = vld [vmem:[%s405 + $0x110] sm:$0xff]
    %v1084 = vld [vmem:[%s405 + $0x118] sm:$0xff]
    %v1085 = vld [vmem:[%s405 + $0x120] sm:$0xff]
    %v1086 = vld [vmem:[%s405 + $0x128] sm:$0xff]
    %v1087 = vld [vmem:[%s405 + $0x130] sm:$0xff]
    %v1088 = vld [vmem:[%s405 + $0x138] sm:$0xff]
    %v1089 = vld [vmem:[%s405 + $0x140] sm:$0xff]
    %v1090 = vld [vmem:[%s405 + $0x148] sm:$0xff]
    %v1091 = vld [vmem:[%s405 + $0x150] sm:$0xff]
    %v1092 = vld [vmem:[%s405 + $0x158] sm:$0xff]
    %v1093 = vld [vmem:[%s405 + $0x160] sm:$0xff]
    %v1094 = vld [vmem:[%s405 + $0x168] sm:$0xff]
    %v1095 = vld [vmem:[%s405 + $0x170] sm:$0xff]
    %v1096 = vld [vmem:[%s405 + $0x178] sm:$0xff]
    %v1097 = vld [vmem:[%s405 + $0x180] sm:$0xff]
    %v1098 = vld [vmem:[%s405 + $0x188] sm:$0xff]
    %v1099 = vld [vmem:[%s405 + $0x190] sm:$0xff]
    %v1100 = vld [vmem:[%s405 + $0x198] sm:$0xff]
    %v1101 = vld [vmem:[%s405 + $0x1a0] sm:$0xff]
    %v1102 = vld [vmem:[%s405 + $0x1a8] sm:$0xff]
    %v1103 = vld [vmem:[%s405 + $0x1b0] sm:$0xff]
    %v1104 = vld [vmem:[%s405 + $0x1b8] sm:$0xff]
    %v1105 = vld [vmem:[%s405 + $0x1c0] sm:$0xff]
    %v1106 = vld [vmem:[%s405 + $0x1c8] sm:$0xff]
    %v1107 = vld [vmem:[%s405 + $0x1d0] sm:$0xff]
    %v1108 = vld [vmem:[%s405 + $0x1d8] sm:$0xff]
    %v1109 = vld [vmem:[%s405 + $0x1e0] sm:$0xff]
    %v1110 = vld [vmem:[%s405 + $0x1e8] sm:$0xff]
    %v1111 = vld [vmem:[%s405 + $0x1f0] sm:$0xff]
    %v1112 = vld [vmem:[%s405 + $0x1f8] sm:$0xff]
    %v1113 = vld [vmem:[%s405 + $0x200] sm:$0xff]
    %v1114 = vld [vmem:[%s405 + $0x208] sm:$0xff]
    %v1115 = vld [vmem:[%s405 + $0x210] sm:$0xff]
    %v1116 = vld [vmem:[%s405 + $0x218] sm:$0xff]
    %v1117 = vld [vmem:[%s405 + $0x220] sm:$0xff]
    %v1118 = vld [vmem:[%s405 + $0x228] sm:$0xff]
    %v1119 = vld [vmem:[%s405 + $0x230] sm:$0xff]
    %v1120 = vld [vmem:[%s405 + $0x238] sm:$0xff]
    %v1121 = vld [vmem:[%s405 + $0x240] sm:$0xff]
    %v1122 = vld [vmem:[%s405 + $0x248] sm:$0xff]
    %v1123 = vld [vmem:[%s405 + $0x250] sm:$0xff]
    %v1124 = vld [vmem:[%s405 + $0x258] sm:$0xff]
    %v1125 = vld [vmem:[%s405 + $0x260] sm:$0xff]
    %v1126 = vld [vmem:[%s405 + $0x268] sm:$0xff]
    %v1127 = vld [vmem:[%s405 + $0x270] sm:$0xff]
    %v1128 = vld [vmem:[%s405 + $0x278] sm:$0xff]
    %v1129 = vld [vmem:[%s405 + $0x280] sm:$0xff]
    %v1130 = vld [vmem:[%s405 + $0x288] sm:$0xff]
    %v1131 = vld [vmem:[%s405 + $0x290] sm:$0xff]
    %v1132 = vld [vmem:[%s405 + $0x298] sm:$0xff]
    %v1133 = vld [vmem:[%s405 + $0x2a0] sm:$0xff]
    %v1134 = vld [vmem:[%s405 + $0x2a8] sm:$0xff]
    %v1135 = vld [vmem:[%s405 + $0x2b0] sm:$0xff]
    %v1136 = vld [vmem:[%s405 + $0x2b8] sm:$0xff]
    %v1137 = vld [vmem:[%s405 + $0x2c0] sm:$0xff]
    %v1138 = vld [vmem:[%s405 + $0x2c8] sm:$0xff]
    %v1139 = vld [vmem:[%s405 + $0x2d0] sm:$0xff]
    %v1140 = vld [vmem:[%s405 + $0x2d8] sm:$0xff]
    %v1141 = vld [vmem:[%s405 + $0x2e0] sm:$0xff]
    %v1142 = vld [vmem:[%s405 + $0x2e8] sm:$0xff]
    %v1143 = vld [vmem:[%s405 + $0x2f0] sm:$0xff]
    %v1144 = vld [vmem:[%s405 + $0x2f8] sm:$0xff]
    %v1145 = vld [vmem:[%s405 + $0x300] sm:$0xff]
    %v1146 = vld [vmem:[%s405 + $0x308] sm:$0xff]
    %v1147 = vld [vmem:[%s405 + $0x310] sm:$0xff]
    %v1148 = vld [vmem:[%s405 + $0x318] sm:$0xff]
    %v1149 = vld [vmem:[%s405 + $0x320] sm:$0xff]
    %v1150 = vld [vmem:[%s405 + $0x328] sm:$0xff]
    %v1151 = vld [vmem:[%s405 + $0x330] sm:$0xff]
    %v1152 = vld [vmem:[%s405 + $0x338] sm:$0xff]
    %v1153 = vld [vmem:[%s405 + $0x340] sm:$0xff]
    %v1154 = vld [vmem:[%s405 + $0x348] sm:$0xff]
    %v1155 = vld [vmem:[%s405 + $0x350] sm:$0xff]
    %v1156 = vld [vmem:[%s405 + $0x358] sm:$0xff]
    %v1157 = vld [vmem:[%s405 + $0x360] sm:$0xff]
    %v1158 = vld [vmem:[%s405 + $0x368] sm:$0xff]
    %v1159 = vld [vmem:[%s405 + $0x370] sm:$0xff]
    %v1160 = vld [vmem:[%s405 + $0x378] sm:$0xff]
    %v1161 = vld [vmem:[%s405 + $0x380] sm:$0xff]
    %v1162 = vld [vmem:[%s405 + $0x388] sm:$0xff]
    %v1163 = vld [vmem:[%s405 + $0x390] sm:$0xff]
    %v1164 = vld [vmem:[%s405 + $0x398] sm:$0xff]
    %v1165 = vld [vmem:[%s405 + $0x3a0] sm:$0xff]
    %v1166 = vld [vmem:[%s405 + $0x3a8] sm:$0xff]
    %v1167 = vld [vmem:[%s405 + $0x3b0] sm:$0xff]
    %v1168 = vld [vmem:[%s405 + $0x3b8] sm:$0xff]
    %v1169 = vld [vmem:[%s405 + $0x3c0] sm:$0xff]
    %v1170 = vld [vmem:[%s405 + $0x3c8] sm:$0xff]
    %v1171 = vld [vmem:[%s405 + $0x3d0] sm:$0xff]
    %v1172 = vld [vmem:[%s405 + $0x3d8] sm:$0xff]
    %v1173 = vld [vmem:[%s405 + $0x3e0] sm:$0xff]
    %v1174 = vld [vmem:[%s405 + $0x3e8] sm:$0xff]
    %v1175 = vld [vmem:[%s405 + $0x3f0] sm:$0xff]
    %v1176 = vld [vmem:[%s405 + $0x3f8] sm:$0xff]
    %v1177 = vld [vmem:[%s534] sm:$0xf]
    %v1179 = vlaneseq
    %v1180 = vshrl.u32 %v1179, 7
    %v1181 = vsub.s32 0, %v1180
    %v1182 = vrot.slane %v1177, %v1181
    %v1183 = vlaneseq
    %v1184 = vshrl.u32 %v1183, 7
    %v1185 = vsub.s32 1, %v1184
    %v1186 = vrot.slane %v1177, %v1185
    %v1187 = vlaneseq
    %v1188 = vshrl.u32 %v1187, 7
    %v1189 = vsub.s32 2, %v1188
    %v1190 = vrot.slane %v1177, %v1189
    %v1191 = vlaneseq
    %v1192 = vshrl.u32 %v1191, 7
    %v1193 = vsub.s32 3, %v1192
    %v1194 = vrot.slane %v1177, %v1193
    %1199 = vmatprep.subr.mxu0 %v1050
    %1200 = vmatpush1.msra.mxu0 %v1049
    %1201 = vmatprep.subr.mxu0 %v1054
    %1202 = vmatpush1.msra.mxu0 %v1053
    %1203 = vmatprep.subr.mxu0 %v1058
    %1204 = vmatpush1.msra.mxu0 %v1057
    %1205 = vmatprep.subr.mxu0 %v1062
    %1206 = vmatpush1.msra.mxu0 %v1061
    %1207 = vmatprep.subr.mxu0 %v1066
    %1208 = vmatpush1.msra.mxu0 %v1065
    %1209 = vmatprep.subr.mxu0 %v1070
    %1210 = vmatpush1.msra.mxu0 %v1069
    %1211 = vmatprep.subr.mxu0 %v1074
    %1212 = vmatpush1.msra.mxu0 %v1073
    %1213 = vmatprep.subr.mxu0 %v1078
    %1214 = vmatpush1.msra.mxu0 %v1077
    %1215 = vmatprep.subr.mxu0 %v1082
    %1216 = vmatpush1.msra.mxu0 %v1081
    %1217 = vmatprep.subr.mxu0 %v1086
    %1218 = vmatpush1.msra.mxu0 %v1085
    %1219 = vmatprep.subr.mxu0 %v1090
    %1220 = vmatpush1.msra.mxu0 %v1089
    %1221 = vmatprep.subr.mxu0 %v1094
    %1222 = vmatpush1.msra.mxu0 %v1093
    %1223 = vmatprep.subr.mxu0 %v1098
    %1224 = vmatpush1.msra.mxu0 %v1097
    %1225 = vmatprep.subr.mxu0 %v1102
    %1226 = vmatpush1.msra.mxu0 %v1101
    %1227 = vmatprep.subr.mxu0 %v1106
    %1228 = vmatpush1.msra.mxu0 %v1105
    %1229 = vmatprep.subr.mxu0 %v1110
    %1230 = vmatpush1.msra.mxu0 %v1109
    %1231 = vmatprep.subr.mxu0 %v1114
    %1232 = vmatpush1.msra.mxu0 %v1113
    %1233 = vmatprep.subr.mxu0 %v1118
    %1234 = vmatpush1.msra.mxu0 %v1117
    %1235 = vmatprep.subr.mxu0 %v1122
    %1236 = vmatpush1.msra.mxu0 %v1121
    %1237 = vmatprep.subr.mxu0 %v1126
    %1238 = vmatpush1.msra.mxu0 %v1125
    %1239 = vmatprep.subr.mxu0 %v1130
    %1240 = vmatpush1.msra.mxu0 %v1129
    %1241 = vmatprep.subr.mxu0 %v1134
    %1242 = vmatpush1.msra.mxu0 %v1133
    %1243 = vmatprep.subr.mxu0 %v1138
    %1244 = vmatpush1.msra.mxu0 %v1137
    %1245 = vmatprep.subr.mxu0 %v1142
    %1246 = vmatpush1.msra.mxu0 %v1141
    %1247 = vmatprep.subr.mxu0 %v1146
    %1248 = vmatpush1.msra.mxu0 %v1145
    %1249 = vmatprep.subr.mxu0 %v1150
    %1250 = vmatpush1.msra.mxu0 %v1149
    %1251 = vmatprep.subr.mxu0 %v1154
    %1252 = vmatpush1.msra.mxu0 %v1153
    %1253 = vmatprep.subr.mxu0 %v1158
    %1254 = vmatpush1.msra.mxu0 %v1157
    %1255 = vmatprep.subr.mxu0 %v1162
    %1256 = vmatpush1.msra.mxu0 %v1161
    %1257 = vmatprep.subr.mxu0 %v1166
    %1258 = vmatpush1.msra.mxu0 %v1165
    %1259 = vmatprep.subr.mxu0 %v1170
    %1260 = vmatpush1.msra.mxu0 %v1169
    %1261 = vmatprep.subr.mxu0 %v1174
    %1262 = vmatpush1.msra.mxu0 %v1173
    %1263 = vmatprep.mubr.f32.mxu0 %v1047
    %1264 = vmatmul.mubr.f32.gmra.mrb[0].mxu0 %v1044
    %v1265 = vpop.f32.mrb[0].mxu0
    %v1266 = vadd.f32 %v1182, %v1265
    %v1267 = vpop.f32.mrb[0].mxu0
    %v1268 = vadd.f32 %v1186, %v1267
    %1269 = vdwg.mxu0
    %1270 = vmatprep.subr.mxu0 %v1052
    %1271 = vmatpush1.msra.mxu0 %v1051
    %1272 = vmatprep.subr.mxu0 %v1056
    %1273 = vmatpush1.msra.mxu0 %v1055
    %1274 = vmatprep.subr.mxu0 %v1060
    %1275 = vmatpush1.msra.mxu0 %v1059
    %1276 = vmatprep.subr.mxu0 %v1064
    %1277 = vmatpush1.msra.mxu0 %v1063
    %1278 = vmatprep.subr.mxu0 %v1068
    %1279 = vmatpush1.msra.mxu0 %v1067
    %1280 = vmatprep.subr.mxu0 %v1072
    %1281 = vmatpush1.msra.mxu0 %v1071
    %1282 = vmatprep.subr.mxu0 %v1076
    %1283 = vmatpush1.msra.mxu0 %v1075
    %1284 = vmatprep.subr.mxu0 %v1080
    %1285 = vmatpush1.msra.mxu0 %v1079
    %1286 = vmatprep.subr.mxu0 %v1084
    %1287 = vmatpush1.msra.mxu0 %v1083
    %1288 = vmatprep.subr.mxu0 %v1088
    %1289 = vmatpush1.msra.mxu0 %v1087
    %1290 = vmatprep.subr.mxu0 %v1092
    %1291 = vmatpush1.msra.mxu0 %v1091
    %1292 = vmatprep.subr.mxu0 %v1096
    %1293 = vmatpush1.msra.mxu0 %v1095
    %1294 = vmatprep.subr.mxu0 %v1100
    %1295 = vmatpush1.msra.mxu0 %v1099
    %1296 = vmatprep.subr.mxu0 %v1104
    %1297 = vmatpush1.msra.mxu0 %v1103
    %1298 = vmatprep.subr.mxu0 %v1108
    %1299 = vmatpush1.msra.mxu0 %v1107
    %1300 = vmatprep.subr.mxu0 %v1112
    %1301 = vmatpush1.msra.mxu0 %v1111
    %1302 = vmatprep.subr.mxu0 %v1116
    %1303 = vmatpush1.msra.mxu0 %v1115
    %1304 = vmatprep.subr.mxu0 %v1120
    %1305 = vmatpush1.msra.mxu0 %v1119
    %1306 = vmatprep.subr.mxu0 %v1124
    %1307 = vmatpush1.msra.mxu0 %v1123
    %1308 = vmatprep.subr.mxu0 %v1128
    %1309 = vmatpush1.msra.mxu0 %v1127
    %1310 = vmatprep.subr.mxu0 %v1132
    %1311 = vmatpush1.msra.mxu0 %v1131
    %1312 = vmatprep.subr.mxu0 %v1136
    %1313 = vmatpush1.msra.mxu0 %v1135
    %1314 = vmatprep.subr.mxu0 %v1140
    %1315 = vmatpush1.msra.mxu0 %v1139
    %1316 = vmatprep.subr.mxu0 %v1144
    %1317 = vmatpush1.msra.mxu0 %v1143
    %1318 = vmatprep.subr.mxu0 %v1148
    %1319 = vmatpush1.msra.mxu0 %v1147
    %1320 = vmatprep.subr.mxu0 %v1152
    %1321 = vmatpush1.msra.mxu0 %v1151
    %1322 = vmatprep.subr.mxu0 %v1156
    %1323 = vmatpush1.msra.mxu0 %v1155
    %1324 = vmatprep.subr.mxu0 %v1160
    %1325 = vmatpush1.msra.mxu0 %v1159
    %1326 = vmatprep.subr.mxu0 %v1164
    %1327 = vmatpush1.msra.mxu0 %v1163
    %1328 = vmatprep.subr.mxu0 %v1168
    %1329 = vmatpush1.msra.mxu0 %v1167
    %1330 = vmatprep.subr.mxu0 %v1172
    %1331 = vmatpush1.msra.mxu0 %v1171
    %1332 = vmatprep.subr.mxu0 %v1176
    %1333 = vmatpush1.msra.mxu0 %v1175
    %1334 = vmatprep.mubr.f32.mxu0 %v1047
    %1335 = vmatmul.mubr.f32.gmra.mrb[0].mxu0 %v1044
    %v1336 = vpop.f32.mrb[0].mxu0
    %v1337 = vadd.f32 %v1190, %v1336
    %v1338 = vpop.f32.mrb[0].mxu0
    %v1339 = vadd.f32 %v1194, %v1338
    %1340 = vdwg.mxu0
    %v1341 = vxor.u32 %v1266, 2147483648
    %v1342 = vmul.f32 %v1341, 1.442695
    %v1343 = vpow.pop %v1342
    %v1344 = vadd.f32 %v1343, 1.0
    %v1345 = vrcp.pop %v1344
    %v1346 = vmul.f32 1.0, %v1345
    %v1347 = vxor.u32 %v1268, 2147483648
    %v1348 = vmul.f32 %v1347, 1.442695
    %v1349 = vpow.pop %v1348
    %v1350 = vadd.f32 %v1349, 1.0
    %v1351 = vrcp.pop %v1350
    %v1352 = vmul.f32 1.0, %v1351
    %v1353 = vtanh.pop %v1337
    %v1354 = vxor.u32 %v1339, 2147483648
    %v1355 = vmul.f32 %v1354, 1.442695
    %v1356 = vpow.pop %v1355
    %v1357 = vadd.f32 %v1356, 1.0
    %v1358 = vrcp.pop %v1357
    %v1359 = vmul.f32 1.0, %v1358
    %v1360 = vmul.f32 %v1352, %v1048
    %v1361 = vmul.f32 %v1346, %v1353
    %v1362 = vadd.f32 %v1360, %v1361
    %v1363 = vtanh.pop %v1362
    %v1364 = vmul.f32 %v1359, %v1363
    %1365 = vst [vmem:[%s403] sm:$0xff] %v1362
    %1366 = vst [vmem:[%s401] sm:$0xff] %v1364
    %s1367 = scalar_lea.vmem [#allocation4], 16
    %v1368 = vld [vmem:[%s1367] sm:$0xff]
    %v1369 = vld [vmem:[#allocation2] sm:$0xff]
    %v1370 = vld [vmem:[#allocation3] sm:$0xff]
    %v1371 = vld [vmem:[#allocation7] sm:$0xff]
    %v1372 = vld [vmem:[#allocation7 + $0x8] sm:$0xff]
    %v1373 = vld [vmem:[#allocation7 + $0x10] sm:$0xff]
    %v1374 = vld [vmem:[#allocation7 + $0x18] sm:$0xff]
    %v1375 = vld [vmem:[#allocation7 + $0x20] sm:$0xff]
    %v1376 = vld [vmem:[#allocation7 + $0x28] sm:$0xff]
    %v1377 = vld [vmem:[#allocation7 + $0x30] sm:$0xff]
    %v1378 = vld [vmem:[#allocation7 + $0x38] sm:$0xff]
    %v1379 = vld [vmem:[#allocation7 + $0x40] sm:$0xff]
    %v1380 = vld [vmem:[#allocation7 + $0x48] sm:$0xff]
    %v1381 = vld [vmem:[#allocation7 + $0x50] sm:$0xff]
    %v1382 = vld [vmem:[#allocation7 + $0x58] sm:$0xff]
    %v1383 = vld [vmem:[#allocation7 + $0x60] sm:$0xff]
    %v1384 = vld [vmem:[#allocation7 + $0x68] sm:$0xff]
    %v1385 = vld [vmem:[#allocation7 + $0x70] sm:$0xff]
    %v1386 = vld [vmem:[#allocation7 + $0x78] sm:$0xff]
    %v1387 = vld [vmem:[#allocation7 + $0x80] sm:$0xff]
    %v1388 = vld [vmem:[#allocation7 + $0x88] sm:$0xff]
    %v1389 = vld [vmem:[#allocation7 + $0x90] sm:$0xff]
    %v1390 = vld [vmem:[#allocation7 + $0x98] sm:$0xff]
    %v1391 = vld [vmem:[#allocation7 + $0xa0] sm:$0xff]
    %v1392 = vld [vmem:[#allocation7 + $0xa8] sm:$0xff]
    %v1393 = vld [vmem:[#allocation7 + $0xb0] sm:$0xff]
    %v1394 = vld [vmem:[#allocation7 + $0xb8] sm:$0xff]
    %v1395 = vld [vmem:[#allocation7 + $0xc0] sm:$0xff]
    %v1396 = vld [vmem:[#allocation7 + $0xc8] sm:$0xff]
    %v1397 = vld [vmem:[#allocation7 + $0xd0] sm:$0xff]
    %v1398 = vld [vmem:[#allocation7 + $0xd8] sm:$0xff]
    %v1399 = vld [vmem:[#allocation7 + $0xe0] sm:$0xff]
    %v1400 = vld [vmem:[#allocation7 + $0xe8] sm:$0xff]
    %v1401 = vld [vmem:[#allocation7 + $0xf0] sm:$0xff]
    %v1402 = vld [vmem:[#allocation7 + $0xf8] sm:$0xff]
    %v1403 = vld [vmem:[#allocation7 + $0x100] sm:$0xff]
    %v1404 = vld [vmem:[#allocation7 + $0x108] sm:$0xff]
    %v1405 = vld [vmem:[#allocation7 + $0x110] sm:$0xff]
    %v1406 = vld [vmem:[#allocation7 + $0x118] sm:$0xff]
    %v1407 = vld [vmem:[#allocation7 + $0x120] sm:$0xff]
    %v1408 = vld [vmem:[#allocation7 + $0x128] sm:$0xff]
    %v1409 = vld [vmem:[#allocation7 + $0x130] sm:$0xff]
    %v1410 = vld [vmem:[#allocation7 + $0x138] sm:$0xff]
    %v1411 = vld [vmem:[#allocation7 + $0x140] sm:$0xff]
    %v1412 = vld [vmem:[#allocation7 + $0x148] sm:$0xff]
    %v1413 = vld [vmem:[#allocation7 + $0x150] sm:$0xff]
    %v1414 = vld [vmem:[#allocation7 + $0x158] sm:$0xff]
    %v1415 = vld [vmem:[#allocation7 + $0x160] sm:$0xff]
    %v1416 = vld [vmem:[#allocation7 + $0x168] sm:$0xff]
    %v1417 = vld [vmem:[#allocation7 + $0x170] sm:$0xff]
    %v1418 = vld [vmem:[#allocation7 + $0x178] sm:$0xff]
    %v1419 = vld [vmem:[#allocation7 + $0x180] sm:$0xff]
    %v1420 = vld [vmem:[#allocation7 + $0x188] sm:$0xff]
    %v1421 = vld [vmem:[#allocation7 + $0x190] sm:$0xff]
    %v1422 = vld [vmem:[#allocation7 + $0x198] sm:$0xff]
    %v1423 = vld [vmem:[#allocation7 + $0x1a0] sm:$0xff]
    %v1424 = vld [vmem:[#allocation7 + $0x1a8] sm:$0xff]
    %v1425 = vld [vmem:[#allocation7 + $0x1b0] sm:$0xff]
    %v1426 = vld [vmem:[#allocation7 + $0x1b8] sm:$0xff]
    %v1427 = vld [vmem:[#allocation7 + $0x1c0] sm:$0xff]
    %v1428 = vld [vmem:[#allocation7 + $0x1c8] sm:$0xff]
    %v1429 = vld [vmem:[#allocation7 + $0x1d0] sm:$0xff]
    %v1430 = vld [vmem:[#allocation7 + $0x1d8] sm:$0xff]
    %v1431 = vld [vmem:[#allocation7 + $0x1e0] sm:$0xff]
    %v1432 = vld [vmem:[#allocation7 + $0x1e8] sm:$0xff]
    %v1433 = vld [vmem:[#allocation7 + $0x1f0] sm:$0xff]
    %v1434 = vld [vmem:[#allocation7 + $0x1f8] sm:$0xff]
    %v1435 = vld [vmem:[#allocation7 + $0x200] sm:$0xff]
    %v1436 = vld [vmem:[#allocation7 + $0x208] sm:$0xff]
    %v1437 = vld [vmem:[#allocation7 + $0x210] sm:$0xff]
    %v1438 = vld [vmem:[#allocation7 + $0x218] sm:$0xff]
    %v1439 = vld [vmem:[#allocation7 + $0x220] sm:$0xff]
    %v1440 = vld [vmem:[#allocation7 + $0x228] sm:$0xff]
    %v1441 = vld [vmem:[#allocation7 + $0x230] sm:$0xff]
    %v1442 = vld [vmem:[#allocation7 + $0x238] sm:$0xff]
    %v1443 = vld [vmem:[#allocation7 + $0x240] sm:$0xff]
    %v1444 = vld [vmem:[#allocation7 + $0x248] sm:$0xff]
    %v1445 = vld [vmem:[#allocation7 + $0x250] sm:$0xff]
    %v1446 = vld [vmem:[#allocation7 + $0x258] sm:$0xff]
    %v1447 = vld [vmem:[#allocation7 + $0x260] sm:$0xff]
    %v1448 = vld [vmem:[#allocation7 + $0x268] sm:$0xff]
    %v1449 = vld [vmem:[#allocation7 + $0x270] sm:$0xff]
    %v1450 = vld [vmem:[#allocation7 + $0x278] sm:$0xff]
    %v1451 = vld [vmem:[#allocation7 + $0x280] sm:$0xff]
    %v1452 = vld [vmem:[#allocation7 + $0x288] sm:$0xff]
    %v1453 = vld [vmem:[#allocation7 + $0x290] sm:$0xff]
    %v1454 = vld [vmem:[#allocation7 + $0x298] sm:$0xff]
    %v1455 = vld [vmem:[#allocation7 + $0x2a0] sm:$0xff]
    %v1456 = vld [vmem:[#allocation7 + $0x2a8] sm:$0xff]
    %v1457 = vld [vmem:[#allocation7 + $0x2b0] sm:$0xff]
    %v1458 = vld [vmem:[#allocation7 + $0x2b8] sm:$0xff]
    %v1459 = vld [vmem:[#allocation7 + $0x2c0] sm:$0xff]
    %v1460 = vld [vmem:[#allocation7 + $0x2c8] sm:$0xff]
    %v1461 = vld [vmem:[#allocation7 + $0x2d0] sm:$0xff]
    %v1462 = vld [vmem:[#allocation7 + $0x2d8] sm:$0xff]
    %v1463 = vld [vmem:[#allocation7 + $0x2e0] sm:$0xff]
    %v1464 = vld [vmem:[#allocation7 + $0x2e8] sm:$0xff]
    %v1465 = vld [vmem:[#allocation7 + $0x2f0] sm:$0xff]
    %v1466 = vld [vmem:[#allocation7 + $0x2f8] sm:$0xff]
    %v1467 = vld [vmem:[#allocation7 + $0x300] sm:$0xff]
    %v1468 = vld [vmem:[#allocation7 + $0x308] sm:$0xff]
    %v1469 = vld [vmem:[#allocation7 + $0x310] sm:$0xff]
    %v1470 = vld [vmem:[#allocation7 + $0x318] sm:$0xff]
    %v1471 = vld [vmem:[#allocation7 + $0x320] sm:$0xff]
    %v1472 = vld [vmem:[#allocation7 + $0x328] sm:$0xff]
    %v1473 = vld [vmem:[#allocation7 + $0x330] sm:$0xff]
    %v1474 = vld [vmem:[#allocation7 + $0x338] sm:$0xff]
    %v1475 = vld [vmem:[#allocation7 + $0x340] sm:$0xff]
    %v1476 = vld [vmem:[#allocation7 + $0x348] sm:$0xff]
    %v1477 = vld [vmem:[#allocation7 + $0x350] sm:$0xff]
    %v1478 = vld [vmem:[#allocation7 + $0x358] sm:$0xff]
    %v1479 = vld [vmem:[#allocation7 + $0x360] sm:$0xff]
    %v1480 = vld [vmem:[#allocation7 + $0x368] sm:$0xff]
    %v1481 = vld [vmem:[#allocation7 + $0x370] sm:$0xff]
    %v1482 = vld [vmem:[#allocation7 + $0x378] sm:$0xff]
    %v1483 = vld [vmem:[#allocation7 + $0x380] sm:$0xff]
    %v1484 = vld [vmem:[#allocation7 + $0x388] sm:$0xff]
    %v1485 = vld [vmem:[#allocation7 + $0x390] sm:$0xff]
    %v1486 = vld [vmem:[#allocation7 + $0x398] sm:$0xff]
    %v1487 = vld [vmem:[#allocation7 + $0x3a0] sm:$0xff]
    %v1488 = vld [vmem:[#allocation7 + $0x3a8] sm:$0xff]
    %v1489 = vld [vmem:[#allocation7 + $0x3b0] sm:$0xff]
    %v1490 = vld [vmem:[#allocation7 + $0x3b8] sm:$0xff]
    %v1491 = vld [vmem:[#allocation7 + $0x3c0] sm:$0xff]
    %v1492 = vld [vmem:[#allocation7 + $0x3c8] sm:$0xff]
    %v1493 = vld [vmem:[#allocation7 + $0x3d0] sm:$0xff]
    %v1494 = vld [vmem:[#allocation7 + $0x3d8] sm:$0xff]
    %v1495 = vld [vmem:[#allocation7 + $0x3e0] sm:$0xff]
    %v1496 = vld [vmem:[#allocation7 + $0x3e8] sm:$0xff]
    %v1497 = vld [vmem:[#allocation7 + $0x3f0] sm:$0xff]
    %v1498 = vld [vmem:[#allocation7 + $0x3f8] sm:$0xff]
    %v1499 = vld [vmem:[#allocation9] sm:$0xf]
    %v1501 = vlaneseq
    %v1502 = vshrl.u32 %v1501, 7
    %v1503 = vsub.s32 0, %v1502
    %v1504 = vrot.slane %v1499, %v1503
    %v1505 = vlaneseq
    %v1506 = vshrl.u32 %v1505, 7
    %v1507 = vsub.s32 1, %v1506
    %v1508 = vrot.slane %v1499, %v1507
    %v1509 = vlaneseq
    %v1510 = vshrl.u32 %v1509, 7
    %v1511 = vsub.s32 2, %v1510
    %v1512 = vrot.slane %v1499, %v1511
    %v1513 = vlaneseq
    %v1514 = vshrl.u32 %v1513, 7
    %v1515 = vsub.s32 3, %v1514
    %v1516 = vrot.slane %v1499, %v1515
    %1521 = vmatprep.subr.mxu0 %v1372
    %1522 = vmatpush1.msra.mxu0 %v1371
    %1523 = vmatprep.subr.mxu0 %v1376
    %1524 = vmatpush1.msra.mxu0 %v1375
    %1525 = vmatprep.subr.mxu0 %v1380
    %1526 = vmatpush1.msra.mxu0 %v1379
    %1527 = vmatprep.subr.mxu0 %v1384
    %1528 = vmatpush1.msra.mxu0 %v1383
    %1529 = vmatprep.subr.mxu0 %v1388
    %1530 = vmatpush1.msra.mxu0 %v1387
    %1531 = vmatprep.subr.mxu0 %v1392
    %1532 = vmatpush1.msra.mxu0 %v1391
    %1533 = vmatprep.subr.mxu0 %v1396
    %1534 = vmatpush1.msra.mxu0 %v1395
    %1535 = vmatprep.subr.mxu0 %v1400
    %1536 = vmatpush1.msra.mxu0 %v1399
    %1537 = vmatprep.subr.mxu0 %v1404
    %1538 = vmatpush1.msra.mxu0 %v1403
    %1539 = vmatprep.subr.mxu0 %v1408
    %1540 = vmatpush1.msra.mxu0 %v1407
    %1541 = vmatprep.subr.mxu0 %v1412
    %1542 = vmatpush1.msra.mxu0 %v1411
    %1543 = vmatprep.subr.mxu0 %v1416
    %1544 = vmatpush1.msra.mxu0 %v1415
    %1545 = vmatprep.subr.mxu0 %v1420
    %1546 = vmatpush1.msra.mxu0 %v1419
    %1547 = vmatprep.subr.mxu0 %v1424
    %1548 = vmatpush1.msra.mxu0 %v1423
    %1549 = vmatprep.subr.mxu0 %v1428
    %1550 = vmatpush1.msra.mxu0 %v1427
    %1551 = vmatprep.subr.mxu0 %v1432
    %1552 = vmatpush1.msra.mxu0 %v1431
    %1553 = vmatprep.subr.mxu0 %v1436
    %1554 = vmatpush1.msra.mxu0 %v1435
    %1555 = vmatprep.subr.mxu0 %v1440
    %1556 = vmatpush1.msra.mxu0 %v1439
    %1557 = vmatprep.subr.mxu0 %v1444
    %1558 = vmatpush1.msra.mxu0 %v1443
    %1559 = vmatprep.subr.mxu0 %v1448
    %1560 = vmatpush1.msra.mxu0 %v1447
    %1561 = vmatprep.subr.mxu0 %v1452
    %1562 = vmatpush1.msra.mxu0 %v1451
    %1563 = vmatprep.subr.mxu0 %v1456
    %1564 = vmatpush1.msra.mxu0 %v1455
    %1565 = vmatprep.subr.mxu0 %v1460
    %1566 = vmatpush1.msra.mxu0 %v1459
    %1567 = vmatprep.subr.mxu0 %v1464
    %1568 = vmatpush1.msra.mxu0 %v1463
    %1569 = vmatprep.subr.mxu0 %v1468
    %1570 = vmatpush1.msra.mxu0 %v1467
    %1571 = vmatprep.subr.mxu0 %v1472
    %1572 = vmatpush1.msra.mxu0 %v1471
    %1573 = vmatprep.subr.mxu0 %v1476
    %1574 = vmatpush1.msra.mxu0 %v1475
    %1575 = vmatprep.subr.mxu0 %v1480
    %1576 = vmatpush1.msra.mxu0 %v1479
    %1577 = vmatprep.subr.mxu0 %v1484
    %1578 = vmatpush1.msra.mxu0 %v1483
    %1579 = vmatprep.subr.mxu0 %v1488
    %1580 = vmatpush1.msra.mxu0 %v1487
    %1581 = vmatprep.subr.mxu0 %v1492
    %1582 = vmatpush1.msra.mxu0 %v1491
    %1583 = vmatprep.subr.mxu0 %v1496
    %1584 = vmatpush1.msra.mxu0 %v1495
    %1585 = vmatprep.mubr.f32.mxu0 %v1369
    %1586 = vmatmul.mubr.f32.gmra.mrb[0].mxu0 %v1368
    %v1587 = vpop.f32.mrb[0].mxu0
    %v1588 = vadd.f32 %v1504, %v1587
    %v1589 = vpop.f32.mrb[0].mxu0
    %v1590 = vadd.f32 %v1508, %v1589
    %1591 = vdwg.mxu0
    %1592 = vmatprep.subr.mxu0 %v1374
    %1593 = vmatpush1.msra.mxu0 %v1373
    %1594 = vmatprep.subr.mxu0 %v1378
    %1595 = vmatpush1.msra.mxu0 %v1377
    %1596 = vmatprep.subr.mxu0 %v1382
    %1597 = vmatpush1.msra.mxu0 %v1381
    %1598 = vmatprep.subr.mxu0 %v1386
    %1599 = vmatpush1.msra.mxu0 %v1385
    %1600 = vmatprep.subr.mxu0 %v1390
    %1601 = vmatpush1.msra.mxu0 %v1389
    %1602 = vmatprep.subr.mxu0 %v1394
    %1603 = vmatpush1.msra.mxu0 %v1393
    %1604 = vmatprep.subr.mxu0 %v1398
    %1605 = vmatpush1.msra.mxu0 %v1397
    %1606 = vmatprep.subr.mxu0 %v1402
    %1607 = vmatpush1.msra.mxu0 %v1401
    %1608 = vmatprep.subr.mxu0 %v1406
    %1609 = vmatpush1.msra.mxu0 %v1405
    %1610 = vmatprep.subr.mxu0 %v1410
    %1611 = vmatpush1.msra.mxu0 %v1409
    %1612 = vmatprep.subr.mxu0 %v1414
    %1613 = vmatpush1.msra.mxu0 %v1413
    %1614 = vmatprep.subr.mxu0 %v1418
    %1615 = vmatpush1.msra.mxu0 %v1417
    %1616 = vmatprep.subr.mxu0 %v1422
    %1617 = vmatpush1.msra.mxu0 %v1421
    %1618 = vmatprep.subr.mxu0 %v1426
    %1619 = vmatpush1.msra.mxu0 %v1425
    %1620 = vmatprep.subr.mxu0 %v1430
    %1621 = vmatpush1.msra.mxu0 %v1429
    %1622 = vmatprep.subr.mxu0 %v1434
    %1623 = vmatpush1.msra.mxu0 %v1433
    %1624 = vmatprep.subr.mxu0 %v1438
    %1625 = vmatpush1.msra.mxu0 %v1437
    %1626 = vmatprep.subr.mxu0 %v1442
    %1627 = vmatpush1.msra.mxu0 %v1441
    %1628 = vmatprep.subr.mxu0 %v1446
    %1629 = vmatpush1.msra.mxu0 %v1445
    %1630 = vmatprep.subr.mxu0 %v1450
    %1631 = vmatpush1.msra.mxu0 %v1449
    %1632 = vmatprep.subr.mxu0 %v1454
    %1633 = vmatpush1.msra.mxu0 %v1453
    %1634 = vmatprep.subr.mxu0 %v1458
    %1635 = vmatpush1.msra.mxu0 %v1457
    %1636 = vmatprep.subr.mxu0 %v1462
    %1637 = vmatpush1.msra.mxu0 %v1461
    %1638 = vmatprep.subr.mxu0 %v1466
    %1639 = vmatpush1.msra.mxu0 %v1465
    %1640 = vmatprep.subr.mxu0 %v1470
    %1641 = vmatpush1.msra.mxu0 %v1469
    %1642 = vmatprep.subr.mxu0 %v1474
    %1643 = vmatpush1.msra.mxu0 %v1473
    %1644 = vmatprep.subr.mxu0 %v1478
    %1645 = vmatpush1.msra.mxu0 %v1477
    %1646 = vmatprep.subr.mxu0 %v1482
    %1647 = vmatpush1.msra.mxu0 %v1481
    %1648 = vmatprep.subr.mxu0 %v1486
    %1649 = vmatpush1.msra.mxu0 %v1485
    %1650 = vmatprep.subr.mxu0 %v1490
    %1651 = vmatpush1.msra.mxu0 %v1489
    %1652 = vmatprep.subr.mxu0 %v1494
    %1653 = vmatpush1.msra.mxu0 %v1493
    %1654 = vmatprep.subr.mxu0 %v1498
    %1655 = vmatpush1.msra.mxu0 %v1497
    %1656 = vmatprep.mubr.f32.mxu0 %v1369
    %1657 = vmatmul.mubr.f32.gmra.mrb[0].mxu0 %v1368
    %v1658 = vpop.f32.mrb[0].mxu0
    %v1659 = vadd.f32 %v1512, %v1658
    %v1660 = vpop.f32.mrb[0].mxu0
    %v1661 = vadd.f32 %v1516, %v1660
    %1662 = vdwg.mxu0
    %v1663 = vxor.u32 %v1588, 2147483648
    %v1664 = vmul.f32 %v1663, 1.442695
    %v1665 = vpow.pop %v1664
    %v1666 = vadd.f32 %v1665, 1.0
    %v1667 = vrcp.pop %v1666
    %v1668 = vmul.f32 1.0, %v1667
    %v1669 = vxor.u32 %v1590, 2147483648
    %v1670 = vmul.f32 %v1669, 1.442695
    %v1671 = vpow.pop %v1670
    %v1672 = vadd.f32 %v1671, 1.0
    %v1673 = vrcp.pop %v1672
    %v1674 = vmul.f32 1.0, %v1673
    %v1675 = vtanh.pop %v1659
    %v1676 = vxor.u32 %v1661, 2147483648
    %v1677 = vmul.f32 %v1676, 1.442695
    %v1678 = vpow.pop %v1677
    %v1679 = vadd.f32 %v1678, 1.0
    %v1680 = vrcp.pop %v1679
    %v1681 = vmul.f32 1.0, %v1680
    %v1682 = vmul.f32 %v1674, %v1370
    %v1683 = vmul.f32 %v1668, %v1675
    %v1684 = vadd.f32 %v1682, %v1683
    %v1685 = vtanh.pop %v1684
    %v1686 = vmul.f32 %v1681, %v1685
    %1687 = vst [vmem:[#allocation3] sm:$0xff] %v1684
    %1688 = vst [vmem:[#allocation2] sm:$0xff] %v1686
    %v1689 = vld [vmem:[%s401] sm:$0xff]
    %v1690 = vld [vmem:[%s403] sm:$0xff]
    %v1691 = vld [vmem:[%s405] sm:$0xff]
    %v1692 = vld [vmem:[%s405 + $0x8] sm:$0xff]
    %v1693 = vld [vmem:[%s405 + $0x10] sm:$0xff]
    %v1694 = vld [vmem:[%s405 + $0x18] sm:$0xff]
    %v1695 = vld [vmem:[%s405 + $0x20] sm:$0xff]
    %v1696 = vld [vmem:[%s405 + $0x28] sm:$0xff]
    %v1697 = vld [vmem:[%s405 + $0x30] sm:$0xff]
    %v1698 = vld [vmem:[%s405 + $0x38] sm:$0xff]
    %v1699 = vld [vmem:[%s405 + $0x40] sm:$0xff]
    %v1700 = vld [vmem:[%s405 + $0x48] sm:$0xff]
    %v1701 = vld [vmem:[%s405 + $0x50] sm:$0xff]
    %v1702 = vld [vmem:[%s405 + $0x58] sm:$0xff]
    %v1703 = vld [vmem:[%s405 + $0x60] sm:$0xff]
    %v1704 = vld [vmem:[%s405 + $0x68] sm:$0xff]
    %v1705 = vld [vmem:[%s405 + $0x70] sm:$0xff]
    %v1706 = vld [vmem:[%s405 + $0x78] sm:$0xff]
    %v1707 = vld [vmem:[%s405 + $0x80] sm:$0xff]
    %v1708 = vld [vmem:[%s405 + $0x88] sm:$0xff]
    %v1709 = vld [vmem:[%s405 + $0x90] sm:$0xff]
    %v1710 = vld [vmem:[%s405 + $0x98] sm:$0xff]
    %v1711 = vld [vmem:[%s405 + $0xa0] sm:$0xff]
    %v1712 = vld [vmem:[%s405 + $0xa8] sm:$0xff]
    %v1713 = vld [vmem:[%s405 + $0xb0] sm:$0xff]
    %v1714 = vld [vmem:[%s405 + $0xb8] sm:$0xff]
    %v1715 = vld [vmem:[%s405 + $0xc0] sm:$0xff]
    %v1716 = vld [vmem:[%s405 + $0xc8] sm:$0xff]
    %v1717 = vld [vmem:[%s405 + $0xd0] sm:$0xff]
    %v1718 = vld [vmem:[%s405 + $0xd8] sm:$0xff]
    %v1719 = vld [vmem:[%s405 + $0xe0] sm:$0xff]
    %v1720 = vld [vmem:[%s405 + $0xe8] sm:$0xff]
    %v1721 = vld [vmem:[%s405 + $0xf0] sm:$0xff]
    %v1722 = vld [vmem:[%s405 + $0xf8] sm:$0xff]
    %v1723 = vld [vmem:[%s405 + $0x100] sm:$0xff]
    %v1724 = vld [vmem:[%s405 + $0x108] sm:$0xff]
    %v1725 = vld [vmem:[%s405 + $0x110] sm:$0xff]
    %v1726 = vld [vmem:[%s405 + $0x118] sm:$0xff]
    %v1727 = vld [vmem:[%s405 + $0x120] sm:$0xff]
    %v1728 = vld [vmem:[%s405 + $0x128] sm:$0xff]
    %v1729 = vld [vmem:[%s405 + $0x130] sm:$0xff]
    %v1730 = vld [vmem:[%s405 + $0x138] sm:$0xff]
    %v1731 = vld [vmem:[%s405 + $0x140] sm:$0xff]
    %v1732 = vld [vmem:[%s405 + $0x148] sm:$0xff]
    %v1733 = vld [vmem:[%s405 + $0x150] sm:$0xff]
    %v1734 = vld [vmem:[%s405 + $0x158] sm:$0xff]
    %v1735 = vld [vmem:[%s405 + $0x160] sm:$0xff]
    %v1736 = vld [vmem:[%s405 + $0x168] sm:$0xff]
    %v1737 = vld [vmem:[%s405 + $0x170] sm:$0xff]
    %v1738 = vld [vmem:[%s405 + $0x178] sm:$0xff]
    %v1739 = vld [vmem:[%s405 + $0x180] sm:$0xff]
    %v1740 = vld [vmem:[%s405 + $0x188] sm:$0xff]
    %v1741 = vld [vmem:[%s405 + $0x190] sm:$0xff]
    %v1742 = vld [vmem:[%s405 + $0x198] sm:$0xff]
    %v1743 = vld [vmem:[%s405 + $0x1a0] sm:$0xff]
    %v1744 = vld [vmem:[%s405 + $0x1a8] sm:$0xff]
    %v1745 = vld [vmem:[%s405 + $0x1b0] sm:$0xff]
    %v1746 = vld [vmem:[%s405 + $0x1b8] sm:$0xff]
    %v1747 = vld [vmem:[%s405 + $0x1c0] sm:$0xff]
    %v1748 = vld [vmem:[%s405 + $0x1c8] sm:$0xff]
    %v1749 = vld [vmem:[%s405 + $0x1d0] sm:$0xff]
    %v1750 = vld [vmem:[%s405 + $0x1d8] sm:$0xff]
    %v1751 = vld [vmem:[%s405 + $0x1e0] sm:$0xff]
    %v1752 = vld [vmem:[%s405 + $0x1e8] sm:$0xff]
    %v1753 = vld [vmem:[%s405 + $0x1f0] sm:$0xff]
    %v1754 = vld [vmem:[%s405 + $0x1f8] sm:$0xff]
    %v1755 = vld [vmem:[%s405 + $0x200] sm:$0xff]
    %v1756 = vld [vmem:[%s405 + $0x208] sm:$0xff]
    %v1757 = vld [vmem:[%s405 + $0x210] sm:$0xff]
    %v1758 = vld [vmem:[%s405 + $0x218] sm:$0xff]
    %v1759 = vld [vmem:[%s405 + $0x220] sm:$0xff]
    %v1760 = vld [vmem:[%s405 + $0x228] sm:$0xff]
    %v1761 = vld [vmem:[%s405 + $0x230] sm:$0xff]
    %v1762 = vld [vmem:[%s405 + $0x238] sm:$0xff]
    %v1763 = vld [vmem:[%s405 + $0x240] sm:$0xff]
    %v1764 = vld [vmem:[%s405 + $0x248] sm:$0xff]
    %v1765 = vld [vmem:[%s405 + $0x250] sm:$0xff]
    %v1766 = vld [vmem:[%s405 + $0x258] sm:$0xff]
    %v1767 = vld [vmem:[%s405 + $0x260] sm:$0xff]
    %v1768 = vld [vmem:[%s405 + $0x268] sm:$0xff]
    %v1769 = vld [vmem:[%s405 + $0x270] sm:$0xff]
    %v1770 = vld [vmem:[%s405 + $0x278] sm:$0xff]
    %v1771 = vld [vmem:[%s405 + $0x280] sm:$0xff]
    %v1772 = vld [vmem:[%s405 + $0x288] sm:$0xff]
    %v1773 = vld [vmem:[%s405 + $0x290] sm:$0xff]
    %v1774 = vld [vmem:[%s405 + $0x298] sm:$0xff]
    %v1775 = vld [vmem:[%s405 + $0x2a0] sm:$0xff]
    %v1776 = vld [vmem:[%s405 + $0x2a8] sm:$0xff]
    %v1777 = vld [vmem:[%s405 + $0x2b0] sm:$0xff]
    %v1778 = vld [vmem:[%s405 + $0x2b8] sm:$0xff]
    %v1779 = vld [vmem:[%s405 + $0x2c0] sm:$0xff]
    %v1780 = vld [vmem:[%s405 + $0x2c8] sm:$0xff]
    %v1781 = vld [vmem:[%s405 + $0x2d0] sm:$0xff]
    %v1782 = vld [vmem:[%s405 + $0x2d8] sm:$0xff]
    %v1783 = vld [vmem:[%s405 + $0x2e0] sm:$0xff]
    %v1784 = vld [vmem:[%s405 + $0x2e8] sm:$0xff]
    %v1785 = vld [vmem:[%s405 + $0x2f0] sm:$0xff]
    %v1786 = vld [vmem:[%s405 + $0x2f8] sm:$0xff]
    %v1787 = vld [vmem:[%s405 + $0x300] sm:$0xff]
    %v1788 = vld [vmem:[%s405 + $0x308] sm:$0xff]
    %v1789 = vld [vmem:[%s405 + $0x310] sm:$0xff]
    %v1790 = vld [vmem:[%s405 + $0x318] sm:$0xff]
    %v1791 = vld [vmem:[%s405 + $0x320] sm:$0xff]
    %v1792 = vld [vmem:[%s405 + $0x328] sm:$0xff]
    %v1793 = vld [vmem:[%s405 + $0x330] sm:$0xff]
    %v1794 = vld [vmem:[%s405 + $0x338] sm:$0xff]
    %v1795 = vld [vmem:[%s405 + $0x340] sm:$0xff]
    %v1796 = vld [vmem:[%s405 + $0x348] sm:$0xff]
    %v1797 = vld [vmem:[%s405 + $0x350] sm:$0xff]
    %v1798 = vld [vmem:[%s405 + $0x358] sm:$0xff]
    %v1799 = vld [vmem:[%s405 + $0x360] sm:$0xff]
    %v1800 = vld [vmem:[%s405 + $0x368] sm:$0xff]
    %v1801 = vld [vmem:[%s405 + $0x370] sm:$0xff]
    %v1802 = vld [vmem:[%s405 + $0x378] sm:$0xff]
    %v1803 = vld [vmem:[%s405 + $0x380] sm:$0xff]
    %v1804 = vld [vmem:[%s405 + $0x388] sm:$0xff]
    %v1805 = vld [vmem:[%s405 + $0x390] sm:$0xff]
    %v1806 = vld [vmem:[%s405 + $0x398] sm:$0xff]
    %v1807 = vld [vmem:[%s405 + $0x3a0] sm:$0xff]
    %v1808 = vld [vmem:[%s405 + $0x3a8] sm:$0xff]
    %v1809 = vld [vmem:[%s405 + $0x3b0] sm:$0xff]
    %v1810 = vld [vmem:[%s405 + $0x3b8] sm:$0xff]
    %v1811 = vld [vmem:[%s405 + $0x3c0] sm:$0xff]
    %v1812 = vld [vmem:[%s405 + $0x3c8] sm:$0xff]
    %v1813 = vld [vmem:[%s405 + $0x3d0] sm:$0xff]
    %v1814 = vld [vmem:[%s405 + $0x3d8] sm:$0xff]
    %v1815 = vld [vmem:[%s405 + $0x3e0] sm:$0xff]
    %v1816 = vld [vmem:[%s405 + $0x3e8] sm:$0xff]
    %v1817 = vld [vmem:[%s405 + $0x3f0] sm:$0xff]
    %v1818 = vld [vmem:[%s405 + $0x3f8] sm:$0xff]
    %v1819 = vld [vmem:[%s534] sm:$0xf]
    %v1821 = vlaneseq
    %v1822 = vshrl.u32 %v1821, 7
    %v1823 = vsub.s32 0, %v1822
    %v1824 = vrot.slane %v1819, %v1823
    %v1825 = vlaneseq
    %v1826 = vshrl.u32 %v1825, 7
    %v1827 = vsub.s32 1, %v1826
    %v1828 = vrot.slane %v1819, %v1827
    %v1829 = vlaneseq
    %v1830 = vshrl.u32 %v1829, 7
    %v1831 = vsub.s32 2, %v1830
    %v1832 = vrot.slane %v1819, %v1831
    %v1833 = vlaneseq
    %v1834 = vshrl.u32 %v1833, 7
    %v1835 = vsub.s32 3, %v1834
    %v1836 = vrot.slane %v1819, %v1835
    %1841 = vmatprep.subr.mxu0 %v1692
    %1842 = vmatpush1.msra.mxu0 %v1691
    %1843 = vmatprep.subr.mxu0 %v1696
    %1844 = vmatpush1.msra.mxu0 %v1695
    %1845 = vmatprep.subr.mxu0 %v1700
    %1846 = vmatpush1.msra.mxu0 %v1699
    %1847 = vmatprep.subr.mxu0 %v1704
    %1848 = vmatpush1.msra.mxu0 %v1703
    %1849 = vmatprep.subr.mxu0 %v1708
    %1850 = vmatpush1.msra.mxu0 %v1707
    %1851 = vmatprep.subr.mxu0 %v1712
    %1852 = vmatpush1.msra.mxu0 %v1711
    %1853 = vmatprep.subr.mxu0 %v1716
    %1854 = vmatpush1.msra.mxu0 %v1715
    %1855 = vmatprep.subr.mxu0 %v1720
    %1856 = vmatpush1.msra.mxu0 %v1719
    %1857 = vmatprep.subr.mxu0 %v1724
    %1858 = vmatpush1.msra.mxu0 %v1723
    %1859 = vmatprep.subr.mxu0 %v1728
    %1860 = vmatpush1.msra.mxu0 %v1727
    %1861 = vmatprep.subr.mxu0 %v1732
    %1862 = vmatpush1.msra.mxu0 %v1731
    %1863 = vmatprep.subr.mxu0 %v1736
    %1864 = vmatpush1.msra.mxu0 %v1735
    %1865 = vmatprep.subr.mxu0 %v1740
    %1866 = vmatpush1.msra.mxu0 %v1739
    %1867 = vmatprep.subr.mxu0 %v1744
    %1868 = vmatpush1.msra.mxu0 %v1743
    %1869 = vmatprep.subr.mxu0 %v1748
    %1870 = vmatpush1.msra.mxu0 %v1747
    %1871 = vmatprep.subr.mxu0 %v1752
    %1872 = vmatpush1.msra.mxu0 %v1751
    %1873 = vmatprep.subr.mxu0 %v1756
    %1874 = vmatpush1.msra.mxu0 %v1755
    %1875 = vmatprep.subr.mxu0 %v1760
    %1876 = vmatpush1.msra.mxu0 %v1759
    %1877 = vmatprep.subr.mxu0 %v1764
    %1878 = vmatpush1.msra.mxu0 %v1763
    %1879 = vmatprep.subr.mxu0 %v1768
    %1880 = vmatpush1.msra.mxu0 %v1767
    %1881 = vmatprep.subr.mxu0 %v1772
    %1882 = vmatpush1.msra.mxu0 %v1771
    %1883 = vmatprep.subr.mxu0 %v1776
    %1884 = vmatpush1.msra.mxu0 %v1775
    %1885 = vmatprep.subr.mxu0 %v1780
    %1886 = vmatpush1.msra.mxu0 %v1779
    %1887 = vmatprep.subr.mxu0 %v1784
    %1888 = vmatpush1.msra.mxu0 %v1783
    %1889 = vmatprep.subr.mxu0 %v1788
    %1890 = vmatpush1.msra.mxu0 %v1787
    %1891 = vmatprep.subr.mxu0 %v1792
    %1892 = vmatpush1.msra.mxu0 %v1791
    %1893 = vmatprep.subr.mxu0 %v1796
    %1894 = vmatpush1.msra.mxu0 %v1795
    %1895 = vmatprep.subr.mxu0 %v1800
    %1896 = vmatpush1.msra.mxu0 %v1799
    %1897 = vmatprep.subr.mxu0 %v1804
    %1898 = vmatpush1.msra.mxu0 %v1803
    %1899 = vmatprep.subr.mxu0 %v1808
    %1900 = vmatpush1.msra.mxu0 %v1807
    %1901 = vmatprep.subr.mxu0 %v1812
    %1902 = vmatpush1.msra.mxu0 %v1811
    %1903 = vmatprep.subr.mxu0 %v1816
    %1904 = vmatpush1.msra.mxu0 %v1815
    %1905 = vmatprep.mubr.f32.mxu0 %v1689
    %1906 = vmatmul.mubr.f32.gmra.mrb[0].mxu0 %v1686
    %v1907 = vpop.f32.mrb[0].mxu0
    %v1908 = vadd.f32 %v1824, %v1907
    %v1909 = vpop.f32.mrb[0].mxu0
    %v1910 = vadd.f32 %v1828, %v1909
    %1911 = vdwg.mxu0
    %1912 = vmatprep.subr.mxu0 %v1694
    %1913 = vmatpush1.msra.mxu0 %v1693
    %1914 = vmatprep.subr.mxu0 %v1698
    %1915 = vmatpush1.msra.mxu0 %v1697
    %1916 = vmatprep.subr.mxu0 %v1702
    %1917 = vmatpush1.msra.mxu0 %v1701
    %1918 = vmatprep.subr.mxu0 %v1706
    %1919 = vmatpush1.msra.mxu0 %v1705
    %1920 = vmatprep.subr.mxu0 %v1710
    %1921 = vmatpush1.msra.mxu0 %v1709
    %1922 = vmatprep.subr.mxu0 %v1714
    %1923 = vmatpush1.msra.mxu0 %v1713
    %1924 = vmatprep.subr.mxu0 %v1718
    %1925 = vmatpush1.msra.mxu0 %v1717
    %1926 = vmatprep.subr.mxu0 %v1722
    %1927 = vmatpush1.msra.mxu0 %v1721
    %1928 = vmatprep.subr.mxu0 %v1726
    %1929 = vmatpush1.msra.mxu0 %v1725
    %1930 = vmatprep.subr.mxu0 %v1730
    %1931 = vmatpush1.msra.mxu0 %v1729
    %1932 = vmatprep.subr.mxu0 %v1734
    %1933 = vmatpush1.msra.mxu0 %v1733
    %1934 = vmatprep.subr.mxu0 %v1738
    %1935 = vmatpush1.msra.mxu0 %v1737
    %1936 = vmatprep.subr.mxu0 %v1742
    %1937 = vmatpush1.msra.mxu0 %v1741
    %1938 = vmatprep.subr.mxu0 %v1746
    %1939 = vmatpush1.msra.mxu0 %v1745
    %1940 = vmatprep.subr.mxu0 %v1750
    %1941 = vmatpush1.msra.mxu0 %v1749
    %1942 = vmatprep.subr.mxu0 %v1754
    %1943 = vmatpush1.msra.mxu0 %v1753
    %1944 = vmatprep.subr.mxu0 %v1758
    %1945 = vmatpush1.msra.mxu0 %v1757
    %1946 = vmatprep.subr.mxu0 %v1762
    %1947 = vmatpush1.msra.mxu0 %v1761
    %1948 = vmatprep.subr.mxu0 %v1766
    %1949 = vmatpush1.msra.mxu0 %v1765
    %1950 = vmatprep.subr.mxu0 %v1770
    %1951 = vmatpush1.msra.mxu0 %v1769
    %1952 = vmatprep.subr.mxu0 %v1774
    %1953 = vmatpush1.msra.mxu0 %v1773
    %1954 = vmatprep.subr.mxu0 %v1778
    %1955 = vmatpush1.msra.mxu0 %v1777
    %1956 = vmatprep.subr.mxu0 %v1782
    %1957 = vmatpush1.msra.mxu0 %v1781
    %1958 = vmatprep.subr.mxu0 %v1786
    %1959 = vmatpush1.msra.mxu0 %v1785
    %1960 = vmatprep.subr.mxu0 %v1790
    %1961 = vmatpush1.msra.mxu0 %v1789
    %1962 = vmatprep.subr.mxu0 %v1794
    %1963 = vmatpush1.msra.mxu0 %v1793
    %1964 = vmatprep.subr.mxu0 %v1798
    %1965 = vmatpush1.msra.mxu0 %v1797
    %1966 = vmatprep.subr.mxu0 %v1802
    %1967 = vmatpush1.msra.mxu0 %v1801
    %1968 = vmatprep.subr.mxu0 %v1806
    %1969 = vmatpush1.msra.mxu0 %v1805
    %1970 = vmatprep.subr.mxu0 %v1810
    %1971 = vmatpush1.msra.mxu0 %v1809
    %1972 = vmatprep.subr.mxu0 %v1814
    %1973 = vmatpush1.msra.mxu0 %v1813
    %1974 = vmatprep.subr.mxu0 %v1818
    %1975 = vmatpush1.msra.mxu0 %v1817
    %1976 = vmatprep.mubr.f32.mxu0 %v1689
    %1977 = vmatmul.mubr.f32.gmra.mrb[0].mxu0 %v1686
    %v1978 = vpop.f32.mrb[0].mxu0
    %v1979 = vadd.f32 %v1832, %v1978
    %v1980 = vpop.f32.mrb[0].mxu0
    %v1981 = vadd.f32 %v1836, %v1980
    %1982 = vdwg.mxu0
    %v1983 = vxor.u32 %v1908, 2147483648
    %v1984 = vmul.f32 %v1983, 1.442695
    %v1985 = vpow.pop %v1984
    %v1986 = vadd.f32 %v1985, 1.0
    %v1987 = vrcp.pop %v1986
    %v1988 = vmul.f32 1.0, %v1987
    %v1989 = vxor.u32 %v1910, 2147483648
    %v1990 = vmul.f32 %v1989, 1.442695
    %v1991 = vpow.pop %v1990
    %v1992 = vadd.f32 %v1991, 1.0
    %v1993 = vrcp.pop %v1992
    %v1994 = vmul.f32 1.0, %v1993
    %v1995 = vtanh.pop %v1979
    %v1996 = vxor.u32 %v1981, 2147483648
    %v1997 = vmul.f32 %v1996, 1.442695
    %v1998 = vpow.pop %v1997
    %v1999 = vadd.f32 %v1998, 1.0
    %v2000 = vrcp.pop %v1999
    %v2001 = vmul.f32 1.0, %v2000
    %v2002 = vmul.f32 %v1994, %v1690
    %v2003 = vmul.f32 %v1988, %v1995
    %v2004 = vadd.f32 %v2002, %v2003
    %v2005 = vtanh.pop %v2004
    %v2006 = vmul.f32 %v2001, %v2005
    %2007 = vst [vmem:[%s403] sm:$0xff] %v2004
    %2008 = vst [vmem:[%s401] sm:$0xff] %v2006
    %s2009 = scalar_lea.vmem [#allocation4], 24
    %v2010 = vld [vmem:[%s2009] sm:$0xff]
    %v2011 = vld [vmem:[#allocation2] sm:$0xff]
    %v2012 = vld [vmem:[#allocation3] sm:$0xff]
    %v2013 = vld [vmem:[#allocation7] sm:$0xff]
    %v2014 = vld [vmem:[#allocation7 + $0x8] sm:$0xff]
    %v2015 = vld [vmem:[#allocation7 + $0x10] sm:$0xff]
    %v2016 = vld [vmem:[#allocation7 + $0x18] sm:$0xff]
    %v2017 = vld [vmem:[#allocation7 + $0x20] sm:$0xff]
    %v2018 = vld [vmem:[#allocation7 + $0x28] sm:$0xff]
    %v2019 = vld [vmem:[#allocation7 + $0x30] sm:$0xff]
    %v2020 = vld [vmem:[#allocation7 + $0x38] sm:$0xff]
    %v2021 = vld [vmem:[#allocation7 + $0x40] sm:$0xff]
    %v2022 = vld [vmem:[#allocation7 + $0x48] sm:$0xff]
    %v2023 = vld [vmem:[#allocation7 + $0x50] sm:$0xff]
    %v2024 = vld [vmem:[#allocation7 + $0x58] sm:$0xff]
    %v2025 = vld [vmem:[#allocation7 + $0x60] sm:$0xff]
    %v2026 = vld [vmem:[#allocation7 + $0x68] sm:$0xff]
    %v2027 = vld [vmem:[#allocation7 + $0x70] sm:$0xff]
    %v2028 = vld [vmem:[#allocation7 + $0x78] sm:$0xff]
    %v2029 = vld [vmem:[#allocation7 + $0x80] sm:$0xff]
    %v2030 = vld [vmem:[#allocation7 + $0x88] sm:$0xff]
    %v2031 = vld [vmem:[#allocation7 + $0x90] sm:$0xff]
    %v2032 = vld [vmem:[#allocation7 + $0x98] sm:$0xff]
    %v2033 = vld [vmem:[#allocation7 + $0xa0] sm:$0xff]
    %v2034 = vld [vmem:[#allocation7 + $0xa8] sm:$0xff]
    %v2035 = vld [vmem:[#allocation7 + $0xb0] sm:$0xff]
    %v2036 = vld [vmem:[#allocation7 + $0xb8] sm:$0xff]
    %v2037 = vld [vmem:[#allocation7 + $0xc0] sm:$0xff]
    %v2038 = vld [vmem:[#allocation7 + $0xc8] sm:$0xff]
    %v2039 = vld [vmem:[#allocation7 + $0xd0] sm:$0xff]
    %v2040 = vld [vmem:[#allocation7 + $0xd8] sm:$0xff]
    %v2041 = vld [vmem:[#allocation7 + $0xe0] sm:$0xff]
    %v2042 = vld [vmem:[#allocation7 + $0xe8] sm:$0xff]
    %v2043 = vld [vmem:[#allocation7 + $0xf0] sm:$0xff]
    %v2044 = vld [vmem:[#allocation7 + $0xf8] sm:$0xff]
    %v2045 = vld [vmem:[#allocation7 + $0x100] sm:$0xff]
    %v2046 = vld [vmem:[#allocation7 + $0x108] sm:$0xff]
    %v2047 = vld [vmem:[#allocation7 + $0x110] sm:$0xff]
    %v2048 = vld [vmem:[#allocation7 + $0x118] sm:$0xff]
    %v2049 = vld [vmem:[#allocation7 + $0x120] sm:$0xff]
    %v2050 = vld [vmem:[#allocation7 + $0x128] sm:$0xff]
    %v2051 = vld [vmem:[#allocation7 + $0x130] sm:$0xff]
    %v2052 = vld [vmem:[#allocation7 + $0x138] sm:$0xff]
    %v2053 = vld [vmem:[#allocation7 + $0x140] sm:$0xff]
    %v2054 = vld [vmem:[#allocation7 + $0x148] sm:$0xff]
    %v2055 = vld [vmem:[#allocation7 + $0x150] sm:$0xff]
    %v2056 = vld [vmem:[#allocation7 + $0x158] sm:$0xff]
    %v2057 = vld [vmem:[#allocation7 + $0x160] sm:$0xff]
    %v2058 = vld [vmem:[#allocation7 + $0x168] sm:$0xff]
    %v2059 = vld [vmem:[#allocation7 + $0x170] sm:$0xff]
    %v2060 = vld [vmem:[#allocation7 + $0x178] sm:$0xff]
    %v2061 = vld [vmem:[#allocation7 + $0x180] sm:$0xff]
    %v2062 = vld [vmem:[#allocation7 + $0x188] sm:$0xff]
    %v2063 = vld [vmem:[#allocation7 + $0x190] sm:$0xff]
    %v2064 = vld [vmem:[#allocation7 + $0x198] sm:$0xff]
    %v2065 = vld [vmem:[#allocation7 + $0x1a0] sm:$0xff]
    %v2066 = vld [vmem:[#allocation7 + $0x1a8] sm:$0xff]
    %v2067 = vld [vmem:[#allocation7 + $0x1b0] sm:$0xff]
    %v2068 = vld [vmem:[#allocation7 + $0x1b8] sm:$0xff]
    %v2069 = vld [vmem:[#allocation7 + $0x1c0] sm:$0xff]
    %v2070 = vld [vmem:[#allocation7 + $0x1c8] sm:$0xff]
    %v2071 = vld [vmem:[#allocation7 + $0x1d0] sm:$0xff]
    %v2072 = vld [vmem:[#allocation7 + $0x1d8] sm:$0xff]
    %v2073 = vld [vmem:[#allocation7 + $0x1e0] sm:$0xff]
    %v2074 = vld [vmem:[#allocation7 + $0x1e8] sm:$0xff]
    %v2075 = vld [vmem:[#allocation7 + $0x1f0] sm:$0xff]
    %v2076 = vld [vmem:[#allocation7 + $0x1f8] sm:$0xff]
    %v2077 = vld [vmem:[#allocation7 + $0x200] sm:$0xff]
    %v2078 = vld [vmem:[#allocation7 + $0x208] sm:$0xff]
    %v2079 = vld [vmem:[#allocation7 + $0x210] sm:$0xff]
    %v2080 = vld [vmem:[#allocation7 + $0x218] sm:$0xff]
    %v2081 = vld [vmem:[#allocation7 + $0x220] sm:$0xff]
    %v2082 = vld [vmem:[#allocation7 + $0x228] sm:$0xff]
    %v2083 = vld [vmem:[#allocation7 + $0x230] sm:$0xff]
    %v2084 = vld [vmem:[#allocation7 + $0x238] sm:$0xff]
    %v2085 = vld [vmem:[#allocation7 + $0x240] sm:$0xff]
    %v2086 = vld [vmem:[#allocation7 + $0x248] sm:$0xff]
    %v2087 = vld [vmem:[#allocation7 + $0x250] sm:$0xff]
    %v2088 = vld [vmem:[#allocation7 + $0x258] sm:$0xff]
    %v2089 = vld [vmem:[#allocation7 + $0x260] sm:$0xff]
    %v2090 = vld [vmem:[#allocation7 + $0x268] sm:$0xff]
    %v2091 = vld [vmem:[#allocation7 + $0x270] sm:$0xff]
    %v2092 = vld [vmem:[#allocation7 + $0x278] sm:$0xff]
    %v2093 = vld [vmem:[#allocation7 + $0x280] sm:$0xff]
    %v2094 = vld [vmem:[#allocation7 + $0x288] sm:$0xff]
    %v2095 = vld [vmem:[#allocation7 + $0x290] sm:$0xff]
    %v2096 = vld [vmem:[#allocation7 + $0x298] sm:$0xff]
    %v2097 = vld [vmem:[#allocation7 + $0x2a0] sm:$0xff]
    %v2098 = vld [vmem:[#allocation7 + $0x2a8] sm:$0xff]
    %v2099 = vld [vmem:[#allocation7 + $0x2b0] sm:$0xff]
    %v2100 = vld [vmem:[#allocation7 + $0x2b8] sm:$0xff]
    %v2101 = vld [vmem:[#allocation7 + $0x2c0] sm:$0xff]
    %v2102 = vld [vmem:[#allocation7 + $0x2c8] sm:$0xff]
    %v2103 = vld [vmem:[#allocation7 + $0x2d0] sm:$0xff]
    %v2104 = vld [vmem:[#allocation7 + $0x2d8] sm:$0xff]
    %v2105 = vld [vmem:[#allocation7 + $0x2e0] sm:$0xff]
    %v2106 = vld [vmem:[#allocation7 + $0x2e8] sm:$0xff]
    %v2107 = vld [vmem:[#allocation7 + $0x2f0] sm:$0xff]
    %v2108 = vld [vmem:[#allocation7 + $0x2f8] sm:$0xff]
    %v2109 = vld [vmem:[#allocation7 + $0x300] sm:$0xff]
    %v2110 = vld [vmem:[#allocation7 + $0x308] sm:$0xff]
    %v2111 = vld [vmem:[#allocation7 + $0x310] sm:$0xff]
    %v2112 = vld [vmem:[#allocation7 + $0x318] sm:$0xff]
    %v2113 = vld [vmem:[#allocation7 + $0x320] sm:$0xff]
    %v2114 = vld [vmem:[#allocation7 + $0x328] sm:$0xff]
    %v2115 = vld [vmem:[#allocation7 + $0x330] sm:$0xff]
    %v2116 = vld [vmem:[#allocation7 + $0x338] sm:$0xff]
    %v2117 = vld [vmem:[#allocation7 + $0x340] sm:$0xff]
    %v2118 = vld [vmem:[#allocation7 + $0x348] sm:$0xff]
    %v2119 = vld [vmem:[#allocation7 + $0x350] sm:$0xff]
    %v2120 = vld [vmem:[#allocation7 + $0x358] sm:$0xff]
    %v2121 = vld [vmem:[#allocation7 + $0x360] sm:$0xff]
    %v2122 = vld [vmem:[#allocation7 + $0x368] sm:$0xff]
    %v2123 = vld [vmem:[#allocation7 + $0x370] sm:$0xff]
    %v2124 = vld [vmem:[#allocation7 + $0x378] sm:$0xff]
    %v2125 = vld [vmem:[#allocation7 + $0x380] sm:$0xff]
    %v2126 = vld [vmem:[#allocation7 + $0x388] sm:$0xff]
    %v2127 = vld [vmem:[#allocation7 + $0x390] sm:$0xff]
    %v2128 = vld [vmem:[#allocation7 + $0x398] sm:$0xff]
    %v2129 = vld [vmem:[#allocation7 + $0x3a0] sm:$0xff]
    %v2130 = vld [vmem:[#allocation7 + $0x3a8] sm:$0xff]
    %v2131 = vld [vmem:[#allocation7 + $0x3b0] sm:$0xff]
    %v2132 = vld [vmem:[#allocation7 + $0x3b8] sm:$0xff]
    %v2133 = vld [vmem:[#allocation7 + $0x3c0] sm:$0xff]
    %v2134 = vld [vmem:[#allocation7 + $0x3c8] sm:$0xff]
    %v2135 = vld [vmem:[#allocation7 + $0x3d0] sm:$0xff]
    %v2136 = vld [vmem:[#allocation7 + $0x3d8] sm:$0xff]
    %v2137 = vld [vmem:[#allocation7 + $0x3e0] sm:$0xff]
    %v2138 = vld [vmem:[#allocation7 + $0x3e8] sm:$0xff]
    %v2139 = vld [vmem:[#allocation7 + $0x3f0] sm:$0xff]
    %v2140 = vld [vmem:[#allocation7 + $0x3f8] sm:$0xff]
    %v2141 = vld [vmem:[#allocation9] sm:$0xf]
    %v2143 = vlaneseq
    %v2144 = vshrl.u32 %v2143, 7
    %v2145 = vsub.s32 0, %v2144
    %v2146 = vrot.slane %v2141, %v2145
    %v2147 = vlaneseq
    %v2148 = vshrl.u32 %v2147, 7
    %v2149 = vsub.s32 1, %v2148
    %v2150 = vrot.slane %v2141, %v2149
    %v2151 = vlaneseq
    %v2152 = vshrl.u32 %v2151, 7
    %v2153 = vsub.s32 2, %v2152
    %v2154 = vrot.slane %v2141, %v2153
    %v2155 = vlaneseq
    %v2156 = vshrl.u32 %v2155, 7
    %v2157 = vsub.s32 3, %v2156
    %v2158 = vrot.slane %v2141, %v2157
    %2163 = vmatprep.subr.mxu0 %v2014
    %2164 = vmatpush1.msra.mxu0 %v2013
    %2165 = vmatprep.subr.mxu0 %v2018
    %2166 = vmatpush1.msra.mxu0 %v2017
    %2167 = vmatprep.subr.mxu0 %v2022
    %2168 = vmatpush1.msra.mxu0 %v2021
    %2169 = vmatprep.subr.mxu0 %v2026
    %2170 = vmatpush1.msra.mxu0 %v2025
    %2171 = vmatprep.subr.mxu0 %v2030
    %2172 = vmatpush1.msra.mxu0 %v2029
    %2173 = vmatprep.subr.mxu0 %v2034
    %2174 = vmatpush1.msra.mxu0 %v2033
    %2175 = vmatprep.subr.mxu0 %v2038
    %2176 = vmatpush1.msra.mxu0 %v2037
    %2177 = vmatprep.subr.mxu0 %v2042
    %2178 = vmatpush1.msra.mxu0 %v2041
    %2179 = vmatprep.subr.mxu0 %v2046
    %2180 = vmatpush1.msra.mxu0 %v2045
    %2181 = vmatprep.subr.mxu0 %v2050
    %2182 = vmatpush1.msra.mxu0 %v2049
    %2183 = vmatprep.subr.mxu0 %v2054
    %2184 = vmatpush1.msra.mxu0 %v2053
    %2185 = vmatprep.subr.mxu0 %v2058
    %2186 = vmatpush1.msra.mxu0 %v2057
    %2187 = vmatprep.subr.mxu0 %v2062
    %2188 = vmatpush1.msra.mxu0 %v2061
    %2189 = vmatprep.subr.mxu0 %v2066
    %2190 = vmatpush1.msra.mxu0 %v2065
    %2191 = vmatprep.subr.mxu0 %v2070
    %2192 = vmatpush1.msra.mxu0 %v2069
    %2193 = vmatprep.subr.mxu0 %v2074
    %2194 = vmatpush1.msra.mxu0 %v2073
    %2195 = vmatprep.subr.mxu0 %v2078
    %2196 = vmatpush1.msra.mxu0 %v2077
    %2197 = vmatprep.subr.mxu0 %v2082
    %2198 = vmatpush1.msra.mxu0 %v2081
    %2199 = vmatprep.subr.mxu0 %v2086
    %2200 = vmatpush1.msra.mxu0 %v2085
    %2201 = vmatprep.subr.mxu0 %v2090
    %2202 = vmatpush1.msra.mxu0 %v2089
    %2203 = vmatprep.subr.mxu0 %v2094
    %2204 = vmatpush1.msra.mxu0 %v2093
    %2205 = vmatprep.subr.mxu0 %v2098
    %2206 = vmatpush1.msra.mxu0 %v2097
    %2207 = vmatprep.subr.mxu0 %v2102
    %2208 = vmatpush1.msra.mxu0 %v2101
    %2209 = vmatprep.subr.mxu0 %v2106
    %2210 = vmatpush1.msra.mxu0 %v2105
    %2211 = vmatprep.subr.mxu0 %v2110
    %2212 = vmatpush1.msra.mxu0 %v2109
    %2213 = vmatprep.subr.mxu0 %v2114
    %2214 = vmatpush1.msra.mxu0 %v2113
    %2215 = vmatprep.subr.mxu0 %v2118
    %2216 = vmatpush1.msra.mxu0 %v2117
    %2217 = vmatprep.subr.mxu0 %v2122
    %2218 = vmatpush1.msra.mxu0 %v2121
    %2219 = vmatprep.subr.mxu0 %v2126
    %2220 = vmatpush1.msra.mxu0 %v2125
    %2221 = vmatprep.subr.mxu0 %v2130
    %2222 = vmatpush1.msra.mxu0 %v2129
    %2223 = vmatprep.subr.mxu0 %v2134
    %2224 = vmatpush1.msra.mxu0 %v2133
    %2225 = vmatprep.subr.mxu0 %v2138
    %2226 = vmatpush1.msra.mxu0 %v2137
    %2227 = vmatprep.mubr.f32.mxu0 %v2011
    %2228 = vmatmul.mubr.f32.gmra.mrb[0].mxu0 %v2010
    %v2229 = vpop.f32.mrb[0].mxu0
    %v2230 = vadd.f32 %v2146, %v2229
    %v2231 = vpop.f32.mrb[0].mxu0
    %v2232 = vadd.f32 %v2150, %v2231
    %2233 = vdwg.mxu0
    %2234 = vmatprep.subr.mxu0 %v2016
    %2235 = vmatpush1.msra.mxu0 %v2015
    %2236 = vmatprep.subr.mxu0 %v2020
    %2237 = vmatpush1.msra.mxu0 %v2019
    %2238 = vmatprep.subr.mxu0 %v2024
    %2239 = vmatpush1.msra.mxu0 %v2023
    %2240 = vmatprep.subr.mxu0 %v2028
    %2241 = vmatpush1.msra.mxu0 %v2027
    %2242 = vmatprep.subr.mxu0 %v2032
    %2243 = vmatpush1.msra.mxu0 %v2031
    %2244 = vmatprep.subr.mxu0 %v2036
    %2245 = vmatpush1.msra.mxu0 %v2035
    %2246 = vmatprep.subr.mxu0 %v2040
    %2247 = vmatpush1.msra.mxu0 %v2039
    %2248 = vmatprep.subr.mxu0 %v2044
    %2249 = vmatpush1.msra.mxu0 %v2043
    %2250 = vmatprep.subr.mxu0 %v2048
    %2251 = vmatpush1.msra.mxu0 %v2047
    %2252 = vmatprep.subr.mxu0 %v2052
    %2253 = vmatpush1.msra.mxu0 %v2051
    %2254 = vmatprep.subr.mxu0 %v2056
    %2255 = vmatpush1.msra.mxu0 %v2055
    %2256 = vmatprep.subr.mxu0 %v2060
    %2257 = vmatpush1.msra.mxu0 %v2059
    %2258 = vmatprep.subr.mxu0 %v2064
    %2259 = vmatpush1.msra.mxu0 %v2063
    %2260 = vmatprep.subr.mxu0 %v2068
    %2261 = vmatpush1.msra.mxu0 %v2067
    %2262 = vmatprep.subr.mxu0 %v2072
    %2263 = vmatpush1.msra.mxu0 %v2071
    %2264 = vmatprep.subr.mxu0 %v2076
    %2265 = vmatpush1.msra.mxu0 %v2075
    %2266 = vmatprep.subr.mxu0 %v2080
    %2267 = vmatpush1.msra.mxu0 %v2079
    %2268 = vmatprep.subr.mxu0 %v2084
    %2269 = vmatpush1.msra.mxu0 %v2083
    %2270 = vmatprep.subr.mxu0 %v2088
    %2271 = vmatpush1.msra.mxu0 %v2087
    %2272 = vmatprep.subr.mxu0 %v2092
    %2273 = vmatpush1.msra.mxu0 %v2091
    %2274 = vmatprep.subr.mxu0 %v2096
    %2275 = vmatpush1.msra.mxu0 %v2095
    %2276 = vmatprep.subr.mxu0 %v2100
    %2277 = vmatpush1.msra.mxu0 %v2099
    %2278 = vmatprep.subr.mxu0 %v2104
    %2279 = vmatpush1.msra.mxu0 %v2103
    %2280 = vmatprep.subr.mxu0 %v2108
    %2281 = vmatpush1.msra.mxu0 %v2107
    %2282 = vmatprep.subr.mxu0 %v2112
    %2283 = vmatpush1.msra.mxu0 %v2111
    %2284 = vmatprep.subr.mxu0 %v2116
    %2285 = vmatpush1.msra.mxu0 %v2115
    %2286 = vmatprep.subr.mxu0 %v2120
    %2287 = vmatpush1.msra.mxu0 %v2119
    %2288 = vmatprep.subr.mxu0 %v2124
    %2289 = vmatpush1.msra.mxu0 %v2123
    %2290 = vmatprep.subr.mxu0 %v2128
    %2291 = vmatpush1.msra.mxu0 %v2127
    %2292 = vmatprep.subr.mxu0 %v2132
    %2293 = vmatpush1.msra.mxu0 %v2131
    %2294 = vmatprep.subr.mxu0 %v2136
    %2295 = vmatpush1.msra.mxu0 %v2135
    %2296 = vmatprep.subr.mxu0 %v2140
    %2297 = vmatpush1.msra.mxu0 %v2139
    %2298 = vmatprep.mubr.f32.mxu0 %v2011
    %2299 = vmatmul.mubr.f32.gmra.mrb[0].mxu0 %v2010
    %v2300 = vpop.f32.mrb[0].mxu0
    %v2301 = vadd.f32 %v2154, %v2300
    %v2302 = vpop.f32.mrb[0].mxu0
    %v2303 = vadd.f32 %v2158, %v2302
    %2304 = vdwg.mxu0
    %v2305 = vxor.u32 %v2230, 2147483648
    %v2306 = vmul.f32 %v2305, 1.442695
    %v2307 = vpow.pop %v2306
    %v2308 = vadd.f32 %v2307, 1.0
    %v2309 = vrcp.pop %v2308
    %v2310 = vmul.f32 1.0, %v2309
    %v2311 = vxor.u32 %v2232, 2147483648
    %v2312 = vmul.f32 %v2311, 1.442695
    %v2313 = vpow.pop %v2312
    %v2314 = vadd.f32 %v2313, 1.0
    %v2315 = vrcp.pop %v2314
    %v2316 = vmul.f32 1.0, %v2315
    %v2317 = vtanh.pop %v2301
    %v2318 = vxor.u32 %v2303, 2147483648
    %v2319 = vmul.f32 %v2318, 1.442695
    %v2320 = vpow.pop %v2319
    %v2321 = vadd.f32 %v2320, 1.0
    %v2322 = vrcp.pop %v2321
    %v2323 = vmul.f32 1.0, %v2322
    %v2324 = vmul.f32 %v2316, %v2012
    %v2325 = vmul.f32 %v2310, %v2317
    %v2326 = vadd.f32 %v2324, %v2325
    %v2327 = vtanh.pop %v2326
    %v2328 = vmul.f32 %v2323, %v2327
    %2329 = vst [vmem:[#allocation3] sm:$0xff] %v2326
    %2330 = vst [vmem:[#allocation2] sm:$0xff] %v2328
    %v2331 = vld [vmem:[%s401] sm:$0xff]
    %v2332 = vld [vmem:[%s403] sm:$0xff]
    %v2333 = vld [vmem:[%s405] sm:$0xff]
    %v2334 = vld [vmem:[%s405 + $0x8] sm:$0xff]
    %v2335 = vld [vmem:[%s405 + $0x10] sm:$0xff]
    %v2336 = vld [vmem:[%s405 + $0x18] sm:$0xff]
    %v2337 = vld [vmem:[%s405 + $0x20] sm:$0xff]
    %v2338 = vld [vmem:[%s405 + $0x28] sm:$0xff]
    %v2339 = vld [vmem:[%s405 + $0x30] sm:$0xff]
    %v2340 = vld [vmem:[%s405 + $0x38] sm:$0xff]
    %v2341 = vld [vmem:[%s405 + $0x40] sm:$0xff]
    %v2342 = vld [vmem:[%s405 + $0x48] sm:$0xff]
    %v2343 = vld [vmem:[%s405 + $0x50] sm:$0xff]
    %v2344 = vld [vmem:[%s405 + $0x58] sm:$0xff]
    %v2345 = vld [vmem:[%s405 + $0x60] sm:$0xff]
    %v2346 = vld [vmem:[%s405 + $0x68] sm:$0xff]
    %v2347 = vld [vmem:[%s405 + $0x70] sm:$0xff]
    %v2348 = vld [vmem:[%s405 + $0x78] sm:$0xff]
    %v2349 = vld [vmem:[%s405 + $0x80] sm:$0xff]
    %v2350 = vld [vmem:[%s405 + $0x88] sm:$0xff]
    %v2351 = vld [vmem:[%s405 + $0x90] sm:$0xff]
    %v2352 = vld [vmem:[%s405 + $0x98] sm:$0xff]
    %v2353 = vld [vmem:[%s405 + $0xa0] sm:$0xff]
    %v2354 = vld [vmem:[%s405 + $0xa8] sm:$0xff]
    %v2355 = vld [vmem:[%s405 + $0xb0] sm:$0xff]
    %v2356 = vld [vmem:[%s405 + $0xb8] sm:$0xff]
    %v2357 = vld [vmem:[%s405 + $0xc0] sm:$0xff]
    %v2358 = vld [vmem:[%s405 + $0xc8] sm:$0xff]
    %v2359 = vld [vmem:[%s405 + $0xd0] sm:$0xff]
    %v2360 = vld [vmem:[%s405 + $0xd8] sm:$0xff]
    %v2361 = vld [vmem:[%s405 + $0xe0] sm:$0xff]
    %v2362 = vld [vmem:[%s405 + $0xe8] sm:$0xff]
    %v2363 = vld [vmem:[%s405 + $0xf0] sm:$0xff]
    %v2364 = vld [vmem:[%s405 + $0xf8] sm:$0xff]
    %v2365 = vld [vmem:[%s405 + $0x100] sm:$0xff]
    %v2366 = vld [vmem:[%s405 + $0x108] sm:$0xff]
    %v2367 = vld [vmem:[%s405 + $0x110] sm:$0xff]
    %v2368 = vld [vmem:[%s405 + $0x118] sm:$0xff]
    %v2369 = vld [vmem:[%s405 + $0x120] sm:$0xff]
    %v2370 = vld [vmem:[%s405 + $0x128] sm:$0xff]
    %v2371 = vld [vmem:[%s405 + $0x130] sm:$0xff]
    %v2372 = vld [vmem:[%s405 + $0x138] sm:$0xff]
    %v2373 = vld [vmem:[%s405 + $0x140] sm:$0xff]
    %v2374 = vld [vmem:[%s405 + $0x148] sm:$0xff]
    %v2375 = vld [vmem:[%s405 + $0x150] sm:$0xff]
    %v2376 = vld [vmem:[%s405 + $0x158] sm:$0xff]
    %v2377 = vld [vmem:[%s405 + $0x160] sm:$0xff]
    %v2378 = vld [vmem:[%s405 + $0x168] sm:$0xff]
    %v2379 = vld [vmem:[%s405 + $0x170] sm:$0xff]
    %v2380 = vld [vmem:[%s405 + $0x178] sm:$0xff]
    %v2381 = vld [vmem:[%s405 + $0x180] sm:$0xff]
    %v2382 = vld [vmem:[%s405 + $0x188] sm:$0xff]
    %v2383 = vld [vmem:[%s405 + $0x190] sm:$0xff]
    %v2384 = vld [vmem:[%s405 + $0x198] sm:$0xff]
    %v2385 = vld [vmem:[%s405 + $0x1a0] sm:$0xff]
    %v2386 = vld [vmem:[%s405 + $0x1a8] sm:$0xff]
    %v2387 = vld [vmem:[%s405 + $0x1b0] sm:$0xff]
    %v2388 = vld [vmem:[%s405 + $0x1b8] sm:$0xff]
    %v2389 = vld [vmem:[%s405 + $0x1c0] sm:$0xff]
    %v2390 = vld [vmem:[%s405 + $0x1c8] sm:$0xff]
    %v2391 = vld [vmem:[%s405 + $0x1d0] sm:$0xff]
    %v2392 = vld [vmem:[%s405 + $0x1d8] sm:$0xff]
    %v2393 = vld [vmem:[%s405 + $0x1e0] sm:$0xff]
    %v2394 = vld [vmem:[%s405 + $0x1e8] sm:$0xff]
    %v2395 = vld [vmem:[%s405 + $0x1f0] sm:$0xff]
    %v2396 = vld [vmem:[%s405 + $0x1f8] sm:$0xff]
    %v2397 = vld [vmem:[%s405 + $0x200] sm:$0xff]
    %v2398 = vld [vmem:[%s405 + $0x208] sm:$0xff]
    %v2399 = vld [vmem:[%s405 + $0x210] sm:$0xff]
    %v2400 = vld [vmem:[%s405 + $0x218] sm:$0xff]
    %v2401 = vld [vmem:[%s405 + $0x220] sm:$0xff]
    %v2402 = vld [vmem:[%s405 + $0x228] sm:$0xff]
    %v2403 = vld [vmem:[%s405 + $0x230] sm:$0xff]
    %v2404 = vld [vmem:[%s405 + $0x238] sm:$0xff]
    %v2405 = vld [vmem:[%s405 + $0x240] sm:$0xff]
    %v2406 = vld [vmem:[%s405 + $0x248] sm:$0xff]
    %v2407 = vld [vmem:[%s405 + $0x250] sm:$0xff]
    %v2408 = vld [vmem:[%s405 + $0x258] sm:$0xff]
    %v2409 = vld [vmem:[%s405 + $0x260] sm:$0xff]
    %v2410 = vld [vmem:[%s405 + $0x268] sm:$0xff]
    %v2411 = vld [vmem:[%s405 + $0x270] sm:$0xff]
    %v2412 = vld [vmem:[%s405 + $0x278] sm:$0xff]
    %v2413 = vld [vmem:[%s405 + $0x280] sm:$0xff]
    %v2414 = vld [vmem:[%s405 + $0x288] sm:$0xff]
    %v2415 = vld [vmem:[%s405 + $0x290] sm:$0xff]
    %v2416 = vld [vmem:[%s405 + $0x298] sm:$0xff]
    %v2417 = vld [vmem:[%s405 + $0x2a0] sm:$0xff]
    %v2418 = vld [vmem:[%s405 + $0x2a8] sm:$0xff]
    %v2419 = vld [vmem:[%s405 + $0x2b0] sm:$0xff]
    %v2420 = vld [vmem:[%s405 + $0x2b8] sm:$0xff]
    %v2421 = vld [vmem:[%s405 + $0x2c0] sm:$0xff]
    %v2422 = vld [vmem:[%s405 + $0x2c8] sm:$0xff]
    %v2423 = vld [vmem:[%s405 + $0x2d0] sm:$0xff]
    %v2424 = vld [vmem:[%s405 + $0x2d8] sm:$0xff]
    %v2425 = vld [vmem:[%s405 + $0x2e0] sm:$0xff]
    %v2426 = vld [vmem:[%s405 + $0x2e8] sm:$0xff]
    %v2427 = vld [vmem:[%s405 + $0x2f0] sm:$0xff]
    %v2428 = vld [vmem:[%s405 + $0x2f8] sm:$0xff]
    %v2429 = vld [vmem:[%s405 + $0x300] sm:$0xff]
    %v2430 = vld [vmem:[%s405 + $0x308] sm:$0xff]
    %v2431 = vld [vmem:[%s405 + $0x310] sm:$0xff]
    %v2432 = vld [vmem:[%s405 + $0x318] sm:$0xff]
    %v2433 = vld [vmem:[%s405 + $0x320] sm:$0xff]
    %v2434 = vld [vmem:[%s405 + $0x328] sm:$0xff]
    %v2435 = vld [vmem:[%s405 + $0x330] sm:$0xff]
    %v2436 = vld [vmem:[%s405 + $0x338] sm:$0xff]
    %v2437 = vld [vmem:[%s405 + $0x340] sm:$0xff]
    %v2438 = vld [vmem:[%s405 + $0x348] sm:$0xff]
    %v2439 = vld [vmem:[%s405 + $0x350] sm:$0xff]
    %v2440 = vld [vmem:[%s405 + $0x358] sm:$0xff]
    %v2441 = vld [vmem:[%s405 + $0x360] sm:$0xff]
    %v2442 = vld [vmem:[%s405 + $0x368] sm:$0xff]
    %v2443 = vld [vmem:[%s405 + $0x370] sm:$0xff]
    %v2444 = vld [vmem:[%s405 + $0x378] sm:$0xff]
    %v2445 = vld [vmem:[%s405 + $0x380] sm:$0xff]
    %v2446 = vld [vmem:[%s405 + $0x388] sm:$0xff]
    %v2447 = vld [vmem:[%s405 + $0x390] sm:$0xff]
    %v2448 = vld [vmem:[%s405 + $0x398] sm:$0xff]
    %v2449 = vld [vmem:[%s405 + $0x3a0] sm:$0xff]
    %v2450 = vld [vmem:[%s405 + $0x3a8] sm:$0xff]
    %v2451 = vld [vmem:[%s405 + $0x3b0] sm:$0xff]
    %v2452 = vld [vmem:[%s405 + $0x3b8] sm:$0xff]
    %v2453 = vld [vmem:[%s405 + $0x3c0] sm:$0xff]
    %v2454 = vld [vmem:[%s405 + $0x3c8] sm:$0xff]
    %v2455 = vld [vmem:[%s405 + $0x3d0] sm:$0xff]
    %v2456 = vld [vmem:[%s405 + $0x3d8] sm:$0xff]
    %v2457 = vld [vmem:[%s405 + $0x3e0] sm:$0xff]
    %v2458 = vld [vmem:[%s405 + $0x3e8] sm:$0xff]
    %v2459 = vld [vmem:[%s405 + $0x3f0] sm:$0xff]
    %v2460 = vld [vmem:[%s405 + $0x3f8] sm:$0xff]
    %v2461 = vld [vmem:[%s534] sm:$0xf]
    %v2463 = vlaneseq
    %v2464 = vshrl.u32 %v2463, 7
    %v2465 = vsub.s32 0, %v2464
    %v2466 = vrot.slane %v2461, %v2465
    %v2467 = vlaneseq
    %v2468 = vshrl.u32 %v2467, 7
    %v2469 = vsub.s32 1, %v2468
    %v2470 = vrot.slane %v2461, %v2469
    %v2471 = vlaneseq
    %v2472 = vshrl.u32 %v2471, 7
    %v2473 = vsub.s32 2, %v2472
    %v2474 = vrot.slane %v2461, %v2473
    %v2475 = vlaneseq
    %v2476 = vshrl.u32 %v2475, 7
    %v2477 = vsub.s32 3, %v2476
    %v2478 = vrot.slane %v2461, %v2477
    %2483 = vmatprep.subr.mxu0 %v2334
    %2484 = vmatpush1.msra.mxu0 %v2333
    %2485 = vmatprep.subr.mxu0 %v2338
    %2486 = vmatpush1.msra.mxu0 %v2337
    %2487 = vmatprep.subr.mxu0 %v2342
    %2488 = vmatpush1.msra.mxu0 %v2341
    %2489 = vmatprep.subr.mxu0 %v2346
    %2490 = vmatpush1.msra.mxu0 %v2345
    %2491 = vmatprep.subr.mxu0 %v2350
    %2492 = vmatpush1.msra.mxu0 %v2349
    %2493 = vmatprep.subr.mxu0 %v2354
    %2494 = vmatpush1.msra.mxu0 %v2353
    %2495 = vmatprep.subr.mxu0 %v2358
    %2496 = vmatpush1.msra.mxu0 %v2357
    %2497 = vmatprep.subr.mxu0 %v2362
    %2498 = vmatpush1.msra.mxu0 %v2361
    %2499 = vmatprep.subr.mxu0 %v2366
    %2500 = vmatpush1.msra.mxu0 %v2365
    %2501 = vmatprep.subr.mxu0 %v2370
    %2502 = vmatpush1.msra.mxu0 %v2369
    %2503 = vmatprep.subr.mxu0 %v2374
    %2504 = vmatpush1.msra.mxu0 %v2373
    %2505 = vmatprep.subr.mxu0 %v2378
    %2506 = vmatpush1.msra.mxu0 %v2377
    %2507 = vmatprep.subr.mxu0 %v2382
    %2508 = vmatpush1.msra.mxu0 %v2381
    %2509 = vmatprep.subr.mxu0 %v2386
    %2510 = vmatpush1.msra.mxu0 %v2385
    %2511 = vmatprep.subr.mxu0 %v2390
    %2512 = vmatpush1.msra.mxu0 %v2389
    %2513 = vmatprep.subr.mxu0 %v2394
    %2514 = vmatpush1.msra.mxu0 %v2393
    %2515 = vmatprep.subr.mxu0 %v2398
    %2516 = vmatpush1.msra.mxu0 %v2397
    %2517 = vmatprep.subr.mxu0 %v2402
    %2518 = vmatpush1.msra.mxu0 %v2401
    %2519 = vmatprep.subr.mxu0 %v2406
    %2520 = vmatpush1.msra.mxu0 %v2405
    %2521 = vmatprep.subr.mxu0 %v2410
    %2522 = vmatpush1.msra.mxu0 %v2409
    %2523 = vmatprep.subr.mxu0 %v2414
    %2524 = vmatpush1.msra.mxu0 %v2413
    %2525 = vmatprep.subr.mxu0 %v2418
    %2526 = vmatpush1.msra.mxu0 %v2417
    %2527 = vmatprep.subr.mxu0 %v2422
    %2528 = vmatpush1.msra.mxu0 %v2421
    %2529 = vmatprep.subr.mxu0 %v2426
    %2530 = vmatpush1.msra.mxu0 %v2425
    %2531 = vmatprep.subr.mxu0 %v2430
    %2532 = vmatpush1.msra.mxu0 %v2429
    %2533 = vmatprep.subr.mxu0 %v2434
    %2534 = vmatpush1.msra.mxu0 %v2433
    %2535 = vmatprep.subr.mxu0 %v2438
    %2536 = vmatpush1.msra.mxu0 %v2437
    %2537 = vmatprep.subr.mxu0 %v2442
    %2538 = vmatpush1.msra.mxu0 %v2441
    %2539 = vmatprep.subr.mxu0 %v2446
    %2540 = vmatpush1.msra.mxu0 %v2445
    %2541 = vmatprep.subr.mxu0 %v2450
    %2542 = vmatpush1.msra.mxu0 %v2449
    %2543 = vmatprep.subr.mxu0 %v2454
    %2544 = vmatpush1.msra.mxu0 %v2453
    %2545 = vmatprep.subr.mxu0 %v2458
    %2546 = vmatpush1.msra.mxu0 %v2457
    %2547 = vmatprep.mubr.f32.mxu0 %v2331
    %2548 = vmatmul.mubr.f32.gmra.mrb[0].mxu0 %v2328
    %v2549 = vpop.f32.mrb[0].mxu0
    %v2550 = vadd.f32 %v2466, %v2549
    %v2551 = vpop.f32.mrb[0].mxu0
    %v2552 = vadd.f32 %v2470, %v2551
    %2553 = vdwg.mxu0
    %2554 = vmatprep.subr.mxu0 %v2336
    %2555 = vmatpush1.msra.mxu0 %v2335
    %2556 = vmatprep.subr.mxu0 %v2340
    %2557 = vmatpush1.msra.mxu0 %v2339
    %2558 = vmatprep.subr.mxu0 %v2344
    %2559 = vmatpush1.msra.mxu0 %v2343
    %2560 = vmatprep.subr.mxu0 %v2348
    %2561 = vmatpush1.msra.mxu0 %v2347
    %2562 = vmatprep.subr.mxu0 %v2352
    %2563 = vmatpush1.msra.mxu0 %v2351
    %2564 = vmatprep.subr.mxu0 %v2356
    %2565 = vmatpush1.msra.mxu0 %v2355
    %2566 = vmatprep.subr.mxu0 %v2360
    %2567 = vmatpush1.msra.mxu0 %v2359
    %2568 = vmatprep.subr.mxu0 %v2364
    %2569 = vmatpush1.msra.mxu0 %v2363
    %2570 = vmatprep.subr.mxu0 %v2368
    %2571 = vmatpush1.msra.mxu0 %v2367
    %2572 = vmatprep.subr.mxu0 %v2372
    %2573 = vmatpush1.msra.mxu0 %v2371
    %2574 = vmatprep.subr.mxu0 %v2376
    %2575 = vmatpush1.msra.mxu0 %v2375
    %2576 = vmatprep.subr.mxu0 %v2380
    %2577 = vmatpush1.msra.mxu0 %v2379
    %2578 = vmatprep.subr.mxu0 %v2384
    %2579 = vmatpush1.msra.mxu0 %v2383
    %2580 = vmatprep.subr.mxu0 %v2388
    %2581 = vmatpush1.msra.mxu0 %v2387
    %2582 = vmatprep.subr.mxu0 %v2392
    %2583 = vmatpush1.msra.mxu0 %v2391
    %2584 = vmatprep.subr.mxu0 %v2396
    %2585 = vmatpush1.msra.mxu0 %v2395
    %2586 = vmatprep.subr.mxu0 %v2400
    %2587 = vmatpush1.msra.mxu0 %v2399
    %2588 = vmatprep.subr.mxu0 %v2404
    %2589 = vmatpush1.msra.mxu0 %v2403
    %2590 = vmatprep.subr.mxu0 %v2408
    %2591 = vmatpush1.msra.mxu0 %v2407
    %2592 = vmatprep.subr.mxu0 %v2412
    %2593 = vmatpush1.msra.mxu0 %v2411
    %2594 = vmatprep.subr.mxu0 %v2416
    %2595 = vmatpush1.msra.mxu0 %v2415
    %2596 = vmatprep.subr.mxu0 %v2420
    %2597 = vmatpush1.msra.mxu0 %v2419
    %2598 = vmatprep.subr.mxu0 %v2424
    %2599 = vmatpush1.msra.mxu0 %v2423
    %2600 = vmatprep.subr.mxu0 %v2428
    %2601 = vmatpush1.msra.mxu0 %v2427
    %2602 = vmatprep.subr.mxu0 %v2432
    %2603 = vmatpush1.msra.mxu0 %v2431
    %2604 = vmatprep.subr.mxu0 %v2436
    %2605 = vmatpush1.msra.mxu0 %v2435
    %2606 = vmatprep.subr.mxu0 %v2440
    %2607 = vmatpush1.msra.mxu0 %v2439
    %2608 = vmatprep.subr.mxu0 %v2444
    %2609 = vmatpush1.msra.mxu0 %v2443
    %2610 = vmatprep.subr.mxu0 %v2448
    %2611 = vmatpush1.msra.mxu0 %v2447
    %2612 = vmatprep.subr.mxu0 %v2452
    %2613 = vmatpush1.msra.mxu0 %v2451
    %2614 = vmatprep.subr.mxu0 %v2456
    %2615 = vmatpush1.msra.mxu0 %v2455
    %2616 = vmatprep.subr.mxu0 %v2460
    %2617 = vmatpush1.msra.mxu0 %v2459
    %2618 = vmatprep.mubr.f32.mxu0 %v2331
    %2619 = vmatmul.mubr.f32.gmra.mrb[0].mxu0 %v2328
    %v2620 = vpop.f32.mrb[0].mxu0
    %v2621 = vadd.f32 %v2474, %v2620
    %v2622 = vpop.f32.mrb[0].mxu0
    %v2623 = vadd.f32 %v2478, %v2622
    %2624 = vdwg.mxu0
    %v2625 = vxor.u32 %v2550, 2147483648
    %v2626 = vmul.f32 %v2625, 1.442695
    %v2627 = vpow.pop %v2626
    %v2628 = vadd.f32 %v2627, 1.0
    %v2629 = vrcp.pop %v2628
    %v2630 = vmul.f32 1.0, %v2629
    %v2631 = vxor.u32 %v2552, 2147483648
    %v2632 = vmul.f32 %v2631, 1.442695
    %v2633 = vpow.pop %v2632
    %v2634 = vadd.f32 %v2633, 1.0
    %v2635 = vrcp.pop %v2634
    %v2636 = vmul.f32 1.0, %v2635
    %v2637 = vtanh.pop %v2621
    %v2638 = vxor.u32 %v2623, 2147483648
    %v2639 = vmul.f32 %v2638, 1.442695
    %v2640 = vpow.pop %v2639
    %v2641 = vadd.f32 %v2640, 1.0
    %v2642 = vrcp.pop %v2641
    %v2643 = vmul.f32 1.0, %v2642
    %v2644 = vmul.f32 %v2636, %v2332
    %v2645 = vmul.f32 %v2630, %v2637
    %v2646 = vadd.f32 %v2644, %v2645
    %v2647 = vtanh.pop %v2646
    %v2648 = vmul.f32 %v2643, %v2647
    %2649 = vst [vmem:[%s403] sm:$0xff] %v2646
    %2650 = vst [vmem:[%s401] sm:$0xff] %v2648
    %s2651 = scalar_lea.vmem [#allocation4], 32
    %v2652 = vld [vmem:[%s2651] sm:$0xff]
    %v2653 = vld [vmem:[#allocation2] sm:$0xff]
    %v2654 = vld [vmem:[#allocation3] sm:$0xff]
    %v2655 = vld [vmem:[#allocation7] sm:$0xff]
    %v2656 = vld [vmem:[#allocation7 + $0x8] sm:$0xff]
    %v2657 = vld [vmem:[#allocation7 + $0x10] sm:$0xff]
    %v2658 = vld [vmem:[#allocation7 + $0x18] sm:$0xff]
    %v2659 = vld [vmem:[#allocation7 + $0x20] sm:$0xff]
    %v2660 = vld [vmem:[#allocation7 + $0x28] sm:$0xff]
    %v2661 = vld [vmem:[#allocation7 + $0x30] sm:$0xff]
    %v2662 = vld [vmem:[#allocation7 + $0x38] sm:$0xff]
    %v2663 = vld [vmem:[#allocation7 + $0x40] sm:$0xff]
    %v2664 = vld [vmem:[#allocation7 + $0x48] sm:$0xff]
    %v2665 = vld [vmem:[#allocation7 + $0x50] sm:$0xff]
    %v2666 = vld [vmem:[#allocation7 + $0x58] sm:$0xff]
    %v2667 = vld [vmem:[#allocation7 + $0x60] sm:$0xff]
    %v2668 = vld [vmem:[#allocation7 + $0x68] sm:$0xff]
    %v2669 = vld [vmem:[#allocation7 + $0x70] sm:$0xff]
    %v2670 = vld [vmem:[#allocation7 + $0x78] sm:$0xff]
    %v2671 = vld [vmem:[#allocation7 + $0x80] sm:$0xff]
    %v2672 = vld [vmem:[#allocation7 + $0x88] sm:$0xff]
    %v2673 = vld [vmem:[#allocation7 + $0x90] sm:$0xff]
    %v2674 = vld [vmem:[#allocation7 + $0x98] sm:$0xff]
    %v2675 = vld [vmem:[#allocation7 + $0xa0] sm:$0xff]
    %v2676 = vld [vmem:[#allocation7 + $0xa8] sm:$0xff]
    %v2677 = vld [vmem:[#allocation7 + $0xb0] sm:$0xff]
    %v2678 = vld [vmem:[#allocation7 + $0xb8] sm:$0xff]
    %v2679 = vld [vmem:[#allocation7 + $0xc0] sm:$0xff]
    %v2680 = vld [vmem:[#allocation7 + $0xc8] sm:$0xff]
    %v2681 = vld [vmem:[#allocation7 + $0xd0] sm:$0xff]
    %v2682 = vld [vmem:[#allocation7 + $0xd8] sm:$0xff]
    %v2683 = vld [vmem:[#allocation7 + $0xe0] sm:$0xff]
    %v2684 = vld [vmem:[#allocation7 + $0xe8] sm:$0xff]
    %v2685 = vld [vmem:[#allocation7 + $0xf0] sm:$0xff]
    %v2686 = vld [vmem:[#allocation7 + $0xf8] sm:$0xff]
    %v2687 = vld [vmem:[#allocation7 + $0x100] sm:$0xff]
    %v2688 = vld [vmem:[#allocation7 + $0x108] sm:$0xff]
    %v2689 = vld [vmem:[#allocation7 + $0x110] sm:$0xff]
    %v2690 = vld [vmem:[#allocation7 + $0x118] sm:$0xff]
    %v2691 = vld [vmem:[#allocation7 + $0x120] sm:$0xff]
    %v2692 = vld [vmem:[#allocation7 + $0x128] sm:$0xff]
    %v2693 = vld [vmem:[#allocation7 + $0x130] sm:$0xff]
    %v2694 = vld [vmem:[#allocation7 + $0x138] sm:$0xff]
    %v2695 = vld [vmem:[#allocation7 + $0x140] sm:$0xff]
    %v2696 = vld [vmem:[#allocation7 + $0x148] sm:$0xff]
    %v2697 = vld [vmem:[#allocation7 + $0x150] sm:$0xff]
    %v2698 = vld [vmem:[#allocation7 + $0x158] sm:$0xff]
    %v2699 = vld [vmem:[#allocation7 + $0x160] sm:$0xff]
    %v2700 = vld [vmem:[#allocation7 + $0x168] sm:$0xff]
    %v2701 = vld [vmem:[#allocation7 + $0x170] sm:$0xff]
    %v2702 = vld [vmem:[#allocation7 + $0x178] sm:$0xff]
    %v2703 = vld [vmem:[#allocation7 + $0x180] sm:$0xff]
    %v2704 = vld [vmem:[#allocation7 + $0x188] sm:$0xff]
    %v2705 = vld [vmem:[#allocation7 + $0x190] sm:$0xff]
    %v2706 = vld [vmem:[#allocation7 + $0x198] sm:$0xff]
    %v2707 = vld [vmem:[#allocation7 + $0x1a0] sm:$0xff]
    %v2708 = vld [vmem:[#allocation7 + $0x1a8] sm:$0xff]
    %v2709 = vld [vmem:[#allocation7 + $0x1b0] sm:$0xff]
    %v2710 = vld [vmem:[#allocation7 + $0x1b8] sm:$0xff]
    %v2711 = vld [vmem:[#allocation7 + $0x1c0] sm:$0xff]
    %v2712 = vld [vmem:[#allocation7 + $0x1c8] sm:$0xff]
    %v2713 = vld [vmem:[#allocation7 + $0x1d0] sm:$0xff]
    %v2714 = vld [vmem:[#allocation7 + $0x1d8] sm:$0xff]
    %v2715 = vld [vmem:[#allocation7 + $0x1e0] sm:$0xff]
    %v2716 = vld [vmem:[#allocation7 + $0x1e8] sm:$0xff]
    %v2717 = vld [vmem:[#allocation7 + $0x1f0] sm:$0xff]
    %v2718 = vld [vmem:[#allocation7 + $0x1f8] sm:$0xff]
    %v2719 = vld [vmem:[#allocation7 + $0x200] sm:$0xff]
    %v2720 = vld [vmem:[#allocation7 + $0x208] sm:$0xff]
    %v2721 = vld [vmem:[#allocation7 + $0x210] sm:$0xff]
    %v2722 = vld [vmem:[#allocation7 + $0x218] sm:$0xff]
    %v2723 = vld [vmem:[#allocation7 + $0x220] sm:$0xff]
    %v2724 = vld [vmem:[#allocation7 + $0x228] sm:$0xff]
    %v2725 = vld [vmem:[#allocation7 + $0x230] sm:$0xff]
    %v2726 = vld [vmem:[#allocation7 + $0x238] sm:$0xff]
    %v2727 = vld [vmem:[#allocation7 + $0x240] sm:$0xff]
    %v2728 = vld [vmem:[#allocation7 + $0x248] sm:$0xff]
    %v2729 = vld [vmem:[#allocation7 + $0x250] sm:$0xff]
    %v2730 = vld [vmem:[#allocation7 + $0x258] sm:$0xff]
    %v2731 = vld [vmem:[#allocation7 + $0x260] sm:$0xff]
    %v2732 = vld [vmem:[#allocation7 + $0x268] sm:$0xff]
    %v2733 = vld [vmem:[#allocation7 + $0x270] sm:$0xff]
    %v2734 = vld [vmem:[#allocation7 + $0x278] sm:$0xff]
    %v2735 = vld [vmem:[#allocation7 + $0x280] sm:$0xff]
    %v2736 = vld [vmem:[#allocation7 + $0x288] sm:$0xff]
    %v2737 = vld [vmem:[#allocation7 + $0x290] sm:$0xff]
    %v2738 = vld [vmem:[#allocation7 + $0x298] sm:$0xff]
    %v2739 = vld [vmem:[#allocation7 + $0x2a0] sm:$0xff]
    %v2740 = vld [vmem:[#allocation7 + $0x2a8] sm:$0xff]
    %v2741 = vld [vmem:[#allocation7 + $0x2b0] sm:$0xff]
    %v2742 = vld [vmem:[#allocation7 + $0x2b8] sm:$0xff]
    %v2743 = vld [vmem:[#allocation7 + $0x2c0] sm:$0xff]
    %v2744 = vld [vmem:[#allocation7 + $0x2c8] sm:$0xff]
    %v2745 = vld [vmem:[#allocation7 + $0x2d0] sm:$0xff]
    %v2746 = vld [vmem:[#allocation7 + $0x2d8] sm:$0xff]
    %v2747 = vld [vmem:[#allocation7 + $0x2e0] sm:$0xff]
    %v2748 = vld [vmem:[#allocation7 + $0x2e8] sm:$0xff]
    %v2749 = vld [vmem:[#allocation7 + $0x2f0] sm:$0xff]
    %v2750 = vld [vmem:[#allocation7 + $0x2f8] sm:$0xff]
    %v2751 = vld [vmem:[#allocation7 + $0x300] sm:$0xff]
    %v2752 = vld [vmem:[#allocation7 + $0x308] sm:$0xff]
    %v2753 = vld [vmem:[#allocation7 + $0x310] sm:$0xff]
    %v2754 = vld [vmem:[#allocation7 + $0x318] sm:$0xff]
    %v2755 = vld [vmem:[#allocation7 + $0x320] sm:$0xff]
    %v2756 = vld [vmem:[#allocation7 + $0x328] sm:$0xff]
    %v2757 = vld [vmem:[#allocation7 + $0x330] sm:$0xff]
    %v2758 = vld [vmem:[#allocation7 + $0x338] sm:$0xff]
    %v2759 = vld [vmem:[#allocation7 + $0x340] sm:$0xff]
    %v2760 = vld [vmem:[#allocation7 + $0x348] sm:$0xff]
    %v2761 = vld [vmem:[#allocation7 + $0x350] sm:$0xff]
    %v2762 = vld [vmem:[#allocation7 + $0x358] sm:$0xff]
    %v2763 = vld [vmem:[#allocation7 + $0x360] sm:$0xff]
    %v2764 = vld [vmem:[#allocation7 + $0x368] sm:$0xff]
    %v2765 = vld [vmem:[#allocation7 + $0x370] sm:$0xff]
    %v2766 = vld [vmem:[#allocation7 + $0x378] sm:$0xff]
    %v2767 = vld [vmem:[#allocation7 + $0x380] sm:$0xff]
    %v2768 = vld [vmem:[#allocation7 + $0x388] sm:$0xff]
    %v2769 = vld [vmem:[#allocation7 + $0x390] sm:$0xff]
    %v2770 = vld [vmem:[#allocation7 + $0x398] sm:$0xff]
    %v2771 = vld [vmem:[#allocation7 + $0x3a0] sm:$0xff]
    %v2772 = vld [vmem:[#allocation7 + $0x3a8] sm:$0xff]
    %v2773 = vld [vmem:[#allocation7 + $0x3b0] sm:$0xff]
    %v2774 = vld [vmem:[#allocation7 + $0x3b8] sm:$0xff]
    %v2775 = vld [vmem:[#allocation7 + $0x3c0] sm:$0xff]
    %v2776 = vld [vmem:[#allocation7 + $0x3c8] sm:$0xff]
    %v2777 = vld [vmem:[#allocation7 + $0x3d0] sm:$0xff]
    %v2778 = vld [vmem:[#allocation7 + $0x3d8] sm:$0xff]
    %v2779 = vld [vmem:[#allocation7 + $0x3e0] sm:$0xff]
    %v2780 = vld [vmem:[#allocation7 + $0x3e8] sm:$0xff]
    %v2781 = vld [vmem:[#allocation7 + $0x3f0] sm:$0xff]
    %v2782 = vld [vmem:[#allocation7 + $0x3f8] sm:$0xff]
    %v2783 = vld [vmem:[#allocation9] sm:$0xf]
    %v2785 = vlaneseq
    %v2786 = vshrl.u32 %v2785, 7
    %v2787 = vsub.s32 0, %v2786
    %v2788 = vrot.slane %v2783, %v2787
    %v2789 = vlaneseq
    %v2790 = vshrl.u32 %v2789, 7
    %v2791 = vsub.s32 1, %v2790
    %v2792 = vrot.slane %v2783, %v2791
    %v2793 = vlaneseq
    %v2794 = vshrl.u32 %v2793, 7
    %v2795 = vsub.s32 2, %v2794
    %v2796 = vrot.slane %v2783, %v2795
    %v2797 = vlaneseq
    %v2798 = vshrl.u32 %v2797, 7
    %v2799 = vsub.s32 3, %v2798
    %v2800 = vrot.slane %v2783, %v2799
    %2805 = vmatprep.subr.mxu0 %v2656
    %2806 = vmatpush1.msra.mxu0 %v2655
    %2807 = vmatprep.subr.mxu0 %v2660
    %2808 = vmatpush1.msra.mxu0 %v2659
    %2809 = vmatprep.subr.mxu0 %v2664
    %2810 = vmatpush1.msra.mxu0 %v2663
    %2811 = vmatprep.subr.mxu0 %v2668
    %2812 = vmatpush1.msra.mxu0 %v2667
    %2813 = vmatprep.subr.mxu0 %v2672
    %2814 = vmatpush1.msra.mxu0 %v2671
    %2815 = vmatprep.subr.mxu0 %v2676
    %2816 = vmatpush1.msra.mxu0 %v2675
    %2817 = vmatprep.subr.mxu0 %v2680
    %2818 = vmatpush1.msra.mxu0 %v2679
    %2819 = vmatprep.subr.mxu0 %v2684
    %2820 = vmatpush1.msra.mxu0 %v2683
    %2821 = vmatprep.subr.mxu0 %v2688
    %2822 = vmatpush1.msra.mxu0 %v2687
    %2823 = vmatprep.subr.mxu0 %v2692
    %2824 = vmatpush1.msra.mxu0 %v2691
    %2825 = vmatprep.subr.mxu0 %v2696
    %2826 = vmatpush1.msra.mxu0 %v2695
    %2827 = vmatprep.subr.mxu0 %v2700
    %2828 = vmatpush1.msra.mxu0 %v2699
    %2829 = vmatprep.subr.mxu0 %v2704
    %2830 = vmatpush1.msra.mxu0 %v2703
    %2831 = vmatprep.subr.mxu0 %v2708
    %2832 = vmatpush1.msra.mxu0 %v2707
    %2833 = vmatprep.subr.mxu0 %v2712
    %2834 = vmatpush1.msra.mxu0 %v2711
    %2835 = vmatprep.subr.mxu0 %v2716
    %2836 = vmatpush1.msra.mxu0 %v2715
    %2837 = vmatprep.subr.mxu0 %v2720
    %2838 = vmatpush1.msra.mxu0 %v2719
    %2839 = vmatprep.subr.mxu0 %v2724
    %2840 = vmatpush1.msra.mxu0 %v2723
    %2841 = vmatprep.subr.mxu0 %v2728
    %2842 = vmatpush1.msra.mxu0 %v2727
    %2843 = vmatprep.subr.mxu0 %v2732
    %2844 = vmatpush1.msra.mxu0 %v2731
    %2845 = vmatprep.subr.mxu0 %v2736
    %2846 = vmatpush1.msra.mxu0 %v2735
    %2847 = vmatprep.subr.mxu0 %v2740
    %2848 = vmatpush1.msra.mxu0 %v2739
    %2849 = vmatprep.subr.mxu0 %v2744
    %2850 = vmatpush1.msra.mxu0 %v2743
    %2851 = vmatprep.subr.mxu0 %v2748
    %2852 = vmatpush1.msra.mxu0 %v2747
    %2853 = vmatprep.subr.mxu0 %v2752
    %2854 = vmatpush1.msra.mxu0 %v2751
    %2855 = vmatprep.subr.mxu0 %v2756
    %2856 = vmatpush1.msra.mxu0 %v2755
    %2857 = vmatprep.subr.mxu0 %v2760
    %2858 = vmatpush1.msra.mxu0 %v2759
    %2859 = vmatprep.subr.mxu0 %v2764
    %2860 = vmatpush1.msra.mxu0 %v2763
    %2861 = vmatprep.subr.mxu0 %v2768
    %2862 = vmatpush1.msra.mxu0 %v2767
    %2863 = vmatprep.subr.mxu0 %v2772
    %2864 = vmatpush1.msra.mxu0 %v2771
    %2865 = vmatprep.subr.mxu0 %v2776
    %2866 = vmatpush1.msra.mxu0 %v2775
    %2867 = vmatprep.subr.mxu0 %v2780
    %2868 = vmatpush1.msra.mxu0 %v2779
    %2869 = vmatprep.mubr.f32.mxu0 %v2653
    %2870 = vmatmul.mubr.f32.gmra.mrb[0].mxu0 %v2652
    %v2871 = vpop.f32.mrb[0].mxu0
    %v2872 = vadd.f32 %v2788, %v2871
    %v2873 = vpop.f32.mrb[0].mxu0
    %v2874 = vadd.f32 %v2792, %v2873
    %2875 = vdwg.mxu0
    %2876 = vmatprep.subr.mxu0 %v2658
    %2877 = vmatpush1.msra.mxu0 %v2657
    %2878 = vmatprep.subr.mxu0 %v2662
    %2879 = vmatpush1.msra.mxu0 %v2661
    %2880 = vmatprep.subr.mxu0 %v2666
    %2881 = vmatpush1.msra.mxu0 %v2665
    %2882 = vmatprep.subr.mxu0 %v2670
    %2883 = vmatpush1.msra.mxu0 %v2669
    %2884 = vmatprep.subr.mxu0 %v2674
    %2885 = vmatpush1.msra.mxu0 %v2673
    %2886 = vmatprep.subr.mxu0 %v2678
    %2887 = vmatpush1.msra.mxu0 %v2677
    %2888 = vmatprep.subr.mxu0 %v2682
    %2889 = vmatpush1.msra.mxu0 %v2681
    %2890 = vmatprep.subr.mxu0 %v2686
    %2891 = vmatpush1.msra.mxu0 %v2685
    %2892 = vmatprep.subr.mxu0 %v2690
    %2893 = vmatpush1.msra.mxu0 %v2689
    %2894 = vmatprep.subr.mxu0 %v2694
    %2895 = vmatpush1.msra.mxu0 %v2693
    %2896 = vmatprep.subr.mxu0 %v2698
    %2897 = vmatpush1.msra.mxu0 %v2697
    %2898 = vmatprep.subr.mxu0 %v2702
    %2899 = vmatpush1.msra.mxu0 %v2701
    %2900 = vmatprep.subr.mxu0 %v2706
    %2901 = vmatpush1.msra.mxu0 %v2705
    %2902 = vmatprep.subr.mxu0 %v2710
    %2903 = vmatpush1.msra.mxu0 %v2709
    %2904 = vmatprep.subr.mxu0 %v2714
    %2905 = vmatpush1.msra.mxu0 %v2713
    %2906 = vmatprep.subr.mxu0 %v2718
    %2907 = vmatpush1.msra.mxu0 %v2717
    %2908 = vmatprep.subr.mxu0 %v2722
    %2909 = vmatpush1.msra.mxu0 %v2721
    %2910 = vmatprep.subr.mxu0 %v2726
    %2911 = vmatpush1.msra.mxu0 %v2725
    %2912 = vmatprep.subr.mxu0 %v2730
    %2913 = vmatpush1.msra.mxu0 %v2729
    %2914 = vmatprep.subr.mxu0 %v2734
    %2915 = vmatpush1.msra.mxu0 %v2733
    %2916 = vmatprep.subr.mxu0 %v2738
    %2917 = vmatpush1.msra.mxu0 %v2737
    %2918 = vmatprep.subr.mxu0 %v2742
    %2919 = vmatpush1.msra.mxu0 %v2741
    %2920 = vmatprep.subr.mxu0 %v2746
    %2921 = vmatpush1.msra.mxu0 %v2745
    %2922 = vmatprep.subr.mxu0 %v2750
    %2923 = vmatpush1.msra.mxu0 %v2749
    %2924 = vmatprep.subr.mxu0 %v2754
    %2925 = vmatpush1.msra.mxu0 %v2753
    %2926 = vmatprep.subr.mxu0 %v2758
    %2927 = vmatpush1.msra.mxu0 %v2757
    %2928 = vmatprep.subr.mxu0 %v2762
    %2929 = vmatpush1.msra.mxu0 %v2761
    %2930 = vmatprep.subr.mxu0 %v2766
    %2931 = vmatpush1.msra.mxu0 %v2765
    %2932 = vmatprep.subr.mxu0 %v2770
    %2933 = vmatpush1.msra.mxu0 %v2769
    %2934 = vmatprep.subr.mxu0 %v2774
    %2935 = vmatpush1.msra.mxu0 %v2773
    %2936 = vmatprep.subr.mxu0 %v2778
    %2937 = vmatpush1.msra.mxu0 %v2777
    %2938 = vmatprep.subr.mxu0 %v2782
    %2939 = vmatpush1.msra.mxu0 %v2781
    %2940 = vmatprep.mubr.f32.mxu0 %v2653
    %2941 = vmatmul.mubr.f32.gmra.mrb[0].mxu0 %v2652
    %v2942 = vpop.f32.mrb[0].mxu0
    %v2943 = vadd.f32 %v2796, %v2942
    %v2944 = vpop.f32.mrb[0].mxu0
    %v2945 = vadd.f32 %v2800, %v2944
    %2946 = vdwg.mxu0
    %v2947 = vxor.u32 %v2872, 2147483648
    %v2948 = vmul.f32 %v2947, 1.442695
    %v2949 = vpow.pop %v2948
    %v2950 = vadd.f32 %v2949, 1.0
    %v2951 = vrcp.pop %v2950
    %v2952 = vmul.f32 1.0, %v2951
    %v2953 = vxor.u32 %v2874, 2147483648
    %v2954 = vmul.f32 %v2953, 1.442695
    %v2955 = vpow.pop %v2954
    %v2956 = vadd.f32 %v2955, 1.0
    %v2957 = vrcp.pop %v2956
    %v2958 = vmul.f32 1.0, %v2957
    %v2959 = vtanh.pop %v2943
    %v2960 = vxor.u32 %v2945, 2147483648
    %v2961 = vmul.f32 %v2960, 1.442695
    %v2962 = vpow.pop %v2961
    %v2963 = vadd.f32 %v2962, 1.0
    %v2964 = vrcp.pop %v2963
    %v2965 = vmul.f32 1.0, %v2964
    %v2966 = vmul.f32 %v2958, %v2654
    %v2967 = vmul.f32 %v2952, %v2959
    %v2968 = vadd.f32 %v2966, %v2967
    %v2969 = vtanh.pop %v2968
    %v2970 = vmul.f32 %v2965, %v2969
    %2971 = vst [vmem:[#allocation3] sm:$0xff] %v2968
    %2972 = vst [vmem:[#allocation2] sm:$0xff] %v2970
    %v2973 = vld [vmem:[%s401] sm:$0xff]
    %v2974 = vld [vmem:[%s403] sm:$0xff]
    %v2975 = vld [vmem:[%s405] sm:$0xff]
    %v2976 = vld [vmem:[%s405 + $0x8] sm:$0xff]
    %v2977 = vld [vmem:[%s405 + $0x10] sm:$0xff]
    %v2978 = vld [vmem:[%s405 + $0x18] sm:$0xff]
    %v2979 = vld [vmem:[%s405 + $0x20] sm:$0xff]
    %v2980 = vld [vmem:[%s405 + $0x28] sm:$0xff]
    %v2981 = vld [vmem:[%s405 + $0x30] sm:$0xff]
    %v2982 = vld [vmem:[%s405 + $0x38] sm:$0xff]
    %v2983 = vld [vmem:[%s405 + $0x40] sm:$0xff]
    %v2984 = vld [vmem:[%s405 + $0x48] sm:$0xff]
    %v2985 = vld [vmem:[%s405 + $0x50] sm:$0xff]
    %v2986 = vld [vmem:[%s405 + $0x58] sm:$0xff]
    %v2987 = vld [vmem:[%s405 + $0x60] sm:$0xff]
    %v2988 = vld [vmem:[%s405 + $0x68] sm:$0xff]
    %v2989 = vld [vmem:[%s405 + $0x70] sm:$0xff]
    %v2990 = vld [vmem:[%s405 + $0x78] sm:$0xff]
    %v2991 = vld [vmem:[%s405 + $0x80] sm:$0xff]
    %v2992 = vld [vmem:[%s405 + $0x88] sm:$0xff]
    %v2993 = vld [vmem:[%s405 + $0x90] sm:$0xff]
    %v2994 = vld [vmem:[%s405 + $0x98] sm:$0xff]
    %v2995 = vld [vmem:[%s405 + $0xa0] sm:$0xff]
    %v2996 = vld [vmem:[%s405 + $0xa8] sm:$0xff]
    %v2997 = vld [vmem:[%s405 + $0xb0] sm:$0xff]
    %v2998 = vld [vmem:[%s405 + $0xb8] sm:$0xff]
    %v2999 = vld [vmem:[%s405 + $0xc0] sm:$0xff]
    %v3000 = vld [vmem:[%s405 + $0xc8] sm:$0xff]
    %v3001 = vld [vmem:[%s405 + $0xd0] sm:$0xff]
    %v3002 = vld [vmem:[%s405 + $0xd8] sm:$0xff]
    %v3003 = vld [vmem:[%s405 + $0xe0] sm:$0xff]
    %v3004 = vld [vmem:[%s405 + $0xe8] sm:$0xff]
    %v3005 = vld [vmem:[%s405 + $0xf0] sm:$0xff]
    %v3006 = vld [vmem:[%s405 + $0xf8] sm:$0xff]
    %v3007 = vld [vmem:[%s405 + $0x100] sm:$0xff]
    %v3008 = vld [vmem:[%s405 + $0x108] sm:$0xff]
    %v3009 = vld [vmem:[%s405 + $0x110] sm:$0xff]
    %v3010 = vld [vmem:[%s405 + $0x118] sm:$0xff]
    %v3011 = vld [vmem:[%s405 + $0x120] sm:$0xff]
    %v3012 = vld [vmem:[%s405 + $0x128] sm:$0xff]
    %v3013 = vld [vmem:[%s405 + $0x130] sm:$0xff]
    %v3014 = vld [vmem:[%s405 + $0x138] sm:$0xff]
    %v3015 = vld [vmem:[%s405 + $0x140] sm:$0xff]
    %v3016 = vld [vmem:[%s405 + $0x148] sm:$0xff]
    %v3017 = vld [vmem:[%s405 + $0x150] sm:$0xff]
    %v3018 = vld [vmem:[%s405 + $0x158] sm:$0xff]
    %v3019 = vld [vmem:[%s405 + $0x160] sm:$0xff]
    %v3020 = vld [vmem:[%s405 + $0x168] sm:$0xff]
    %v3021 = vld [vmem:[%s405 + $0x170] sm:$0xff]
    %v3022 = vld [vmem:[%s405 + $0x178] sm:$0xff]
    %v3023 = vld [vmem:[%s405 + $0x180] sm:$0xff]
    %v3024 = vld [vmem:[%s405 + $0x188] sm:$0xff]
    %v3025 = vld [vmem:[%s405 + $0x190] sm:$0xff]
    %v3026 = vld [vmem:[%s405 + $0x198] sm:$0xff]
    %v3027 = vld [vmem:[%s405 + $0x1a0] sm:$0xff]
    %v3028 = vld [vmem:[%s405 + $0x1a8] sm:$0xff]
    %v3029 = vld [vmem:[%s405 + $0x1b0] sm:$0xff]
    %v3030 = vld [vmem:[%s405 + $0x1b8] sm:$0xff]
    %v3031 = vld [vmem:[%s405 + $0x1c0] sm:$0xff]
    %v3032 = vld [vmem:[%s405 + $0x1c8] sm:$0xff]
    %v3033 = vld [vmem:[%s405 + $0x1d0] sm:$0xff]
    %v3034 = vld [vmem:[%s405 + $0x1d8] sm:$0xff]
    %v3035 = vld [vmem:[%s405 + $0x1e0] sm:$0xff]
    %v3036 = vld [vmem:[%s405 + $0x1e8] sm:$0xff]
    %v3037 = vld [vmem:[%s405 + $0x1f0] sm:$0xff]
    %v3038 = vld [vmem:[%s405 + $0x1f8] sm:$0xff]
    %v3039 = vld [vmem:[%s405 + $0x200] sm:$0xff]
    %v3040 = vld [vmem:[%s405 + $0x208] sm:$0xff]
    %v3041 = vld [vmem:[%s405 + $0x210] sm:$0xff]
    %v3042 = vld [vmem:[%s405 + $0x218] sm:$0xff]
    %v3043 = vld [vmem:[%s405 + $0x220] sm:$0xff]
    %v3044 = vld [vmem:[%s405 + $0x228] sm:$0xff]
    %v3045 = vld [vmem:[%s405 + $0x230] sm:$0xff]
    %v3046 = vld [vmem:[%s405 + $0x238] sm:$0xff]
    %v3047 = vld [vmem:[%s405 + $0x240] sm:$0xff]
    %v3048 = vld [vmem:[%s405 + $0x248] sm:$0xff]
    %v3049 = vld [vmem:[%s405 + $0x250] sm:$0xff]
    %v3050 = vld [vmem:[%s405 + $0x258] sm:$0xff]
    %v3051 = vld [vmem:[%s405 + $0x260] sm:$0xff]
    %v3052 = vld [vmem:[%s405 + $0x268] sm:$0xff]
    %v3053 = vld [vmem:[%s405 + $0x270] sm:$0xff]
    %v3054 = vld [vmem:[%s405 + $0x278] sm:$0xff]
    %v3055 = vld [vmem:[%s405 + $0x280] sm:$0xff]
    %v3056 = vld [vmem:[%s405 + $0x288] sm:$0xff]
    %v3057 = vld [vmem:[%s405 + $0x290] sm:$0xff]
    %v3058 = vld [vmem:[%s405 + $0x298] sm:$0xff]
    %v3059 = vld [vmem:[%s405 + $0x2a0] sm:$0xff]
    %v3060 = vld [vmem:[%s405 + $0x2a8] sm:$0xff]
    %v3061 = vld [vmem:[%s405 + $0x2b0] sm:$0xff]
    %v3062 = vld [vmem:[%s405 + $0x2b8] sm:$0xff]
    %v3063 = vld [vmem:[%s405 + $0x2c0] sm:$0xff]
    %v3064 = vld [vmem:[%s405 + $0x2c8] sm:$0xff]
    %v3065 = vld [vmem:[%s405 + $0x2d0] sm:$0xff]
    %v3066 = vld [vmem:[%s405 + $0x2d8] sm:$0xff]
    %v3067 = vld [vmem:[%s405 + $0x2e0] sm:$0xff]
    %v3068 = vld [vmem:[%s405 + $0x2e8] sm:$0xff]
    %v3069 = vld [vmem:[%s405 + $0x2f0] sm:$0xff]
    %v3070 = vld [vmem:[%s405 + $0x2f8] sm:$0xff]
    %v3071 = vld [vmem:[%s405 + $0x300] sm:$0xff]
    %v3072 = vld [vmem:[%s405 + $0x308] sm:$0xff]
    %v3073 = vld [vmem:[%s405 + $0x310] sm:$0xff]
    %v3074 = vld [vmem:[%s405 + $0x318] sm:$0xff]
    %v3075 = vld [vmem:[%s405 + $0x320] sm:$0xff]
    %v3076 = vld [vmem:[%s405 + $0x328] sm:$0xff]
    %v3077 = vld [vmem:[%s405 + $0x330] sm:$0xff]
    %v3078 = vld [vmem:[%s405 + $0x338] sm:$0xff]
    %v3079 = vld [vmem:[%s405 + $0x340] sm:$0xff]
    %v3080 = vld [vmem:[%s405 + $0x348] sm:$0xff]
    %v3081 = vld [vmem:[%s405 + $0x350] sm:$0xff]
    %v3082 = vld [vmem:[%s405 + $0x358] sm:$0xff]
    %v3083 = vld [vmem:[%s405 + $0x360] sm:$0xff]
    %v3084 = vld [vmem:[%s405 + $0x368] sm:$0xff]
    %v3085 = vld [vmem:[%s405 + $0x370] sm:$0xff]
    %v3086 = vld [vmem:[%s405 + $0x378] sm:$0xff]
    %v3087 = vld [vmem:[%s405 + $0x380] sm:$0xff]
    %v3088 = vld [vmem:[%s405 + $0x388] sm:$0xff]
    %v3089 = vld [vmem:[%s405 + $0x390] sm:$0xff]
    %v3090 = vld [vmem:[%s405 + $0x398] sm:$0xff]
    %v3091 = vld [vmem:[%s405 + $0x3a0] sm:$0xff]
    %v3092 = vld [vmem:[%s405 + $0x3a8] sm:$0xff]
    %v3093 = vld [vmem:[%s405 + $0x3b0] sm:$0xff]
    %v3094 = vld [vmem:[%s405 + $0x3b8] sm:$0xff]
    %v3095 = vld [vmem:[%s405 + $0x3c0] sm:$0xff]
    %v3096 = vld [vmem:[%s405 + $0x3c8] sm:$0xff]
    %v3097 = vld [vmem:[%s405 + $0x3d0] sm:$0xff]
    %v3098 = vld [vmem:[%s405 + $0x3d8] sm:$0xff]
    %v3099 = vld [vmem:[%s405 + $0x3e0] sm:$0xff]
    %v3100 = vld [vmem:[%s405 + $0x3e8] sm:$0xff]
    %v3101 = vld [vmem:[%s405 + $0x3f0] sm:$0xff]
    %v3102 = vld [vmem:[%s405 + $0x3f8] sm:$0xff]
    %v3103 = vld [vmem:[%s534] sm:$0xf]
    %v3105 = vlaneseq
    %v3106 = vshrl.u32 %v3105, 7
    %v3107 = vsub.s32 0, %v3106
    %v3108 = vrot.slane %v3103, %v3107
    %v3109 = vlaneseq
    %v3110 = vshrl.u32 %v3109, 7
    %v3111 = vsub.s32 1, %v3110
    %v3112 = vrot.slane %v3103, %v3111
    %v3113 = vlaneseq
    %v3114 = vshrl.u32 %v3113, 7
    %v3115 = vsub.s32 2, %v3114
    %v3116 = vrot.slane %v3103, %v3115
    %v3117 = vlaneseq
    %v3118 = vshrl.u32 %v3117, 7
    %v3119 = vsub.s32 3, %v3118
    %v3120 = vrot.slane %v3103, %v3119
    %3125 = vmatprep.subr.mxu0 %v2976
    %3126 = vmatpush1.msra.mxu0 %v2975
    %3127 = vmatprep.subr.mxu0 %v2980
    %3128 = vmatpush1.msra.mxu0 %v2979
    %3129 = vmatprep.subr.mxu0 %v2984
    %3130 = vmatpush1.msra.mxu0 %v2983
    %3131 = vmatprep.subr.mxu0 %v2988
    %3132 = vmatpush1.msra.mxu0 %v2987
    %3133 = vmatprep.subr.mxu0 %v2992
    %3134 = vmatpush1.msra.mxu0 %v2991
    %3135 = vmatprep.subr.mxu0 %v2996
    %3136 = vmatpush1.msra.mxu0 %v2995
    %3137 = vmatprep.subr.mxu0 %v3000
    %3138 = vmatpush1.msra.mxu0 %v2999
    %3139 = vmatprep.subr.mxu0 %v3004
    %3140 = vmatpush1.msra.mxu0 %v3003
    %3141 = vmatprep.subr.mxu0 %v3008
    %3142 = vmatpush1.msra.mxu0 %v3007
    %3143 = vmatprep.subr.mxu0 %v3012
    %3144 = vmatpush1.msra.mxu0 %v3011
    %3145 = vmatprep.subr.mxu0 %v3016
    %3146 = vmatpush1.msra.mxu0 %v3015
    %3147 = vmatprep.subr.mxu0 %v3020
    %3148 = vmatpush1.msra.mxu0 %v3019
    %3149 = vmatprep.subr.mxu0 %v3024
    %3150 = vmatpush1.msra.mxu0 %v3023
    %3151 = vmatprep.subr.mxu0 %v3028
    %3152 = vmatpush1.msra.mxu0 %v3027
    %3153 = vmatprep.subr.mxu0 %v3032
    %3154 = vmatpush1.msra.mxu0 %v3031
    %3155 = vmatprep.subr.mxu0 %v3036
    %3156 = vmatpush1.msra.mxu0 %v3035
    %3157 = vmatprep.subr.mxu0 %v3040
    %3158 = vmatpush1.msra.mxu0 %v3039
    %3159 = vmatprep.subr.mxu0 %v3044
    %3160 = vmatpush1.msra.mxu0 %v3043
    %3161 = vmatprep.subr.mxu0 %v3048
    %3162 = vmatpush1.msra.mxu0 %v3047
    %3163 = vmatprep.subr.mxu0 %v3052
    %3164 = vmatpush1.msra.mxu0 %v3051
    %3165 = vmatprep.subr.mxu0 %v3056
    %3166 = vmatpush1.msra.mxu0 %v3055
    %3167 = vmatprep.subr.mxu0 %v3060
    %3168 = vmatpush1.msra.mxu0 %v3059
    %3169 = vmatprep.subr.mxu0 %v3064
    %3170 = vmatpush1.msra.mxu0 %v3063
    %3171 = vmatprep.subr.mxu0 %v3068
    %3172 = vmatpush1.msra.mxu0 %v3067
    %3173 = vmatprep.subr.mxu0 %v3072
    %3174 = vmatpush1.msra.mxu0 %v3071
    %3175 = vmatprep.subr.mxu0 %v3076
    %3176 = vmatpush1.msra.mxu0 %v3075
    %3177 = vmatprep.subr.mxu0 %v3080
    %3178 = vmatpush1.msra.mxu0 %v3079
    %3179 = vmatprep.subr.mxu0 %v3084
    %3180 = vmatpush1.msra.mxu0 %v3083
    %3181 = vmatprep.subr.mxu0 %v3088
    %3182 = vmatpush1.msra.mxu0 %v3087
    %3183 = vmatprep.subr.mxu0 %v3092
    %3184 = vmatpush1.msra.mxu0 %v3091
    %3185 = vmatprep.subr.mxu0 %v3096
    %3186 = vmatpush1.msra.mxu0 %v3095
    %3187 = vmatprep.subr.mxu0 %v3100
    %3188 = vmatpush1.msra.mxu0 %v3099
    %3189 = vmatprep.mubr.f32.mxu0 %v2973
    %3190 = vmatmul.mubr.f32.gmra.mrb[0].mxu0 %v2970
    %v3191 = vpop.f32.mrb[0].mxu0
    %v3192 = vadd.f32 %v3108, %v3191
    %v3193 = vpop.f32.mrb[0].mxu0
    %v3194 = vadd.f32 %v3112, %v3193
    %3195 = vdwg.mxu0
    %3196 = vmatprep.subr.mxu0 %v2978
    %3197 = vmatpush1.msra.mxu0 %v2977
    %3198 = vmatprep.subr.mxu0 %v2982
    %3199 = vmatpush1.msra.mxu0 %v2981
    %3200 = vmatprep.subr.mxu0 %v2986
    %3201 = vmatpush1.msra.mxu0 %v2985
    %3202 = vmatprep.subr.mxu0 %v2990
    %3203 = vmatpush1.msra.mxu0 %v2989
    %3204 = vmatprep.subr.mxu0 %v2994
    %3205 = vmatpush1.msra.mxu0 %v2993
    %3206 = vmatprep.subr.mxu0 %v2998
    %3207 = vmatpush1.msra.mxu0 %v2997
    %3208 = vmatprep.subr.mxu0 %v3002
    %3209 = vmatpush1.msra.mxu0 %v3001
    %3210 = vmatprep.subr.mxu0 %v3006
    %3211 = vmatpush1.msra.mxu0 %v3005
    %3212 = vmatprep.subr.mxu0 %v3010
    %3213 = vmatpush1.msra.mxu0 %v3009
    %3214 = vmatprep.subr.mxu0 %v3014
    %3215 = vmatpush1.msra.mxu0 %v3013
    %3216 = vmatprep.subr.mxu0 %v3018
    %3217 = vmatpush1.msra.mxu0 %v3017
    %3218 = vmatprep.subr.mxu0 %v3022
    %3219 = vmatpush1.msra.mxu0 %v3021
    %3220 = vmatprep.subr.mxu0 %v3026
    %3221 = vmatpush1.msra.mxu0 %v3025
    %3222 = vmatprep.subr.mxu0 %v3030
    %3223 = vmatpush1.msra.mxu0 %v3029
    %3224 = vmatprep.subr.mxu0 %v3034
    %3225 = vmatpush1.msra.mxu0 %v3033
    %3226 = vmatprep.subr.mxu0 %v3038
    %3227 = vmatpush1.msra.mxu0 %v3037
    %3228 = vmatprep.subr.mxu0 %v3042
    %3229 = vmatpush1.msra.mxu0 %v3041
    %3230 = vmatprep.subr.mxu0 %v3046
    %3231 = vmatpush1.msra.mxu0 %v3045
    %3232 = vmatprep.subr.mxu0 %v3050
    %3233 = vmatpush1.msra.mxu0 %v3049
    %3234 = vmatprep.subr.mxu0 %v3054
    %3235 = vmatpush1.msra.mxu0 %v3053
    %3236 = vmatprep.subr.mxu0 %v3058
    %3237 = vmatpush1.msra.mxu0 %v3057
    %3238 = vmatprep.subr.mxu0 %v3062
    %3239 = vmatpush1.msra.mxu0 %v3061
    %3240 = vmatprep.subr.mxu0 %v3066
    %3241 = vmatpush1.msra.mxu0 %v3065
    %3242 = vmatprep.subr.mxu0 %v3070
    %3243 = vmatpush1.msra.mxu0 %v3069
    %3244 = vmatprep.subr.mxu0 %v3074
    %3245 = vmatpush1.msra.mxu0 %v3073
    %3246 = vmatprep.subr.mxu0 %v3078
    %3247 = vmatpush1.msra.mxu0 %v3077
    %3248 = vmatprep.subr.mxu0 %v3082
    %3249 = vmatpush1.msra.mxu0 %v3081
    %3250 = vmatprep.subr.mxu0 %v3086
    %3251 = vmatpush1.msra.mxu0 %v3085
    %3252 = vmatprep.subr.mxu0 %v3090
    %3253 = vmatpush1.msra.mxu0 %v3089
    %3254 = vmatprep.subr.mxu0 %v3094
    %3255 = vmatpush1.msra.mxu0 %v3093
    %3256 = vmatprep.subr.mxu0 %v3098
    %3257 = vmatpush1.msra.mxu0 %v3097
    %3258 = vmatprep.subr.mxu0 %v3102
    %3259 = vmatpush1.msra.mxu0 %v3101
    %3260 = vmatprep.mubr.f32.mxu0 %v2973
    %3261 = vmatmul.mubr.f32.gmra.mrb[0].mxu0 %v2970
    %v3262 = vpop.f32.mrb[0].mxu0
    %v3263 = vadd.f32 %v3116, %v3262
    %v3264 = vpop.f32.mrb[0].mxu0
    %v3265 = vadd.f32 %v3120, %v3264
    %3266 = vdwg.mxu0
    %v3267 = vxor.u32 %v3192, 2147483648
    %v3268 = vmul.f32 %v3267, 1.442695
    %v3269 = vpow.pop %v3268
    %v3270 = vadd.f32 %v3269, 1.0
    %v3271 = vrcp.pop %v3270
    %v3272 = vmul.f32 1.0, %v3271
    %v3273 = vxor.u32 %v3194, 2147483648
    %v3274 = vmul.f32 %v3273, 1.442695
    %v3275 = vpow.pop %v3274
    %v3276 = vadd.f32 %v3275, 1.0
    %v3277 = vrcp.pop %v3276
    %v3278 = vmul.f32 1.0, %v3277
    %v3279 = vtanh.pop %v3263
    %v3280 = vxor.u32 %v3265, 2147483648
    %v3281 = vmul.f32 %v3280, 1.442695
    %v3282 = vpow.pop %v3281
    %v3283 = vadd.f32 %v3282, 1.0
    %v3284 = vrcp.pop %v3283
    %v3285 = vmul.f32 1.0, %v3284
    %v3286 = vmul.f32 %v3278, %v2974
    %v3287 = vmul.f32 %v3272, %v3279
    %v3288 = vadd.f32 %v3286, %v3287
    %v3289 = vtanh.pop %v3288
    %v3290 = vmul.f32 %v3285, %v3289
    %3291 = vst [vmem:[%s403] sm:$0xff] %v3288
    %3292 = vst [vmem:[%s401] sm:$0xff] %v3290
    %s3293 = scalar_lea.vmem [#allocation4], 40
    %v3294 = vld [vmem:[%s3293] sm:$0xff]
    %v3295 = vld [vmem:[#allocation2] sm:$0xff]
    %v3296 = vld [vmem:[#allocation3] sm:$0xff]
    %v3297 = vld [vmem:[#allocation7] sm:$0xff]
    %v3298 = vld [vmem:[#allocation7 + $0x8] sm:$0xff]
    %v3299 = vld [vmem:[#allocation7 + $0x10] sm:$0xff]
    %v3300 = vld [vmem:[#allocation7 + $0x18] sm:$0xff]
    %v3301 = vld [vmem:[#allocation7 + $0x20] sm:$0xff]
    %v3302 = vld [vmem:[#allocation7 + $0x28] sm:$0xff]
    %v3303 = vld [vmem:[#allocation7 + $0x30] sm:$0xff]
    %v3304 = vld [vmem:[#allocation7 + $0x38] sm:$0xff]
    %v3305 = vld [vmem:[#allocation7 + $0x40] sm:$0xff]
    %v3306 = vld [vmem:[#allocation7 + $0x48] sm:$0xff]
    %v3307 = vld [vmem:[#allocation7 + $0x50] sm:$0xff]
    %v3308 = vld [vmem:[#allocation7 + $0x58] sm:$0xff]
    %v3309 = vld [vmem:[#allocation7 + $0x60] sm:$0xff]
    %v3310 = vld [vmem:[#allocation7 + $0x68] sm:$0xff]
    %v3311 = vld [vmem:[#allocation7 + $0x70] sm:$0xff]
    %v3312 = vld [vmem:[#allocation7 + $0x78] sm:$0xff]
    %v3313 = vld [vmem:[#allocation7 + $0x80] sm:$0xff]
    %v3314 = vld [vmem:[#allocation7 + $0x88] sm:$0xff]
    %v3315 = vld [vmem:[#allocation7 + $0x90] sm:$0xff]
    %v3316 = vld [vmem:[#allocation7 + $0x98] sm:$0xff]
    %v3317 = vld [vmem:[#allocation7 + $0xa0] sm:$0xff]
    %v3318 = vld [vmem:[#allocation7 + $0xa8] sm:$0xff]
    %v3319 = vld [vmem:[#allocation7 + $0xb0] sm:$0xff]
    %v3320 = vld [vmem:[#allocation7 + $0xb8] sm:$0xff]
    %v3321 = vld [vmem:[#allocation7 + $0xc0] sm:$0xff]
    %v3322 = vld [vmem:[#allocation7 + $0xc8] sm:$0xff]
    %v3323 = vld [vmem:[#allocation7 + $0xd0] sm:$0xff]
    %v3324 = vld [vmem:[#allocation7 + $0xd8] sm:$0xff]
    %v3325 = vld [vmem:[#allocation7 + $0xe0] sm:$0xff]
    %v3326 = vld [vmem:[#allocation7 + $0xe8] sm:$0xff]
    %v3327 = vld [vmem:[#allocation7 + $0xf0] sm:$0xff]
    %v3328 = vld [vmem:[#allocation7 + $0xf8] sm:$0xff]
    %v3329 = vld [vmem:[#allocation7 + $0x100] sm:$0xff]
    %v3330 = vld [vmem:[#allocation7 + $0x108] sm:$0xff]
    %v3331 = vld [vmem:[#allocation7 + $0x110] sm:$0xff]
    %v3332 = vld [vmem:[#allocation7 + $0x118] sm:$0xff]
    %v3333 = vld [vmem:[#allocation7 + $0x120] sm:$0xff]
    %v3334 = vld [vmem:[#allocation7 + $0x128] sm:$0xff]
    %v3335 = vld [vmem:[#allocation7 + $0x130] sm:$0xff]
    %v3336 = vld [vmem:[#allocation7 + $0x138] sm:$0xff]
    %v3337 = vld [vmem:[#allocation7 + $0x140] sm:$0xff]
    %v3338 = vld [vmem:[#allocation7 + $0x148] sm:$0xff]
    %v3339 = vld [vmem:[#allocation7 + $0x150] sm:$0xff]
    %v3340 = vld [vmem:[#allocation7 + $0x158] sm:$0xff]
    %v3341 = vld [vmem:[#allocation7 + $0x160] sm:$0xff]
    %v3342 = vld [vmem:[#allocation7 + $0x168] sm:$0xff]
    %v3343 = vld [vmem:[#allocation7 + $0x170] sm:$0xff]
    %v3344 = vld [vmem:[#allocation7 + $0x178] sm:$0xff]
    %v3345 = vld [vmem:[#allocation7 + $0x180] sm:$0xff]
    %v3346 = vld [vmem:[#allocation7 + $0x188] sm:$0xff]
    %v3347 = vld [vmem:[#allocation7 + $0x190] sm:$0xff]
    %v3348 = vld [vmem:[#allocation7 + $0x198] sm:$0xff]
    %v3349 = vld [vmem:[#allocation7 + $0x1a0] sm:$0xff]
    %v3350 = vld [vmem:[#allocation7 + $0x1a8] sm:$0xff]
    %v3351 = vld [vmem:[#allocation7 + $0x1b0] sm:$0xff]
    %v3352 = vld [vmem:[#allocation7 + $0x1b8] sm:$0xff]
    %v3353 = vld [vmem:[#allocation7 + $0x1c0] sm:$0xff]
    %v3354 = vld [vmem:[#allocation7 + $0x1c8] sm:$0xff]
    %v3355 = vld [vmem:[#allocation7 + $0x1d0] sm:$0xff]
    %v3356 = vld [vmem:[#allocation7 + $0x1d8] sm:$0xff]
    %v3357 = vld [vmem:[#allocation7 + $0x1e0] sm:$0xff]
    %v3358 = vld [vmem:[#allocation7 + $0x1e8] sm:$0xff]
    %v3359 = vld [vmem:[#allocation7 + $0x1f0] sm:$0xff]
    %v3360 = vld [vmem:[#allocation7 + $0x1f8] sm:$0xff]
    %v3361 = vld [vmem:[#allocation7 + $0x200] sm:$0xff]
    %v3362 = vld [vmem:[#allocation7 + $0x208] sm:$0xff]
    %v3363 = vld [vmem:[#allocation7 + $0x210] sm:$0xff]
    %v3364 = vld [vmem:[#allocation7 + $0x218] sm:$0xff]
    %v3365 = vld [vmem:[#allocation7 + $0x220] sm:$0xff]
    %v3366 = vld [vmem:[#allocation7 + $0x228] sm:$0xff]
    %v3367 = vld [vmem:[#allocation7 + $0x230] sm:$0xff]
    %v3368 = vld [vmem:[#allocation7 + $0x238] sm:$0xff]
    %v3369 = vld [vmem:[#allocation7 + $0x240] sm:$0xff]
    %v3370 = vld [vmem:[#allocation7 + $0x248] sm:$0xff]
    %v3371 = vld [vmem:[#allocation7 + $0x250] sm:$0xff]
    %v3372 = vld [vmem:[#allocation7 + $0x258] sm:$0xff]
    %v3373 = vld [vmem:[#allocation7 + $0x260] sm:$0xff]
    %v3374 = vld [vmem:[#allocation7 + $0x268] sm:$0xff]
    %v3375 = vld [vmem:[#allocation7 + $0x270] sm:$0xff]
    %v3376 = vld [vmem:[#allocation7 + $0x278] sm:$0xff]
    %v3377 = vld [vmem:[#allocation7 + $0x280] sm:$0xff]
    %v3378 = vld [vmem:[#allocation7 + $0x288] sm:$0xff]
    %v3379 = vld [vmem:[#allocation7 + $0x290] sm:$0xff]
    %v3380 = vld [vmem:[#allocation7 + $0x298] sm:$0xff]
    %v3381 = vld [vmem:[#allocation7 + $0x2a0] sm:$0xff]
    %v3382 = vld [vmem:[#allocation7 + $0x2a8] sm:$0xff]
    %v3383 = vld [vmem:[#allocation7 + $0x2b0] sm:$0xff]
    %v3384 = vld [vmem:[#allocation7 + $0x2b8] sm:$0xff]
    %v3385 = vld [vmem:[#allocation7 + $0x2c0] sm:$0xff]
    %v3386 = vld [vmem:[#allocation7 + $0x2c8] sm:$0xff]
    %v3387 = vld [vmem:[#allocation7 + $0x2d0] sm:$0xff]
    %v3388 = vld [vmem:[#allocation7 + $0x2d8] sm:$0xff]
    %v3389 = vld [vmem:[#allocation7 + $0x2e0] sm:$0xff]
    %v3390 = vld [vmem:[#allocation7 + $0x2e8] sm:$0xff]
    %v3391 = vld [vmem:[#allocation7 + $0x2f0] sm:$0xff]
    %v3392 = vld [vmem:[#allocation7 + $0x2f8] sm:$0xff]
    %v3393 = vld [vmem:[#allocation7 + $0x300] sm:$0xff]
    %v3394 = vld [vmem:[#allocation7 + $0x308] sm:$0xff]
    %v3395 = vld [vmem:[#allocation7 + $0x310] sm:$0xff]
    %v3396 = vld [vmem:[#allocation7 + $0x318] sm:$0xff]
    %v3397 = vld [vmem:[#allocation7 + $0x320] sm:$0xff]
    %v3398 = vld [vmem:[#allocation7 + $0x328] sm:$0xff]
    %v3399 = vld [vmem:[#allocation7 + $0x330] sm:$0xff]
    %v3400 = vld [vmem:[#allocation7 + $0x338] sm:$0xff]
    %v3401 = vld [vmem:[#allocation7 + $0x340] sm:$0xff]
    %v3402 = vld [vmem:[#allocation7 + $0x348] sm:$0xff]
    %v3403 = vld [vmem:[#allocation7 + $0x350] sm:$0xff]
    %v3404 = vld [vmem:[#allocation7 + $0x358] sm:$0xff]
    %v3405 = vld [vmem:[#allocation7 + $0x360] sm:$0xff]
    %v3406 = vld [vmem:[#allocation7 + $0x368] sm:$0xff]
    %v3407 = vld [vmem:[#allocation7 + $0x370] sm:$0xff]
    %v3408 = vld [vmem:[#allocation7 + $0x378] sm:$0xff]
    %v3409 = vld [vmem:[#allocation7 + $0x380] sm:$0xff]
    %v3410 = vld [vmem:[#allocation7 + $0x388] sm:$0xff]
    %v3411 = vld [vmem:[#allocation7 + $0x390] sm:$0xff]
    %v3412 = vld [vmem:[#allocation7 + $0x398] sm:$0xff]
    %v3413 = vld [vmem:[#allocation7 + $0x3a0] sm:$0xff]
    %v3414 = vld [vmem:[#allocation7 + $0x3a8] sm:$0xff]
    %v3415 = vld [vmem:[#allocation7 + $0x3b0] sm:$0xff]
    %v3416 = vld [vmem:[#allocation7 + $0x3b8] sm:$0xff]
    %v3417 = vld [vmem:[#allocation7 + $0x3c0] sm:$0xff]
    %v3418 = vld [vmem:[#allocation7 + $0x3c8] sm:$0xff]
    %v3419 = vld [vmem:[#allocation7 + $0x3d0] sm:$0xff]
    %v3420 = vld [vmem:[#allocation7 + $0x3d8] sm:$0xff]
    %v3421 = vld [vmem:[#allocation7 + $0x3e0] sm:$0xff]
    %v3422 = vld [vmem:[#allocation7 + $0x3e8] sm:$0xff]
    %v3423 = vld [vmem:[#allocation7 + $0x3f0] sm:$0xff]
    %v3424 = vld [vmem:[#allocation7 + $0x3f8] sm:$0xff]
    %v3425 = vld [vmem:[#allocation9] sm:$0xf]
    %v3427 = vlaneseq
    %v3428 = vshrl.u32 %v3427, 7
    %v3429 = vsub.s32 0, %v3428
    %v3430 = vrot.slane %v3425, %v3429
    %v3431 = vlaneseq
    %v3432 = vshrl.u32 %v3431, 7
    %v3433 = vsub.s32 1, %v3432
    %v3434 = vrot.slane %v3425, %v3433
    %v3435 = vlaneseq
    %v3436 = vshrl.u32 %v3435, 7
    %v3437 = vsub.s32 2, %v3436
    %v3438 = vrot.slane %v3425, %v3437
    %v3439 = vlaneseq
    %v3440 = vshrl.u32 %v3439, 7
    %v3441 = vsub.s32 3, %v3440
    %v3442 = vrot.slane %v3425, %v3441
    %3447 = vmatprep.subr.mxu0 %v3298
    %3448 = vmatpush1.msra.mxu0 %v3297
    %3449 = vmatprep.subr.mxu0 %v3302
    %3450 = vmatpush1.msra.mxu0 %v3301
    %3451 = vmatprep.subr.mxu0 %v3306
    %3452 = vmatpush1.msra.mxu0 %v3305
    %3453 = vmatprep.subr.mxu0 %v3310
    %3454 = vmatpush1.msra.mxu0 %v3309
    %3455 = vmatprep.subr.mxu0 %v3314
    %3456 = vmatpush1.msra.mxu0 %v3313
    %3457 = vmatprep.subr.mxu0 %v3318
    %3458 = vmatpush1.msra.mxu0 %v3317
    %3459 = vmatprep.subr.mxu0 %v3322
    %3460 = vmatpush1.msra.mxu0 %v3321
    %3461 = vmatprep.subr.mxu0 %v3326
    %3462 = vmatpush1.msra.mxu0 %v3325
    %3463 = vmatprep.subr.mxu0 %v3330
    %3464 = vmatpush1.msra.mxu0 %v3329
    %3465 = vmatprep.subr.mxu0 %v3334
    %3466 = vmatpush1.msra.mxu0 %v3333
    %3467 = vmatprep.subr.mxu0 %v3338
    %3468 = vmatpush1.msra.mxu0 %v3337
    %3469 = vmatprep.subr.mxu0 %v3342
    %3470 = vmatpush1.msra.mxu0 %v3341
    %3471 = vmatprep.subr.mxu0 %v3346
    %3472 = vmatpush1.msra.mxu0 %v3345
    %3473 = vmatprep.subr.mxu0 %v3350
    %3474 = vmatpush1.msra.mxu0 %v3349
    %3475 = vmatprep.subr.mxu0 %v3354
    %3476 = vmatpush1.msra.mxu0 %v3353
    %3477 = vmatprep.subr.mxu0 %v3358
    %3478 = vmatpush1.msra.mxu0 %v3357
    %3479 = vmatprep.subr.mxu0 %v3362
    %3480 = vmatpush1.msra.mxu0 %v3361
    %3481 = vmatprep.subr.mxu0 %v3366
    %3482 = vmatpush1.msra.mxu0 %v3365
    %3483 = vmatprep.subr.mxu0 %v3370
    %3484 = vmatpush1.msra.mxu0 %v3369
    %3485 = vmatprep.subr.mxu0 %v3374
    %3486 = vmatpush1.msra.mxu0 %v3373
    %3487 = vmatprep.subr.mxu0 %v3378
    %3488 = vmatpush1.msra.mxu0 %v3377
    %3489 = vmatprep.subr.mxu0 %v3382
    %3490 = vmatpush1.msra.mxu0 %v3381
    %3491 = vmatprep.subr.mxu0 %v3386
    %3492 = vmatpush1.msra.mxu0 %v3385
    %3493 = vmatprep.subr.mxu0 %v3390
    %3494 = vmatpush1.msra.mxu0 %v3389
    %3495 = vmatprep.subr.mxu0 %v3394
    %3496 = vmatpush1.msra.mxu0 %v3393
    %3497 = vmatprep.subr.mxu0 %v3398
    %3498 = vmatpush1.msra.mxu0 %v3397
    %3499 = vmatprep.subr.mxu0 %v3402
    %3500 = vmatpush1.msra.mxu0 %v3401
    %3501 = vmatprep.subr.mxu0 %v3406
    %3502 = vmatpush1.msra.mxu0 %v3405
    %3503 = vmatprep.subr.mxu0 %v3410
    %3504 = vmatpush1.msra.mxu0 %v3409
    %3505 = vmatprep.subr.mxu0 %v3414
    %3506 = vmatpush1.msra.mxu0 %v3413
    %3507 = vmatprep.subr.mxu0 %v3418
    %3508 = vmatpush1.msra.mxu0 %v3417
    %3509 = vmatprep.subr.mxu0 %v3422
    %3510 = vmatpush1.msra.mxu0 %v3421
    %3511 = vmatprep.mubr.f32.mxu0 %v3295
    %3512 = vmatmul.mubr.f32.gmra.mrb[0].mxu0 %v3294
    %v3513 = vpop.f32.mrb[0].mxu0
    %v3514 = vadd.f32 %v3430, %v3513
    %v3515 = vpop.f32.mrb[0].mxu0
    %v3516 = vadd.f32 %v3434, %v3515
    %3517 = vdwg.mxu0
    %3518 = vmatprep.subr.mxu0 %v3300
    %3519 = vmatpush1.msra.mxu0 %v3299
    %3520 = vmatprep.subr.mxu0 %v3304
    %3521 = vmatpush1.msra.mxu0 %v3303
    %3522 = vmatprep.subr.mxu0 %v3308
    %3523 = vmatpush1.msra.mxu0 %v3307
    %3524 = vmatprep.subr.mxu0 %v3312
    %3525 = vmatpush1.msra.mxu0 %v3311
    %3526 = vmatprep.subr.mxu0 %v3316
    %3527 = vmatpush1.msra.mxu0 %v3315
    %3528 = vmatprep.subr.mxu0 %v3320
    %3529 = vmatpush1.msra.mxu0 %v3319
    %3530 = vmatprep.subr.mxu0 %v3324
    %3531 = vmatpush1.msra.mxu0 %v3323
    %3532 = vmatprep.subr.mxu0 %v3328
    %3533 = vmatpush1.msra.mxu0 %v3327
    %3534 = vmatprep.subr.mxu0 %v3332
    %3535 = vmatpush1.msra.mxu0 %v3331
    %3536 = vmatprep.subr.mxu0 %v3336
    %3537 = vmatpush1.msra.mxu0 %v3335
    %3538 = vmatprep.subr.mxu0 %v3340
    %3539 = vmatpush1.msra.mxu0 %v3339
    %3540 = vmatprep.subr.mxu0 %v3344
    %3541 = vmatpush1.msra.mxu0 %v3343
    %3542 = vmatprep.subr.mxu0 %v3348
    %3543 = vmatpush1.msra.mxu0 %v3347
    %3544 = vmatprep.subr.mxu0 %v3352
    %3545 = vmatpush1.msra.mxu0 %v3351
    %3546 = vmatprep.subr.mxu0 %v3356
    %3547 = vmatpush1.msra.mxu0 %v3355
    %3548 = vmatprep.subr.mxu0 %v3360
    %3549 = vmatpush1.msra.mxu0 %v3359
    %3550 = vmatprep.subr.mxu0 %v3364
    %3551 = vmatpush1.msra.mxu0 %v3363
    %3552 = vmatprep.subr.mxu0 %v3368
    %3553 = vmatpush1.msra.mxu0 %v3367
    %3554 = vmatprep.subr.mxu0 %v3372
    %3555 = vmatpush1.msra.mxu0 %v3371
    %3556 = vmatprep.subr.mxu0 %v3376
    %3557 = vmatpush1.msra.mxu0 %v3375
    %3558 = vmatprep.subr.mxu0 %v3380
    %3559 = vmatpush1.msra.mxu0 %v3379
    %3560 = vmatprep.subr.mxu0 %v3384
    %3561 = vmatpush1.msra.mxu0 %v3383
    %3562 = vmatprep.subr.mxu0 %v3388
    %3563 = vmatpush1.msra.mxu0 %v3387
    %3564 = vmatprep.subr.mxu0 %v3392
    %3565 = vmatpush1.msra.mxu0 %v3391
    %3566 = vmatprep.subr.mxu0 %v3396
    %3567 = vmatpush1.msra.mxu0 %v3395
    %3568 = vmatprep.subr.mxu0 %v3400
    %3569 = vmatpush1.msra.mxu0 %v3399
    %3570 = vmatprep.subr.mxu0 %v3404
    %3571 = vmatpush1.msra.mxu0 %v3403
    %3572 = vmatprep.subr.mxu0 %v3408
    %3573 = vmatpush1.msra.mxu0 %v3407
    %3574 = vmatprep.subr.mxu0 %v3412
    %3575 = vmatpush1.msra.mxu0 %v3411
    %3576 = vmatprep.subr.mxu0 %v3416
    %3577 = vmatpush1.msra.mxu0 %v3415
    %3578 = vmatprep.subr.mxu0 %v3420
    %3579 = vmatpush1.msra.mxu0 %v3419
    %3580 = vmatprep.subr.mxu0 %v3424
    %3581 = vmatpush1.msra.mxu0 %v3423
    %3582 = vmatprep.mubr.f32.mxu0 %v3295
    %3583 = vmatmul.mubr.f32.gmra.mrb[0].mxu0 %v3294
    %v3584 = vpop.f32.mrb[0].mxu0
    %v3585 = vadd.f32 %v3438, %v3584
    %v3586 = vpop.f32.mrb[0].mxu0
    %v3587 = vadd.f32 %v3442, %v3586
    %3588 = vdwg.mxu0
    %v3589 = vxor.u32 %v3514, 2147483648
    %v3590 = vmul.f32 %v3589, 1.442695
    %v3591 = vpow.pop %v3590
    %v3592 = vadd.f32 %v3591, 1.0
    %v3593 = vrcp.pop %v3592
    %v3594 = vmul.f32 1.0, %v3593
    %v3595 = vxor.u32 %v3516, 2147483648
    %v3596 = vmul.f32 %v3595, 1.442695
    %v3597 = vpow.pop %v3596
    %v3598 = vadd.f32 %v3597, 1.0
    %v3599 = vrcp.pop %v3598
    %v3600 = vmul.f32 1.0, %v3599
    %v3601 = vtanh.pop %v3585
    %v3602 = vxor.u32 %v3587, 2147483648
    %v3603 = vmul.f32 %v3602, 1.442695
    %v3604 = vpow.pop %v3603
    %v3605 = vadd.f32 %v3604, 1.0
    %v3606 = vrcp.pop %v3605
    %v3607 = vmul.f32 1.0, %v3606
    %v3608 = vmul.f32 %v3600, %v3296
    %v3609 = vmul.f32 %v3594, %v3601
    %v3610 = vadd.f32 %v3608, %v3609
    %v3611 = vtanh.pop %v3610
    %v3612 = vmul.f32 %v3607, %v3611
    %3613 = vst [vmem:[#allocation3] sm:$0xff] %v3610
    %3614 = vst [vmem:[#allocation2] sm:$0xff] %v3612
    %v3615 = vld [vmem:[%s401] sm:$0xff]
    %v3616 = vld [vmem:[%s403] sm:$0xff]
    %v3617 = vld [vmem:[%s405] sm:$0xff]
    %v3618 = vld [vmem:[%s405 + $0x8] sm:$0xff]
    %v3619 = vld [vmem:[%s405 + $0x10] sm:$0xff]
    %v3620 = vld [vmem:[%s405 + $0x18] sm:$0xff]
    %v3621 = vld [vmem:[%s405 + $0x20] sm:$0xff]
    %v3622 = vld [vmem:[%s405 + $0x28] sm:$0xff]
    %v3623 = vld [vmem:[%s405 + $0x30] sm:$0xff]
    %v3624 = vld [vmem:[%s405 + $0x38] sm:$0xff]
    %v3625 = vld [vmem:[%s405 + $0x40] sm:$0xff]
    %v3626 = vld [vmem:[%s405 + $0x48] sm:$0xff]
    %v3627 = vld [vmem:[%s405 + $0x50] sm:$0xff]
    %v3628 = vld [vmem:[%s405 + $0x58] sm:$0xff]
    %v3629 = vld [vmem:[%s405 + $0x60] sm:$0xff]
    %v3630 = vld [vmem:[%s405 + $0x68] sm:$0xff]
    %v3631 = vld [vmem:[%s405 + $0x70] sm:$0xff]
    %v3632 = vld [vmem:[%s405 + $0x78] sm:$0xff]
    %v3633 = vld [vmem:[%s405 + $0x80] sm:$0xff]
    %v3634 = vld [vmem:[%s405 + $0x88] sm:$0xff]
    %v3635 = vld [vmem:[%s405 + $0x90] sm:$0xff]
    %v3636 = vld [vmem:[%s405 + $0x98] sm:$0xff]
    %v3637 = vld [vmem:[%s405 + $0xa0] sm:$0xff]
    %v3638 = vld [vmem:[%s405 + $0xa8] sm:$0xff]
    %v3639 = vld [vmem:[%s405 + $0xb0] sm:$0xff]
    %v3640 = vld [vmem:[%s405 + $0xb8] sm:$0xff]
    %v3641 = vld [vmem:[%s405 + $0xc0] sm:$0xff]
    %v3642 = vld [vmem:[%s405 + $0xc8] sm:$0xff]
    %v3643 = vld [vmem:[%s405 + $0xd0] sm:$0xff]
    %v3644 = vld [vmem:[%s405 + $0xd8] sm:$0xff]
    %v3645 = vld [vmem:[%s405 + $0xe0] sm:$0xff]
    %v3646 = vld [vmem:[%s405 + $0xe8] sm:$0xff]
    %v3647 = vld [vmem:[%s405 + $0xf0] sm:$0xff]
    %v3648 = vld [vmem:[%s405 + $0xf8] sm:$0xff]
    %v3649 = vld [vmem:[%s405 + $0x100] sm:$0xff]
    %v3650 = vld [vmem:[%s405 + $0x108] sm:$0xff]
    %v3651 = vld [vmem:[%s405 + $0x110] sm:$0xff]
    %v3652 = vld [vmem:[%s405 + $0x118] sm:$0xff]
    %v3653 = vld [vmem:[%s405 + $0x120] sm:$0xff]
    %v3654 = vld [vmem:[%s405 + $0x128] sm:$0xff]
    %v3655 = vld [vmem:[%s405 + $0x130] sm:$0xff]
    %v3656 = vld [vmem:[%s405 + $0x138] sm:$0xff]
    %v3657 = vld [vmem:[%s405 + $0x140] sm:$0xff]
    %v3658 = vld [vmem:[%s405 + $0x148] sm:$0xff]
    %v3659 = vld [vmem:[%s405 + $0x150] sm:$0xff]
    %v3660 = vld [vmem:[%s405 + $0x158] sm:$0xff]
    %v3661 = vld [vmem:[%s405 + $0x160] sm:$0xff]
    %v3662 = vld [vmem:[%s405 + $0x168] sm:$0xff]
    %v3663 = vld [vmem:[%s405 + $0x170] sm:$0xff]
    %v3664 = vld [vmem:[%s405 + $0x178] sm:$0xff]
    %v3665 = vld [vmem:[%s405 + $0x180] sm:$0xff]
    %v3666 = vld [vmem:[%s405 + $0x188] sm:$0xff]
    %v3667 = vld [vmem:[%s405 + $0x190] sm:$0xff]
    %v3668 = vld [vmem:[%s405 + $0x198] sm:$0xff]
    %v3669 = vld [vmem:[%s405 + $0x1a0] sm:$0xff]
    %v3670 = vld [vmem:[%s405 + $0x1a8] sm:$0xff]
    %v3671 = vld [vmem:[%s405 + $0x1b0] sm:$0xff]
    %v3672 = vld [vmem:[%s405 + $0x1b8] sm:$0xff]
    %v3673 = vld [vmem:[%s405 + $0x1c0] sm:$0xff]
    %v3674 = vld [vmem:[%s405 + $0x1c8] sm:$0xff]
    %v3675 = vld [vmem:[%s405 + $0x1d0] sm:$0xff]
    %v3676 = vld [vmem:[%s405 + $0x1d8] sm:$0xff]
    %v3677 = vld [vmem:[%s405 + $0x1e0] sm:$0xff]
    %v3678 = vld [vmem:[%s405 + $0x1e8] sm:$0xff]
    %v3679 = vld [vmem:[%s405 + $0x1f0] sm:$0xff]
    %v3680 = vld [vmem:[%s405 + $0x1f8] sm:$0xff]
    %v3681 = vld [vmem:[%s405 + $0x200] sm:$0xff]
    %v3682 = vld [vmem:[%s405 + $0x208] sm:$0xff]
    %v3683 = vld [vmem:[%s405 + $0x210] sm:$0xff]
    %v3684 = vld [vmem:[%s405 + $0x218] sm:$0xff]
    %v3685 = vld [vmem:[%s405 + $0x220] sm:$0xff]
    %v3686 = vld [vmem:[%s405 + $0x228] sm:$0xff]
    %v3687 = vld [vmem:[%s405 + $0x230] sm:$0xff]
    %v3688 = vld [vmem:[%s405 + $0x238] sm:$0xff]
    %v3689 = vld [vmem:[%s405 + $0x240] sm:$0xff]
    %v3690 = vld [vmem:[%s405 + $0x248] sm:$0xff]
    %v3691 = vld [vmem:[%s405 + $0x250] sm:$0xff]
    %v3692 = vld [vmem:[%s405 + $0x258] sm:$0xff]
    %v3693 = vld [vmem:[%s405 + $0x260] sm:$0xff]
    %v3694 = vld [vmem:[%s405 + $0x268] sm:$0xff]
    %v3695 = vld [vmem:[%s405 + $0x270] sm:$0xff]
    %v3696 = vld [vmem:[%s405 + $0x278] sm:$0xff]
    %v3697 = vld [vmem:[%s405 + $0x280] sm:$0xff]
    %v3698 = vld [vmem:[%s405 + $0x288] sm:$0xff]
    %v3699 = vld [vmem:[%s405 + $0x290] sm:$0xff]
    %v3700 = vld [vmem:[%s405 + $0x298] sm:$0xff]
    %v3701 = vld [vmem:[%s405 + $0x2a0] sm:$0xff]
    %v3702 = vld [vmem:[%s405 + $0x2a8] sm:$0xff]
    %v3703 = vld [vmem:[%s405 + $0x2b0] sm:$0xff]
    %v3704 = vld [vmem:[%s405 + $0x2b8] sm:$0xff]
    %v3705 = vld [vmem:[%s405 + $0x2c0] sm:$0xff]
    %v3706 = vld [vmem:[%s405 + $0x2c8] sm:$0xff]
    %v3707 = vld [vmem:[%s405 + $0x2d0] sm:$0xff]
    %v3708 = vld [vmem:[%s405 + $0x2d8] sm:$0xff]
    %v3709 = vld [vmem:[%s405 + $0x2e0] sm:$0xff]
    %v3710 = vld [vmem:[%s405 + $0x2e8] sm:$0xff]
    %v3711 = vld [vmem:[%s405 + $0x2f0] sm:$0xff]
    %v3712 = vld [vmem:[%s405 + $0x2f8] sm:$0xff]
    %v3713 = vld [vmem:[%s405 + $0x300] sm:$0xff]
    %v3714 = vld [vmem:[%s405 + $0x308] sm:$0xff]
    %v3715 = vld [vmem:[%s405 + $0x310] sm:$0xff]
    %v3716 = vld [vmem:[%s405 + $0x318] sm:$0xff]
    %v3717 = vld [vmem:[%s405 + $0x320] sm:$0xff]
    %v3718 = vld [vmem:[%s405 + $0x328] sm:$0xff]
    %v3719 = vld [vmem:[%s405 + $0x330] sm:$0xff]
    %v3720 = vld [vmem:[%s405 + $0x338] sm:$0xff]
    %v3721 = vld [vmem:[%s405 + $0x340] sm:$0xff]
    %v3722 = vld [vmem:[%s405 + $0x348] sm:$0xff]
    %v3723 = vld [vmem:[%s405 + $0x350] sm:$0xff]
    %v3724 = vld [vmem:[%s405 + $0x358] sm:$0xff]
    %v3725 = vld [vmem:[%s405 + $0x360] sm:$0xff]
    %v3726 = vld [vmem:[%s405 + $0x368] sm:$0xff]
    %v3727 = vld [vmem:[%s405 + $0x370] sm:$0xff]
    %v3728 = vld [vmem:[%s405 + $0x378] sm:$0xff]
    %v3729 = vld [vmem:[%s405 + $0x380] sm:$0xff]
    %v3730 = vld [vmem:[%s405 + $0x388] sm:$0xff]
    %v3731 = vld [vmem:[%s405 + $0x390] sm:$0xff]
    %v3732 = vld [vmem:[%s405 + $0x398] sm:$0xff]
    %v3733 = vld [vmem:[%s405 + $0x3a0] sm:$0xff]
    %v3734 = vld [vmem:[%s405 + $0x3a8] sm:$0xff]
    %v3735 = vld [vmem:[%s405 + $0x3b0] sm:$0xff]
    %v3736 = vld [vmem:[%s405 + $0x3b8] sm:$0xff]
    %v3737 = vld [vmem:[%s405 + $0x3c0] sm:$0xff]
    %v3738 = vld [vmem:[%s405 + $0x3c8] sm:$0xff]
    %v3739 = vld [vmem:[%s405 + $0x3d0] sm:$0xff]
    %v3740 = vld [vmem:[%s405 + $0x3d8] sm:$0xff]
    %v3741 = vld [vmem:[%s405 + $0x3e0] sm:$0xff]
    %v3742 = vld [vmem:[%s405 + $0x3e8] sm:$0xff]
    %v3743 = vld [vmem:[%s405 + $0x3f0] sm:$0xff]
    %v3744 = vld [vmem:[%s405 + $0x3f8] sm:$0xff]
    %v3745 = vld [vmem:[%s534] sm:$0xf]
    %v3747 = vlaneseq
    %v3748 = vshrl.u32 %v3747, 7
    %v3749 = vsub.s32 0, %v3748
    %v3750 = vrot.slane %v3745, %v3749
    %v3751 = vlaneseq
    %v3752 = vshrl.u32 %v3751, 7
    %v3753 = vsub.s32 1, %v3752
    %v3754 = vrot.slane %v3745, %v3753
    %v3755 = vlaneseq
    %v3756 = vshrl.u32 %v3755, 7
    %v3757 = vsub.s32 2, %v3756
    %v3758 = vrot.slane %v3745, %v3757
    %v3759 = vlaneseq
    %v3760 = vshrl.u32 %v3759, 7
    %v3761 = vsub.s32 3, %v3760
    %v3762 = vrot.slane %v3745, %v3761
    %3767 = vmatprep.subr.mxu0 %v3618
    %3768 = vmatpush1.msra.mxu0 %v3617
    %3769 = vmatprep.subr.mxu0 %v3622
    %3770 = vmatpush1.msra.mxu0 %v3621
    %3771 = vmatprep.subr.mxu0 %v3626
    %3772 = vmatpush1.msra.mxu0 %v3625
    %3773 = vmatprep.subr.mxu0 %v3630
    %3774 = vmatpush1.msra.mxu0 %v3629
    %3775 = vmatprep.subr.mxu0 %v3634
    %3776 = vmatpush1.msra.mxu0 %v3633
    %3777 = vmatprep.subr.mxu0 %v3638
    %3778 = vmatpush1.msra.mxu0 %v3637
    %3779 = vmatprep.subr.mxu0 %v3642
    %3780 = vmatpush1.msra.mxu0 %v3641
    %3781 = vmatprep.subr.mxu0 %v3646
    %3782 = vmatpush1.msra.mxu0 %v3645
    %3783 = vmatprep.subr.mxu0 %v3650
    %3784 = vmatpush1.msra.mxu0 %v3649
    %3785 = vmatprep.subr.mxu0 %v3654
    %3786 = vmatpush1.msra.mxu0 %v3653
    %3787 = vmatprep.subr.mxu0 %v3658
    %3788 = vmatpush1.msra.mxu0 %v3657
    %3789 = vmatprep.subr.mxu0 %v3662
    %3790 = vmatpush1.msra.mxu0 %v3661
    %3791 = vmatprep.subr.mxu0 %v3666
    %3792 = vmatpush1.msra.mxu0 %v3665
    %3793 = vmatprep.subr.mxu0 %v3670
    %3794 = vmatpush1.msra.mxu0 %v3669
    %3795 = vmatprep.subr.mxu0 %v3674
    %3796 = vmatpush1.msra.mxu0 %v3673
    %3797 = vmatprep.subr.mxu0 %v3678
    %3798 = vmatpush1.msra.mxu0 %v3677
    %3799 = vmatprep.subr.mxu0 %v3682
    %3800 = vmatpush1.msra.mxu0 %v3681
    %3801 = vmatprep.subr.mxu0 %v3686
    %3802 = vmatpush1.msra.mxu0 %v3685
    %3803 = vmatprep.subr.mxu0 %v3690
    %3804 = vmatpush1.msra.mxu0 %v3689
    %3805 = vmatprep.subr.mxu0 %v3694
    %3806 = vmatpush1.msra.mxu0 %v3693
    %3807 = vmatprep.subr.mxu0 %v3698
    %3808 = vmatpush1.msra.mxu0 %v3697
    %3809 = vmatprep.subr.mxu0 %v3702
    %3810 = vmatpush1.msra.mxu0 %v3701
    %3811 = vmatprep.subr.mxu0 %v3706
    %3812 = vmatpush1.msra.mxu0 %v3705
    %3813 = vmatprep.subr.mxu0 %v3710
    %3814 = vmatpush1.msra.mxu0 %v3709
    %3815 = vmatprep.subr.mxu0 %v3714
    %3816 = vmatpush1.msra.mxu0 %v3713
    %3817 = vmatprep.subr.mxu0 %v3718
    %3818 = vmatpush1.msra.mxu0 %v3717
    %3819 = vmatprep.subr.mxu0 %v3722
    %3820 = vmatpush1.msra.mxu0 %v3721
    %3821 = vmatprep.subr.mxu0 %v3726
    %3822 = vmatpush1.msra.mxu0 %v3725
    %3823 = vmatprep.subr.mxu0 %v3730
    %3824 = vmatpush1.msra.mxu0 %v3729
    %3825 = vmatprep.subr.mxu0 %v3734
    %3826 = vmatpush1.msra.mxu0 %v3733
    %3827 = vmatprep.subr.mxu0 %v3738
    %3828 = vmatpush1.msra.mxu0 %v3737
    %3829 = vmatprep.subr.mxu0 %v3742
    %3830 = vmatpush1.msra.mxu0 %v3741
    %3831 = vmatprep.mubr.f32.mxu0 %v3615
    %3832 = vmatmul.mubr.f32.gmra.mrb[0].mxu0 %v3612
    %v3833 = vpop.f32.mrb[0].mxu0
    %v3834 = vadd.f32 %v3750, %v3833
    %v3835 = vpop.f32.mrb[0].mxu0
    %v3836 = vadd.f32 %v3754, %v3835
    %3837 = vdwg.mxu0
    %3838 = vmatprep.subr.mxu0 %v3620
    %3839 = vmatpush1.msra.mxu0 %v3619
    %3840 = vmatprep.subr.mxu0 %v3624
    %3841 = vmatpush1.msra.mxu0 %v3623
    %3842 = vmatprep.subr.mxu0 %v3628
    %3843 = vmatpush1.msra.mxu0 %v3627
    %3844 = vmatprep.subr.mxu0 %v3632
    %3845 = vmatpush1.msra.mxu0 %v3631
    %3846 = vmatprep.subr.mxu0 %v3636
    %3847 = vmatpush1.msra.mxu0 %v3635
    %3848 = vmatprep.subr.mxu0 %v3640
    %3849 = vmatpush1.msra.mxu0 %v3639
    %3850 = vmatprep.subr.mxu0 %v3644
    %3851 = vmatpush1.msra.mxu0 %v3643
    %3852 = vmatprep.subr.mxu0 %v3648
    %3853 = vmatpush1.msra.mxu0 %v3647
    %3854 = vmatprep.subr.mxu0 %v3652
    %3855 = vmatpush1.msra.mxu0 %v3651
    %3856 = vmatprep.subr.mxu0 %v3656
    %3857 = vmatpush1.msra.mxu0 %v3655
    %3858 = vmatprep.subr.mxu0 %v3660
    %3859 = vmatpush1.msra.mxu0 %v3659
    %3860 = vmatprep.subr.mxu0 %v3664
    %3861 = vmatpush1.msra.mxu0 %v3663
    %3862 = vmatprep.subr.mxu0 %v3668
    %3863 = vmatpush1.msra.mxu0 %v3667
    %3864 = vmatprep.subr.mxu0 %v3672
    %3865 = vmatpush1.msra.mxu0 %v3671
    %3866 = vmatprep.subr.mxu0 %v3676
    %3867 = vmatpush1.msra.mxu0 %v3675
    %3868 = vmatprep.subr.mxu0 %v3680
    %3869 = vmatpush1.msra.mxu0 %v3679
    %3870 = vmatprep.subr.mxu0 %v3684
    %3871 = vmatpush1.msra.mxu0 %v3683
    %3872 = vmatprep.subr.mxu0 %v3688
    %3873 = vmatpush1.msra.mxu0 %v3687
    %3874 = vmatprep.subr.mxu0 %v3692
    %3875 = vmatpush1.msra.mxu0 %v3691
    %3876 = vmatprep.subr.mxu0 %v3696
    %3877 = vmatpush1.msra.mxu0 %v3695
    %3878 = vmatprep.subr.mxu0 %v3700
    %3879 = vmatpush1.msra.mxu0 %v3699
    %3880 = vmatprep.subr.mxu0 %v3704
    %3881 = vmatpush1.msra.mxu0 %v3703
    %3882 = vmatprep.subr.mxu0 %v3708
    %3883 = vmatpush1.msra.mxu0 %v3707
    %3884 = vmatprep.subr.mxu0 %v3712
    %3885 = vmatpush1.msra.mxu0 %v3711
    %3886 = vmatprep.subr.mxu0 %v3716
    %3887 = vmatpush1.msra.mxu0 %v3715
    %3888 = vmatprep.subr.mxu0 %v3720
    %3889 = vmatpush1.msra.mxu0 %v3719
    %3890 = vmatprep.subr.mxu0 %v3724
    %3891 = vmatpush1.msra.mxu0 %v3723
    %3892 = vmatprep.subr.mxu0 %v3728
    %3893 = vmatpush1.msra.mxu0 %v3727
    %3894 = vmatprep.subr.mxu0 %v3732
    %3895 = vmatpush1.msra.mxu0 %v3731
    %3896 = vmatprep.subr.mxu0 %v3736
    %3897 = vmatpush1.msra.mxu0 %v3735
    %3898 = vmatprep.subr.mxu0 %v3740
    %3899 = vmatpush1.msra.mxu0 %v3739
    %3900 = vmatprep.subr.mxu0 %v3744
    %3901 = vmatpush1.msra.mxu0 %v3743
    %3902 = vmatprep.mubr.f32.mxu0 %v3615
    %3903 = vmatmul.mubr.f32.gmra.mrb[0].mxu0 %v3612
    %v3904 = vpop.f32.mrb[0].mxu0
    %v3905 = vadd.f32 %v3758, %v3904
    %v3906 = vpop.f32.mrb[0].mxu0
    %v3907 = vadd.f32 %v3762, %v3906
    %3908 = vdwg.mxu0
    %v3909 = vxor.u32 %v3834, 2147483648
    %v3910 = vmul.f32 %v3909, 1.442695
    %v3911 = vpow.pop %v3910
    %v3912 = vadd.f32 %v3911, 1.0
    %v3913 = vrcp.pop %v3912
    %v3914 = vmul.f32 1.0, %v3913
    %v3915 = vxor.u32 %v3836, 2147483648
    %v3916 = vmul.f32 %v3915, 1.442695
    %v3917 = vpow.pop %v3916
    %v3918 = vadd.f32 %v3917, 1.0
    %v3919 = vrcp.pop %v3918
    %v3920 = vmul.f32 1.0, %v3919
    %v3921 = vtanh.pop %v3905
    %v3922 = vxor.u32 %v3907, 2147483648
    %v3923 = vmul.f32 %v3922, 1.442695
    %v3924 = vpow.pop %v3923
    %v3925 = vadd.f32 %v3924, 1.0
    %v3926 = vrcp.pop %v3925
    %v3927 = vmul.f32 1.0, %v3926
    %v3928 = vmul.f32 %v3920, %v3616
    %v3929 = vmul.f32 %v3914, %v3921
    %v3930 = vadd.f32 %v3928, %v3929
    %v3931 = vtanh.pop %v3930
    %v3932 = vmul.f32 %v3927, %v3931
    %3933 = vst [vmem:[%s403] sm:$0xff] %v3930
    %3934 = vst [vmem:[%s401] sm:$0xff] %v3932
    %s3935 = scalar_lea.vmem [#allocation4], 48
    %v3936 = vld [vmem:[%s3935] sm:$0xff]
    %v3937 = vld [vmem:[#allocation2] sm:$0xff]
    %v3938 = vld [vmem:[#allocation3] sm:$0xff]
    %v3939 = vld [vmem:[#allocation7] sm:$0xff]
    %v3940 = vld [vmem:[#allocation7 + $0x8] sm:$0xff]
    %v3941 = vld [vmem:[#allocation7 + $0x10] sm:$0xff]
    %v3942 = vld [vmem:[#allocation7 + $0x18] sm:$0xff]
    %v3943 = vld [vmem:[#allocation7 + $0x20] sm:$0xff]
    %v3944 = vld [vmem:[#allocation7 + $0x28] sm:$0xff]
    %v3945 = vld [vmem:[#allocation7 + $0x30] sm:$0xff]
    %v3946 = vld [vmem:[#allocation7 + $0x38] sm:$0xff]
    %v3947 = vld [vmem:[#allocation7 + $0x40] sm:$0xff]
    %v3948 = vld [vmem:[#allocation7 + $0x48] sm:$0xff]
    %v3949 = vld [vmem:[#allocation7 + $0x50] sm:$0xff]
    %v3950 = vld [vmem:[#allocation7 + $0x58] sm:$0xff]
    %v3951 = vld [vmem:[#allocation7 + $0x60] sm:$0xff]
    %v3952 = vld [vmem:[#allocation7 + $0x68] sm:$0xff]
    %v3953 = vld [vmem:[#allocation7 + $0x70] sm:$0xff]
    %v3954 = vld [vmem:[#allocation7 + $0x78] sm:$0xff]
    %v3955 = vld [vmem:[#allocation7 + $0x80] sm:$0xff]
    %v3956 = vld [vmem:[#allocation7 + $0x88] sm:$0xff]
    %v3957 = vld [vmem:[#allocation7 + $0x90] sm:$0xff]
    %v3958 = vld [vmem:[#allocation7 + $0x98] sm:$0xff]
    %v3959 = vld [vmem:[#allocation7 + $0xa0] sm:$0xff]
    %v3960 = vld [vmem:[#allocation7 + $0xa8] sm:$0xff]
    %v3961 = vld [vmem:[#allocation7 + $0xb0] sm:$0xff]
    %v3962 = vld [vmem:[#allocation7 + $0xb8] sm:$0xff]
    %v3963 = vld [vmem:[#allocation7 + $0xc0] sm:$0xff]
    %v3964 = vld [vmem:[#allocation7 + $0xc8] sm:$0xff]
    %v3965 = vld [vmem:[#allocation7 + $0xd0] sm:$0xff]
    %v3966 = vld [vmem:[#allocation7 + $0xd8] sm:$0xff]
    %v3967 = vld [vmem:[#allocation7 + $0xe0] sm:$0xff]
    %v3968 = vld [vmem:[#allocation7 + $0xe8] sm:$0xff]
    %v3969 = vld [vmem:[#allocation7 + $0xf0] sm:$0xff]
    %v3970 = vld [vmem:[#allocation7 + $0xf8] sm:$0xff]
    %v3971 = vld [vmem:[#allocation7 + $0x100] sm:$0xff]
    %v3972 = vld [vmem:[#allocation7 + $0x108] sm:$0xff]
    %v3973 = vld [vmem:[#allocation7 + $0x110] sm:$0xff]
    %v3974 = vld [vmem:[#allocation7 + $0x118] sm:$0xff]
    %v3975 = vld [vmem:[#allocation7 + $0x120] sm:$0xff]
    %v3976 = vld [vmem:[#allocation7 + $0x128] sm:$0xff]
    %v3977 = vld [vmem:[#allocation7 + $0x130] sm:$0xff]
    %v3978 = vld [vmem:[#allocation7 + $0x138] sm:$0xff]
    %v3979 = vld [vmem:[#allocation7 + $0x140] sm:$0xff]
    %v3980 = vld [vmem:[#allocation7 + $0x148] sm:$0xff]
    %v3981 = vld [vmem:[#allocation7 + $0x150] sm:$0xff]
    %v3982 = vld [vmem:[#allocation7 + $0x158] sm:$0xff]
    %v3983 = vld [vmem:[#allocation7 + $0x160] sm:$0xff]
    %v3984 = vld [vmem:[#allocation7 + $0x168] sm:$0xff]
    %v3985 = vld [vmem:[#allocation7 + $0x170] sm:$0xff]
    %v3986 = vld [vmem:[#allocation7 + $0x178] sm:$0xff]
    %v3987 = vld [vmem:[#allocation7 + $0x180] sm:$0xff]
    %v3988 = vld [vmem:[#allocation7 + $0x188] sm:$0xff]
    %v3989 = vld [vmem:[#allocation7 + $0x190] sm:$0xff]
    %v3990 = vld [vmem:[#allocation7 + $0x198] sm:$0xff]
    %v3991 = vld [vmem:[#allocation7 + $0x1a0] sm:$0xff]
    %v3992 = vld [vmem:[#allocation7 + $0x1a8] sm:$0xff]
    %v3993 = vld [vmem:[#allocation7 + $0x1b0] sm:$0xff]
    %v3994 = vld [vmem:[#allocation7 + $0x1b8] sm:$0xff]
    %v3995 = vld [vmem:[#allocation7 + $0x1c0] sm:$0xff]
    %v3996 = vld [vmem:[#allocation7 + $0x1c8] sm:$0xff]
    %v3997 = vld [vmem:[#allocation7 + $0x1d0] sm:$0xff]
    %v3998 = vld [vmem:[#allocation7 + $0x1d8] sm:$0xff]
    %v3999 = vld [vmem:[#allocation7 + $0x1e0] sm:$0xff]
    %v4000 = vld [vmem:[#allocation7 + $0x1e8] sm:$0xff]
    %v4001 = vld [vmem:[#allocation7 + $0x1f0] sm:$0xff]
    %v4002 = vld [vmem:[#allocation7 + $0x1f8] sm:$0xff]
    %v4003 = vld [vmem:[#allocation7 + $0x200] sm:$0xff]
    %v4004 = vld [vmem:[#allocation7 + $0x208] sm:$0xff]
    %v4005 = vld [vmem:[#allocation7 + $0x210] sm:$0xff]
    %v4006 = vld [vmem:[#allocation7 + $0x218] sm:$0xff]
    %v4007 = vld [vmem:[#allocation7 + $0x220] sm:$0xff]
    %v4008 = vld [vmem:[#allocation7 + $0x228] sm:$0xff]
    %v4009 = vld [vmem:[#allocation7 + $0x230] sm:$0xff]
    %v4010 = vld [vmem:[#allocation7 + $0x238] sm:$0xff]
    %v4011 = vld [vmem:[#allocation7 + $0x240] sm:$0xff]
    %v4012 = vld [vmem:[#allocation7 + $0x248] sm:$0xff]
    %v4013 = vld [vmem:[#allocation7 + $0x250] sm:$0xff]
    %v4014 = vld [vmem:[#allocation7 + $0x258] sm:$0xff]
    %v4015 = vld [vmem:[#allocation7 + $0x260] sm:$0xff]
    %v4016 = vld [vmem:[#allocation7 + $0x268] sm:$0xff]
    %v4017 = vld [vmem:[#allocation7 + $0x270] sm:$0xff]
    %v4018 = vld [vmem:[#allocation7 + $0x278] sm:$0xff]
    %v4019 = vld [vmem:[#allocation7 + $0x280] sm:$0xff]
    %v4020 = vld [vmem:[#allocation7 + $0x288] sm:$0xff]
    %v4021 = vld [vmem:[#allocation7 + $0x290] sm:$0xff]
    %v4022 = vld [vmem:[#allocation7 + $0x298] sm:$0xff]
    %v4023 = vld [vmem:[#allocation7 + $0x2a0] sm:$0xff]
    %v4024 = vld [vmem:[#allocation7 + $0x2a8] sm:$0xff]
    %v4025 = vld [vmem:[#allocation7 + $0x2b0] sm:$0xff]
    %v4026 = vld [vmem:[#allocation7 + $0x2b8] sm:$0xff]
    %v4027 = vld [vmem:[#allocation7 + $0x2c0] sm:$0xff]
    %v4028 = vld [vmem:[#allocation7 + $0x2c8] sm:$0xff]
    %v4029 = vld [vmem:[#allocation7 + $0x2d0] sm:$0xff]
    %v4030 = vld [vmem:[#allocation7 + $0x2d8] sm:$0xff]
    %v4031 = vld [vmem:[#allocation7 + $0x2e0] sm:$0xff]
    %v4032 = vld [vmem:[#allocation7 + $0x2e8] sm:$0xff]
    %v4033 = vld [vmem:[#allocation7 + $0x2f0] sm:$0xff]
    %v4034 = vld [vmem:[#allocation7 + $0x2f8] sm:$0xff]
    %v4035 = vld [vmem:[#allocation7 + $0x300] sm:$0xff]
    %v4036 = vld [vmem:[#allocation7 + $0x308] sm:$0xff]
    %v4037 = vld [vmem:[#allocation7 + $0x310] sm:$0xff]
    %v4038 = vld [vmem:[#allocation7 + $0x318] sm:$0xff]
    %v4039 = vld [vmem:[#allocation7 + $0x320] sm:$0xff]
    %v4040 = vld [vmem:[#allocation7 + $0x328] sm:$0xff]
    %v4041 = vld [vmem:[#allocation7 + $0x330] sm:$0xff]
    %v4042 = vld [vmem:[#allocation7 + $0x338] sm:$0xff]
    %v4043 = vld [vmem:[#allocation7 + $0x340] sm:$0xff]
    %v4044 = vld [vmem:[#allocation7 + $0x348] sm:$0xff]
    %v4045 = vld [vmem:[#allocation7 + $0x350] sm:$0xff]
    %v4046 = vld [vmem:[#allocation7 + $0x358] sm:$0xff]
    %v4047 = vld [vmem:[#allocation7 + $0x360] sm:$0xff]
    %v4048 = vld [vmem:[#allocation7 + $0x368] sm:$0xff]
    %v4049 = vld [vmem:[#allocation7 + $0x370] sm:$0xff]
    %v4050 = vld [vmem:[#allocation7 + $0x378] sm:$0xff]
    %v4051 = vld [vmem:[#allocation7 + $0x380] sm:$0xff]
    %v4052 = vld [vmem:[#allocation7 + $0x388] sm:$0xff]
    %v4053 = vld [vmem:[#allocation7 + $0x390] sm:$0xff]
    %v4054 = vld [vmem:[#allocation7 + $0x398] sm:$0xff]
    %v4055 = vld [vmem:[#allocation7 + $0x3a0] sm:$0xff]
    %v4056 = vld [vmem:[#allocation7 + $0x3a8] sm:$0xff]
    %v4057 = vld [vmem:[#allocation7 + $0x3b0] sm:$0xff]
    %v4058 = vld [vmem:[#allocation7 + $0x3b8] sm:$0xff]
    %v4059 = vld [vmem:[#allocation7 + $0x3c0] sm:$0xff]
    %v4060 = vld [vmem:[#allocation7 + $0x3c8] sm:$0xff]
    %v4061 = vld [vmem:[#allocation7 + $0x3d0] sm:$0xff]
    %v4062 = vld [vmem:[#allocation7 + $0x3d8] sm:$0xff]
    %v4063 = vld [vmem:[#allocation7 + $0x3e0] sm:$0xff]
    %v4064 = vld [vmem:[#allocation7 + $0x3e8] sm:$0xff]
    %v4065 = vld [vmem:[#allocation7 + $0x3f0] sm:$0xff]
    %v4066 = vld [vmem:[#allocation7 + $0x3f8] sm:$0xff]
    %v4067 = vld [vmem:[#allocation9] sm:$0xf]
    %v4069 = vlaneseq
    %v4070 = vshrl.u32 %v4069, 7
    %v4071 = vsub.s32 0, %v4070
    %v4072 = vrot.slane %v4067, %v4071
    %v4073 = vlaneseq
    %v4074 = vshrl.u32 %v4073, 7
    %v4075 = vsub.s32 1, %v4074
    %v4076 = vrot.slane %v4067, %v4075
    %v4077 = vlaneseq
    %v4078 = vshrl.u32 %v4077, 7
    %v4079 = vsub.s32 2, %v4078
    %v4080 = vrot.slane %v4067, %v4079
    %v4081 = vlaneseq
    %v4082 = vshrl.u32 %v4081, 7
    %v4083 = vsub.s32 3, %v4082
    %v4084 = vrot.slane %v4067, %v4083
    %4089 = vmatprep.subr.mxu0 %v3940
    %4090 = vmatpush1.msra.mxu0 %v3939
    %4091 = vmatprep.subr.mxu0 %v3944
    %4092 = vmatpush1.msra.mxu0 %v3943
    %4093 = vmatprep.subr.mxu0 %v3948
    %4094 = vmatpush1.msra.mxu0 %v3947
    %4095 = vmatprep.subr.mxu0 %v3952
    %4096 = vmatpush1.msra.mxu0 %v3951
    %4097 = vmatprep.subr.mxu0 %v3956
    %4098 = vmatpush1.msra.mxu0 %v3955
    %4099 = vmatprep.subr.mxu0 %v3960
    %4100 = vmatpush1.msra.mxu0 %v3959
    %4101 = vmatprep.subr.mxu0 %v3964
    %4102 = vmatpush1.msra.mxu0 %v3963
    %4103 = vmatprep.subr.mxu0 %v3968
    %4104 = vmatpush1.msra.mxu0 %v3967
    %4105 = vmatprep.subr.mxu0 %v3972
    %4106 = vmatpush1.msra.mxu0 %v3971
    %4107 = vmatprep.subr.mxu0 %v3976
    %4108 = vmatpush1.msra.mxu0 %v3975
    %4109 = vmatprep.subr.mxu0 %v3980
    %4110 = vmatpush1.msra.mxu0 %v3979
    %4111 = vmatprep.subr.mxu0 %v3984
    %4112 = vmatpush1.msra.mxu0 %v3983
    %4113 = vmatprep.subr.mxu0 %v3988
    %4114 = vmatpush1.msra.mxu0 %v3987
    %4115 = vmatprep.subr.mxu0 %v3992
    %4116 = vmatpush1.msra.mxu0 %v3991
    %4117 = vmatprep.subr.mxu0 %v3996
    %4118 = vmatpush1.msra.mxu0 %v3995
    %4119 = vmatprep.subr.mxu0 %v4000
    %4120 = vmatpush1.msra.mxu0 %v3999
    %4121 = vmatprep.subr.mxu0 %v4004
    %4122 = vmatpush1.msra.mxu0 %v4003
    %4123 = vmatprep.subr.mxu0 %v4008
    %4124 = vmatpush1.msra.mxu0 %v4007
    %4125 = vmatprep.subr.mxu0 %v4012
    %4126 = vmatpush1.msra.mxu0 %v4011
    %4127 = vmatprep.subr.mxu0 %v4016
    %4128 = vmatpush1.msra.mxu0 %v4015
    %4129 = vmatprep.subr.mxu0 %v4020
    %4130 = vmatpush1.msra.mxu0 %v4019
    %4131 = vmatprep.subr.mxu0 %v4024
    %4132 = vmatpush1.msra.mxu0 %v4023
    %4133 = vmatprep.subr.mxu0 %v4028
    %4134 = vmatpush1.msra.mxu0 %v4027
    %4135 = vmatprep.subr.mxu0 %v4032
    %4136 = vmatpush1.msra.mxu0 %v4031
    %4137 = vmatprep.subr.mxu0 %v4036
    %4138 = vmatpush1.msra.mxu0 %v4035
    %4139 = vmatprep.subr.mxu0 %v4040
    %4140 = vmatpush1.msra.mxu0 %v4039
    %4141 = vmatprep.subr.mxu0 %v4044
    %4142 = vmatpush1.msra.mxu0 %v4043
    %4143 = vmatprep.subr.mxu0 %v4048
    %4144 = vmatpush1.msra.mxu0 %v4047
    %4145 = vmatprep.subr.mxu0 %v4052
    %4146 = vmatpush1.msra.mxu0 %v4051
    %4147 = vmatprep.subr.mxu0 %v4056
    %4148 = vmatpush1.msra.mxu0 %v4055
    %4149 = vmatprep.subr.mxu0 %v4060
    %4150 = vmatpush1.msra.mxu0 %v4059
    %4151 = vmatprep.subr.mxu0 %v4064
    %4152 = vmatpush1.msra.mxu0 %v4063
    %4153 = vmatprep.mubr.f32.mxu0 %v3937
    %4154 = vmatmul.mubr.f32.gmra.mrb[0].mxu0 %v3936
    %v4155 = vpop.f32.mrb[0].mxu0
    %v4156 = vadd.f32 %v4072, %v4155
    %v4157 = vpop.f32.mrb[0].mxu0
    %v4158 = vadd.f32 %v4076, %v4157
    %4159 = vdwg.mxu0
    %4160 = vmatprep.subr.mxu0 %v3942
    %4161 = vmatpush1.msra.mxu0 %v3941
    %4162 = vmatprep.subr.mxu0 %v3946
    %4163 = vmatpush1.msra.mxu0 %v3945
    %4164 = vmatprep.subr.mxu0 %v3950
    %4165 = vmatpush1.msra.mxu0 %v3949
    %4166 = vmatprep.subr.mxu0 %v3954
    %4167 = vmatpush1.msra.mxu0 %v3953
    %4168 = vmatprep.subr.mxu0 %v3958
    %4169 = vmatpush1.msra.mxu0 %v3957
    %4170 = vmatprep.subr.mxu0 %v3962
    %4171 = vmatpush1.msra.mxu0 %v3961
    %4172 = vmatprep.subr.mxu0 %v3966
    %4173 = vmatpush1.msra.mxu0 %v3965
    %4174 = vmatprep.subr.mxu0 %v3970
    %4175 = vmatpush1.msra.mxu0 %v3969
    %4176 = vmatprep.subr.mxu0 %v3974
    %4177 = vmatpush1.msra.mxu0 %v3973
    %4178 = vmatprep.subr.mxu0 %v3978
    %4179 = vmatpush1.msra.mxu0 %v3977
    %4180 = vmatprep.subr.mxu0 %v3982
    %4181 = vmatpush1.msra.mxu0 %v3981
    %4182 = vmatprep.subr.mxu0 %v3986
    %4183 = vmatpush1.msra.mxu0 %v3985
    %4184 = vmatprep.subr.mxu0 %v3990
    %4185 = vmatpush1.msra.mxu0 %v3989
    %4186 = vmatprep.subr.mxu0 %v3994
    %4187 = vmatpush1.msra.mxu0 %v3993
    %4188 = vmatprep.subr.mxu0 %v3998
    %4189 = vmatpush1.msra.mxu0 %v3997
    %4190 = vmatprep.subr.mxu0 %v4002
    %4191 = vmatpush1.msra.mxu0 %v4001
    %4192 = vmatprep.subr.mxu0 %v4006
    %4193 = vmatpush1.msra.mxu0 %v4005
    %4194 = vmatprep.subr.mxu0 %v4010
    %4195 = vmatpush1.msra.mxu0 %v4009
    %4196 = vmatprep.subr.mxu0 %v4014
    %4197 = vmatpush1.msra.mxu0 %v4013
    %4198 = vmatprep.subr.mxu0 %v4018
    %4199 = vmatpush1.msra.mxu0 %v4017
    %4200 = vmatprep.subr.mxu0 %v4022
    %4201 = vmatpush1.msra.mxu0 %v4021
    %4202 = vmatprep.subr.mxu0 %v4026
    %4203 = vmatpush1.msra.mxu0 %v4025
    %4204 = vmatprep.subr.mxu0 %v4030
    %4205 = vmatpush1.msra.mxu0 %v4029
    %4206 = vmatprep.subr.mxu0 %v4034
    %4207 = vmatpush1.msra.mxu0 %v4033
    %4208 = vmatprep.subr.mxu0 %v4038
    %4209 = vmatpush1.msra.mxu0 %v4037
    %4210 = vmatprep.subr.mxu0 %v4042
    %4211 = vmatpush1.msra.mxu0 %v4041
    %4212 = vmatprep.subr.mxu0 %v4046
    %4213 = vmatpush1.msra.mxu0 %v4045
    %4214 = vmatprep.subr.mxu0 %v4050
    %4215 = vmatpush1.msra.mxu0 %v4049
    %4216 = vmatprep.subr.mxu0 %v4054
    %4217 = vmatpush1.msra.mxu0 %v4053
    %4218 = vmatprep.subr.mxu0 %v4058
    %4219 = vmatpush1.msra.mxu0 %v4057
    %4220 = vmatprep.subr.mxu0 %v4062
    %4221 = vmatpush1.msra.mxu0 %v4061
    %4222 = vmatprep.subr.mxu0 %v4066
    %4223 = vmatpush1.msra.mxu0 %v4065
    %4224 = vmatprep.mubr.f32.mxu0 %v3937
    %4225 = vmatmul.mubr.f32.gmra.mrb[0].mxu0 %v3936
    %v4226 = vpop.f32.mrb[0].mxu0
    %v4227 = vadd.f32 %v4080, %v4226
    %v4228 = vpop.f32.mrb[0].mxu0
    %v4229 = vadd.f32 %v4084, %v4228
    %4230 = vdwg.mxu0
    %v4231 = vxor.u32 %v4156, 2147483648
    %v4232 = vmul.f32 %v4231, 1.442695
    %v4233 = vpow.pop %v4232
    %v4234 = vadd.f32 %v4233, 1.0
    %v4235 = vrcp.pop %v4234
    %v4236 = vmul.f32 1.0, %v4235
    %v4237 = vxor.u32 %v4158, 2147483648
    %v4238 = vmul.f32 %v4237, 1.442695
    %v4239 = vpow.pop %v4238
    %v4240 = vadd.f32 %v4239, 1.0
    %v4241 = vrcp.pop %v4240
    %v4242 = vmul.f32 1.0, %v4241
    %v4243 = vtanh.pop %v4227
    %v4244 = vxor.u32 %v4229, 2147483648
    %v4245 = vmul.f32 %v4244, 1.442695
    %v4246 = vpow.pop %v4245
    %v4247 = vadd.f32 %v4246, 1.0
    %v4248 = vrcp.pop %v4247
    %v4249 = vmul.f32 1.0, %v4248
    %v4250 = vmul.f32 %v4242, %v3938
    %v4251 = vmul.f32 %v4236, %v4243
    %v4252 = vadd.f32 %v4250, %v4251
    %v4253 = vtanh.pop %v4252
    %v4254 = vmul.f32 %v4249, %v4253
    %4255 = vst [vmem:[#allocation3] sm:$0xff] %v4252
    %4256 = vst [vmem:[#allocation2] sm:$0xff] %v4254
    %v4257 = vld [vmem:[%s401] sm:$0xff]
    %v4258 = vld [vmem:[%s403] sm:$0xff]
    %v4259 = vld [vmem:[%s405] sm:$0xff]
    %v4260 = vld [vmem:[%s405 + $0x8] sm:$0xff]
    %v4261 = vld [vmem:[%s405 + $0x10] sm:$0xff]
    %v4262 = vld [vmem:[%s405 + $0x18] sm:$0xff]
    %v4263 = vld [vmem:[%s405 + $0x20] sm:$0xff]
    %v4264 = vld [vmem:[%s405 + $0x28] sm:$0xff]
    %v4265 = vld [vmem:[%s405 + $0x30] sm:$0xff]
    %v4266 = vld [vmem:[%s405 + $0x38] sm:$0xff]
    %v4267 = vld [vmem:[%s405 + $0x40] sm:$0xff]
    %v4268 = vld [vmem:[%s405 + $0x48] sm:$0xff]
    %v4269 = vld [vmem:[%s405 + $0x50] sm:$0xff]
    %v4270 = vld [vmem:[%s405 + $0x58] sm:$0xff]
    %v4271 = vld [vmem:[%s405 + $0x60] sm:$0xff]
    %v4272 = vld [vmem:[%s405 + $0x68] sm:$0xff]
    %v4273 = vld [vmem:[%s405 + $0x70] sm:$0xff]
    %v4274 = vld [vmem:[%s405 + $0x78] sm:$0xff]
    %v4275 = vld [vmem:[%s405 + $0x80] sm:$0xff]
    %v4276 = vld [vmem:[%s405 + $0x88] sm:$0xff]
    %v4277 = vld [vmem:[%s405 + $0x90] sm:$0xff]
    %v4278 = vld [vmem:[%s405 + $0x98] sm:$0xff]
    %v4279 = vld [vmem:[%s405 + $0xa0] sm:$0xff]
    %v4280 = vld [vmem:[%s405 + $0xa8] sm:$0xff]
    %v4281 = vld [vmem:[%s405 + $0xb0] sm:$0xff]
    %v4282 = vld [vmem:[%s405 + $0xb8] sm:$0xff]
    %v4283 = vld [vmem:[%s405 + $0xc0] sm:$0xff]
    %v4284 = vld [vmem:[%s405 + $0xc8] sm:$0xff]
    %v4285 = vld [vmem:[%s405 + $0xd0] sm:$0xff]
    %v4286 = vld [vmem:[%s405 + $0xd8] sm:$0xff]
    %v4287 = vld [vmem:[%s405 + $0xe0] sm:$0xff]
    %v4288 = vld [vmem:[%s405 + $0xe8] sm:$0xff]
    %v4289 = vld [vmem:[%s405 + $0xf0] sm:$0xff]
    %v4290 = vld [vmem:[%s405 + $0xf8] sm:$0xff]
    %v4291 = vld [vmem:[%s405 + $0x100] sm:$0xff]
    %v4292 = vld [vmem:[%s405 + $0x108] sm:$0xff]
    %v4293 = vld [vmem:[%s405 + $0x110] sm:$0xff]
    %v4294 = vld [vmem:[%s405 + $0x118] sm:$0xff]
    %v4295 = vld [vmem:[%s405 + $0x120] sm:$0xff]
    %v4296 = vld [vmem:[%s405 + $0x128] sm:$0xff]
    %v4297 = vld [vmem:[%s405 + $0x130] sm:$0xff]
    %v4298 = vld [vmem:[%s405 + $0x138] sm:$0xff]
    %v4299 = vld [vmem:[%s405 + $0x140] sm:$0xff]
    %v4300 = vld [vmem:[%s405 + $0x148] sm:$0xff]
    %v4301 = vld [vmem:[%s405 + $0x150] sm:$0xff]
    %v4302 = vld [vmem:[%s405 + $0x158] sm:$0xff]
    %v4303 = vld [vmem:[%s405 + $0x160] sm:$0xff]
    %v4304 = vld [vmem:[%s405 + $0x168] sm:$0xff]
    %v4305 = vld [vmem:[%s405 + $0x170] sm:$0xff]
    %v4306 = vld [vmem:[%s405 + $0x178] sm:$0xff]
    %v4307 = vld [vmem:[%s405 + $0x180] sm:$0xff]
    %v4308 = vld [vmem:[%s405 + $0x188] sm:$0xff]
    %v4309 = vld [vmem:[%s405 + $0x190] sm:$0xff]
    %v4310 = vld [vmem:[%s405 + $0x198] sm:$0xff]
    %v4311 = vld [vmem:[%s405 + $0x1a0] sm:$0xff]
    %v4312 = vld [vmem:[%s405 + $0x1a8] sm:$0xff]
    %v4313 = vld [vmem:[%s405 + $0x1b0] sm:$0xff]
    %v4314 = vld [vmem:[%s405 + $0x1b8] sm:$0xff]
    %v4315 = vld [vmem:[%s405 + $0x1c0] sm:$0xff]
    %v4316 = vld [vmem:[%s405 + $0x1c8] sm:$0xff]
    %v4317 = vld [vmem:[%s405 + $0x1d0] sm:$0xff]
    %v4318 = vld [vmem:[%s405 + $0x1d8] sm:$0xff]
    %v4319 = vld [vmem:[%s405 + $0x1e0] sm:$0xff]
    %v4320 = vld [vmem:[%s405 + $0x1e8] sm:$0xff]
    %v4321 = vld [vmem:[%s405 + $0x1f0] sm:$0xff]
    %v4322 = vld [vmem:[%s405 + $0x1f8] sm:$0xff]
    %v4323 = vld [vmem:[%s405 + $0x200] sm:$0xff]
    %v4324 = vld [vmem:[%s405 + $0x208] sm:$0xff]
    %v4325 = vld [vmem:[%s405 + $0x210] sm:$0xff]
    %v4326 = vld [vmem:[%s405 + $0x218] sm:$0xff]
    %v4327 = vld [vmem:[%s405 + $0x220] sm:$0xff]
    %v4328 = vld [vmem:[%s405 + $0x228] sm:$0xff]
    %v4329 = vld [vmem:[%s405 + $0x230] sm:$0xff]
    %v4330 = vld [vmem:[%s405 + $0x238] sm:$0xff]
    %v4331 = vld [vmem:[%s405 + $0x240] sm:$0xff]
    %v4332 = vld [vmem:[%s405 + $0x248] sm:$0xff]
    %v4333 = vld [vmem:[%s405 + $0x250] sm:$0xff]
    %v4334 = vld [vmem:[%s405 + $0x258] sm:$0xff]
    %v4335 = vld [vmem:[%s405 + $0x260] sm:$0xff]
    %v4336 = vld [vmem:[%s405 + $0x268] sm:$0xff]
    %v4337 = vld [vmem:[%s405 + $0x270] sm:$0xff]
    %v4338 = vld [vmem:[%s405 + $0x278] sm:$0xff]
    %v4339 = vld [vmem:[%s405 + $0x280] sm:$0xff]
    %v4340 = vld [vmem:[%s405 + $0x288] sm:$0xff]
    %v4341 = vld [vmem:[%s405 + $0x290] sm:$0xff]
    %v4342 = vld [vmem:[%s405 + $0x298] sm:$0xff]
    %v4343 = vld [vmem:[%s405 + $0x2a0] sm:$0xff]
    %v4344 = vld [vmem:[%s405 + $0x2a8] sm:$0xff]
    %v4345 = vld [vmem:[%s405 + $0x2b0] sm:$0xff]
    %v4346 = vld [vmem:[%s405 + $0x2b8] sm:$0xff]
    %v4347 = vld [vmem:[%s405 + $0x2c0] sm:$0xff]
    %v4348 = vld [vmem:[%s405 + $0x2c8] sm:$0xff]
    %v4349 = vld [vmem:[%s405 + $0x2d0] sm:$0xff]
    %v4350 = vld [vmem:[%s405 + $0x2d8] sm:$0xff]
    %v4351 = vld [vmem:[%s405 + $0x2e0] sm:$0xff]
    %v4352 = vld [vmem:[%s405 + $0x2e8] sm:$0xff]
    %v4353 = vld [vmem:[%s405 + $0x2f0] sm:$0xff]
    %v4354 = vld [vmem:[%s405 + $0x2f8] sm:$0xff]
    %v4355 = vld [vmem:[%s405 + $0x300] sm:$0xff]
    %v4356 = vld [vmem:[%s405 + $0x308] sm:$0xff]
    %v4357 = vld [vmem:[%s405 + $0x310] sm:$0xff]
    %v4358 = vld [vmem:[%s405 + $0x318] sm:$0xff]
    %v4359 = vld [vmem:[%s405 + $0x320] sm:$0xff]
    %v4360 = vld [vmem:[%s405 + $0x328] sm:$0xff]
    %v4361 = vld [vmem:[%s405 + $0x330] sm:$0xff]
    %v4362 = vld [vmem:[%s405 + $0x338] sm:$0xff]
    %v4363 = vld [vmem:[%s405 + $0x340] sm:$0xff]
    %v4364 = vld [vmem:[%s405 + $0x348] sm:$0xff]
    %v4365 = vld [vmem:[%s405 + $0x350] sm:$0xff]
    %v4366 = vld [vmem:[%s405 + $0x358] sm:$0xff]
    %v4367 = vld [vmem:[%s405 + $0x360] sm:$0xff]
    %v4368 = vld [vmem:[%s405 + $0x368] sm:$0xff]
    %v4369 = vld [vmem:[%s405 + $0x370] sm:$0xff]
    %v4370 = vld [vmem:[%s405 + $0x378] sm:$0xff]
    %v4371 = vld [vmem:[%s405 + $0x380] sm:$0xff]
    %v4372 = vld [vmem:[%s405 + $0x388] sm:$0xff]
    %v4373 = vld [vmem:[%s405 + $0x390] sm:$0xff]
    %v4374 = vld [vmem:[%s405 + $0x398] sm:$0xff]
    %v4375 = vld [vmem:[%s405 + $0x3a0] sm:$0xff]
    %v4376 = vld [vmem:[%s405 + $0x3a8] sm:$0xff]
    %v4377 = vld [vmem:[%s405 + $0x3b0] sm:$0xff]
    %v4378 = vld [vmem:[%s405 + $0x3b8] sm:$0xff]
    %v4379 = vld [vmem:[%s405 + $0x3c0] sm:$0xff]
    %v4380 = vld [vmem:[%s405 + $0x3c8] sm:$0xff]
    %v4381 = vld [vmem:[%s405 + $0x3d0] sm:$0xff]
    %v4382 = vld [vmem:[%s405 + $0x3d8] sm:$0xff]
    %v4383 = vld [vmem:[%s405 + $0x3e0] sm:$0xff]
    %v4384 = vld [vmem:[%s405 + $0x3e8] sm:$0xff]
    %v4385 = vld [vmem:[%s405 + $0x3f0] sm:$0xff]
    %v4386 = vld [vmem:[%s405 + $0x3f8] sm:$0xff]
    %v4387 = vld [vmem:[%s534] sm:$0xf]
    %v4389 = vlaneseq
    %v4390 = vshrl.u32 %v4389, 7
    %v4391 = vsub.s32 0, %v4390
    %v4392 = vrot.slane %v4387, %v4391
    %v4393 = vlaneseq
    %v4394 = vshrl.u32 %v4393, 7
    %v4395 = vsub.s32 1, %v4394
    %v4396 = vrot.slane %v4387, %v4395
    %v4397 = vlaneseq
    %v4398 = vshrl.u32 %v4397, 7
    %v4399 = vsub.s32 2, %v4398
    %v4400 = vrot.slane %v4387, %v4399
    %v4401 = vlaneseq
    %v4402 = vshrl.u32 %v4401, 7
    %v4403 = vsub.s32 3, %v4402
    %v4404 = vrot.slane %v4387, %v4403
    %4409 = vmatprep.subr.mxu0 %v4260
    %4410 = vmatpush1.msra.mxu0 %v4259
    %4411 = vmatprep.subr.mxu0 %v4264
    %4412 = vmatpush1.msra.mxu0 %v4263
    %4413 = vmatprep.subr.mxu0 %v4268
    %4414 = vmatpush1.msra.mxu0 %v4267
    %4415 = vmatprep.subr.mxu0 %v4272
    %4416 = vmatpush1.msra.mxu0 %v4271
    %4417 = vmatprep.subr.mxu0 %v4276
    %4418 = vmatpush1.msra.mxu0 %v4275
    %4419 = vmatprep.subr.mxu0 %v4280
    %4420 = vmatpush1.msra.mxu0 %v4279
    %4421 = vmatprep.subr.mxu0 %v4284
    %4422 = vmatpush1.msra.mxu0 %v4283
    %4423 = vmatprep.subr.mxu0 %v4288
    %4424 = vmatpush1.msra.mxu0 %v4287
    %4425 = vmatprep.subr.mxu0 %v4292
    %4426 = vmatpush1.msra.mxu0 %v4291
    %4427 = vmatprep.subr.mxu0 %v4296
    %4428 = vmatpush1.msra.mxu0 %v4295
    %4429 = vmatprep.subr.mxu0 %v4300
    %4430 = vmatpush1.msra.mxu0 %v4299
    %4431 = vmatprep.subr.mxu0 %v4304
    %4432 = vmatpush1.msra.mxu0 %v4303
    %4433 = vmatprep.subr.mxu0 %v4308
    %4434 = vmatpush1.msra.mxu0 %v4307
    %4435 = vmatprep.subr.mxu0 %v4312
    %4436 = vmatpush1.msra.mxu0 %v4311
    %4437 = vmatprep.subr.mxu0 %v4316
    %4438 = vmatpush1.msra.mxu0 %v4315
    %4439 = vmatprep.subr.mxu0 %v4320
    %4440 = vmatpush1.msra.mxu0 %v4319
    %4441 = vmatprep.subr.mxu0 %v4324
    %4442 = vmatpush1.msra.mxu0 %v4323
    %4443 = vmatprep.subr.mxu0 %v4328
    %4444 = vmatpush1.msra.mxu0 %v4327
    %4445 = vmatprep.subr.mxu0 %v4332
    %4446 = vmatpush1.msra.mxu0 %v4331
    %4447 = vmatprep.subr.mxu0 %v4336
    %4448 = vmatpush1.msra.mxu0 %v4335
    %4449 = vmatprep.subr.mxu0 %v4340
    %4450 = vmatpush1.msra.mxu0 %v4339
    %4451 = vmatprep.subr.mxu0 %v4344
    %4452 = vmatpush1.msra.mxu0 %v4343
    %4453 = vmatprep.subr.mxu0 %v4348
    %4454 = vmatpush1.msra.mxu0 %v4347
    %4455 = vmatprep.subr.mxu0 %v4352
    %4456 = vmatpush1.msra.mxu0 %v4351
    %4457 = vmatprep.subr.mxu0 %v4356
    %4458 = vmatpush1.msra.mxu0 %v4355
    %4459 = vmatprep.subr.mxu0 %v4360
    %4460 = vmatpush1.msra.mxu0 %v4359
    %4461 = vmatprep.subr.mxu0 %v4364
    %4462 = vmatpush1.msra.mxu0 %v4363
    %4463 = vmatprep.subr.mxu0 %v4368
    %4464 = vmatpush1.msra.mxu0 %v4367
    %4465 = vmatprep.subr.mxu0 %v4372
    %4466 = vmatpush1.msra.mxu0 %v4371
    %4467 = vmatprep.subr.mxu0 %v4376
    %4468 = vmatpush1.msra.mxu0 %v4375
    %4469 = vmatprep.subr.mxu0 %v4380
    %4470 = vmatpush1.msra.mxu0 %v4379
    %4471 = vmatprep.subr.mxu0 %v4384
    %4472 = vmatpush1.msra.mxu0 %v4383
    %4473 = vmatprep.mubr.f32.mxu0 %v4257
    %4474 = vmatmul.mubr.f32.gmra.mrb[0].mxu0 %v4254
    %v4475 = vpop.f32.mrb[0].mxu0
    %v4476 = vadd.f32 %v4392, %v4475
    %v4477 = vpop.f32.mrb[0].mxu0
    %v4478 = vadd.f32 %v4396, %v4477
    %4479 = vdwg.mxu0
    %4480 = vmatprep.subr.mxu0 %v4262
    %4481 = vmatpush1.msra.mxu0 %v4261
    %4482 = vmatprep.subr.mxu0 %v4266
    %4483 = vmatpush1.msra.mxu0 %v4265
    %4484 = vmatprep.subr.mxu0 %v4270
    %4485 = vmatpush1.msra.mxu0 %v4269
    %4486 = vmatprep.subr.mxu0 %v4274
    %4487 = vmatpush1.msra.mxu0 %v4273
    %4488 = vmatprep.subr.mxu0 %v4278
    %4489 = vmatpush1.msra.mxu0 %v4277
    %4490 = vmatprep.subr.mxu0 %v4282
    %4491 = vmatpush1.msra.mxu0 %v4281
    %4492 = vmatprep.subr.mxu0 %v4286
    %4493 = vmatpush1.msra.mxu0 %v4285
    %4494 = vmatprep.subr.mxu0 %v4290
    %4495 = vmatpush1.msra.mxu0 %v4289
    %4496 = vmatprep.subr.mxu0 %v4294
    %4497 = vmatpush1.msra.mxu0 %v4293
    %4498 = vmatprep.subr.mxu0 %v4298
    %4499 = vmatpush1.msra.mxu0 %v4297
    %4500 = vmatprep.subr.mxu0 %v4302
    %4501 = vmatpush1.msra.mxu0 %v4301
    %4502 = vmatprep.subr.mxu0 %v4306
    %4503 = vmatpush1.msra.mxu0 %v4305
    %4504 = vmatprep.subr.mxu0 %v4310
    %4505 = vmatpush1.msra.mxu0 %v4309
    %4506 = vmatprep.subr.mxu0 %v4314
    %4507 = vmatpush1.msra.mxu0 %v4313
    %4508 = vmatprep.subr.mxu0 %v4318
    %4509 = vmatpush1.msra.mxu0 %v4317
    %4510 = vmatprep.subr.mxu0 %v4322
    %4511 = vmatpush1.msra.mxu0 %v4321
    %4512 = vmatprep.subr.mxu0 %v4326
    %4513 = vmatpush1.msra.mxu0 %v4325
    %4514 = vmatprep.subr.mxu0 %v4330
    %4515 = vmatpush1.msra.mxu0 %v4329
    %4516 = vmatprep.subr.mxu0 %v4334
    %4517 = vmatpush1.msra.mxu0 %v4333
    %4518 = vmatprep.subr.mxu0 %v4338
    %4519 = vmatpush1.msra.mxu0 %v4337
    %4520 = vmatprep.subr.mxu0 %v4342
    %4521 = vmatpush1.msra.mxu0 %v4341
    %4522 = vmatprep.subr.mxu0 %v4346
    %4523 = vmatpush1.msra.mxu0 %v4345
    %4524 = vmatprep.subr.mxu0 %v4350
    %4525 = vmatpush1.msra.mxu0 %v4349
    %4526 = vmatprep.subr.mxu0 %v4354
    %4527 = vmatpush1.msra.mxu0 %v4353
    %4528 = vmatprep.subr.mxu0 %v4358
    %4529 = vmatpush1.msra.mxu0 %v4357
    %4530 = vmatprep.subr.mxu0 %v4362
    %4531 = vmatpush1.msra.mxu0 %v4361
    %4532 = vmatprep.subr.mxu0 %v4366
    %4533 = vmatpush1.msra.mxu0 %v4365
    %4534 = vmatprep.subr.mxu0 %v4370
    %4535 = vmatpush1.msra.mxu0 %v4369
    %4536 = vmatprep.subr.mxu0 %v4374
    %4537 = vmatpush1.msra.mxu0 %v4373
    %4538 = vmatprep.subr.mxu0 %v4378
    %4539 = vmatpush1.msra.mxu0 %v4377
    %4540 = vmatprep.subr.mxu0 %v4382
    %4541 = vmatpush1.msra.mxu0 %v4381
    %4542 = vmatprep.subr.mxu0 %v4386
    %4543 = vmatpush1.msra.mxu0 %v4385
    %4544 = vmatprep.mubr.f32.mxu0 %v4257
    %4545 = vmatmul.mubr.f32.gmra.mrb[0].mxu0 %v4254
    %v4546 = vpop.f32.mrb[0].mxu0
    %v4547 = vadd.f32 %v4400, %v4546
    %v4548 = vpop.f32.mrb[0].mxu0
    %v4549 = vadd.f32 %v4404, %v4548
    %4550 = vdwg.mxu0
    %v4551 = vxor.u32 %v4476, 2147483648
    %v4552 = vmul.f32 %v4551, 1.442695
    %v4553 = vpow.pop %v4552
    %v4554 = vadd.f32 %v4553, 1.0
    %v4555 = vrcp.pop %v4554
    %v4556 = vmul.f32 1.0, %v4555
    %v4557 = vxor.u32 %v4478, 2147483648
    %v4558 = vmul.f32 %v4557, 1.442695
    %v4559 = vpow.pop %v4558
    %v4560 = vadd.f32 %v4559, 1.0
    %v4561 = vrcp.pop %v4560
    %v4562 = vmul.f32 1.0, %v4561
    %v4563 = vtanh.pop %v4547
    %v4564 = vxor.u32 %v4549, 2147483648
    %v4565 = vmul.f32 %v4564, 1.442695
    %v4566 = vpow.pop %v4565
    %v4567 = vadd.f32 %v4566, 1.0
    %v4568 = vrcp.pop %v4567
    %v4569 = vmul.f32 1.0, %v4568
    %v4570 = vmul.f32 %v4562, %v4258
    %v4571 = vmul.f32 %v4556, %v4563
    %v4572 = vadd.f32 %v4570, %v4571
    %v4573 = vtanh.pop %v4572
    %v4574 = vmul.f32 %v4569, %v4573
    %4575 = vst [vmem:[%s403] sm:$0xff] %v4572
    %4576 = vst [vmem:[%s401] sm:$0xff] %v4574
    %s4577 = scalar_lea.vmem [#allocation4], 56
    %v4578 = vld [vmem:[%s4577] sm:$0xff]
    %v4579 = vld [vmem:[#allocation2] sm:$0xff]
    %v4580 = vld [vmem:[#allocation3] sm:$0xff]
    %v4581 = vld [vmem:[#allocation7] sm:$0xff]
    %v4582 = vld [vmem:[#allocation7 + $0x8] sm:$0xff]
    %v4583 = vld [vmem:[#allocation7 + $0x10] sm:$0xff]
    %v4584 = vld [vmem:[#allocation7 + $0x18] sm:$0xff]
    %v4585 = vld [vmem:[#allocation7 + $0x20] sm:$0xff]
    %v4586 = vld [vmem:[#allocation7 + $0x28] sm:$0xff]
    %v4587 = vld [vmem:[#allocation7 + $0x30] sm:$0xff]
    %v4588 = vld [vmem:[#allocation7 + $0x38] sm:$0xff]
    %v4589 = vld [vmem:[#allocation7 + $0x40] sm:$0xff]
    %v4590 = vld [vmem:[#allocation7 + $0x48] sm:$0xff]
    %v4591 = vld [vmem:[#allocation7 + $0x50] sm:$0xff]
    %v4592 = vld [vmem:[#allocation7 + $0x58] sm:$0xff]
    %v4593 = vld [vmem:[#allocation7 + $0x60] sm:$0xff]
    %v4594 = vld [vmem:[#allocation7 + $0x68] sm:$0xff]
    %v4595 = vld [vmem:[#allocation7 + $0x70] sm:$0xff]
    %v4596 = vld [vmem:[#allocation7 + $0x78] sm:$0xff]
    %v4597 = vld [vmem:[#allocation7 + $0x80] sm:$0xff]
    %v4598 = vld [vmem:[#allocation7 + $0x88] sm:$0xff]
    %v4599 = vld [vmem:[#allocation7 + $0x90] sm:$0xff]
    %v4600 = vld [vmem:[#allocation7 + $0x98] sm:$0xff]
    %v4601 = vld [vmem:[#allocation7 + $0xa0] sm:$0xff]
    %v4602 = vld [vmem:[#allocation7 + $0xa8] sm:$0xff]
    %v4603 = vld [vmem:[#allocation7 + $0xb0] sm:$0xff]
    %v4604 = vld [vmem:[#allocation7 + $0xb8] sm:$0xff]
    %v4605 = vld [vmem:[#allocation7 + $0xc0] sm:$0xff]
    %v4606 = vld [vmem:[#allocation7 + $0xc8] sm:$0xff]
    %v4607 = vld [vmem:[#allocation7 + $0xd0] sm:$0xff]
    %v4608 = vld [vmem:[#allocation7 + $0xd8] sm:$0xff]
    %v4609 = vld [vmem:[#allocation7 + $0xe0] sm:$0xff]
    %v4610 = vld [vmem:[#allocation7 + $0xe8] sm:$0xff]
    %v4611 = vld [vmem:[#allocation7 + $0xf0] sm:$0xff]
    %v4612 = vld [vmem:[#allocation7 + $0xf8] sm:$0xff]
    %v4613 = vld [vmem:[#allocation7 + $0x100] sm:$0xff]
    %v4614 = vld [vmem:[#allocation7 + $0x108] sm:$0xff]
    %v4615 = vld [vmem:[#allocation7 + $0x110] sm:$0xff]
    %v4616 = vld [vmem:[#allocation7 + $0x118] sm:$0xff]
    %v4617 = vld [vmem:[#allocation7 + $0x120] sm:$0xff]
    %v4618 = vld [vmem:[#allocation7 + $0x128] sm:$0xff]
    %v4619 = vld [vmem:[#allocation7 + $0x130] sm:$0xff]
    %v4620 = vld [vmem:[#allocation7 + $0x138] sm:$0xff]
    %v4621 = vld [vmem:[#allocation7 + $0x140] sm:$0xff]
    %v4622 = vld [vmem:[#allocation7 + $0x148] sm:$0xff]
    %v4623 = vld [vmem:[#allocation7 + $0x150] sm:$0xff]
    %v4624 = vld [vmem:[#allocation7 + $0x158] sm:$0xff]
    %v4625 = vld [vmem:[#allocation7 + $0x160] sm:$0xff]
    %v4626 = vld [vmem:[#allocation7 + $0x168] sm:$0xff]
    %v4627 = vld [vmem:[#allocation7 + $0x170] sm:$0xff]
    %v4628 = vld [vmem:[#allocation7 + $0x178] sm:$0xff]
    %v4629 = vld [vmem:[#allocation7 + $0x180] sm:$0xff]
    %v4630 = vld [vmem:[#allocation7 + $0x188] sm:$0xff]
    %v4631 = vld [vmem:[#allocation7 + $0x190] sm:$0xff]
    %v4632 = vld [vmem:[#allocation7 + $0x198] sm:$0xff]
    %v4633 = vld [vmem:[#allocation7 + $0x1a0] sm:$0xff]
    %v4634 = vld [vmem:[#allocation7 + $0x1a8] sm:$0xff]
    %v4635 = vld [vmem:[#allocation7 + $0x1b0] sm:$0xff]
    %v4636 = vld [vmem:[#allocation7 + $0x1b8] sm:$0xff]
    %v4637 = vld [vmem:[#allocation7 + $0x1c0] sm:$0xff]
    %v4638 = vld [vmem:[#allocation7 + $0x1c8] sm:$0xff]
    %v4639 = vld [vmem:[#allocation7 + $0x1d0] sm:$0xff]
    %v4640 = vld [vmem:[#allocation7 + $0x1d8] sm:$0xff]
    %v4641 = vld [vmem:[#allocation7 + $0x1e0] sm:$0xff]
    %v4642 = vld [vmem:[#allocation7 + $0x1e8] sm:$0xff]
    %v4643 = vld [vmem:[#allocation7 + $0x1f0] sm:$0xff]
    %v4644 = vld [vmem:[#allocation7 + $0x1f8] sm:$0xff]
    %v4645 = vld [vmem:[#allocation7 + $0x200] sm:$0xff]
    %v4646 = vld [vmem:[#allocation7 + $0x208] sm:$0xff]
    %v4647 = vld [vmem:[#allocation7 + $0x210] sm:$0xff]
    %v4648 = vld [vmem:[#allocation7 + $0x218] sm:$0xff]
    %v4649 = vld [vmem:[#allocation7 + $0x220] sm:$0xff]
    %v4650 = vld [vmem:[#allocation7 + $0x228] sm:$0xff]
    %v4651 = vld [vmem:[#allocation7 + $0x230] sm:$0xff]
    %v4652 = vld [vmem:[#allocation7 + $0x238] sm:$0xff]
    %v4653 = vld [vmem:[#allocation7 + $0x240] sm:$0xff]
    %v4654 = vld [vmem:[#allocation7 + $0x248] sm:$0xff]
    %v4655 = vld [vmem:[#allocation7 + $0x250] sm:$0xff]
    %v4656 = vld [vmem:[#allocation7 + $0x258] sm:$0xff]
    %v4657 = vld [vmem:[#allocation7 + $0x260] sm:$0xff]
    %v4658 = vld [vmem:[#allocation7 + $0x268] sm:$0xff]
    %v4659 = vld [vmem:[#allocation7 + $0x270] sm:$0xff]
    %v4660 = vld [vmem:[#allocation7 + $0x278] sm:$0xff]
    %v4661 = vld [vmem:[#allocation7 + $0x280] sm:$0xff]
    %v4662 = vld [vmem:[#allocation7 + $0x288] sm:$0xff]
    %v4663 = vld [vmem:[#allocation7 + $0x290] sm:$0xff]
    %v4664 = vld [vmem:[#allocation7 + $0x298] sm:$0xff]
    %v4665 = vld [vmem:[#allocation7 + $0x2a0] sm:$0xff]
    %v4666 = vld [vmem:[#allocation7 + $0x2a8] sm:$0xff]
    %v4667 = vld [vmem:[#allocation7 + $0x2b0] sm:$0xff]
    %v4668 = vld [vmem:[#allocation7 + $0x2b8] sm:$0xff]
    %v4669 = vld [vmem:[#allocation7 + $0x2c0] sm:$0xff]
    %v4670 = vld [vmem:[#allocation7 + $0x2c8] sm:$0xff]
    %v4671 = vld [vmem:[#allocation7 + $0x2d0] sm:$0xff]
    %v4672 = vld [vmem:[#allocation7 + $0x2d8] sm:$0xff]
    %v4673 = vld [vmem:[#allocation7 + $0x2e0] sm:$0xff]
    %v4674 = vld [vmem:[#allocation7 + $0x2e8] sm:$0xff]
    %v4675 = vld [vmem:[#allocation7 + $0x2f0] sm:$0xff]
    %v4676 = vld [vmem:[#allocation7 + $0x2f8] sm:$0xff]
    %v4677 = vld [vmem:[#allocation7 + $0x300] sm:$0xff]
    %v4678 = vld [vmem:[#allocation7 + $0x308] sm:$0xff]
    %v4679 = vld [vmem:[#allocation7 + $0x310] sm:$0xff]
    %v4680 = vld [vmem:[#allocation7 + $0x318] sm:$0xff]
    %v4681 = vld [vmem:[#allocation7 + $0x320] sm:$0xff]
    %v4682 = vld [vmem:[#allocation7 + $0x328] sm:$0xff]
    %v4683 = vld [vmem:[#allocation7 + $0x330] sm:$0xff]
    %v4684 = vld [vmem:[#allocation7 + $0x338] sm:$0xff]
    %v4685 = vld [vmem:[#allocation7 + $0x340] sm:$0xff]
    %v4686 = vld [vmem:[#allocation7 + $0x348] sm:$0xff]
    %v4687 = vld [vmem:[#allocation7 + $0x350] sm:$0xff]
    %v4688 = vld [vmem:[#allocation7 + $0x358] sm:$0xff]
    %v4689 = vld [vmem:[#allocation7 + $0x360] sm:$0xff]
    %v4690 = vld [vmem:[#allocation7 + $0x368] sm:$0xff]
    %v4691 = vld [vmem:[#allocation7 + $0x370] sm:$0xff]
    %v4692 = vld [vmem:[#allocation7 + $0x378] sm:$0xff]
    %v4693 = vld [vmem:[#allocation7 + $0x380] sm:$0xff]
    %v4694 = vld [vmem:[#allocation7 + $0x388] sm:$0xff]
    %v4695 = vld [vmem:[#allocation7 + $0x390] sm:$0xff]
    %v4696 = vld [vmem:[#allocation7 + $0x398] sm:$0xff]
    %v4697 = vld [vmem:[#allocation7 + $0x3a0] sm:$0xff]
    %v4698 = vld [vmem:[#allocation7 + $0x3a8] sm:$0xff]
    %v4699 = vld [vmem:[#allocation7 + $0x3b0] sm:$0xff]
    %v4700 = vld [vmem:[#allocation7 + $0x3b8] sm:$0xff]
    %v4701 = vld [vmem:[#allocation7 + $0x3c0] sm:$0xff]
    %v4702 = vld [vmem:[#allocation7 + $0x3c8] sm:$0xff]
    %v4703 = vld [vmem:[#allocation7 + $0x3d0] sm:$0xff]
    %v4704 = vld [vmem:[#allocation7 + $0x3d8] sm:$0xff]
    %v4705 = vld [vmem:[#allocation7 + $0x3e0] sm:$0xff]
    %v4706 = vld [vmem:[#allocation7 + $0x3e8] sm:$0xff]
    %v4707 = vld [vmem:[#allocation7 + $0x3f0] sm:$0xff]
    %v4708 = vld [vmem:[#allocation7 + $0x3f8] sm:$0xff]
    %v4709 = vld [vmem:[#allocation9] sm:$0xf]
    %v4711 = vlaneseq
    %v4712 = vshrl.u32 %v4711, 7
    %v4713 = vsub.s32 0, %v4712
    %v4714 = vrot.slane %v4709, %v4713
    %v4715 = vlaneseq
    %v4716 = vshrl.u32 %v4715, 7
    %v4717 = vsub.s32 1, %v4716
    %v4718 = vrot.slane %v4709, %v4717
    %v4719 = vlaneseq
    %v4720 = vshrl.u32 %v4719, 7
    %v4721 = vsub.s32 2, %v4720
    %v4722 = vrot.slane %v4709, %v4721
    %v4723 = vlaneseq
    %v4724 = vshrl.u32 %v4723, 7
    %v4725 = vsub.s32 3, %v4724
    %v4726 = vrot.slane %v4709, %v4725
    %4731 = vmatprep.subr.mxu0 %v4582
    %4732 = vmatpush1.msra.mxu0 %v4581
    %4733 = vmatprep.subr.mxu0 %v4586
    %4734 = vmatpush1.msra.mxu0 %v4585
    %4735 = vmatprep.subr.mxu0 %v4590
    %4736 = vmatpush1.msra.mxu0 %v4589
    %4737 = vmatprep.subr.mxu0 %v4594
    %4738 = vmatpush1.msra.mxu0 %v4593
    %4739 = vmatprep.subr.mxu0 %v4598
    %4740 = vmatpush1.msra.mxu0 %v4597
    %4741 = vmatprep.subr.mxu0 %v4602
    %4742 = vmatpush1.msra.mxu0 %v4601
    %4743 = vmatprep.subr.mxu0 %v4606
    %4744 = vmatpush1.msra.mxu0 %v4605
    %4745 = vmatprep.subr.mxu0 %v4610
    %4746 = vmatpush1.msra.mxu0 %v4609
    %4747 = vmatprep.subr.mxu0 %v4614
    %4748 = vmatpush1.msra.mxu0 %v4613
    %4749 = vmatprep.subr.mxu0 %v4618
    %4750 = vmatpush1.msra.mxu0 %v4617
    %4751 = vmatprep.subr.mxu0 %v4622
    %4752 = vmatpush1.msra.mxu0 %v4621
    %4753 = vmatprep.subr.mxu0 %v4626
    %4754 = vmatpush1.msra.mxu0 %v4625
    %4755 = vmatprep.subr.mxu0 %v4630
    %4756 = vmatpush1.msra.mxu0 %v4629
    %4757 = vmatprep.subr.mxu0 %v4634
    %4758 = vmatpush1.msra.mxu0 %v4633
    %4759 = vmatprep.subr.mxu0 %v4638
    %4760 = vmatpush1.msra.mxu0 %v4637
    %4761 = vmatprep.subr.mxu0 %v4642
    %4762 = vmatpush1.msra.mxu0 %v4641
    %4763 = vmatprep.subr.mxu0 %v4646
    %4764 = vmatpush1.msra.mxu0 %v4645
    %4765 = vmatprep.subr.mxu0 %v4650
    %4766 = vmatpush1.msra.mxu0 %v4649
    %4767 = vmatprep.subr.mxu0 %v4654
    %4768 = vmatpush1.msra.mxu0 %v4653
    %4769 = vmatprep.subr.mxu0 %v4658
    %4770 = vmatpush1.msra.mxu0 %v4657
    %4771 = vmatprep.subr.mxu0 %v4662
    %4772 = vmatpush1.msra.mxu0 %v4661
    %4773 = vmatprep.subr.mxu0 %v4666
    %4774 = vmatpush1.msra.mxu0 %v4665
    %4775 = vmatprep.subr.mxu0 %v4670
    %4776 = vmatpush1.msra.mxu0 %v4669
    %4777 = vmatprep.subr.mxu0 %v4674
    %4778 = vmatpush1.msra.mxu0 %v4673
    %4779 = vmatprep.subr.mxu0 %v4678
    %4780 = vmatpush1.msra.mxu0 %v4677
    %4781 = vmatprep.subr.mxu0 %v4682
    %4782 = vmatpush1.msra.mxu0 %v4681
    %4783 = vmatprep.subr.mxu0 %v4686
    %4784 = vmatpush1.msra.mxu0 %v4685
    %4785 = vmatprep.subr.mxu0 %v4690
    %4786 = vmatpush1.msra.mxu0 %v4689
    %4787 = vmatprep.subr.mxu0 %v4694
    %4788 = vmatpush1.msra.mxu0 %v4693
    %4789 = vmatprep.subr.mxu0 %v4698
    %4790 = vmatpush1.msra.mxu0 %v4697
    %4791 = vmatprep.subr.mxu0 %v4702
    %4792 = vmatpush1.msra.mxu0 %v4701
    %4793 = vmatprep.subr.mxu0 %v4706
    %4794 = vmatpush1.msra.mxu0 %v4705
    %4795 = vmatprep.mubr.f32.mxu0 %v4579
    %4796 = vmatmul.mubr.f32.gmra.mrb[0].mxu0 %v4578
    %v4797 = vpop.f32.mrb[0].mxu0
    %v4798 = vadd.f32 %v4714, %v4797
    %v4799 = vpop.f32.mrb[0].mxu0
    %v4800 = vadd.f32 %v4718, %v4799
    %4801 = vdwg.mxu0
    %4802 = vmatprep.subr.mxu0 %v4584
    %4803 = vmatpush1.msra.mxu0 %v4583
    %4804 = vmatprep.subr.mxu0 %v4588
    %4805 = vmatpush1.msra.mxu0 %v4587
    %4806 = vmatprep.subr.mxu0 %v4592
    %4807 = vmatpush1.msra.mxu0 %v4591
    %4808 = vmatprep.subr.mxu0 %v4596
    %4809 = vmatpush1.msra.mxu0 %v4595
    %4810 = vmatprep.subr.mxu0 %v4600
    %4811 = vmatpush1.msra.mxu0 %v4599
    %4812 = vmatprep.subr.mxu0 %v4604
    %4813 = vmatpush1.msra.mxu0 %v4603
    %4814 = vmatprep.subr.mxu0 %v4608
    %4815 = vmatpush1.msra.mxu0 %v4607
    %4816 = vmatprep.subr.mxu0 %v4612
    %4817 = vmatpush1.msra.mxu0 %v4611
    %4818 = vmatprep.subr.mxu0 %v4616
    %4819 = vmatpush1.msra.mxu0 %v4615
    %4820 = vmatprep.subr.mxu0 %v4620
    %4821 = vmatpush1.msra.mxu0 %v4619
    %4822 = vmatprep.subr.mxu0 %v4624
    %4823 = vmatpush1.msra.mxu0 %v4623
    %4824 = vmatprep.subr.mxu0 %v4628
    %4825 = vmatpush1.msra.mxu0 %v4627
    %4826 = vmatprep.subr.mxu0 %v4632
    %4827 = vmatpush1.msra.mxu0 %v4631
    %4828 = vmatprep.subr.mxu0 %v4636
    %4829 = vmatpush1.msra.mxu0 %v4635
    %4830 = vmatprep.subr.mxu0 %v4640
    %4831 = vmatpush1.msra.mxu0 %v4639
    %4832 = vmatprep.subr.mxu0 %v4644
    %4833 = vmatpush1.msra.mxu0 %v4643
    %4834 = vmatprep.subr.mxu0 %v4648
    %4835 = vmatpush1.msra.mxu0 %v4647
    %4836 = vmatprep.subr.mxu0 %v4652
    %4837 = vmatpush1.msra.mxu0 %v4651
    %4838 = vmatprep.subr.mxu0 %v4656
    %4839 = vmatpush1.msra.mxu0 %v4655
    %4840 = vmatprep.subr.mxu0 %v4660
    %4841 = vmatpush1.msra.mxu0 %v4659
    %4842 = vmatprep.subr.mxu0 %v4664
    %4843 = vmatpush1.msra.mxu0 %v4663
    %4844 = vmatprep.subr.mxu0 %v4668
    %4845 = vmatpush1.msra.mxu0 %v4667
    %4846 = vmatprep.subr.mxu0 %v4672
    %4847 = vmatpush1.msra.mxu0 %v4671
    %4848 = vmatprep.subr.mxu0 %v4676
    %4849 = vmatpush1.msra.mxu0 %v4675
    %4850 = vmatprep.subr.mxu0 %v4680
    %4851 = vmatpush1.msra.mxu0 %v4679
    %4852 = vmatprep.subr.mxu0 %v4684
    %4853 = vmatpush1.msra.mxu0 %v4683
    %4854 = vmatprep.subr.mxu0 %v4688
    %4855 = vmatpush1.msra.mxu0 %v4687
    %4856 = vmatprep.subr.mxu0 %v4692
    %4857 = vmatpush1.msra.mxu0 %v4691
    %4858 = vmatprep.subr.mxu0 %v4696
    %4859 = vmatpush1.msra.mxu0 %v4695
    %4860 = vmatprep.subr.mxu0 %v4700
    %4861 = vmatpush1.msra.mxu0 %v4699
    %4862 = vmatprep.subr.mxu0 %v4704
    %4863 = vmatpush1.msra.mxu0 %v4703
    %4864 = vmatprep.subr.mxu0 %v4708
    %4865 = vmatpush1.msra.mxu0 %v4707
    %4866 = vmatprep.mubr.f32.mxu0 %v4579
    %4867 = vmatmul.mubr.f32.gmra.mrb[0].mxu0 %v4578
    %v4868 = vpop.f32.mrb[0].mxu0
    %v4869 = vadd.f32 %v4722, %v4868
    %v4870 = vpop.f32.mrb[0].mxu0
    %v4871 = vadd.f32 %v4726, %v4870
    %4872 = vdwg.mxu0
    %v4873 = vxor.u32 %v4798, 2147483648
    %v4874 = vmul.f32 %v4873, 1.442695
    %v4875 = vpow.pop %v4874
    %v4876 = vadd.f32 %v4875, 1.0
    %v4877 = vrcp.pop %v4876
    %v4878 = vmul.f32 1.0, %v4877
    %v4879 = vxor.u32 %v4800, 2147483648
    %v4880 = vmul.f32 %v4879, 1.442695
    %v4881 = vpow.pop %v4880
    %v4882 = vadd.f32 %v4881, 1.0
    %v4883 = vrcp.pop %v4882
    %v4884 = vmul.f32 1.0, %v4883
    %v4885 = vtanh.pop %v4869
    %v4886 = vxor.u32 %v4871, 2147483648
    %v4887 = vmul.f32 %v4886, 1.442695
    %v4888 = vpow.pop %v4887
    %v4889 = vadd.f32 %v4888, 1.0
    %v4890 = vrcp.pop %v4889
    %v4891 = vmul.f32 1.0, %v4890
    %v4892 = vmul.f32 %v4884, %v4580
    %v4893 = vmul.f32 %v4878, %v4885
    %v4894 = vadd.f32 %v4892, %v4893
    %v4895 = vtanh.pop %v4894
    %v4896 = vmul.f32 %v4891, %v4895
    %4897 = vst [vmem:[#allocation3] sm:$0xff] %v4894
    %4898 = vst [vmem:[#allocation2] sm:$0xff] %v4896
    %v4899 = vld [vmem:[%s401] sm:$0xff]
    %v4900 = vld [vmem:[%s403] sm:$0xff]
    %v4901 = vld [vmem:[%s405] sm:$0xff]
    %v4902 = vld [vmem:[%s405 + $0x8] sm:$0xff]
    %v4903 = vld [vmem:[%s405 + $0x10] sm:$0xff]
    %v4904 = vld [vmem:[%s405 + $0x18] sm:$0xff]
    %v4905 = vld [vmem:[%s405 + $0x20] sm:$0xff]
    %v4906 = vld [vmem:[%s405 + $0x28] sm:$0xff]
    %v4907 = vld [vmem:[%s405 + $0x30] sm:$0xff]
    %v4908 = vld [vmem:[%s405 + $0x38] sm:$0xff]
    %v4909 = vld [vmem:[%s405 + $0x40] sm:$0xff]
    %v4910 = vld [vmem:[%s405 + $0x48] sm:$0xff]
    %v4911 = vld [vmem:[%s405 + $0x50] sm:$0xff]
    %v4912 = vld [vmem:[%s405 + $0x58] sm:$0xff]
    %v4913 = vld [vmem:[%s405 + $0x60] sm:$0xff]
    %v4914 = vld [vmem:[%s405 + $0x68] sm:$0xff]
    %v4915 = vld [vmem:[%s405 + $0x70] sm:$0xff]
    %v4916 = vld [vmem:[%s405 + $0x78] sm:$0xff]
    %v4917 = vld [vmem:[%s405 + $0x80] sm:$0xff]
    %v4918 = vld [vmem:[%s405 + $0x88] sm:$0xff]
    %v4919 = vld [vmem:[%s405 + $0x90] sm:$0xff]
    %v4920 = vld [vmem:[%s405 + $0x98] sm:$0xff]
    %v4921 = vld [vmem:[%s405 + $0xa0] sm:$0xff]
    %v4922 = vld [vmem:[%s405 + $0xa8] sm:$0xff]
    %v4923 = vld [vmem:[%s405 + $0xb0] sm:$0xff]
    %v4924 = vld [vmem:[%s405 + $0xb8] sm:$0xff]
    %v4925 = vld [vmem:[%s405 + $0xc0] sm:$0xff]
    %v4926 = vld [vmem:[%s405 + $0xc8] sm:$0xff]
    %v4927 = vld [vmem:[%s405 + $0xd0] sm:$0xff]
    %v4928 = vld [vmem:[%s405 + $0xd8] sm:$0xff]
    %v4929 = vld [vmem:[%s405 + $0xe0] sm:$0xff]
    %v4930 = vld [vmem:[%s405 + $0xe8] sm:$0xff]
    %v4931 = vld [vmem:[%s405 + $0xf0] sm:$0xff]
    %v4932 = vld [vmem:[%s405 + $0xf8] sm:$0xff]
    %v4933 = vld [vmem:[%s405 + $0x100] sm:$0xff]
    %v4934 = vld [vmem:[%s405 + $0x108] sm:$0xff]
    %v4935 = vld [vmem:[%s405 + $0x110] sm:$0xff]
    %v4936 = vld [vmem:[%s405 + $0x118] sm:$0xff]
    %v4937 = vld [vmem:[%s405 + $0x120] sm:$0xff]
    %v4938 = vld [vmem:[%s405 + $0x128] sm:$0xff]
    %v4939 = vld [vmem:[%s405 + $0x130] sm:$0xff]
    %v4940 = vld [vmem:[%s405 + $0x138] sm:$0xff]
    %v4941 = vld [vmem:[%s405 + $0x140] sm:$0xff]
    %v4942 = vld [vmem:[%s405 + $0x148] sm:$0xff]
    %v4943 = vld [vmem:[%s405 + $0x150] sm:$0xff]
    %v4944 = vld [vmem:[%s405 + $0x158] sm:$0xff]
    %v4945 = vld [vmem:[%s405 + $0x160] sm:$0xff]
    %v4946 = vld [vmem:[%s405 + $0x168] sm:$0xff]
    %v4947 = vld [vmem:[%s405 + $0x170] sm:$0xff]
    %v4948 = vld [vmem:[%s405 + $0x178] sm:$0xff]
    %v4949 = vld [vmem:[%s405 + $0x180] sm:$0xff]
    %v4950 = vld [vmem:[%s405 + $0x188] sm:$0xff]
    %v4951 = vld [vmem:[%s405 + $0x190] sm:$0xff]
    %v4952 = vld [vmem:[%s405 + $0x198] sm:$0xff]
    %v4953 = vld [vmem:[%s405 + $0x1a0] sm:$0xff]
    %v4954 = vld [vmem:[%s405 + $0x1a8] sm:$0xff]
    %v4955 = vld [vmem:[%s405 + $0x1b0] sm:$0xff]
    %v4956 = vld [vmem:[%s405 + $0x1b8] sm:$0xff]
    %v4957 = vld [vmem:[%s405 + $0x1c0] sm:$0xff]
    %v4958 = vld [vmem:[%s405 + $0x1c8] sm:$0xff]
    %v4959 = vld [vmem:[%s405 + $0x1d0] sm:$0xff]
    %v4960 = vld [vmem:[%s405 + $0x1d8] sm:$0xff]
    %v4961 = vld [vmem:[%s405 + $0x1e0] sm:$0xff]
    %v4962 = vld [vmem:[%s405 + $0x1e8] sm:$0xff]
    %v4963 = vld [vmem:[%s405 + $0x1f0] sm:$0xff]
    %v4964 = vld [vmem:[%s405 + $0x1f8] sm:$0xff]
    %v4965 = vld [vmem:[%s405 + $0x200] sm:$0xff]
    %v4966 = vld [vmem:[%s405 + $0x208] sm:$0xff]
    %v4967 = vld [vmem:[%s405 + $0x210] sm:$0xff]
    %v4968 = vld [vmem:[%s405 + $0x218] sm:$0xff]
    %v4969 = vld [vmem:[%s405 + $0x220] sm:$0xff]
    %v4970 = vld [vmem:[%s405 + $0x228] sm:$0xff]
    %v4971 = vld [vmem:[%s405 + $0x230] sm:$0xff]
    %v4972 = vld [vmem:[%s405 + $0x238] sm:$0xff]
    %v4973 = vld [vmem:[%s405 + $0x240] sm:$0xff]
    %v4974 = vld [vmem:[%s405 + $0x248] sm:$0xff]
    %v4975 = vld [vmem:[%s405 + $0x250] sm:$0xff]
    %v4976 = vld [vmem:[%s405 + $0x258] sm:$0xff]
    %v4977 = vld [vmem:[%s405 + $0x260] sm:$0xff]
    %v4978 = vld [vmem:[%s405 + $0x268] sm:$0xff]
    %v4979 = vld [vmem:[%s405 + $0x270] sm:$0xff]
    %v4980 = vld [vmem:[%s405 + $0x278] sm:$0xff]
    %v4981 = vld [vmem:[%s405 + $0x280] sm:$0xff]
    %v4982 = vld [vmem:[%s405 + $0x288] sm:$0xff]
    %v4983 = vld [vmem:[%s405 + $0x290] sm:$0xff]
    %v4984 = vld [vmem:[%s405 + $0x298] sm:$0xff]
    %v4985 = vld [vmem:[%s405 + $0x2a0] sm:$0xff]
    %v4986 = vld [vmem:[%s405 + $0x2a8] sm:$0xff]
    %v4987 = vld [vmem:[%s405 + $0x2b0] sm:$0xff]
    %v4988 = vld [vmem:[%s405 + $0x2b8] sm:$0xff]
    %v4989 = vld [vmem:[%s405 + $0x2c0] sm:$0xff]
    %v4990 = vld [vmem:[%s405 + $0x2c8] sm:$0xff]
    %v4991 = vld [vmem:[%s405 + $0x2d0] sm:$0xff]
    %v4992 = vld [vmem:[%s405 + $0x2d8] sm:$0xff]
    %v4993 = vld [vmem:[%s405 + $0x2e0] sm:$0xff]
    %v4994 = vld [vmem:[%s405 + $0x2e8] sm:$0xff]
    %v4995 = vld [vmem:[%s405 + $0x2f0] sm:$0xff]
    %v4996 = vld [vmem:[%s405 + $0x2f8] sm:$0xff]
    %v4997 = vld [vmem:[%s405 + $0x300] sm:$0xff]
    %v4998 = vld [vmem:[%s405 + $0x308] sm:$0xff]
    %v4999 = vld [vmem:[%s405 + $0x310] sm:$0xff]
    %v5000 = vld [vmem:[%s405 + $0x318] sm:$0xff]
    %v5001 = vld [vmem:[%s405 + $0x320] sm:$0xff]
    %v5002 = vld [vmem:[%s405 + $0x328] sm:$0xff]
    %v5003 = vld [vmem:[%s405 + $0x330] sm:$0xff]
    %v5004 = vld [vmem:[%s405 + $0x338] sm:$0xff]
    %v5005 = vld [vmem:[%s405 + $0x340] sm:$0xff]
    %v5006 = vld [vmem:[%s405 + $0x348] sm:$0xff]
    %v5007 = vld [vmem:[%s405 + $0x350] sm:$0xff]
    %v5008 = vld [vmem:[%s405 + $0x358] sm:$0xff]
    %v5009 = vld [vmem:[%s405 + $0x360] sm:$0xff]
    %v5010 = vld [vmem:[%s405 + $0x368] sm:$0xff]
    %v5011 = vld [vmem:[%s405 + $0x370] sm:$0xff]
    %v5012 = vld [vmem:[%s405 + $0x378] sm:$0xff]
    %v5013 = vld [vmem:[%s405 + $0x380] sm:$0xff]
    %v5014 = vld [vmem:[%s405 + $0x388] sm:$0xff]
    %v5015 = vld [vmem:[%s405 + $0x390] sm:$0xff]
    %v5016 = vld [vmem:[%s405 + $0x398] sm:$0xff]
    %v5017 = vld [vmem:[%s405 + $0x3a0] sm:$0xff]
    %v5018 = vld [vmem:[%s405 + $0x3a8] sm:$0xff]
    %v5019 = vld [vmem:[%s405 + $0x3b0] sm:$0xff]
    %v5020 = vld [vmem:[%s405 + $0x3b8] sm:$0xff]
    %v5021 = vld [vmem:[%s405 + $0x3c0] sm:$0xff]
    %v5022 = vld [vmem:[%s405 + $0x3c8] sm:$0xff]
    %v5023 = vld [vmem:[%s405 + $0x3d0] sm:$0xff]
    %v5024 = vld [vmem:[%s405 + $0x3d8] sm:$0xff]
    %v5025 = vld [vmem:[%s405 + $0x3e0] sm:$0xff]
    %v5026 = vld [vmem:[%s405 + $0x3e8] sm:$0xff]
    %v5027 = vld [vmem:[%s405 + $0x3f0] sm:$0xff]
    %v5028 = vld [vmem:[%s405 + $0x3f8] sm:$0xff]
    %v5029 = vld [vmem:[%s534] sm:$0xf]
    %v5031 = vlaneseq
    %v5032 = vshrl.u32 %v5031, 7
    %v5033 = vsub.s32 0, %v5032
    %v5034 = vrot.slane %v5029, %v5033
    %v5035 = vlaneseq
    %v5036 = vshrl.u32 %v5035, 7
    %v5037 = vsub.s32 1, %v5036
    %v5038 = vrot.slane %v5029, %v5037
    %v5039 = vlaneseq
    %v5040 = vshrl.u32 %v5039, 7
    %v5041 = vsub.s32 2, %v5040
    %v5042 = vrot.slane %v5029, %v5041
    %v5043 = vlaneseq
    %v5044 = vshrl.u32 %v5043, 7
    %v5045 = vsub.s32 3, %v5044
    %v5046 = vrot.slane %v5029, %v5045
    %5051 = vmatprep.subr.mxu0 %v4902
    %5052 = vmatpush1.msra.mxu0 %v4901
    %5053 = vmatprep.subr.mxu0 %v4906
    %5054 = vmatpush1.msra.mxu0 %v4905
    %5055 = vmatprep.subr.mxu0 %v4910
    %5056 = vmatpush1.msra.mxu0 %v4909
    %5057 = vmatprep.subr.mxu0 %v4914
    %5058 = vmatpush1.msra.mxu0 %v4913
    %5059 = vmatprep.subr.mxu0 %v4918
    %5060 = vmatpush1.msra.mxu0 %v4917
    %5061 = vmatprep.subr.mxu0 %v4922
    %5062 = vmatpush1.msra.mxu0 %v4921
    %5063 = vmatprep.subr.mxu0 %v4926
    %5064 = vmatpush1.msra.mxu0 %v4925
    %5065 = vmatprep.subr.mxu0 %v4930
    %5066 = vmatpush1.msra.mxu0 %v4929
    %5067 = vmatprep.subr.mxu0 %v4934
    %5068 = vmatpush1.msra.mxu0 %v4933
    %5069 = vmatprep.subr.mxu0 %v4938
    %5070 = vmatpush1.msra.mxu0 %v4937
    %5071 = vmatprep.subr.mxu0 %v4942
    %5072 = vmatpush1.msra.mxu0 %v4941
    %5073 = vmatprep.subr.mxu0 %v4946
    %5074 = vmatpush1.msra.mxu0 %v4945
    %5075 = vmatprep.subr.mxu0 %v4950
    %5076 = vmatpush1.msra.mxu0 %v4949
    %5077 = vmatprep.subr.mxu0 %v4954
    %5078 = vmatpush1.msra.mxu0 %v4953
    %5079 = vmatprep.subr.mxu0 %v4958
    %5080 = vmatpush1.msra.mxu0 %v4957
    %5081 = vmatprep.subr.mxu0 %v4962
    %5082 = vmatpush1.msra.mxu0 %v4961
    %5083 = vmatprep.subr.mxu0 %v4966
    %5084 = vmatpush1.msra.mxu0 %v4965
    %5085 = vmatprep.subr.mxu0 %v4970
    %5086 = vmatpush1.msra.mxu0 %v4969
    %5087 = vmatprep.subr.mxu0 %v4974
    %5088 = vmatpush1.msra.mxu0 %v4973
    %5089 = vmatprep.subr.mxu0 %v4978
    %5090 = vmatpush1.msra.mxu0 %v4977
    %5091 = vmatprep.subr.mxu0 %v4982
    %5092 = vmatpush1.msra.mxu0 %v4981
    %5093 = vmatprep.subr.mxu0 %v4986
    %5094 = vmatpush1.msra.mxu0 %v4985
    %5095 = vmatprep.subr.mxu0 %v4990
    %5096 = vmatpush1.msra.mxu0 %v4989
    %5097 = vmatprep.subr.mxu0 %v4994
    %5098 = vmatpush1.msra.mxu0 %v4993
    %5099 = vmatprep.subr.mxu0 %v4998
    %5100 = vmatpush1.msra.mxu0 %v4997
    %5101 = vmatprep.subr.mxu0 %v5002
    %5102 = vmatpush1.msra.mxu0 %v5001
    %5103 = vmatprep.subr.mxu0 %v5006
    %5104 = vmatpush1.msra.mxu0 %v5005
    %5105 = vmatprep.subr.mxu0 %v5010
    %5106 = vmatpush1.msra.mxu0 %v5009
    %5107 = vmatprep.subr.mxu0 %v5014
    %5108 = vmatpush1.msra.mxu0 %v5013
    %5109 = vmatprep.subr.mxu0 %v5018
    %5110 = vmatpush1.msra.mxu0 %v5017
    %5111 = vmatprep.subr.mxu0 %v5022
    %5112 = vmatpush1.msra.mxu0 %v5021
    %5113 = vmatprep.subr.mxu0 %v5026
    %5114 = vmatpush1.msra.mxu0 %v5025
    %5115 = vmatprep.mubr.f32.mxu0 %v4899
    %5116 = vmatmul.mubr.f32.gmra.mrb[0].mxu0 %v4896
    %v5117 = vpop.f32.mrb[0].mxu0
    %v5118 = vadd.f32 %v5034, %v5117
    %v5119 = vpop.f32.mrb[0].mxu0
    %v5120 = vadd.f32 %v5038, %v5119
    %5121 = vdwg.mxu0
    %5122 = vmatprep.subr.mxu0 %v4904
    %5123 = vmatpush1.msra.mxu0 %v4903
    %5124 = vmatprep.subr.mxu0 %v4908
    %5125 = vmatpush1.msra.mxu0 %v4907
    %5126 = vmatprep.subr.mxu0 %v4912
    %5127 = vmatpush1.msra.mxu0 %v4911
    %5128 = vmatprep.subr.mxu0 %v4916
    %5129 = vmatpush1.msra.mxu0 %v4915
    %5130 = vmatprep.subr.mxu0 %v4920
    %5131 = vmatpush1.msra.mxu0 %v4919
    %5132 = vmatprep.subr.mxu0 %v4924
    %5133 = vmatpush1.msra.mxu0 %v4923
    %5134 = vmatprep.subr.mxu0 %v4928
    %5135 = vmatpush1.msra.mxu0 %v4927
    %5136 = vmatprep.subr.mxu0 %v4932
    %5137 = vmatpush1.msra.mxu0 %v4931
    %5138 = vmatprep.subr.mxu0 %v4936
    %5139 = vmatpush1.msra.mxu0 %v4935
    %5140 = vmatprep.subr.mxu0 %v4940
    %5141 = vmatpush1.msra.mxu0 %v4939
    %5142 = vmatprep.subr.mxu0 %v4944
    %5143 = vmatpush1.msra.mxu0 %v4943
    %5144 = vmatprep.subr.mxu0 %v4948
    %5145 = vmatpush1.msra.mxu0 %v4947
    %5146 = vmatprep.subr.mxu0 %v4952
    %5147 = vmatpush1.msra.mxu0 %v4951
    %5148 = vmatprep.subr.mxu0 %v4956
    %5149 = vmatpush1.msra.mxu0 %v4955
    %5150 = vmatprep.subr.mxu0 %v4960
    %5151 = vmatpush1.msra.mxu0 %v4959
    %5152 = vmatprep.subr.mxu0 %v4964
    %5153 = vmatpush1.msra.mxu0 %v4963
    %5154 = vmatprep.subr.mxu0 %v4968
    %5155 = vmatpush1.msra.mxu0 %v4967
    %5156 = vmatprep.subr.mxu0 %v4972
    %5157 = vmatpush1.msra.mxu0 %v4971
    %5158 = vmatprep.subr.mxu0 %v4976
    %5159 = vmatpush1.msra.mxu0 %v4975
    %5160 = vmatprep.subr.mxu0 %v4980
    %5161 = vmatpush1.msra.mxu0 %v4979
    %5162 = vmatprep.subr.mxu0 %v4984
    %5163 = vmatpush1.msra.mxu0 %v4983
    %5164 = vmatprep.subr.mxu0 %v4988
    %5165 = vmatpush1.msra.mxu0 %v4987
    %5166 = vmatprep.subr.mxu0 %v4992
    %5167 = vmatpush1.msra.mxu0 %v4991
    %5168 = vmatprep.subr.mxu0 %v4996
    %5169 = vmatpush1.msra.mxu0 %v4995
    %5170 = vmatprep.subr.mxu0 %v5000
    %5171 = vmatpush1.msra.mxu0 %v4999
    %5172 = vmatprep.subr.mxu0 %v5004
    %5173 = vmatpush1.msra.mxu0 %v5003
    %5174 = vmatprep.subr.mxu0 %v5008
    %5175 = vmatpush1.msra.mxu0 %v5007
    %5176 = vmatprep.subr.mxu0 %v5012
    %5177 = vmatpush1.msra.mxu0 %v5011
    %5178 = vmatprep.subr.mxu0 %v5016
    %5179 = vmatpush1.msra.mxu0 %v5015
    %5180 = vmatprep.subr.mxu0 %v5020
    %5181 = vmatpush1.msra.mxu0 %v5019
    %5182 = vmatprep.subr.mxu0 %v5024
    %5183 = vmatpush1.msra.mxu0 %v5023
    %5184 = vmatprep.subr.mxu0 %v5028
    %5185 = vmatpush1.msra.mxu0 %v5027
    %5186 = vmatprep.mubr.f32.mxu0 %v4899
    %5187 = vmatmul.mubr.f32.gmra.mrb[0].mxu0 %v4896
    %v5188 = vpop.f32.mrb[0].mxu0
    %v5189 = vadd.f32 %v5042, %v5188
    %v5190 = vpop.f32.mrb[0].mxu0
    %v5191 = vadd.f32 %v5046, %v5190
    %5192 = vdwg.mxu0
    %v5193 = vxor.u32 %v5118, 2147483648
    %v5194 = vmul.f32 %v5193, 1.442695
    %v5195 = vpow.pop %v5194
    %v5196 = vadd.f32 %v5195, 1.0
    %v5197 = vrcp.pop %v5196
    %v5198 = vmul.f32 1.0, %v5197
    %v5199 = vxor.u32 %v5120, 2147483648
    %v5200 = vmul.f32 %v5199, 1.442695
    %v5201 = vpow.pop %v5200
    %v5202 = vadd.f32 %v5201, 1.0
    %v5203 = vrcp.pop %v5202
    %v5204 = vmul.f32 1.0, %v5203
    %v5205 = vtanh.pop %v5189
    %v5206 = vxor.u32 %v5191, 2147483648
    %v5207 = vmul.f32 %v5206, 1.442695
    %v5208 = vpow.pop %v5207
    %v5209 = vadd.f32 %v5208, 1.0
    %v5210 = vrcp.pop %v5209
    %v5211 = vmul.f32 1.0, %v5210
    %v5212 = vmul.f32 %v5204, %v4900
    %v5213 = vmul.f32 %v5198, %v5205
    %v5214 = vadd.f32 %v5212, %v5213
    %v5215 = vtanh.pop %v5214
    %v5216 = vmul.f32 %v5211, %v5215
    %5217 = vst [vmem:[%s403] sm:$0xff] %v5214
    %5218 = vst [vmem:[%s401] sm:$0xff] %v5216
    %v5219 = vld [vmem:[%s401] sm:$0xff]
    %v5220 = vld [vmem:[#allocation10] sm:$0xff]
    %v5221 = vld [vmem:[#allocation10 + $0x8] sm:$0xff]
    %v5222 = vld [vmem:[#allocation10 + $0x10] sm:$0xff]
    %v5223 = vld [vmem:[#allocation10 + $0x18] sm:$0xff]
    %v5224 = vld [vmem:[#allocation10 + $0x20] sm:$0xff]
    %v5225 = vld [vmem:[#allocation10 + $0x28] sm:$0xff]
    %v5226 = vld [vmem:[#allocation10 + $0x30] sm:$0xff]
    %v5227 = vld [vmem:[#allocation10 + $0x38] sm:$0xff]
    %v5228 = vld [vmem:[#allocation10 + $0x40] sm:$0xff]
    %v5229 = vld [vmem:[#allocation10 + $0x48] sm:$0xff]
    %v5230 = vld [vmem:[#allocation10 + $0x50] sm:$0xff]
    %v5231 = vld [vmem:[#allocation10 + $0x58] sm:$0xff]
    %v5232 = vld [vmem:[#allocation10 + $0x60] sm:$0xff]
    %v5233 = vld [vmem:[#allocation10 + $0x68] sm:$0xff]
    %v5234 = vld [vmem:[#allocation10 + $0x70] sm:$0xff]
    %v5235 = vld [vmem:[#allocation10 + $0x78] sm:$0xff]
    %v5236 = vld [vmem:[%s4] sm:$0x1]
    %v5238 = vlaneseq
    %v5239 = vshrl.u32 %v5238, 7
    %v5240 = vsub.s32 0, %v5239
    %v5241 = vrot.slane %v5236, %v5240
    %5243 = vmatprep.subr.mxu0 0.0
    %5244 = vmatpush1.msra.mxu0 %v5220
    %5245 = vmatprep.subr.mxu0 0.0
    %5246 = vmatpush1.msra.mxu0 %v5221
    %5247 = vmatprep.subr.mxu0 0.0
    %5248 = vmatpush1.msra.mxu0 %v5222
    %5249 = vmatprep.subr.mxu0 0.0
    %5250 = vmatpush1.msra.mxu0 %v5223
    %5251 = vmatprep.subr.mxu0 0.0
    %5252 = vmatpush1.msra.mxu0 %v5224
    %5253 = vmatprep.subr.mxu0 0.0
    %5254 = vmatpush1.msra.mxu0 %v5225
    %5255 = vmatprep.subr.mxu0 0.0
    %5256 = vmatpush1.msra.mxu0 %v5226
    %5257 = vmatprep.subr.mxu0 0.0
    %5258 = vmatpush1.msra.mxu0 %v5227
    %5259 = vmatprep.subr.mxu0 0.0
    %5260 = vmatpush1.msra.mxu0 %v5228
    %5261 = vmatprep.subr.mxu0 0.0
    %5262 = vmatpush1.msra.mxu0 %v5229
    %5263 = vmatprep.subr.mxu0 0.0
    %5264 = vmatpush1.msra.mxu0 %v5230
    %5265 = vmatprep.subr.mxu0 0.0
    %5266 = vmatpush1.msra.mxu0 %v5231
    %5267 = vmatprep.subr.mxu0 0.0
    %5268 = vmatpush1.msra.mxu0 %v5232
    %5269 = vmatprep.subr.mxu0 0.0
    %5270 = vmatpush1.msra.mxu0 %v5233
    %5271 = vmatprep.subr.mxu0 0.0
    %5272 = vmatpush1.msra.mxu0 %v5234
    %5273 = vmatprep.subr.mxu0 0.0
    %5274 = vmatpush1.msra.mxu0 %v5235
    %5275 = vmatprep.subr.mxu0 0.0
    %5276 = vmatpush1.msra.mxu0 0.0
    %5277 = vmatprep.subr.mxu0 0.0
    %5278 = vmatpush1.msra.mxu0 0.0
    %5279 = vmatprep.subr.mxu0 0.0
    %5280 = vmatpush1.msra.mxu0 0.0
    %5281 = vmatprep.subr.mxu0 0.0
    %5282 = vmatpush1.msra.mxu0 0.0
    %5283 = vmatprep.subr.mxu0 0.0
    %5284 = vmatpush1.msra.mxu0 0.0
    %5285 = vmatprep.subr.mxu0 0.0
    %5286 = vmatpush1.msra.mxu0 0.0
    %5287 = vmatprep.subr.mxu0 0.0
    %5288 = vmatpush1.msra.mxu0 0.0
    %5289 = vmatprep.subr.mxu0 0.0
    %5290 = vmatpush1.msra.mxu0 0.0
    %5291 = vmatprep.subr.mxu0 0.0
    %5292 = vmatpush1.msra.mxu0 0.0
    %5293 = vmatprep.subr.mxu0 0.0
    %5294 = vmatpush1.msra.mxu0 0.0
    %5295 = vmatprep.subr.mxu0 0.0
    %5296 = vmatpush1.msra.mxu0 0.0
    %5297 = vmatprep.subr.mxu0 0.0
    %5298 = vmatpush1.msra.mxu0 0.0
    %5299 = vmatprep.subr.mxu0 0.0
    %5300 = vmatpush1.msra.mxu0 0.0
    %5301 = vmatprep.subr.mxu0 0.0
    %5302 = vmatpush1.msra.mxu0 0.0
    %5303 = vmatprep.subr.mxu0 0.0
    %5304 = vmatpush1.msra.mxu0 0.0
    %5305 = vmatprep.subr.mxu0 0.0
    %5306 = vmatpush1.msra.mxu0 0.0
    %5307 = vmatprep.mubr.f32.mxu0 0.0
    %5308 = vmatmul.mubr.f32.gmra.mrb[0].mxu0 %v5219
    %v5309 = vpop.f32.mrb[0].mxu0
    %v5310 = vadd.f32 %v5241, %v5309
    %v5311 = vpop.f32.mrb[0].mxu0
    %5312 = vdwg.mxu0
    %v5313 = vxor.u32 %v5310, 2147483648
    %v5314 = vmul.f32 %v5313, 1.442695
    %v5315 = vpow.pop %v5314
    %v5316 = vadd.f32 %v5315, 1.0
    %v5317 = vrcp.pop %v5316
    %v5318 = vmul.f32 1.0, %v5317
    %5319 = vst [vmem:[#allocation12] sm:$0xff] %v5318
    // Predicated region
    $region38: #{tpu_custom_call.1} parent=1 // pred_check
      _
    $region39: #{tpu_custom_call.1} parent=1 // pred_check_branch
      %5321 = sbr.rel (0) target = $region41
    $region40: #{tpu_custom_call.1} parent=1 // pred_region
      %s5323 = ssub.s32 128, 128
      %5324 = vsyncadd [#allocation6], %s5323
      %s5326 = sshll.u32 [#allocation12], 4
      %s5327 = int_to_ptr.vmem [resolvable:$true] %s5326
      %5329 = dma.vmem_to_hbm [thread:$0]  %s5327, 128, %s5, [#allocation6]
    $region41: #{tpu_custom_call.1} parent=1 // pred_fallthru
      _
    // Predicated region
    $region42: #{tpu_custom_call.1} parent=1 // pred_check
      _
    $region43: #{tpu_custom_call.1} parent=1 // pred_check_branch
      %5331 = sbr.rel (0) target = $region45
    $region44: #{tpu_custom_call.1} parent=1 // pred_region
      %5332 = dma.done [#allocation6], 128
    $region45: #{tpu_custom_call.1} parent=1 // pred_fallthru
      _
    %5333 = vsyncpa [#allocation5], 1
    %5334 = vsyncpa [#allocation8], 1
    %5335 = vsyncpa [#allocation11], 1
    %5336 = vsyncpa [#allocation6], 1

</llo_original>
